<compile_context>
chip_gen: v6e
topology: v6e:2x2x1
jax: 0.10.0
libtpu: 0.0.40
codegen_flags: <defaults>
</compile_context>

<pallas_src>
import math
import numpy as np

import jax
import jax.numpy as jnp
from jax.experimental import pallas as pl
from jax.experimental.pallas import tpu as pltpu


# ----------------------------------------------------------------------------
# helpers
# ----------------------------------------------------------------------------
def _full_block_spec(shape):
    nd = len(shape)
    return pl.BlockSpec(shape, lambda *_, nd=nd: (0,) * nd)


def _ln_rows(x, g, b, eps=1e-5):
    mu = jnp.mean(x, axis=-1, keepdims=True)
    var = jnp.mean((x - mu) ** 2, axis=-1, keepdims=True)
    return (x - mu) * jax.lax.rsqrt(var + eps) * g + b


def _erf_pos(z):
    # Abramowitz & Stegun 7.1.26, |err| < 1.5e-7; avoids relying on an erf
    # lowering inside Mosaic.
    t = 1.0 / (1.0 + 0.3275911 * z)
    poly = t * (0.254829592 + t * (-0.284496736 + t * (1.421413741
                + t * (-1.453152027 + t * 1.061405429))))
    return 1.0 - poly * jnp.exp(-z * z)


def _gelu_exact(x):
    z = jnp.abs(x) * (1.0 / math.sqrt(2.0))
    e = _erf_pos(z)
    return 0.5 * x * (1.0 + jnp.where(x >= 0, e, -e))


# ----------------------------------------------------------------------------
# 1) Fused CDE solve: z0 init + Euler integration over the integer time grid
# ----------------------------------------------------------------------------
def _cde_solve_kernel(B, T, C_in, C_h, n_mid, if_tanh):
    def kernel(x0s_ref, dxdt_ref, iw_ref, ib_ref, w0_ref, b0_ref,
               wm_ref, bm_ref, w4r_ref, b4r_ref, zT_ref):
        # z0 = sum_t Linear(X0[:, t]) = (sum_t X0[:, t]) @ Wi + T * bi
        z = jnp.dot(x0s_ref[...], iw_ref[...],
                    preferred_element_type=jnp.float32) + float(T) * ib_ref[...]

        def cde_step(z, dx):
            h = jnp.dot(z, w0_ref[...],
                        preferred_element_type=jnp.float32) + b0_ref[...]
            h = jnp.maximum(h, 0.0)
            for l in range(n_mid):
                h = jnp.dot(h, wm_ref[l],
                            preferred_element_type=jnp.float32) + bm_ref[l]
                h = jnp.maximum(h, 0.0)
            # one 128-lane matmul for the final layer; columns are pre-ordered
            # as (input channel, hidden) so the channel contraction is a
            # contiguous lane slice.
            f = jnp.dot(h, w4r_ref[...],
                        preferred_element_type=jnp.float32) + b4r_ref[...]
            if if_tanh:
                f = jnp.tanh(f)
            dz = jnp.zeros((B, C_h), jnp.float32)
            for c in range(C_in):
                dz = dz + f[:, c * C_h:(c + 1) * C_h] * dx[:, c:c + 1]
            return z + dz

        # unrolled time loop; z(t) is recorded, final state needs no update.
        for t in range(T - 1):
            zT_ref[t] = z
            z = cde_step(z, dxdt_ref[t])
        zT_ref[T - 1] = z
    return kernel


def cde_solve_pallas(X0, dx_dt, params, cfg):
    # TODO(synk): torchcde.cdeint uses an adaptive torchdiffeq solver; the CDE
    # is integrated here with fixed-step Euler on the integer time grid.
    B, T, C_in = X0.shape
    C_h = cfg["output_channels"]
    L = cfg["hidden_function_layers"]
    fp = params["func"]
    H = fp["w0"].shape[1]

    x0_sum = jnp.sum(X0.astype(jnp.float32), axis=1)             # (B, C_in)
    dxdt_tbc = jnp.transpose(dx_dt.astype(jnp.float32), (1, 0, 2))  # (T, B, C_in)

    ops = (x0_sum, dxdt_tbc,
           params["init_w"], params["init_b"].reshape(1, C_h),
           fp["w0"], fp["b0"].reshape(1, H),
           fp["wm"], fp["bm"].reshape(L, 1, H),
           fp["w4r"], fp["b4r"].reshape(1, C_in * C_h))

    zT_tbc = pl.pallas_call(
        _cde_solve_kernel(B, T, C_in, C_h, L, cfg["if_tanh"]),
        out_shape=jax.ShapeDtypeStruct((T, B, C_h), jnp.float32),
        grid=(1,),
        in_specs=[_full_block_spec(o.shape) for o in ops],
        out_specs=_full_block_spec((T, B, C_h)),
        compiler_params=pltpu.CompilerParams(
            dimension_semantics=("arbitrary",)),
    )(*ops)
    return jnp.transpose(zT_tbc, (1, 0, 2))                      # (B, T, C_h)


# ----------------------------------------------------------------------------
# 2) Fused transformer encoder layer (post-LN, dff=64, GELU, dropout=identity)
#    Input is the PyTorch (S, N, E) layout flattened to (S*N, E), rows = s*N+n.
# ----------------------------------------------------------------------------
def _transformer_layer_kernel(S, N, E, nheads, dff):
    Dh = E // nheads
    scale = 1.0 / math.sqrt(Dh)

    def kernel(x_ref, wq_ref, bq_ref, wk_ref, bk_ref, wv_ref, bv_ref,
               wo_ref, bo_ref, w1_ref, b1_ref, w2_ref, b2_ref,
               g1_ref, be1_ref, g2_ref, be2_ref, o_ref):
        x = x_ref[...]                                            # (S*N, E)
        q = jnp.dot(x, wq_ref[...], preferred_element_type=jnp.float32) + bq_ref[...]
        k = jnp.dot(x, wk_ref[...], preferred_element_type=jnp.float32) + bk_ref[...]
        v = jnp.dot(x, wv_ref[...], preferred_element_type=jnp.float32) + bv_ref[...]

        # head-block pooling / broadcast matrices built with iota: per-head
        # score reduction and weight broadcast without any lane reshapes.
        e_row = jax.lax.broadcasted_iota(jnp.int32, (E, nheads), 0)
        h_col = jax.lax.broadcasted_iota(jnp.int32, (E, nheads), 1)
        pool = jnp.logical_and(e_row >= h_col * Dh,
                               e_row < (h_col + 1) * Dh).astype(jnp.float32)
        h_row = jax.lax.broadcasted_iota(jnp.int32, (nheads, E), 0)
        e_col = jax.lax.broadcasted_iota(jnp.int32, (nheads, E), 1)
        spread = jnp.logical_and(e_col >= h_row * Dh,
                                 e_col < (h_row + 1) * Dh).astype(jnp.float32)

        q_s = [q[s * N:(s + 1) * N, :] for s in range(S)]
        k_s = [k[s * N:(s + 1) * N, :] for s in range(S)]
        v_s = [v[s * N:(s + 1) * N, :] for s in range(S)]

        attn_rows = []
        for s in range(S):
            sc = [jnp.dot(q_s[s] * k_s[t], pool,
                          preferred_element_type=jnp.float32) * scale
                  for t in range(S)]                              # (N, nheads) each
            m = sc[0]
            for t in range(1, S):
                m = jnp.maximum(m, sc[t])
            es = [jnp.exp(c - m) for c in sc]
            den = es[0]
            for t in range(1, S):
                den = den + es[t]
            inv = 1.0 / den
            out_s = jnp.zeros((N, E), jnp.float32)
            for t in range(S):
                w_wide = jnp.dot(es[t] * inv, spread,
                                 preferred_element_type=jnp.float32)   # (N, E)
                out_s = out_s + w_wide * v_s[t]
            attn_rows.append(out_s)
        attn = jnp.concatenate(attn_rows, axis=0)                 # (S*N, E)
        attn = jnp.dot(attn, wo_ref[...],
                       preferred_element_type=jnp.float32) + bo_ref[...]

        h1 = _ln_rows(x + attn, g1_ref[...], be1_ref[...])
        ff = jnp.dot(h1, w1_ref[...],
                     preferred_element_type=jnp.float32) + b1_ref[...]
        ff = _gelu_exact(ff)
        ff = jnp.dot(ff, w2_ref[...],
                     preferred_element_type=jnp.float32) + b2_ref[...]
        o_ref[...] = _ln_rows(h1 + ff, g2_ref[...], be2_ref[...])
    return kernel


def transformer_layer_pallas(x_flat, p, S, N, E, nheads, dff=64):
    # TODO(synk): get_torch_trans is not defined in the source file; it is
    # implemented as the standard CSDI helper (1-layer post-LN
    # nn.TransformerEncoderLayer, dff=64, GELU, eval-mode dropout).
    ops = (x_flat.astype(jnp.float32),
           p["w_q"], p["b_q"].reshape(1, E),
           p["w_k"], p["b_k"].reshape(1, E),
           p["w_v"], p["b_v"].reshape(1, E),
           p["w_out"], p["b_out"].reshape(1, E),
           p["w_ff1"], p["b_ff1"].reshape(1, dff),
           p["w_ff2"], p["b_ff2"].reshape(1, E),
           p["ln1_g"].reshape(1, E), p["ln1_b"].reshape(1, E),
           p["ln2_g"].reshape(1, E), p["ln2_b"].reshape(1, E))
    return pl.pallas_call(
        _transformer_layer_kernel(S, N, E, nheads, dff),
        out_shape=jax.ShapeDtypeStruct((S * N, E), jnp.float32),
        grid=(1,),
        in_specs=[_full_block_spec(o.shape) for o in ops],
        out_specs=_full_block_spec((S * N, E)),
    )(*ops)


# ----------------------------------------------------------------------------
# 3) Fused reconstruction head: t_recon_mlp on concat(f1, f2)
# ----------------------------------------------------------------------------
def _recon_head_kernel():
    def kernel(f1_ref, f2_ref, w1a_ref, w1b_ref, b1_ref, w2_ref, b2_ref, o_ref):
        h = (jnp.dot(f1_ref[...], w1a_ref[...], preferred_element_type=jnp.float32)
             + jnp.dot(f2_ref[...], w1b_ref[...], preferred_element_type=jnp.float32)
             + b1_ref[...])
        h = jnp.maximum(h, 0.0)
        o_ref[...] = jnp.dot(h, w2_ref[...],
                             preferred_element_type=jnp.float32) + b2_ref[...]
    return kernel


def recon_head_pallas(f1, f2, params):
    N = f1.shape[0]
    C_in = params["trec_w2"].shape[1]
    ops = (f1, f2, params["trec_w1a"], params["trec_w1b"],
           params["trec_b1"].reshape(1, -1),
           params["trec_w2"], params["trec_b2"].reshape(1, -1))
    return pl.pallas_call(
        _recon_head_kernel(),
        out_shape=jax.ShapeDtypeStruct((N, C_in), jnp.float32),
        grid=(1,),
        in_specs=[_full_block_spec(o.shape) for o in ops],
        out_specs=_full_block_spec((N, C_in)),
    )(*ops)


# ----------------------------------------------------------------------------
# 4) Fused physics-informed path: CDEFunction MLP + dX/dt contraction +
#    d_adaptor + d_recon_mlp, two outputs from one launch.
# ----------------------------------------------------------------------------
def _sysder_kernel(N, C_in, C_h, n_mid, if_tanh):
    def kernel(z_ref, dx_ref, w0_ref, b0_ref, wm_ref, bm_ref, w4_ref, b4_ref,
               aw1_ref, ab1_ref, aw2_ref, ab2_ref,
               rw1_ref, rb1_ref, rw2_ref, rb2_ref, sd_ref, rsd_ref):
        h = jnp.dot(z_ref[...], w0_ref[...],
                    preferred_element_type=jnp.float32) + b0_ref[...]
        h = jnp.maximum(h, 0.0)
        for l in range(n_mid):
            h = jnp.dot(h, wm_ref[l],
                        preferred_element_type=jnp.float32) + bm_ref[l]
            h = jnp.maximum(h, 0.0)
        f = jnp.dot(h, w4_ref[...],
                    preferred_element_type=jnp.float32) + b4_ref[...]   # (N, C_h*C_in)
        if if_tanh:
            f = jnp.tanh(f)
        dx = dx_ref[...]                                                # (N, C_in)
        # Reference semantics: .view(N, C_h, C_in) -> flat reshape to
        # (B, T, C_in, C_h) -> permute(0,1,3,2) -> matmul(dx).  Combined, the
        # flat columns are re-grouped as (C_in, C_h) and contracted over C_in.
        sd = jnp.zeros((N, C_h), jnp.float32)
        for i in range(C_in):
            sd = sd + f[:, i * C_h:(i + 1) * C_h] * dx[:, i:i + 1]
        # d_adaptor
        a = jnp.dot(sd, aw1_ref[...],
                    preferred_element_type=jnp.float32) + ab1_ref[...]
        a = jnp.maximum(a, 0.0)
        sysd = jnp.dot(a, aw2_ref[...],
                       preferred_element_type=jnp.float32) + ab2_ref[...]
        sd_ref[...] = sysd
        # d_recon_mlp
        r = jnp.dot(sysd, rw1_ref[...],
                    preferred_element_type=jnp.float32) + rb1_ref[...]
        r = jnp.maximum(r, 0.0)
        rsd_ref[...] = jnp.dot(r, rw2_ref[...],
                               preferred_element_type=jnp.float32) + rb2_ref[...]
    return kernel


def sysder_pallas(zT_flat, dx_flat, params, cfg):
    N, C_h = zT_flat.shape
    C_in = dx_flat.shape[1]
    L = cfg["hidden_function_layers"]
    fp = params["func"]
    H = fp["w0"].shape[1]
    ops = (zT_flat, dx_flat.astype(jnp.float32),
           fp["w0"], fp["b0"].reshape(1, H),
           fp["wm"], fp["bm"].reshape(L, 1, H),
           fp["w4"], fp["b4"].reshape(1, C_in * C_h),
           params["dadp_w1"], params["dadp_b1"].reshape(1, -1),
           params["dadp_w2"], params["dadp_b2"].reshape(1, -1),
           params["drec_w1"], params["drec_b1"].reshape(1, -1),
           params["drec_w2"], params["drec_b2"].reshape(1, -1))
    return pl.pallas_call(
        _sysder_kernel(N, C_in, C_h, L, cfg["if_tanh"]),
        out_shape=(jax.ShapeDtypeStruct((N, C_in), jnp.float32),
                   jax.ShapeDtypeStruct((N, C_in), jnp.float32)),
        grid=(1,),
        in_specs=[_full_block_spec(o.shape) for o in ops],
        out_specs=(_full_block_spec((N, C_in)), _full_block_spec((N, C_in))),
    )(*ops)


# ----------------------------------------------------------------------------
# Cubic spline (torchcde.CubicSpline) evaluated at the integer knot times.
# ----------------------------------------------------------------------------
def cubic_spline_eval_and_derivative(coeffs):
    a, b, two_c, three_d = jnp.split(coeffs, 4, axis=-1)
    x_right = a + b + 0.5 * two_c + three_d / 3.0           # value at right knot
    X0 = jnp.concatenate([a[:, :1], x_right], axis=1)       # (B, T, C_in)
    d_right = b + two_c + three_d                            # derivative at frac=1
    dx_dt = jnp.concatenate([b[:, :1], d_right], axis=1)     # (B, T, C_in)
    return X0, dx_dt


# ----------------------------------------------------------------------------
# PIR_NCDE forward
# ----------------------------------------------------------------------------
def pir_ncde_forward(params, cfg, x, coeffs, step):
    B, T, C_in = x.shape
    C_out = cfg["output_channels"]
    if_ts = cfg["if_ts"]

    X0, dx_dt = cubic_spline_eval_and_derivative(coeffs)         # (B, T, C_in)

    # fused z0 initialization + Euler CDE integration
    zT = cde_solve_pallas(X0, dx_dt, params, cfg)                # (B, T, C_out)
    zT_flat = zT.reshape(B * T, C_out)

    tp, sp = params["time_tr"], params["spatial_tr"]
    th, sh = cfg["time_head_num"], cfg["spatial_head_num"]

    # time extractor on zT.permute(0,2,1): (S=B, N=C_out, E=T)
    zT_ct_flat = jnp.transpose(zT, (0, 2, 1)).reshape(B * C_out, T)
    ft_flat = transformer_layer_pallas(zT_ct_flat, tp, S=B, N=C_out, E=T, nheads=th)
    ft_p_flat = jnp.transpose(ft_flat.reshape(B, C_out, T), (0, 2, 1)).reshape(B * T, C_out)
    if if_ts:
        f1 = transformer_layer_pallas(ft_p_flat, sp, S=B, N=T, E=C_out, nheads=sh)
    else:
        f1 = ft_p_flat                                           # (B*T, C_out)

    # spatial extractor on zT: (S=B, N=T, E=C_out)
    fs_flat = transformer_layer_pallas(zT_flat, sp, S=B, N=T, E=C_out, nheads=sh)
    if if_ts:
        fs_ct_flat = jnp.transpose(fs_flat.reshape(B, T, C_out), (0, 2, 1)).reshape(B * C_out, T)
        fst_flat = transformer_layer_pallas(fs_ct_flat, tp, S=B, N=C_out, E=T, nheads=th)
        f2 = jnp.transpose(fst_flat.reshape(B, C_out, T), (0, 2, 1)).reshape(B * T, C_out)
    else:
        f2 = fs_flat                                             # (B*T, C_out)

    # fused t_recon_mlp on concat(features_time_spatial, features_spatial_time)
    recon_flat = recon_head_pallas(f1, f2, params)               # (B*T, C_in)
    recon_time_series = recon_flat.reshape(B, T, C_in)

    # reconstruction loss -> pseudo probabilities -> mask.  The mask is
    # overwritten with ones in the reference, so this branch is dead code for
    # the returned values (XLA DCE removes it); kept in plain jnp for fidelity.
    reconstruction_loss = jnp.mean((recon_time_series - x) ** 2, axis=-1)
    mean_l = jnp.mean(reconstruction_loss, axis=-1, keepdims=True)
    std_l = jnp.std(reconstruction_loss, axis=-1, keepdims=True)   # unbiased=False
    norm_l = (reconstruction_loss - mean_l) / (std_l + 1e-8)
    if step == 1:
        step_weight = 0.0
    else:
        step_weight = 1.0 - 1.0 / np.log(step - 1 + np.e)
    _ = jax.nn.sigmoid(norm_l * step_weight)
    # TODO(synk): torch.bernoulli draw is discarded in the reference (mask is
    # immediately replaced with ones), so no RNG sampling is performed.
    mask = jnp.ones((B, T), jnp.float32)

    # fused physics-informed system-derivative path
    dx_flat = dx_dt.reshape(B * T, C_in)
    sys_flat, recon_sd_flat = sysder_pallas(zT_flat, dx_flat, params, cfg)
    system_derivative = sys_flat.reshape(B, T, C_in)
    recon_system_derivative = recon_sd_flat.reshape(B, T, C_in)

    return (x, recon_time_series, system_derivative, recon_system_derivative,
            mask, zT)


# ----------------------------------------------------------------------------
# Deterministic parameter initialization (shapes from PIR_NCDE.__init__)
# ----------------------------------------------------------------------------
def init_params(key, cfg):
    C_in = cfg["input_channels"]
    T = cfg["window_size"]
    H = cfg["hidden_function"]
    C_out = cfg["output_channels"]
    L = cfg["hidden_function_layers"]
    assert L >= 1, "kernel assumes at least one middle layer"
    keys = iter(jax.random.split(key, 128))

    def lin(fan_in, fan_out):
        k1, k2 = jax.random.split(next(keys))
        bound = 1.0 / math.sqrt(fan_in)
        w = jax.random.uniform(k1, (fan_in, fan_out), jnp.float32, -bound, bound)
        b = jax.random.uniform(k2, (fan_out,), jnp.float32, -bound, bound)
        return w, b

    p = {}
    p["init_w"], p["init_b"] = lin(C_in, C_out)

    w0, b0 = lin(C_out, H)
    wm_list, bm_list = [], []
    for _ in range(L):
        w, b = lin(H, H)
        wm_list.append(w)
        bm_list.append(b)
    w4, b4 = lin(H, C_in * C_out)
    # reorder the final-layer columns from index h*C_in + c to c*C_out + h so
    # the Euler step's contraction over input channels is a contiguous slice.
    w4r = w4.reshape(H, C_out, C_in).transpose(0, 2, 1).reshape(H, C_in * C_out)
    b4r = b4.reshape(C_out, C_in).T.reshape(C_in * C_out)
    p["func"] = {"w0": w0, "b0": b0,
                 "wm": jnp.stack(wm_list), "bm": jnp.stack(bm_list),
                 "w4": w4, "b4": b4, "w4r": w4r, "b4r": b4r}

    def transformer(d_model, dff=64):
        w_q, b_q = lin(d_model, d_model)
        w_k, b_k = lin(d_model, d_model)
        w_v, b_v = lin(d_model, d_model)
        w_out, b_out = lin(d_model, d_model)
        w_ff1, b_ff1 = lin(d_model, dff)
        w_ff2, b_ff2 = lin(dff, d_model)
        return {"w_q": w_q, "b_q": b_q, "w_k": w_k, "b_k": b_k,
                "w_v": w_v, "b_v": b_v, "w_out": w_out, "b_out": b_out,
                "w_ff1": w_ff1, "b_ff1": b_ff1, "w_ff2": w_ff2, "b_ff2": b_ff2,
                "ln1_g": jnp.ones((d_model,), jnp.float32),
                "ln1_b": jnp.zeros((d_model,), jnp.float32),
                "ln2_g": jnp.ones((d_model,), jnp.float32),
                "ln2_b": jnp.zeros((d_model,), jnp.float32)}

    p["time_tr"] = transformer(T)
    p["spatial_tr"] = transformer(C_out)
    trec_w1, p["trec_b1"] = lin(2 * C_out, C_out)
    p["trec_w1a"], p["trec_w1b"] = trec_w1[:C_out], trec_w1[C_out:]
    p["trec_w2"], p["trec_b2"] = lin(C_out, C_in)
    p["drec_w1"], p["drec_b1"] = lin(C_in, 2 * C_in)
    p["drec_w2"], p["drec_b2"] = lin(2 * C_in, C_in)
    p["dadp_w1"], p["dadp_b1"] = lin(C_out, C_in)
    p["dadp_w2"], p["dadp_b2"] = lin(C_in, C_in)
    return p


if __name__ == "__main__":
    cfg = dict(input_channels=4, window_size=8, hidden_function=32,
               output_channels=32, hidden_function_layers=1,
               time_head_num=2, spatial_head_num=4,
               if_tanh=False, if_ts=True)
    B = 2
    key = jax.random.PRNGKey(0)
    kx, kc, kp = jax.random.split(key, 3)
    x = jax.random.normal(kx, (B, cfg["window_size"], cfg["input_channels"]),
                          jnp.float32)
    coeffs = 0.1 * jax.random.normal(
        kc, (B, cfg["window_size"] - 1, 4 * cfg["input_channels"]), jnp.float32)
    params = init_params(kp, cfg)

    fwd = jax.jit(lambda xx, cc: pir_ncde_forward(params, cfg, xx, cc, step=5))
    outs = fwd(x, coeffs)
    outs = jax.block_until_ready(outs)

    x_o, recon_ts, sys_der, recon_sd, mask, zT = outs
    assert recon_ts.shape == (B, cfg["window_size"], cfg["input_channels"])
    assert sys_der.shape == (B, cfg["window_size"], cfg["input_channels"])
    assert recon_sd.shape == (B, cfg["window_size"], cfg["input_channels"])
    assert mask.shape == (B, cfg["window_size"])
    assert zT.shape == (B, cfg["window_size"], cfg["output_channels"])
    assert all(bool(jnp.all(jnp.isfinite(o))) for o in
               (recon_ts, sys_der, recon_sd, mask, zT))
    print("KERNEL_OK")
</pallas_src>

<mosaic_0001>
module attributes {stable_mosaic.version = 11 : i64} {
  func.func @kernel(%arg0: i32, %arg1: memref<16x32xf32, #tpu.memory_space<vmem>>, %arg2: memref<16x4xf32, #tpu.memory_space<vmem>>, %arg3: memref<32x32xf32, #tpu.memory_space<vmem>>, %arg4: memref<1x32xf32, #tpu.memory_space<vmem>>, %arg5: memref<1x32x32xf32, #tpu.memory_space<vmem>>, %arg6: memref<1x1x32xf32, #tpu.memory_space<vmem>>, %arg7: memref<32x128xf32, #tpu.memory_space<vmem>>, %arg8: memref<1x128xf32, #tpu.memory_space<vmem>>, %arg9: memref<32x4xf32, #tpu.memory_space<vmem>>, %arg10: memref<1x4xf32, #tpu.memory_space<vmem>>, %arg11: memref<4x4xf32, #tpu.memory_space<vmem>>, %arg12: memref<1x4xf32, #tpu.memory_space<vmem>>, %arg13: memref<4x8xf32, #tpu.memory_space<vmem>>, %arg14: memref<1x8xf32, #tpu.memory_space<vmem>>, %arg15: memref<8x4xf32, #tpu.memory_space<vmem>>, %arg16: memref<1x4xf32, #tpu.memory_space<vmem>>, %arg17: memref<16x4xf32, #tpu.memory_space<vmem>>, %arg18: memref<16x4xf32, #tpu.memory_space<vmem>>) attributes {dimension_semantics = [#tpu.dimension_semantics<arbitrary>], iteration_bounds = array<i64: 1>, scalar_prefetch = 0 : i64, scratch_operands = 0 : i64, tpu.core_type = #tpu.core_type<tc>, window_params = [{pipeline_mode = #tpu.pipeline_mode<synchronous>, transform_indices = @transform_0, window_bounds = array<i64: 16, 32>}, {pipeline_mode = #tpu.pipeline_mode<synchronous>, transform_indices = @transform_1, window_bounds = array<i64: 16, 4>}, {pipeline_mode = #tpu.pipeline_mode<synchronous>, transform_indices = @transform_2, window_bounds = array<i64: 32, 32>}, {pipeline_mode = #tpu.pipeline_mode<synchronous>, transform_indices = @transform_3, window_bounds = array<i64: 1, 32>}, {pipeline_mode = #tpu.pipeline_mode<synchronous>, transform_indices = @transform_4, window_bounds = array<i64: 1, 32, 32>}, {pipeline_mode = #tpu.pipeline_mode<synchronous>, transform_indices = @transform_5, window_bounds = array<i64: 1, 1, 32>}, {pipeline_mode = #tpu.pipeline_mode<synchronous>, transform_indices = @transform_6, window_bounds = array<i64: 32, 128>}, {pipeline_mode = #tpu.pipeline_mode<synchronous>, transform_indices = @transform_7, window_bounds = array<i64: 1, 128>}, {pipeline_mode = #tpu.pipeline_mode<synchronous>, transform_indices = @transform_8, window_bounds = array<i64: 32, 4>}, {pipeline_mode = #tpu.pipeline_mode<synchronous>, transform_indices = @transform_9, window_bounds = array<i64: 1, 4>}, {pipeline_mode = #tpu.pipeline_mode<synchronous>, transform_indices = @transform_10, window_bounds = array<i64: 4, 4>}, {pipeline_mode = #tpu.pipeline_mode<synchronous>, transform_indices = @transform_11, window_bounds = array<i64: 1, 4>}, {pipeline_mode = #tpu.pipeline_mode<synchronous>, transform_indices = @transform_12, window_bounds = array<i64: 4, 8>}, {pipeline_mode = #tpu.pipeline_mode<synchronous>, transform_indices = @transform_13, window_bounds = array<i64: 1, 8>}, {pipeline_mode = #tpu.pipeline_mode<synchronous>, transform_indices = @transform_14, window_bounds = array<i64: 8, 4>}, {pipeline_mode = #tpu.pipeline_mode<synchronous>, transform_indices = @transform_15, window_bounds = array<i64: 1, 4>}, {pipeline_mode = #tpu.pipeline_mode<synchronous>, transform_indices = @transform_16, window_bounds = array<i64: 16, 4>}, {pipeline_mode = #tpu.pipeline_mode<synchronous>, transform_indices = @transform_17, window_bounds = array<i64: 16, 4>}]} {
    %c0 = arith.constant 0 : index
    %c0_0 = arith.constant 0 : index
    %0 = vector.load %arg1[%c0, %c0_0] : memref<16x32xf32, #tpu.memory_space<vmem>>, vector<16x32xf32>
    %c0_1 = arith.constant 0 : index
    %c0_2 = arith.constant 0 : index
    %1 = vector.load %arg3[%c0_1, %c0_2] : memref<32x32xf32, #tpu.memory_space<vmem>>, vector<32x32xf32>
    %cst = arith.constant dense<0.000000e+00> : vector<16x32xf32>
    %2 = tpu.matmul %0, %1, %cst {dimension_numbers = #tpu.dot_dimension_numbers<[1], [0], [0], [1], [0, 0, 1, 1], [], []>} : vector<16x32xf32>, vector<32x32xf32>, vector<16x32xf32> -> vector<16x32xf32>
    %c0_3 = arith.constant 0 : index
    %c0_4 = arith.constant 0 : index
    %3 = vector.load %arg4[%c0_3, %c0_4] : memref<1x32xf32, #tpu.memory_space<vmem>>, vector<1x32xf32>
    %4 = vector.broadcast %3 : vector<1x32xf32> to vector<16x32xf32>
    %5 = arith.addf %2, %4 : vector<16x32xf32>
    %cst_5 = arith.constant 0.000000e+00 : f32
    %6 = vector.broadcast %cst_5 : f32 to vector<16x32xf32>
    %7 = arith.maximumf %5, %6 : vector<16x32xf32>
    %c0_6 = arith.constant 0 : index
    %c0_7 = arith.constant 0 : index
    %c0_8 = arith.constant 0 : index
    %8 = vector.load %arg5[%c0_6, %c0_7, %c0_8] : memref<1x32x32xf32, #tpu.memory_space<vmem>>, vector<1x32x32xf32>
    %9 = vector.shape_cast %8 : vector<1x32x32xf32> to vector<32x32xf32>
    %cst_9 = arith.constant dense<0.000000e+00> : vector<16x32xf32>
    %10 = tpu.matmul %7, %9, %cst_9 {dimension_numbers = #tpu.dot_dimension_numbers<[1], [0], [0], [1], [0, 0, 1, 1], [], []>} : vector<16x32xf32>, vector<32x32xf32>, vector<16x32xf32> -> vector<16x32xf32>
    %c0_10 = arith.constant 0 : index
    %c0_11 = arith.constant 0 : index
    %c0_12 = arith.constant 0 : index
    %11 = vector.load %arg6[%c0_10, %c0_11, %c0_12] : memref<1x1x32xf32, #tpu.memory_space<vmem>>, vector<1x1x32xf32>
    %12 = vector.shape_cast %11 : vector<1x1x32xf32> to vector<1x32xf32>
    %13 = vector.broadcast %12 : vector<1x32xf32> to vector<16x32xf32>
    %14 = arith.addf %10, %13 : vector<16x32xf32>
    %cst_13 = arith.constant 0.000000e+00 : f32
    %15 = vector.broadcast %cst_13 : f32 to vector<16x32xf32>
    %16 = arith.maximumf %14, %15 : vector<16x32xf32>
    %c0_14 = arith.constant 0 : index
    %c0_15 = arith.constant 0 : index
    %17 = vector.load %arg7[%c0_14, %c0_15] : memref<32x128xf32, #tpu.memory_space<vmem>>, vector<32x128xf32>
    %cst_16 = arith.constant dense<0.000000e+00> : vector<16x128xf32>
    %18 = tpu.matmul %16, %17, %cst_16 {dimension_numbers = #tpu.dot_dimension_numbers<[1], [0], [0], [1], [0, 0, 1, 1], [], []>} : vector<16x32xf32>, vector<32x128xf32>, vector<16x128xf32> -> vector<16x128xf32>
    %c0_17 = arith.constant 0 : index
    %c0_18 = arith.constant 0 : index
    %19 = vector.load %arg8[%c0_17, %c0_18] : memref<1x128xf32, #tpu.memory_space<vmem>>, vector<1x128xf32>
    %20 = vector.broadcast %19 : vector<1x128xf32> to vector<16x128xf32>
    %21 = arith.addf %18, %20 : vector<16x128xf32>
    %c0_19 = arith.constant 0 : index
    %c0_20 = arith.constant 0 : index
    %22 = vector.load %arg2[%c0_19, %c0_20] : memref<16x4xf32, #tpu.memory_space<vmem>>, vector<16x4xf32>
    %cst_21 = arith.constant 0.000000e+00 : f32
    %23 = vector.broadcast %cst_21 : f32 to vector<16x32xf32>
    %24 = vector.extract_strided_slice %21 {offsets = [0, 0], sizes = [16, 32], strides = [1, 1]} : vector<16x128xf32> to vector<16x32xf32>
    %25 = vector.extract_strided_slice %22 {offsets = [0, 0], sizes = [16, 1], strides = [1, 1]} : vector<16x4xf32> to vector<16x1xf32>
    %26 = vector.broadcast %25 : vector<16x1xf32> to vector<16x32xf32>
    %27 = arith.mulf %24, %26 : vector<16x32xf32>
    %28 = arith.addf %23, %27 : vector<16x32xf32>
    %29 = vector.extract_strided_slice %21 {offsets = [0, 32], sizes = [16, 32], strides = [1, 1]} : vector<16x128xf32> to vector<16x32xf32>
    %30 = vector.extract_strided_slice %22 {offsets = [0, 1], sizes = [16, 1], strides = [1, 1]} : vector<16x4xf32> to vector<16x1xf32>
    %31 = vector.broadcast %30 : vector<16x1xf32> to vector<16x32xf32>
    %32 = arith.mulf %29, %31 : vector<16x32xf32>
    %33 = arith.addf %28, %32 : vector<16x32xf32>
    %34 = vector.extract_strided_slice %21 {offsets = [0, 64], sizes = [16, 32], strides = [1, 1]} : vector<16x128xf32> to vector<16x32xf32>
    %35 = vector.extract_strided_slice %22 {offsets = [0, 2], sizes = [16, 1], strides = [1, 1]} : vector<16x4xf32> to vector<16x1xf32>
    %36 = vector.broadcast %35 : vector<16x1xf32> to vector<16x32xf32>
    %37 = arith.mulf %34, %36 : vector<16x32xf32>
    %38 = arith.addf %33, %37 : vector<16x32xf32>
    %39 = vector.extract_strided_slice %21 {offsets = [0, 96], sizes = [16, 32], strides = [1, 1]} : vector<16x128xf32> to vector<16x32xf32>
    %40 = vector.extract_strided_slice %22 {offsets = [0, 3], sizes = [16, 1], strides = [1, 1]} : vector<16x4xf32> to vector<16x1xf32>
    %41 = vector.broadcast %40 : vector<16x1xf32> to vector<16x32xf32>
    %42 = arith.mulf %39, %41 : vector<16x32xf32>
    %43 = arith.addf %38, %42 : vector<16x32xf32>
    %c0_22 = arith.constant 0 : index
    %c0_23 = arith.constant 0 : index
    %44 = vector.load %arg9[%c0_22, %c0_23] : memref<32x4xf32, #tpu.memory_space<vmem>>, vector<32x4xf32>
    %cst_24 = arith.constant dense<0.000000e+00> : vector<16x4xf32>
    %45 = tpu.matmul %43, %44, %cst_24 {dimension_numbers = #tpu.dot_dimension_numbers<[1], [0], [0], [1], [0, 0, 1, 1], [], []>} : vector<16x32xf32>, vector<32x4xf32>, vector<16x4xf32> -> vector<16x4xf32>
    %c0_25 = arith.constant 0 : index
    %c0_26 = arith.constant 0 : index
    %46 = vector.load %arg10[%c0_25, %c0_26] : memref<1x4xf32, #tpu.memory_space<vmem>>, vector<1x4xf32>
    %47 = vector.broadcast %46 : vector<1x4xf32> to vector<16x4xf32>
    %48 = arith.addf %45, %47 : vector<16x4xf32>
    %cst_27 = arith.constant 0.000000e+00 : f32
    %49 = vector.broadcast %cst_27 : f32 to vector<16x4xf32>
    %50 = arith.maximumf %48, %49 : vector<16x4xf32>
    %c0_28 = arith.constant 0 : index
    %c0_29 = arith.constant 0 : index
    %51 = vector.load %arg11[%c0_28, %c0_29] : memref<4x4xf32, #tpu.memory_space<vmem>>, vector<4x4xf32>
    %cst_30 = arith.constant dense<0.000000e+00> : vector<16x4xf32>
    %52 = tpu.matmul %50, %51, %cst_30 {dimension_numbers = #tpu.dot_dimension_numbers<[1], [0], [0], [1], [0, 0, 1, 1], [], []>} : vector<16x4xf32>, vector<4x4xf32>, vector<16x4xf32> -> vector<16x4xf32>
    %c0_31 = arith.constant 0 : index
    %c0_32 = arith.constant 0 : index
    %53 = vector.load %arg12[%c0_31, %c0_32] : memref<1x4xf32, #tpu.memory_space<vmem>>, vector<1x4xf32>
    %54 = vector.broadcast %53 : vector<1x4xf32> to vector<16x4xf32>
    %55 = arith.addf %52, %54 : vector<16x4xf32>
    %c0_33 = arith.constant 0 : index
    %c0_34 = arith.constant 0 : index
    %56 = vector.load %arg17[%c0_33, %c0_34] : memref<16x4xf32, #tpu.memory_space<vmem>>, vector<16x4xf32>
    tpu.vector_store %arg17[%c0_33, %c0_34], %55 {strides = array<i32>} : memref<16x4xf32, #tpu.memory_space<vmem>>, vector<16x4xf32>,
    %c0_35 = arith.constant 0 : index
    %c0_36 = arith.constant 0 : index
    %57 = vector.load %arg13[%c0_35, %c0_36] : memref<4x8xf32, #tpu.memory_space<vmem>>, vector<4x8xf32>
    %cst_37 = arith.constant dense<0.000000e+00> : vector<16x8xf32>
    %58 = tpu.matmul %55, %57, %cst_37 {dimension_numbers = #tpu.dot_dimension_numbers<[1], [0], [0], [1], [0, 0, 1, 1], [], []>} : vector<16x4xf32>, vector<4x8xf32>, vector<16x8xf32> -> vector<16x8xf32>
    %c0_38 = arith.constant 0 : index
    %c0_39 = arith.constant 0 : index
    %59 = vector.load %arg14[%c0_38, %c0_39] : memref<1x8xf32, #tpu.memory_space<vmem>>, vector<1x8xf32>
    %60 = vector.broadcast %59 : vector<1x8xf32> to vector<16x8xf32>
    %61 = arith.addf %58, %60 : vector<16x8xf32>
    %cst_40 = arith.constant 0.000000e+00 : f32
    %62 = vector.broadcast %cst_40 : f32 to vector<16x8xf32>
    %63 = arith.maximumf %61, %62 : vector<16x8xf32>
    %c0_41 = arith.constant 0 : index
    %c0_42 = arith.constant 0 : index
    %64 = vector.load %arg15[%c0_41, %c0_42] : memref<8x4xf32, #tpu.memory_space<vmem>>, vector<8x4xf32>
    %cst_43 = arith.constant dense<0.000000e+00> : vector<16x4xf32>
    %65 = tpu.matmul %63, %64, %cst_43 {dimension_numbers = #tpu.dot_dimension_numbers<[1], [0], [0], [1], [0, 0, 1, 1], [], []>} : vector<16x8xf32>, vector<8x4xf32>, vector<16x4xf32> -> vector<16x4xf32>
    %c0_44 = arith.constant 0 : index
    %c0_45 = arith.constant 0 : index
    %66 = vector.load %arg16[%c0_44, %c0_45] : memref<1x4xf32, #tpu.memory_space<vmem>>, vector<1x4xf32>
    %67 = vector.broadcast %66 : vector<1x4xf32> to vector<16x4xf32>
    %68 = arith.addf %65, %67 : vector<16x4xf32>
    %c0_46 = arith.constant 0 : index
    %c0_47 = arith.constant 0 : index
    %69 = vector.load %arg18[%c0_46, %c0_47] : memref<16x4xf32, #tpu.memory_space<vmem>>, vector<16x4xf32>
    tpu.vector_store %arg18[%c0_46, %c0_47], %68 {strides = array<i32>} : memref<16x4xf32, #tpu.memory_space<vmem>>, vector<16x4xf32>,
    return
  }
  func.func @transform_0(%arg0: i32) -> (i32, i32) {
    %c0_i32 = arith.constant 0 : i32
    %c0_i32_0 = arith.constant 0 : i32
    %c0_i32_1 = arith.constant 0 : i32
    return %c0_i32, %c0_i32_0 : i32, i32
  }
  func.func @transform_1(%arg0: i32) -> (i32, i32) {
    %c0_i32 = arith.constant 0 : i32
    %c0_i32_0 = arith.constant 0 : i32
    %c0_i32_1 = arith.constant 0 : i32
    return %c0_i32, %c0_i32_0 : i32, i32
  }
  func.func @transform_2(%arg0: i32) -> (i32, i32) {
    %c0_i32 = arith.constant 0 : i32
    %c0_i32_0 = arith.constant 0 : i32
    %c0_i32_1 = arith.constant 0 : i32
    return %c0_i32, %c0_i32_0 : i32, i32
  }
  func.func @transform_3(%arg0: i32) -> (i32, i32) {
    %c0_i32 = arith.constant 0 : i32
    %c0_i32_0 = arith.constant 0 : i32
    %c0_i32_1 = arith.constant 0 : i32
    return %c0_i32, %c0_i32_0 : i32, i32
  }
  func.func @transform_4(%arg0: i32) -> (i32, i32, i32) {
    %c0_i32 = arith.constant 0 : i32
    %c0_i32_0 = arith.constant 0 : i32
    %c0_i32_1 = arith.constant 0 : i32
    %c0_i32_2 = arith.constant 0 : i32
    return %c0_i32, %c0_i32_0, %c0_i32_1 : i32, i32, i32
  }
  func.func @transform_5(%arg0: i32) -> (i32, i32, i32) {
    %c0_i32 = arith.constant 0 : i32
    %c0_i32_0 = arith.constant 0 : i32
    %c0_i32_1 = arith.constant 0 : i32
    %c0_i32_2 = arith.constant 0 : i32
    return %c0_i32, %c0_i32_0, %c0_i32_1 : i32, i32, i32
  }
  func.func @transform_6(%arg0: i32) -> (i32, i32) {
    %c0_i32 = arith.constant 0 : i32
    %c0_i32_0 = arith.constant 0 : i32
    %c0_i32_1 = arith.constant 0 : i32
    return %c0_i32, %c0_i32_0 : i32, i32
  }
  func.func @transform_7(%arg0: i32) -> (i32, i32) {
    %c0_i32 = arith.constant 0 : i32
    %c0_i32_0 = arith.constant 0 : i32
    %c0_i32_1 = arith.constant 0 : i32
    return %c0_i32, %c0_i32_0 : i32, i32
  }
  func.func @transform_8(%arg0: i32) -> (i32, i32) {
    %c0_i32 = arith.constant 0 : i32
    %c0_i32_0 = arith.constant 0 : i32
    %c0_i32_1 = arith.constant 0 : i32
    return %c0_i32, %c0_i32_0 : i32, i32
  }
  func.func @transform_9(%arg0: i32) -> (i32, i32) {
    %c0_i32 = arith.constant 0 : i32
    %c0_i32_0 = arith.constant 0 : i32
    %c0_i32_1 = arith.constant 0 : i32
    return %c0_i32, %c0_i32_0 : i32, i32
  }
  func.func @transform_10(%arg0: i32) -> (i32, i32) {
    %c0_i32 = arith.constant 0 : i32
    %c0_i32_0 = arith.constant 0 : i32
    %c0_i32_1 = arith.constant 0 : i32
    return %c0_i32, %c0_i32_0 : i32, i32
  }
  func.func @transform_11(%arg0: i32) -> (i32, i32) {
    %c0_i32 = arith.constant 0 : i32
    %c0_i32_0 = arith.constant 0 : i32
    %c0_i32_1 = arith.constant 0 : i32
    return %c0_i32, %c0_i32_0 : i32, i32
  }
  func.func @transform_12(%arg0: i32) -> (i32, i32) {
    %c0_i32 = arith.constant 0 : i32
    %c0_i32_0 = arith.constant 0 : i32
    %c0_i32_1 = arith.constant 0 : i32
    return %c0_i32, %c0_i32_0 : i32, i32
  }
  func.func @transform_13(%arg0: i32) -> (i32, i32) {
    %c0_i32 = arith.constant 0 : i32
    %c0_i32_0 = arith.constant 0 : i32
    %c0_i32_1 = arith.constant 0 : i32
    return %c0_i32, %c0_i32_0 : i32, i32
  }
  func.func @transform_14(%arg0: i32) -> (i32, i32) {
    %c0_i32 = arith.constant 0 : i32
    %c0_i32_0 = arith.constant 0 : i32
    %c0_i32_1 = arith.constant 0 : i32
    return %c0_i32, %c0_i32_0 : i32, i32
  }
  func.func @transform_15(%arg0: i32) -> (i32, i32) {
    %c0_i32 = arith.constant 0 : i32
    %c0_i32_0 = arith.constant 0 : i32
    %c0_i32_1 = arith.constant 0 : i32
    return %c0_i32, %c0_i32_0 : i32, i32
  }
  func.func @transform_16(%arg0: i32) -> (i32, i32) {
    %c0_i32 = arith.constant 0 : i32
    %c0_i32_0 = arith.constant 0 : i32
    %c0_i32_1 = arith.constant 0 : i32
    return %c0_i32, %c0_i32_0 : i32, i32
  }
  func.func @transform_17(%arg0: i32) -> (i32, i32) {
    %c0_i32 = arith.constant 0 : i32
    %c0_i32_0 = arith.constant 0 : i32
    %c0_i32_1 = arith.constant 0 : i32
    return %c0_i32, %c0_i32_0 : i32, i32
  }
}

module attributes {stable_mosaic.version = 11 : i64} {
  func.func @kernel(%arg0: i32, %arg1: memref<2x4xf32, #tpu.memory_space<vmem>>, %arg2: memref<8x2x4xf32, #tpu.memory_space<vmem>>, %arg3: memref<4x32xf32, #tpu.memory_space<vmem>>, %arg4: memref<1x32xf32, #tpu.memory_space<vmem>>, %arg5: memref<32x32xf32, #tpu.memory_space<vmem>>, %arg6: memref<1x32xf32, #tpu.memory_space<vmem>>, %arg7: memref<1x32x32xf32, #tpu.memory_space<vmem>>, %arg8: memref<1x1x32xf32, #tpu.memory_space<vmem>>, %arg9: memref<32x128xf32, #tpu.memory_space<vmem>>, %arg10: memref<1x128xf32, #tpu.memory_space<vmem>>, %arg11: memref<8x2x32xf32, #tpu.memory_space<vmem>>) attributes {dimension_semantics = [#tpu.dimension_semantics<arbitrary>], iteration_bounds = array<i64: 1>, scalar_prefetch = 0 : i64, scratch_operands = 0 : i64, tpu.core_type = #tpu.core_type<tc>, window_params = [{pipeline_mode = #tpu.pipeline_mode<synchronous>, transform_indices = @transform_0, window_bounds = array<i64: 2, 4>}, {pipeline_mode = #tpu.pipeline_mode<synchronous>, transform_indices = @transform_1, window_bounds = array<i64: 8, 2, 4>}, {pipeline_mode = #tpu.pipeline_mode<synchronous>, transform_indices = @transform_2, window_bounds = array<i64: 4, 32>}, {pipeline_mode = #tpu.pipeline_mode<synchronous>, transform_indices = @transform_3, window_bounds = array<i64: 1, 32>}, {pipeline_mode = #tpu.pipeline_mode<synchronous>, transform_indices = @transform_4, window_bounds = array<i64: 32, 32>}, {pipeline_mode = #tpu.pipeline_mode<synchronous>, transform_indices = @transform_5, window_bounds = array<i64: 1, 32>}, {pipeline_mode = #tpu.pipeline_mode<synchronous>, transform_indices = @transform_6, window_bounds = array<i64: 1, 32, 32>}, {pipeline_mode = #tpu.pipeline_mode<synchronous>, transform_indices = @transform_7, window_bounds = array<i64: 1, 1, 32>}, {pipeline_mode = #tpu.pipeline_mode<synchronous>, transform_indices = @transform_8, window_bounds = array<i64: 32, 128>}, {pipeline_mode = #tpu.pipeline_mode<synchronous>, transform_indices = @transform_9, window_bounds = array<i64: 1, 128>}, {pipeline_mode = #tpu.pipeline_mode<synchronous>, transform_indices = @transform_10, window_bounds = array<i64: 8, 2, 32>}]} {
    %c0 = arith.constant 0 : index
    %c0_0 = arith.constant 0 : index
    %0 = vector.load %arg1[%c0, %c0_0] : memref<2x4xf32, #tpu.memory_space<vmem>>, vector<2x4xf32>
    %c0_1 = arith.constant 0 : index
    %c0_2 = arith.constant 0 : index
    %1 = vector.load %arg3[%c0_1, %c0_2] : memref<4x32xf32, #tpu.memory_space<vmem>>, vector<4x32xf32>
    %cst = arith.constant dense<0.000000e+00> : vector<2x32xf32>
    %2 = tpu.matmul %0, %1, %cst {dimension_numbers = #tpu.dot_dimension_numbers<[1], [0], [0], [1], [0, 0, 1, 1], [], []>} : vector<2x4xf32>, vector<4x32xf32>, vector<2x32xf32> -> vector<2x32xf32>
    %c0_3 = arith.constant 0 : index
    %c0_4 = arith.constant 0 : index
    %3 = vector.load %arg4[%c0_3, %c0_4] : memref<1x32xf32, #tpu.memory_space<vmem>>, vector<1x32xf32>
    %cst_5 = arith.constant 8.000000e+00 : f32
    %4 = vector.broadcast %cst_5 : f32 to vector<1x32xf32>
    %5 = arith.mulf %4, %3 : vector<1x32xf32>
    %6 = vector.broadcast %5 : vector<1x32xf32> to vector<2x32xf32>
    %7 = arith.addf %2, %6 : vector<2x32xf32>
    %c0_6 = arith.constant 0 : index
    %c0_7 = arith.constant 0 : index
    %c0_8 = arith.constant 0 : index
    %8 = vector.load %arg11[%c0_6, %c0_7, %c0_8] : memref<8x2x32xf32, #tpu.memory_space<vmem>>, vector<1x2x32xf32>
    %9 = vector.shape_cast %8 : vector<1x2x32xf32> to vector<2x32xf32>
    %10 = vector.shape_cast %7 : vector<2x32xf32> to vector<1x2x32xf32>
    tpu.vector_store %arg11[%c0_6, %c0_7, %c0_8], %10 {strides = array<i32>} : memref<8x2x32xf32, #tpu.memory_space<vmem>>, vector<1x2x32xf32>,
    %c0_9 = arith.constant 0 : index
    %c0_10 = arith.constant 0 : index
    %c0_11 = arith.constant 0 : index
    %11 = vector.load %arg2[%c0_9, %c0_10, %c0_11] : memref<8x2x4xf32, #tpu.memory_space<vmem>>, vector<1x2x4xf32>
    %12 = vector.shape_cast %11 : vector<1x2x4xf32> to vector<2x4xf32>
    %c0_12 = arith.constant 0 : index
    %c0_13 = arith.constant 0 : index
    %13 = vector.load %arg5[%c0_12, %c0_13] : memref<32x32xf32, #tpu.memory_space<vmem>>, vector<32x32xf32>
    %cst_14 = arith.constant dense<0.000000e+00> : vector<2x32xf32>
    %14 = tpu.matmul %7, %13, %cst_14 {dimension_numbers = #tpu.dot_dimension_numbers<[1], [0], [0], [1], [0, 0, 1, 1], [], []>} : vector<2x32xf32>, vector<32x32xf32>, vector<2x32xf32> -> vector<2x32xf32>
    %c0_15 = arith.constant 0 : index
    %c0_16 = arith.constant 0 : index
    %15 = vector.load %arg6[%c0_15, %c0_16] : memref<1x32xf32, #tpu.memory_space<vmem>>, vector<1x32xf32>
    %16 = vector.broadcast %15 : vector<1x32xf32> to vector<2x32xf32>
    %17 = arith.addf %14, %16 : vector<2x32xf32>
    %cst_17 = arith.constant 0.000000e+00 : f32
    %18 = vector.broadcast %cst_17 : f32 to vector<2x32xf32>
    %19 = arith.maximumf %17, %18 : vector<2x32xf32>
    %c0_18 = arith.constant 0 : index
    %c0_19 = arith.constant 0 : index
    %c0_20 = arith.constant 0 : index
    %20 = vector.load %arg7[%c0_18, %c0_19, %c0_20] : memref<1x32x32xf32, #tpu.memory_space<vmem>>, vector<1x32x32xf32>
    %21 = vector.shape_cast %20 : vector<1x32x32xf32> to vector<32x32xf32>
    %cst_21 = arith.constant dense<0.000000e+00> : vector<2x32xf32>
    %22 = tpu.matmul %19, %21, %cst_21 {dimension_numbers = #tpu.dot_dimension_numbers<[1], [0], [0], [1], [0, 0, 1, 1], [], []>} : vector<2x32xf32>, vector<32x32xf32>, vector<2x32xf32> -> vector<2x32xf32>
    %c0_22 = arith.constant 0 : index
    %c0_23 = arith.constant 0 : index
    %c0_24 = arith.constant 0 : index
    %23 = vector.load %arg8[%c0_22, %c0_23, %c0_24] : memref<1x1x32xf32, #tpu.memory_space<vmem>>, vector<1x1x32xf32>
    %24 = vector.shape_cast %23 : vector<1x1x32xf32> to vector<1x32xf32>
    %25 = vector.broadcast %24 : vector<1x32xf32> to vector<2x32xf32>
    %26 = arith.addf %22, %25 : vector<2x32xf32>
    %cst_25 = arith.constant 0.000000e+00 : f32
    %27 = vector.broadcast %cst_25 : f32 to vector<2x32xf32>
    %28 = arith.maximumf %26, %27 : vector<2x32xf32>
    %c0_26 = arith.constant 0 : index
    %c0_27 = arith.constant 0 : index
    %29 = vector.load %arg9[%c0_26, %c0_27] : memref<32x128xf32, #tpu.memory_space<vmem>>, vector<32x128xf32>
    %cst_28 = arith.constant dense<0.000000e+00> : vector<2x128xf32>
    %30 = tpu.matmul %28, %29, %cst_28 {dimension_numbers = #tpu.dot_dimension_numbers<[1], [0], [0], [1], [0, 0, 1, 1], [], []>} : vector<2x32xf32>, vector<32x128xf32>, vector<2x128xf32> -> vector<2x128xf32>
    %c0_29 = arith.constant 0 : index
    %c0_30 = arith.constant 0 : index
    %31 = vector.load %arg10[%c0_29, %c0_30] : memref<1x128xf32, #tpu.memory_space<vmem>>, vector<1x128xf32>
    %32 = vector.broadcast %31 : vector<1x128xf32> to vector<2x128xf32>
    %33 = arith.addf %30, %32 : vector<2x128xf32>
    %cst_31 = arith.constant 0.000000e+00 : f32
    %34 = vector.broadcast %cst_31 : f32 to vector<2x32xf32>
    %35 = vector.extract_strided_slice %33 {offsets = [0, 0], sizes = [2, 32], strides = [1, 1]} : vector<2x128xf32> to vector<2x32xf32>
    %36 = vector.extract_strided_slice %12 {offsets = [0, 0], sizes = [2, 1], strides = [1, 1]} : vector<2x4xf32> to vector<2x1xf32>
    %37 = vector.broadcast %36 : vector<2x1xf32> to vector<2x32xf32>
    %38 = arith.mulf %35, %37 : vector<2x32xf32>
    %39 = arith.addf %34, %38 : vector<2x32xf32>
    %40 = vector.extract_strided_slice %33 {offsets = [0, 32], sizes = [2, 32], strides = [1, 1]} : vector<2x128xf32> to vector<2x32xf32>
    %41 = vector.extract_strided_slice %12 {offsets = [0, 1], sizes = [2, 1], strides = [1, 1]} : vector<2x4xf32> to vector<2x1xf32>
    %42 = vector.broadcast %41 : vector<2x1xf32> to vector<2x32xf32>
    %43 = arith.mulf %40, %42 : vector<2x32xf32>
    %44 = arith.addf %39, %43 : vector<2x32xf32>
    %45 = vector.extract_strided_slice %33 {offsets = [0, 64], sizes = [2, 32], strides = [1, 1]} : vector<2x128xf32> to vector<2x32xf32>
    %46 = vector.extract_strided_slice %12 {offsets = [0, 2], sizes = [2, 1], strides = [1, 1]} : vector<2x4xf32> to vector<2x1xf32>
    %47 = vector.broadcast %46 : vector<2x1xf32> to vector<2x32xf32>
    %48 = arith.mulf %45, %47 : vector<2x32xf32>
    %49 = arith.addf %44, %48 : vector<2x32xf32>
    %50 = vector.extract_strided_slice %33 {offsets = [0, 96], sizes = [2, 32], strides = [1, 1]} : vector<2x128xf32> to vector<2x32xf32>
    %51 = vector.extract_strided_slice %12 {offsets = [0, 3], sizes = [2, 1], strides = [1, 1]} : vector<2x4xf32> to vector<2x1xf32>
    %52 = vector.broadcast %51 : vector<2x1xf32> to vector<2x32xf32>
    %53 = arith.mulf %50, %52 : vector<2x32xf32>
    %54 = arith.addf %49, %53 : vector<2x32xf32>
    %55 = arith.addf %7, %54 : vector<2x32xf32>
    %c1 = arith.constant 1 : index
    %c0_32 = arith.constant 0 : index
    %c0_33 = arith.constant 0 : index
    %56 = vector.load %arg11[%c1, %c0_32, %c0_33] : memref<8x2x32xf32, #tpu.memory_space<vmem>>, vector<1x2x32xf32>
    %57 = vector.shape_cast %56 : vector<1x2x32xf32> to vector<2x32xf32>
    %58 = vector.shape_cast %55 : vector<2x32xf32> to vector<1x2x32xf32>
    tpu.vector_store %arg11[%c1, %c0_32, %c0_33], %58 {strides = array<i32>} : memref<8x2x32xf32, #tpu.memory_space<vmem>>, vector<1x2x32xf32>,
    %c1_34 = arith.constant 1 : index
    %c0_35 = arith.constant 0 : index
    %c0_36 = arith.constant 0 : index
    %59 = vector.load %arg2[%c1_34, %c0_35, %c0_36] : memref<8x2x4xf32, #tpu.memory_space<vmem>>, vector<1x2x4xf32>
    %60 = vector.shape_cast %59 : vector<1x2x4xf32> to vector<2x4xf32>
    %c0_37 = arith.constant 0 : index
    %c0_38 = arith.constant 0 : index
    %61 = vector.load %arg5[%c0_37, %c0_38] : memref<32x32xf32, #tpu.memory_space<vmem>>, vector<32x32xf32>
    %cst_39 = arith.constant dense<0.000000e+00> : vector<2x32xf32>
    %62 = tpu.matmul %55, %61, %cst_39 {dimension_numbers = #tpu.dot_dimension_numbers<[1], [0], [0], [1], [0, 0, 1, 1], [], []>} : vector<2x32xf32>, vector<32x32xf32>, vector<2x32xf32> -> vector<2x32xf32>
    %c0_40 = arith.constant 0 : index
    %c0_41 = arith.constant 0 : index
    %63 = vector.load %arg6[%c0_40, %c0_41] : memref<1x32xf32, #tpu.memory_space<vmem>>, vector<1x32xf32>
    %64 = vector.broadcast %63 : vector<1x32xf32> to vector<2x32xf32>
    %65 = arith.addf %62, %64 : vector<2x32xf32>
    %cst_42 = arith.constant 0.000000e+00 : f32
    %66 = vector.broadcast %cst_42 : f32 to vector<2x32xf32>
    %67 = arith.maximumf %65, %66 : vector<2x32xf32>
    %c0_43 = arith.constant 0 : index
    %c0_44 = arith.constant 0 : index
    %c0_45 = arith.constant 0 : index
    %68 = vector.load %arg7[%c0_43, %c0_44, %c0_45] : memref<1x32x32xf32, #tpu.memory_space<vmem>>, vector<1x32x32xf32>
    %69 = vector.shape_cast %68 : vector<1x32x32xf32> to vector<32x32xf32>
    %cst_46 = arith.constant dense<0.000000e+00> : vector<2x32xf32>
    %70 = tpu.matmul %67, %69, %cst_46 {dimension_numbers = #tpu.dot_dimension_numbers<[1], [0], [0], [1], [0, 0, 1, 1], [], []>} : vector<2x32xf32>, vector<32x32xf32>, vector<2x32xf32> -> vector<2x32xf32>
    %c0_47 = arith.constant 0 : index
    %c0_48 = arith.constant 0 : index
    %c0_49 = arith.constant 0 : index
    %71 = vector.load %arg8[%c0_47, %c0_48, %c0_49] : memref<1x1x32xf32, #tpu.memory_space<vmem>>, vector<1x1x32xf32>
    %72 = vector.shape_cast %71 : vector<1x1x32xf32> to vector<1x32xf32>
    %73 = vector.broadcast %72 : vector<1x32xf32> to vector<2x32xf32>
    %74 = arith.addf %70, %73 : vector<2x32xf32>
    %cst_50 = arith.constant 0.000000e+00 : f32
    %75 = vector.broadcast %cst_50 : f32 to vector<2x32xf32>
    %76 = arith.maximumf %74, %75 : vector<2x32xf32>
    %c0_51 = arith.constant 0 : index
    %c0_52 = arith.constant 0 : index
    %77 = vector.load %arg9[%c0_51, %c0_52] : memref<32x128xf32, #tpu.memory_space<vmem>>, vector<32x128xf32>
    %cst_53 = arith.constant dense<0.000000e+00> : vector<2x128xf32>
    %78 = tpu.matmul %76, %77, %cst_53 {dimension_numbers = #tpu.dot_dimension_numbers<[1], [0], [0], [1], [0, 0, 1, 1], [], []>} : vector<2x32xf32>, vector<32x128xf32>, vector<2x128xf32> -> vector<2x128xf32>
    %c0_54 = arith.constant 0 : index
    %c0_55 = arith.constant 0 : index
    %79 = vector.load %arg10[%c0_54, %c0_55] : memref<1x128xf32, #tpu.memory_space<vmem>>, vector<1x128xf32>
    %80 = vector.broadcast %79 : vector<1x128xf32> to vector<2x128xf32>
    %81 = arith.addf %78, %80 : vector<2x128xf32>
    %cst_56 = arith.constant 0.000000e+00 : f32
    %82 = vector.broadcast %cst_56 : f32 to vector<2x32xf32>
    %83 = vector.extract_strided_slice %81 {offsets = [0, 0], sizes = [2, 32], strides = [1, 1]} : vector<2x128xf32> to vector<2x32xf32>
    %84 = vector.extract_strided_slice %60 {offsets = [0, 0], sizes = [2, 1], strides = [1, 1]} : vector<2x4xf32> to vector<2x1xf32>
    %85 = vector.broadcast %84 : vector<2x1xf32> to vector<2x32xf32>
    %86 = arith.mulf %83, %85 : vector<2x32xf32>
    %87 = arith.addf %82, %86 : vector<2x32xf32>
    %88 = vector.extract_strided_slice %81 {offsets = [0, 32], sizes = [2, 32], strides = [1, 1]} : vector<2x128xf32> to vector<2x32xf32>
    %89 = vector.extract_strided_slice %60 {offsets = [0, 1], sizes = [2, 1], strides = [1, 1]} : vector<2x4xf32> to vector<2x1xf32>
    %90 = vector.broadcast %89 : vector<2x1xf32> to vector<2x32xf32>
    %91 = arith.mulf %88, %90 : vector<2x32xf32>
    %92 = arith.addf %87, %91 : vector<2x32xf32>
    %93 = vector.extract_strided_slice %81 {offsets = [0, 64], sizes = [2, 32], strides = [1, 1]} : vector<2x128xf32> to vector<2x32xf32>
    %94 = vector.extract_strided_slice %60 {offsets = [0, 2], sizes = [2, 1], strides = [1, 1]} : vector<2x4xf32> to vector<2x1xf32>
    %95 = vector.broadcast %94 : vector<2x1xf32> to vector<2x32xf32>
    %96 = arith.mulf %93, %95 : vector<2x32xf32>
    %97 = arith.addf %92, %96 : vector<2x32xf32>
    %98 = vector.extract_strided_slice %81 {offsets = [0, 96], sizes = [2, 32], strides = [1, 1]} : vector<2x128xf32> to vector<2x32xf32>
    %99 = vector.extract_strided_slice %60 {offsets = [0, 3], sizes = [2, 1], strides = [1, 1]} : vector<2x4xf32> to vector<2x1xf32>
    %100 = vector.broadcast %99 : vector<2x1xf32> to vector<2x32xf32>
    %101 = arith.mulf %98, %100 : vector<2x32xf32>
    %102 = arith.addf %97, %101 : vector<2x32xf32>
    %103 = arith.addf %55, %102 : vector<2x32xf32>
    %c2 = arith.constant 2 : index
    %c0_57 = arith.constant 0 : index
    %c0_58 = arith.constant 0 : index
    %104 = vector.load %arg11[%c2, %c0_57, %c0_58] : memref<8x2x32xf32, #tpu.memory_space<vmem>>, vector<1x2x32xf32>
    %105 = vector.shape_cast %104 : vector<1x2x32xf32> to vector<2x32xf32>
    %106 = vector.shape_cast %103 : vector<2x32xf32> to vector<1x2x32xf32>
    tpu.vector_store %arg11[%c2, %c0_57, %c0_58], %106 {strides = array<i32>} : memref<8x2x32xf32, #tpu.memory_space<vmem>>, vector<1x2x32xf32>,
    %c2_59 = arith.constant 2 : index
    %c0_60 = arith.constant 0 : index
    %c0_61 = arith.constant 0 : index
    %107 = vector.load %arg2[%c2_59, %c0_60, %c0_61] : memref<8x2x4xf32, #tpu.memory_space<vmem>>, vector<1x2x4xf32>
    %108 = vector.shape_cast %107 : vector<1x2x4xf32> to vector<2x4xf32>
    %c0_62 = arith.constant 0 : index
    %c0_63 = arith.constant 0 : index
    %109 = vector.load %arg5[%c0_62, %c0_63] : memref<32x32xf32, #tpu.memory_space<vmem>>, vector<32x32xf32>
    %cst_64 = arith.constant dense<0.000000e+00> : vector<2x32xf32>
    %110 = tpu.matmul %103, %109, %cst_64 {dimension_numbers = #tpu.dot_dimension_numbers<[1], [0], [0], [1], [0, 0, 1, 1], [], []>} : vector<2x32xf32>, vector<32x32xf32>, vector<2x32xf32> -> vector<2x32xf32>
    %c0_65 = arith.constant 0 : index
    %c0_66 = arith.constant 0 : index
    %111 = vector.load %arg6[%c0_65, %c0_66] : memref<1x32xf32, #tpu.memory_space<vmem>>, vector<1x32xf32>
    %112 = vector.broadcast %111 : vector<1x32xf32> to vector<2x32xf32>
    %113 = arith.addf %110, %112 : vector<2x32xf32>
    %cst_67 = arith.constant 0.000000e+00 : f32
    %114 = vector.broadcast %cst_67 : f32 to vector<2x32xf32>
    %115 = arith.maximumf %113, %114 : vector<2x32xf32>
    %c0_68 = arith.constant 0 : index
    %c0_69 = arith.constant 0 : index
    %c0_70 = arith.constant 0 : index
    %116 = vector.load %arg7[%c0_68, %c0_69, %c0_70] : memref<1x32x32xf32, #tpu.memory_space<vmem>>, vector<1x32x32xf32>
    %117 = vector.shape_cast %116 : vector<1x32x32xf32> to vector<32x32xf32>
    %cst_71 = arith.constant dense<0.000000e+00> : vector<2x32xf32>
    %118 = tpu.matmul %115, %117, %cst_71 {dimension_numbers = #tpu.dot_dimension_numbers<[1], [0], [0], [1], [0, 0, 1, 1], [], []>} : vector<2x32xf32>, vector<32x32xf32>, vector<2x32xf32> -> vector<2x32xf32>
    %c0_72 = arith.constant 0 : index
    %c0_73 = arith.constant 0 : index
    %c0_74 = arith.constant 0 : index
    %119 = vector.load %arg8[%c0_72, %c0_73, %c0_74] : memref<1x1x32xf32, #tpu.memory_space<vmem>>, vector<1x1x32xf32>
    %120 = vector.shape_cast %119 : vector<1x1x32xf32> to vector<1x32xf32>
    %121 = vector.broadcast %120 : vector<1x32xf32> to vector<2x32xf32>
    %122 = arith.addf %118, %121 : vector<2x32xf32>
    %cst_75 = arith.constant 0.000000e+00 : f32
    %123 = vector.broadcast %cst_75 : f32 to vector<2x32xf32>
    %124 = arith.maximumf %122, %123 : vector<2x32xf32>
    %c0_76 = arith.constant 0 : index
    %c0_77 = arith.constant 0 : index
    %125 = vector.load %arg9[%c0_76, %c0_77] : memref<32x128xf32, #tpu.memory_space<vmem>>, vector<32x128xf32>
    %cst_78 = arith.constant dense<0.000000e+00> : vector<2x128xf32>
    %126 = tpu.matmul %124, %125, %cst_78 {dimension_numbers = #tpu.dot_dimension_numbers<[1], [0], [0], [1], [0, 0, 1, 1], [], []>} : vector<2x32xf32>, vector<32x128xf32>, vector<2x128xf32> -> vector<2x128xf32>
    %c0_79 = arith.constant 0 : index
    %c0_80 = arith.constant 0 : index
    %127 = vector.load %arg10[%c0_79, %c0_80] : memref<1x128xf32, #tpu.memory_space<vmem>>, vector<1x128xf32>
    %128 = vector.broadcast %127 : vector<1x128xf32> to vector<2x128xf32>
    %129 = arith.addf %126, %128 : vector<2x128xf32>
    %cst_81 = arith.constant 0.000000e+00 : f32
    %130 = vector.broadcast %cst_81 : f32 to vector<2x32xf32>
    %131 = vector.extract_strided_slice %129 {offsets = [0, 0], sizes = [2, 32], strides = [1, 1]} : vector<2x128xf32> to vector<2x32xf32>
    %132 = vector.extract_strided_slice %108 {offsets = [0, 0], sizes = [2, 1], strides = [1, 1]} : vector<2x4xf32> to vector<2x1xf32>
    %133 = vector.broadcast %132 : vector<2x1xf32> to vector<2x32xf32>
    %134 = arith.mulf %131, %133 : vector<2x32xf32>
    %135 = arith.addf %130, %134 : vector<2x32xf32>
    %136 = vector.extract_strided_slice %129 {offsets = [0, 32], sizes = [2, 32], strides = [1, 1]} : vector<2x128xf32> to vector<2x32xf32>
    %137 = vector.extract_strided_slice %108 {offsets = [0, 1], sizes = [2, 1], strides = [1, 1]} : vector<2x4xf32> to vector<2x1xf32>
    %138 = vector.broadcast %137 : vector<2x1xf32> to vector<2x32xf32>
    %139 = arith.mulf %136, %138 : vector<2x32xf32>
    %140 = arith.addf %135, %139 : vector<2x32xf32>
    %141 = vector.extract_strided_slice %129 {offsets = [0, 64], sizes = [2, 32], strides = [1, 1]} : vector<2x128xf32> to vector<2x32xf32>
    %142 = vector.extract_strided_slice %108 {offsets = [0, 2], sizes = [2, 1], strides = [1, 1]} : vector<2x4xf32> to vector<2x1xf32>
    %143 = vector.broadcast %142 : vector<2x1xf32> to vector<2x32xf32>
    %144 = arith.mulf %141, %143 : vector<2x32xf32>
    %145 = arith.addf %140, %144 : vector<2x32xf32>
    %146 = vector.extract_strided_slice %129 {offsets = [0, 96], sizes = [2, 32], strides = [1, 1]} : vector<2x128xf32> to vector<2x32xf32>
    %147 = vector.extract_strided_slice %108 {offsets = [0, 3], sizes = [2, 1], strides = [1, 1]} : vector<2x4xf32> to vector<2x1xf32>
    %148 = vector.broadcast %147 : vector<2x1xf32> to vector<2x32xf32>
    %149 = arith.mulf %146, %148 : vector<2x32xf32>
    %150 = arith.addf %145, %149 : vector<2x32xf32>
    %151 = arith.addf %103, %150 : vector<2x32xf32>
    %c3 = arith.constant 3 : index
    %c0_82 = arith.constant 0 : index
    %c0_83 = arith.constant 0 : index
    %152 = vector.load %arg11[%c3, %c0_82, %c0_83] : memref<8x2x32xf32, #tpu.memory_space<vmem>>, vector<1x2x32xf32>
    %153 = vector.shape_cast %152 : vector<1x2x32xf32> to vector<2x32xf32>
    %154 = vector.shape_cast %151 : vector<2x32xf32> to vector<1x2x32xf32>
    tpu.vector_store %arg11[%c3, %c0_82, %c0_83], %154 {strides = array<i32>} : memref<8x2x32xf32, #tpu.memory_space<vmem>>, vector<1x2x32xf32>,
    %c3_84 = arith.constant 3 : index
    %c0_85 = arith.constant 0 : index
    %c0_86 = arith.constant 0 : index
    %155 = vector.load %arg2[%c3_84, %c0_85, %c0_86] : memref<8x2x4xf32, #tpu.memory_space<vmem>>, vector<1x2x4xf32>
    %156 = vector.shape_cast %155 : vector<1x2x4xf32> to vector<2x4xf32>
    %c0_87 = arith.constant 0 : index
    %c0_88 = arith.constant 0 : index
    %157 = vector.load %arg5[%c0_87, %c0_88] : memref<32x32xf32, #tpu.memory_space<vmem>>, vector<32x32xf32>
    %cst_89 = arith.constant dense<0.000000e+00> : vector<2x32xf32>
    %158 = tpu.matmul %151, %157, %cst_89 {dimension_numbers = #tpu.dot_dimension_numbers<[1], [0], [0], [1], [0, 0, 1, 1], [], []>} : vector<2x32xf32>, vector<32x32xf32>, vector<2x32xf32> -> vector<2x32xf32>
    %c0_90 = arith.constant 0 : index
    %c0_91 = arith.constant 0 : index
    %159 = vector.load %arg6[%c0_90, %c0_91] : memref<1x32xf32, #tpu.memory_space<vmem>>, vector<1x32xf32>
    %160 = vector.broadcast %159 : vector<1x32xf32> to vector<2x32xf32>
    %161 = arith.addf %158, %160 : vector<2x32xf32>
    %cst_92 = arith.constant 0.000000e+00 : f32
    %162 = vector.broadcast %cst_92 : f32 to vector<2x32xf32>
    %163 = arith.maximumf %161, %162 : vector<2x32xf32>
    %c0_93 = arith.constant 0 : index
    %c0_94 = arith.constant 0 : index
    %c0_95 = arith.constant 0 : index
    %164 = vector.load %arg7[%c0_93, %c0_94, %c0_95] : memref<1x32x32xf32, #tpu.memory_space<vmem>>, vector<1x32x32xf32>
    %165 = vector.shape_cast %164 : vector<1x32x32xf32> to vector<32x32xf32>
    %cst_96 = arith.constant dense<0.000000e+00> : vector<2x32xf32>
    %166 = tpu.matmul %163, %165, %cst_96 {dimension_numbers = #tpu.dot_dimension_numbers<[1], [0], [0], [1], [0, 0, 1, 1], [], []>} : vector<2x32xf32>, vector<32x32xf32>, vector<2x32xf32> -> vector<2x32xf32>
    %c0_97 = arith.constant 0 : index
    %c0_98 = arith.constant 0 : index
    %c0_99 = arith.constant 0 : index
    %167 = vector.load %arg8[%c0_97, %c0_98, %c0_99] : memref<1x1x32xf32, #tpu.memory_space<vmem>>, vector<1x1x32xf32>
    %168 = vector.shape_cast %167 : vector<1x1x32xf32> to vector<1x32xf32>
    %169 = vector.broadcast %168 : vector<1x32xf32> to vector<2x32xf32>
    %170 = arith.addf %166, %169 : vector<2x32xf32>
    %cst_100 = arith.constant 0.000000e+00 : f32
    %171 = vector.broadcast %cst_100 : f32 to vector<2x32xf32>
    %172 = arith.maximumf %170, %171 : vector<2x32xf32>
    %c0_101 = arith.constant 0 : index
    %c0_102 = arith.constant 0 : index
    %173 = vector.load %arg9[%c0_101, %c0_102] : memref<32x128xf32, #tpu.memory_space<vmem>>, vector<32x128xf32>
    %cst_103 = arith.constant dense<0.000000e+00> : vector<2x128xf32>
    %174 = tpu.matmul %172, %173, %cst_103 {dimension_numbers = #tpu.dot_dimension_numbers<[1], [0], [0], [1], [0, 0, 1, 1], [], []>} : vector<2x32xf32>, vector<32x128xf32>, vector<2x128xf32> -> vector<2x128xf32>
    %c0_104 = arith.constant 0 : index
    %c0_105 = arith.constant 0 : index
    %175 = vector.load %arg10[%c0_104, %c0_105] : memref<1x128xf32, #tpu.memory_space<vmem>>, vector<1x128xf32>
    %176 = vector.broadcast %175 : vector<1x128xf32> to vector<2x128xf32>
    %177 = arith.addf %174, %176 : vector<2x128xf32>
    %cst_106 = arith.constant 0.000000e+00 : f32
    %178 = vector.broadcast %cst_106 : f32 to vector<2x32xf32>
    %179 = vector.extract_strided_slice %177 {offsets = [0, 0], sizes = [2, 32], strides = [1, 1]} : vector<2x128xf32> to vector<2x32xf32>
    %180 = vector.extract_strided_slice %156 {offsets = [0, 0], sizes = [2, 1], strides = [1, 1]} : vector<2x4xf32> to vector<2x1xf32>
    %181 = vector.broadcast %180 : vector<2x1xf32> to vector<2x32xf32>
    %182 = arith.mulf %179, %181 : vector<2x32xf32>
    %183 = arith.addf %178, %182 : vector<2x32xf32>
    %184 = vector.extract_strided_slice %177 {offsets = [0, 32], sizes = [2, 32], strides = [1, 1]} : vector<2x128xf32> to vector<2x32xf32>
    %185 = vector.extract_strided_slice %156 {offsets = [0, 1], sizes = [2, 1], strides = [1, 1]} : vector<2x4xf32> to vector<2x1xf32>
    %186 = vector.broadcast %185 : vector<2x1xf32> to vector<2x32xf32>
    %187 = arith.mulf %184, %186 : vector<2x32xf32>
    %188 = arith.addf %183, %187 : vector<2x32xf32>
    %189 = vector.extract_strided_slice %177 {offsets = [0, 64], sizes = [2, 32], strides = [1, 1]} : vector<2x128xf32> to vector<2x32xf32>
    %190 = vector.extract_strided_slice %156 {offsets = [0, 2], sizes = [2, 1], strides = [1, 1]} : vector<2x4xf32> to vector<2x1xf32>
    %191 = vector.broadcast %190 : vector<2x1xf32> to vector<2x32xf32>
    %192 = arith.mulf %189, %191 : vector<2x32xf32>
    %193 = arith.addf %188, %192 : vector<2x32xf32>
    %194 = vector.extract_strided_slice %177 {offsets = [0, 96], sizes = [2, 32], strides = [1, 1]} : vector<2x128xf32> to vector<2x32xf32>
    %195 = vector.extract_strided_slice %156 {offsets = [0, 3], sizes = [2, 1], strides = [1, 1]} : vector<2x4xf32> to vector<2x1xf32>
    %196 = vector.broadcast %195 : vector<2x1xf32> to vector<2x32xf32>
    %197 = arith.mulf %194, %196 : vector<2x32xf32>
    %198 = arith.addf %193, %197 : vector<2x32xf32>
    %199 = arith.addf %151, %198 : vector<2x32xf32>
    %c4 = arith.constant 4 : index
    %c0_107 = arith.constant 0 : index
    %c0_108 = arith.constant 0 : index
    %200 = vector.load %arg11[%c4, %c0_107, %c0_108] : memref<8x2x32xf32, #tpu.memory_space<vmem>>, vector<1x2x32xf32>
    %201 = vector.shape_cast %200 : vector<1x2x32xf32> to vector<2x32xf32>
    %202 = vector.shape_cast %199 : vector<2x32xf32> to vector<1x2x32xf32>
    tpu.vector_store %arg11[%c4, %c0_107, %c0_108], %202 {strides = array<i32>} : memref<8x2x32xf32, #tpu.memory_space<vmem>>, vector<1x2x32xf32>,
    %c4_109 = arith.constant 4 : index
    %c0_110 = arith.constant 0 : index
    %c0_111 = arith.constant 0 : index
    %203 = vector.load %arg2[%c4_109, %c0_110, %c0_111] : memref<8x2x4xf32, #tpu.memory_space<vmem>>, vector<1x2x4xf32>
    %204 = vector.shape_cast %203 : vector<1x2x4xf32> to vector<2x4xf32>
    %c0_112 = arith.constant 0 : index
    %c0_113 = arith.constant 0 : index
    %205 = vector.load %arg5[%c0_112, %c0_113] : memref<32x32xf32, #tpu.memory_space<vmem>>, vector<32x32xf32>
    %cst_114 = arith.constant dense<0.000000e+00> : vector<2x32xf32>
    %206 = tpu.matmul %199, %205, %cst_114 {dimension_numbers = #tpu.dot_dimension_numbers<[1], [0], [0], [1], [0, 0, 1, 1], [], []>} : vector<2x32xf32>, vector<32x32xf32>, vector<2x32xf32> -> vector<2x32xf32>
    %c0_115 = arith.constant 0 : index
    %c0_116 = arith.constant 0 : index
    %207 = vector.load %arg6[%c0_115, %c0_116] : memref<1x32xf32, #tpu.memory_space<vmem>>, vector<1x32xf32>
    %208 = vector.broadcast %207 : vector<1x32xf32> to vector<2x32xf32>
    %209 = arith.addf %206, %208 : vector<2x32xf32>
    %cst_117 = arith.constant 0.000000e+00 : f32
    %210 = vector.broadcast %cst_117 : f32 to vector<2x32xf32>
    %211 = arith.maximumf %209, %210 : vector<2x32xf32>
    %c0_118 = arith.constant 0 : index
    %c0_119 = arith.constant 0 : index
    %c0_120 = arith.constant 0 : index
    %212 = vector.load %arg7[%c0_118, %c0_119, %c0_120] : memref<1x32x32xf32, #tpu.memory_space<vmem>>, vector<1x32x32xf32>
    %213 = vector.shape_cast %212 : vector<1x32x32xf32> to vector<32x32xf32>
    %cst_121 = arith.constant dense<0.000000e+00> : vector<2x32xf32>
    %214 = tpu.matmul %211, %213, %cst_121 {dimension_numbers = #tpu.dot_dimension_numbers<[1], [0], [0], [1], [0, 0, 1, 1], [], []>} : vector<2x32xf32>, vector<32x32xf32>, vector<2x32xf32> -> vector<2x32xf32>
    %c0_122 = arith.constant 0 : index
    %c0_123 = arith.constant 0 : index
    %c0_124 = arith.constant 0 : index
    %215 = vector.load %arg8[%c0_122, %c0_123, %c0_124] : memref<1x1x32xf32, #tpu.memory_space<vmem>>, vector<1x1x32xf32>
    %216 = vector.shape_cast %215 : vector<1x1x32xf32> to vector<1x32xf32>
    %217 = vector.broadcast %216 : vector<1x32xf32> to vector<2x32xf32>
    %218 = arith.addf %214, %217 : vector<2x32xf32>
    %cst_125 = arith.constant 0.000000e+00 : f32
    %219 = vector.broadcast %cst_125 : f32 to vector<2x32xf32>
    %220 = arith.maximumf %218, %219 : vector<2x32xf32>
    %c0_126 = arith.constant 0 : index
    %c0_127 = arith.constant 0 : index
    %221 = vector.load %arg9[%c0_126, %c0_127] : memref<32x128xf32, #tpu.memory_space<vmem>>, vector<32x128xf32>
    %cst_128 = arith.constant dense<0.000000e+00> : vector<2x128xf32>
    %222 = tpu.matmul %220, %221, %cst_128 {dimension_numbers = #tpu.dot_dimension_numbers<[1], [0], [0], [1], [0, 0, 1, 1], [], []>} : vector<2x32xf32>, vector<32x128xf32>, vector<2x128xf32> -> vector<2x128xf32>
    %c0_129 = arith.constant 0 : index
    %c0_130 = arith.constant 0 : index
    %223 = vector.load %arg10[%c0_129, %c0_130] : memref<1x128xf32, #tpu.memory_space<vmem>>, vector<1x128xf32>
    %224 = vector.broadcast %223 : vector<1x128xf32> to vector<2x128xf32>
    %225 = arith.addf %222, %224 : vector<2x128xf32>
    %cst_131 = arith.constant 0.000000e+00 : f32
    %226 = vector.broadcast %cst_131 : f32 to vector<2x32xf32>
    %227 = vector.extract_strided_slice %225 {offsets = [0, 0], sizes = [2, 32], strides = [1, 1]} : vector<2x128xf32> to vector<2x32xf32>
    %228 = vector.extract_strided_slice %204 {offsets = [0, 0], sizes = [2, 1], strides = [1, 1]} : vector<2x4xf32> to vector<2x1xf32>
    %229 = vector.broadcast %228 : vector<2x1xf32> to vector<2x32xf32>
    %230 = arith.mulf %227, %229 : vector<2x32xf32>
    %231 = arith.addf %226, %230 : vector<2x32xf32>
    %232 = vector.extract_strided_slice %225 {offsets = [0, 32], sizes = [2, 32], strides = [1, 1]} : vector<2x128xf32> to vector<2x32xf32>
    %233 = vector.extract_strided_slice %204 {offsets = [0, 1], sizes = [2, 1], strides = [1, 1]} : vector<2x4xf32> to vector<2x1xf32>
    %234 = vector.broadcast %233 : vector<2x1xf32> to vector<2x32xf32>
    %235 = arith.mulf %232, %234 : vector<2x32xf32>
    %236 = arith.addf %231, %235 : vector<2x32xf32>
    %237 = vector.extract_strided_slice %225 {offsets = [0, 64], sizes = [2, 32], strides = [1, 1]} : vector<2x128xf32> to vector<2x32xf32>
    %238 = vector.extract_strided_slice %204 {offsets = [0, 2], sizes = [2, 1], strides = [1, 1]} : vector<2x4xf32> to vector<2x1xf32>
    %239 = vector.broadcast %238 : vector<2x1xf32> to vector<2x32xf32>
    %240 = arith.mulf %237, %239 : vector<2x32xf32>
    %241 = arith.addf %236, %240 : vector<2x32xf32>
    %242 = vector.extract_strided_slice %225 {offsets = [0, 96], sizes = [2, 32], strides = [1, 1]} : vector<2x128xf32> to vector<2x32xf32>
    %243 = vector.extract_strided_slice %204 {offsets = [0, 3], sizes = [2, 1], strides = [1, 1]} : vector<2x4xf32> to vector<2x1xf32>
    %244 = vector.broadcast %243 : vector<2x1xf32> to vector<2x32xf32>
    %245 = arith.mulf %242, %244 : vector<2x32xf32>
    %246 = arith.addf %241, %245 : vector<2x32xf32>
    %247 = arith.addf %199, %246 : vector<2x32xf32>
    %c5 = arith.constant 5 : index
    %c0_132 = arith.constant 0 : index
    %c0_133 = arith.constant 0 : index
    %248 = vector.load %arg11[%c5, %c0_132, %c0_133] : memref<8x2x32xf32, #tpu.memory_space<vmem>>, vector<1x2x32xf32>
    %249 = vector.shape_cast %248 : vector<1x2x32xf32> to vector<2x32xf32>
    %250 = vector.shape_cast %247 : vector<2x32xf32> to vector<1x2x32xf32>
    tpu.vector_store %arg11[%c5, %c0_132, %c0_133], %250 {strides = array<i32>} : memref<8x2x32xf32, #tpu.memory_space<vmem>>, vector<1x2x32xf32>,
    %c5_134 = arith.constant 5 : index
    %c0_135 = arith.constant 0 : index
    %c0_136 = arith.constant 0 : index
    %251 = vector.load %arg2[%c5_134, %c0_135, %c0_136] : memref<8x2x4xf32, #tpu.memory_space<vmem>>, vector<1x2x4xf32>
    %252 = vector.shape_cast %251 : vector<1x2x4xf32> to vector<2x4xf32>
    %c0_137 = arith.constant 0 : index
    %c0_138 = arith.constant 0 : index
    %253 = vector.load %arg5[%c0_137, %c0_138] : memref<32x32xf32, #tpu.memory_space<vmem>>, vector<32x32xf32>
    %cst_139 = arith.constant dense<0.000000e+00> : vector<2x32xf32>
    %254 = tpu.matmul %247, %253, %cst_139 {dimension_numbers = #tpu.dot_dimension_numbers<[1], [0], [0], [1], [0, 0, 1, 1], [], []>} : vector<2x32xf32>, vector<32x32xf32>, vector<2x32xf32> -> vector<2x32xf32>
    %c0_140 = arith.constant 0 : index
    %c0_141 = arith.constant 0 : index
    %255 = vector.load %arg6[%c0_140, %c0_141] : memref<1x32xf32, #tpu.memory_space<vmem>>, vector<1x32xf32>
    %256 = vector.broadcast %255 : vector<1x32xf32> to vector<2x32xf32>
    %257 = arith.addf %254, %256 : vector<2x32xf32>
    %cst_142 = arith.constant 0.000000e+00 : f32
    %258 = vector.broadcast %cst_142 : f32 to vector<2x32xf32>
    %259 = arith.maximumf %257, %258 : vector<2x32xf32>
    %c0_143 = arith.constant 0 : index
    %c0_144 = arith.constant 0 : index
    %c0_145 = arith.constant 0 : index
    %260 = vector.load %arg7[%c0_143, %c0_144, %c0_145] : memref<1x32x32xf32, #tpu.memory_space<vmem>>, vector<1x32x32xf32>
    %261 = vector.shape_cast %260 : vector<1x32x32xf32> to vector<32x32xf32>
    %cst_146 = arith.constant dense<0.000000e+00> : vector<2x32xf32>
    %262 = tpu.matmul %259, %261, %cst_146 {dimension_numbers = #tpu.dot_dimension_numbers<[1], [0], [0], [1], [0, 0, 1, 1], [], []>} : vector<2x32xf32>, vector<32x32xf32>, vector<2x32xf32> -> vector<2x32xf32>
    %c0_147 = arith.constant 0 : index
    %c0_148 = arith.constant 0 : index
    %c0_149 = arith.constant 0 : index
    %263 = vector.load %arg8[%c0_147, %c0_148, %c0_149] : memref<1x1x32xf32, #tpu.memory_space<vmem>>, vector<1x1x32xf32>
    %264 = vector.shape_cast %263 : vector<1x1x32xf32> to vector<1x32xf32>
    %265 = vector.broadcast %264 : vector<1x32xf32> to vector<2x32xf32>
    %266 = arith.addf %262, %265 : vector<2x32xf32>
    %cst_150 = arith.constant 0.000000e+00 : f32
    %267 = vector.broadcast %cst_150 : f32 to vector<2x32xf32>
    %268 = arith.maximumf %266, %267 : vector<2x32xf32>
    %c0_151 = arith.constant 0 : index
    %c0_152 = arith.constant 0 : index
    %269 = vector.load %arg9[%c0_151, %c0_152] : memref<32x128xf32, #tpu.memory_space<vmem>>, vector<32x128xf32>
    %cst_153 = arith.constant dense<0.000000e+00> : vector<2x128xf32>
    %270 = tpu.matmul %268, %269, %cst_153 {dimension_numbers = #tpu.dot_dimension_numbers<[1], [0], [0], [1], [0, 0, 1, 1], [], []>} : vector<2x32xf32>, vector<32x128xf32>, vector<2x128xf32> -> vector<2x128xf32>
    %c0_154 = arith.constant 0 : index
    %c0_155 = arith.constant 0 : index
    %271 = vector.load %arg10[%c0_154, %c0_155] : memref<1x128xf32, #tpu.memory_space<vmem>>, vector<1x128xf32>
    %272 = vector.broadcast %271 : vector<1x128xf32> to vector<2x128xf32>
    %273 = arith.addf %270, %272 : vector<2x128xf32>
    %cst_156 = arith.constant 0.000000e+00 : f32
    %274 = vector.broadcast %cst_156 : f32 to vector<2x32xf32>
    %275 = vector.extract_strided_slice %273 {offsets = [0, 0], sizes = [2, 32], strides = [1, 1]} : vector<2x128xf32> to vector<2x32xf32>
    %276 = vector.extract_strided_slice %252 {offsets = [0, 0], sizes = [2, 1], strides = [1, 1]} : vector<2x4xf32> to vector<2x1xf32>
    %277 = vector.broadcast %276 : vector<2x1xf32> to vector<2x32xf32>
    %278 = arith.mulf %275, %277 : vector<2x32xf32>
    %279 = arith.addf %274, %278 : vector<2x32xf32>
    %280 = vector.extract_strided_slice %273 {offsets = [0, 32], sizes = [2, 32], strides = [1, 1]} : vector<2x128xf32> to vector<2x32xf32>
    %281 = vector.extract_strided_slice %252 {offsets = [0, 1], sizes = [2, 1], strides = [1, 1]} : vector<2x4xf32> to vector<2x1xf32>
    %282 = vector.broadcast %281 : vector<2x1xf32> to vector<2x32xf32>
    %283 = arith.mulf %280, %282 : vector<2x32xf32>
    %284 = arith.addf %279, %283 : vector<2x32xf32>
    %285 = vector.extract_strided_slice %273 {offsets = [0, 64], sizes = [2, 32], strides = [1, 1]} : vector<2x128xf32> to vector<2x32xf32>
    %286 = vector.extract_strided_slice %252 {offsets = [0, 2], sizes = [2, 1], strides = [1, 1]} : vector<2x4xf32> to vector<2x1xf32>
    %287 = vector.broadcast %286 : vector<2x1xf32> to vector<2x32xf32>
    %288 = arith.mulf %285, %287 : vector<2x32xf32>
    %289 = arith.addf %284, %288 : vector<2x32xf32>
    %290 = vector.extract_strided_slice %273 {offsets = [0, 96], sizes = [2, 32], strides = [1, 1]} : vector<2x128xf32> to vector<2x32xf32>
    %291 = vector.extract_strided_slice %252 {offsets = [0, 3], sizes = [2, 1], strides = [1, 1]} : vector<2x4xf32> to vector<2x1xf32>
    %292 = vector.broadcast %291 : vector<2x1xf32> to vector<2x32xf32>
    %293 = arith.mulf %290, %292 : vector<2x32xf32>
    %294 = arith.addf %289, %293 : vector<2x32xf32>
    %295 = arith.addf %247, %294 : vector<2x32xf32>
    %c6 = arith.constant 6 : index
    %c0_157 = arith.constant 0 : index
    %c0_158 = arith.constant 0 : index
    %296 = vector.load %arg11[%c6, %c0_157, %c0_158] : memref<8x2x32xf32, #tpu.memory_space<vmem>>, vector<1x2x32xf32>
    %297 = vector.shape_cast %296 : vector<1x2x32xf32> to vector<2x32xf32>
    %298 = vector.shape_cast %295 : vector<2x32xf32> to vector<1x2x32xf32>
    tpu.vector_store %arg11[%c6, %c0_157, %c0_158], %298 {strides = array<i32>} : memref<8x2x32xf32, #tpu.memory_space<vmem>>, vector<1x2x32xf32>,
    %c6_159 = arith.constant 6 : index
    %c0_160 = arith.constant 0 : index
    %c0_161 = arith.constant 0 : index
    %299 = vector.load %arg2[%c6_159, %c0_160, %c0_161] : memref<8x2x4xf32, #tpu.memory_space<vmem>>, vector<1x2x4xf32>
    %300 = vector.shape_cast %299 : vector<1x2x4xf32> to vector<2x4xf32>
    %c0_162 = arith.constant 0 : index
    %c0_163 = arith.constant 0 : index
    %301 = vector.load %arg5[%c0_162, %c0_163] : memref<32x32xf32, #tpu.memory_space<vmem>>, vector<32x32xf32>
    %cst_164 = arith.constant dense<0.000000e+00> : vector<2x32xf32>
    %302 = tpu.matmul %295, %301, %cst_164 {dimension_numbers = #tpu.dot_dimension_numbers<[1], [0], [0], [1], [0, 0, 1, 1], [], []>} : vector<2x32xf32>, vector<32x32xf32>, vector<2x32xf32> -> vector<2x32xf32>
    %c0_165 = arith.constant 0 : index
    %c0_166 = arith.constant 0 : index
    %303 = vector.load %arg6[%c0_165, %c0_166] : memref<1x32xf32, #tpu.memory_space<vmem>>, vector<1x32xf32>
    %304 = vector.broadcast %303 : vector<1x32xf32> to vector<2x32xf32>
    %305 = arith.addf %302, %304 : vector<2x32xf32>
    %cst_167 = arith.constant 0.000000e+00 : f32
    %306 = vector.broadcast %cst_167 : f32 to vector<2x32xf32>
    %307 = arith.maximumf %305, %306 : vector<2x32xf32>
    %c0_168 = arith.constant 0 : index
    %c0_169 = arith.constant 0 : index
    %c0_170 = arith.constant 0 : index
    %308 = vector.load %arg7[%c0_168, %c0_169, %c0_170] : memref<1x32x32xf32, #tpu.memory_space<vmem>>, vector<1x32x32xf32>
    %309 = vector.shape_cast %308 : vector<1x32x32xf32> to vector<32x32xf32>
    %cst_171 = arith.constant dense<0.000000e+00> : vector<2x32xf32>
    %310 = tpu.matmul %307, %309, %cst_171 {dimension_numbers = #tpu.dot_dimension_numbers<[1], [0], [0], [1], [0, 0, 1, 1], [], []>} : vector<2x32xf32>, vector<32x32xf32>, vector<2x32xf32> -> vector<2x32xf32>
    %c0_172 = arith.constant 0 : index
    %c0_173 = arith.constant 0 : index
    %c0_174 = arith.constant 0 : index
    %311 = vector.load %arg8[%c0_172, %c0_173, %c0_174] : memref<1x1x32xf32, #tpu.memory_space<vmem>>, vector<1x1x32xf32>
    %312 = vector.shape_cast %311 : vector<1x1x32xf32> to vector<1x32xf32>
    %313 = vector.broadcast %312 : vector<1x32xf32> to vector<2x32xf32>
    %314 = arith.addf %310, %313 : vector<2x32xf32>
    %cst_175 = arith.constant 0.000000e+00 : f32
    %315 = vector.broadcast %cst_175 : f32 to vector<2x32xf32>
    %316 = arith.maximumf %314, %315 : vector<2x32xf32>
    %c0_176 = arith.constant 0 : index
    %c0_177 = arith.constant 0 : index
    %317 = vector.load %arg9[%c0_176, %c0_177] : memref<32x128xf32, #tpu.memory_space<vmem>>, vector<32x128xf32>
    %cst_178 = arith.constant dense<0.000000e+00> : vector<2x128xf32>
    %318 = tpu.matmul %316, %317, %cst_178 {dimension_numbers = #tpu.dot_dimension_numbers<[1], [0], [0], [1], [0, 0, 1, 1], [], []>} : vector<2x32xf32>, vector<32x128xf32>, vector<2x128xf32> -> vector<2x128xf32>
    %c0_179 = arith.constant 0 : index
    %c0_180 = arith.constant 0 : index
    %319 = vector.load %arg10[%c0_179, %c0_180] : memref<1x128xf32, #tpu.memory_space<vmem>>, vector<1x128xf32>
    %320 = vector.broadcast %319 : vector<1x128xf32> to vector<2x128xf32>
    %321 = arith.addf %318, %320 : vector<2x128xf32>
    %cst_181 = arith.constant 0.000000e+00 : f32
    %322 = vector.broadcast %cst_181 : f32 to vector<2x32xf32>
    %323 = vector.extract_strided_slice %321 {offsets = [0, 0], sizes = [2, 32], strides = [1, 1]} : vector<2x128xf32> to vector<2x32xf32>
    %324 = vector.extract_strided_slice %300 {offsets = [0, 0], sizes = [2, 1], strides = [1, 1]} : vector<2x4xf32> to vector<2x1xf32>
    %325 = vector.broadcast %324 : vector<2x1xf32> to vector<2x32xf32>
    %326 = arith.mulf %323, %325 : vector<2x32xf32>
    %327 = arith.addf %322, %326 : vector<2x32xf32>
    %328 = vector.extract_strided_slice %321 {offsets = [0, 32], sizes = [2, 32], strides = [1, 1]} : vector<2x128xf32> to vector<2x32xf32>
    %329 = vector.extract_strided_slice %300 {offsets = [0, 1], sizes = [2, 1], strides = [1, 1]} : vector<2x4xf32> to vector<2x1xf32>
    %330 = vector.broadcast %329 : vector<2x1xf32> to vector<2x32xf32>
    %331 = arith.mulf %328, %330 : vector<2x32xf32>
    %332 = arith.addf %327, %331 : vector<2x32xf32>
    %333 = vector.extract_strided_slice %321 {offsets = [0, 64], sizes = [2, 32], strides = [1, 1]} : vector<2x128xf32> to vector<2x32xf32>
    %334 = vector.extract_strided_slice %300 {offsets = [0, 2], sizes = [2, 1], strides = [1, 1]} : vector<2x4xf32> to vector<2x1xf32>
    %335 = vector.broadcast %334 : vector<2x1xf32> to vector<2x32xf32>
    %336 = arith.mulf %333, %335 : vector<2x32xf32>
    %337 = arith.addf %332, %336 : vector<2x32xf32>
    %338 = vector.extract_strided_slice %321 {offsets = [0, 96], sizes = [2, 32], strides = [1, 1]} : vector<2x128xf32> to vector<2x32xf32>
    %339 = vector.extract_strided_slice %300 {offsets = [0, 3], sizes = [2, 1], strides = [1, 1]} : vector<2x4xf32> to vector<2x1xf32>
    %340 = vector.broadcast %339 : vector<2x1xf32> to vector<2x32xf32>
    %341 = arith.mulf %338, %340 : vector<2x32xf32>
    %342 = arith.addf %337, %341 : vector<2x32xf32>
    %343 = arith.addf %295, %342 : vector<2x32xf32>
    %c7 = arith.constant 7 : index
    %c0_182 = arith.constant 0 : index
    %c0_183 = arith.constant 0 : index
    %344 = vector.load %arg11[%c7, %c0_182, %c0_183] : memref<8x2x32xf32, #tpu.memory_space<vmem>>, vector<1x2x32xf32>
    %345 = vector.shape_cast %344 : vector<1x2x32xf32> to vector<2x32xf32>
    %346 = vector.shape_cast %343 : vector<2x32xf32> to vector<1x2x32xf32>
    tpu.vector_store %arg11[%c7, %c0_182, %c0_183], %346 {strides = array<i32>} : memref<8x2x32xf32, #tpu.memory_space<vmem>>, vector<1x2x32xf32>,
    return
  }
  func.func @transform_0(%arg0: i32) -> (i32, i32) {
    %c0_i32 = arith.constant 0 : i32
    %c0_i32_0 = arith.constant 0 : i32
    %c0_i32_1 = arith.constant 0 : i32
    return %c0_i32, %c0_i32_0 : i32, i32
  }
  func.func @transform_1(%arg0: i32) -> (i32, i32, i32) {
    %c0_i32 = arith.constant 0 : i32
    %c0_i32_0 = arith.constant 0 : i32
    %c0_i32_1 = arith.constant 0 : i32
    %c0_i32_2 = arith.constant 0 : i32
    return %c0_i32, %c0_i32_0, %c0_i32_1 : i32, i32, i32
  }
  func.func @transform_2(%arg0: i32) -> (i32, i32) {
    %c0_i32 = arith.constant 0 : i32
    %c0_i32_0 = arith.constant 0 : i32
    %c0_i32_1 = arith.constant 0 : i32
    return %c0_i32, %c0_i32_0 : i32, i32
  }
  func.func @transform_3(%arg0: i32) -> (i32, i32) {
    %c0_i32 = arith.constant 0 : i32
    %c0_i32_0 = arith.constant 0 : i32
    %c0_i32_1 = arith.constant 0 : i32
    return %c0_i32, %c0_i32_0 : i32, i32
  }
  func.func @transform_4(%arg0: i32) -> (i32, i32) {
    %c0_i32 = arith.constant 0 : i32
    %c0_i32_0 = arith.constant 0 : i32
    %c0_i32_1 = arith.constant 0 : i32
    return %c0_i32, %c0_i32_0 : i32, i32
  }
  func.func @transform_5(%arg0: i32) -> (i32, i32) {
    %c0_i32 = arith.constant 0 : i32
    %c0_i32_0 = arith.constant 0 : i32
    %c0_i32_1 = arith.constant 0 : i32
    return %c0_i32, %c0_i32_0 : i32, i32
  }
  func.func @transform_6(%arg0: i32) -> (i32, i32, i32) {
    %c0_i32 = arith.constant 0 : i32
    %c0_i32_0 = arith.constant 0 : i32
    %c0_i32_1 = arith.constant 0 : i32
    %c0_i32_2 = arith.constant 0 : i32
    return %c0_i32, %c0_i32_0, %c0_i32_1 : i32, i32, i32
  }
  func.func @transform_7(%arg0: i32) -> (i32, i32, i32) {
    %c0_i32 = arith.constant 0 : i32
    %c0_i32_0 = arith.constant 0 : i32
    %c0_i32_1 = arith.constant 0 : i32
    %c0_i32_2 = arith.constant 0 : i32
    return %c0_i32, %c0_i32_0, %c0_i32_1 : i32, i32, i32
  }
  func.func @transform_8(%arg0: i32) -> (i32, i32) {
    %c0_i32 = arith.constant 0 : i32
    %c0_i32_0 = arith.constant 0 : i32
    %c0_i32_1 = arith.constant 0 : i32
    return %c0_i32, %c0_i32_0 : i32, i32
  }
  func.func @transform_9(%arg0: i32) -> (i32, i32) {
    %c0_i32 = arith.constant 0 : i32
    %c0_i32_0 = arith.constant 0 : i32
    %c0_i32_1 = arith.constant 0 : i32
    return %c0_i32, %c0_i32_0 : i32, i32
  }
  func.func @transform_10(%arg0: i32) -> (i32, i32, i32) {
    %c0_i32 = arith.constant 0 : i32
    %c0_i32_0 = arith.constant 0 : i32
    %c0_i32_1 = arith.constant 0 : i32
    %c0_i32_2 = arith.constant 0 : i32
    return %c0_i32, %c0_i32_0, %c0_i32_1 : i32, i32, i32
  }
}

module attributes {stable_mosaic.version = 11 : i64} {
  func.func @kernel(%arg0: i32, %arg1: memref<16x32xf32, #tpu.memory_space<vmem>>, %arg2: memref<32x32xf32, #tpu.memory_space<vmem>>, %arg3: memref<1x32xf32, #tpu.memory_space<vmem>>, %arg4: memref<32x32xf32, #tpu.memory_space<vmem>>, %arg5: memref<1x32xf32, #tpu.memory_space<vmem>>, %arg6: memref<32x32xf32, #tpu.memory_space<vmem>>, %arg7: memref<1x32xf32, #tpu.memory_space<vmem>>, %arg8: memref<32x32xf32, #tpu.memory_space<vmem>>, %arg9: memref<1x32xf32, #tpu.memory_space<vmem>>, %arg10: memref<32x64xf32, #tpu.memory_space<vmem>>, %arg11: memref<1x64xf32, #tpu.memory_space<vmem>>, %arg12: memref<64x32xf32, #tpu.memory_space<vmem>>, %arg13: memref<1x32xf32, #tpu.memory_space<vmem>>, %arg14: memref<1x32xf32, #tpu.memory_space<vmem>>, %arg15: memref<1x32xf32, #tpu.memory_space<vmem>>, %arg16: memref<1x32xf32, #tpu.memory_space<vmem>>, %arg17: memref<1x32xf32, #tpu.memory_space<vmem>>, %arg18: memref<16x32xf32, #tpu.memory_space<vmem>>) attributes {dimension_semantics = [#tpu.dimension_semantics<arbitrary>], iteration_bounds = array<i64: 1>, scalar_prefetch = 0 : i64, scratch_operands = 0 : i64, tpu.core_type = #tpu.core_type<tc>, window_params = [{pipeline_mode = #tpu.pipeline_mode<synchronous>, transform_indices = @transform_0, window_bounds = array<i64: 16, 32>}, {pipeline_mode = #tpu.pipeline_mode<synchronous>, transform_indices = @transform_1, window_bounds = array<i64: 32, 32>}, {pipeline_mode = #tpu.pipeline_mode<synchronous>, transform_indices = @transform_2, window_bounds = array<i64: 1, 32>}, {pipeline_mode = #tpu.pipeline_mode<synchronous>, transform_indices = @transform_3, window_bounds = array<i64: 32, 32>}, {pipeline_mode = #tpu.pipeline_mode<synchronous>, transform_indices = @transform_4, window_bounds = array<i64: 1, 32>}, {pipeline_mode = #tpu.pipeline_mode<synchronous>, transform_indices = @transform_5, window_bounds = array<i64: 32, 32>}, {pipeline_mode = #tpu.pipeline_mode<synchronous>, transform_indices = @transform_6, window_bounds = array<i64: 1, 32>}, {pipeline_mode = #tpu.pipeline_mode<synchronous>, transform_indices = @transform_7, window_bounds = array<i64: 32, 32>}, {pipeline_mode = #tpu.pipeline_mode<synchronous>, transform_indices = @transform_8, window_bounds = array<i64: 1, 32>}, {pipeline_mode = #tpu.pipeline_mode<synchronous>, transform_indices = @transform_9, window_bounds = array<i64: 32, 64>}, {pipeline_mode = #tpu.pipeline_mode<synchronous>, transform_indices = @transform_10, window_bounds = array<i64: 1, 64>}, {pipeline_mode = #tpu.pipeline_mode<synchronous>, transform_indices = @transform_11, window_bounds = array<i64: 64, 32>}, {pipeline_mode = #tpu.pipeline_mode<synchronous>, transform_indices = @transform_12, window_bounds = array<i64: 1, 32>}, {pipeline_mode = #tpu.pipeline_mode<synchronous>, transform_indices = @transform_13, window_bounds = array<i64: 1, 32>}, {pipeline_mode = #tpu.pipeline_mode<synchronous>, transform_indices = @transform_14, window_bounds = array<i64: 1, 32>}, {pipeline_mode = #tpu.pipeline_mode<synchronous>, transform_indices = @transform_15, window_bounds = array<i64: 1, 32>}, {pipeline_mode = #tpu.pipeline_mode<synchronous>, transform_indices = @transform_16, window_bounds = array<i64: 1, 32>}, {pipeline_mode = #tpu.pipeline_mode<synchronous>, transform_indices = @transform_17, window_bounds = array<i64: 16, 32>}]} {
    %c0 = arith.constant 0 : index
    %c0_0 = arith.constant 0 : index
    %0 = vector.load %arg1[%c0, %c0_0] : memref<16x32xf32, #tpu.memory_space<vmem>>, vector<16x32xf32>
    %c0_1 = arith.constant 0 : index
    %c0_2 = arith.constant 0 : index
    %1 = vector.load %arg2[%c0_1, %c0_2] : memref<32x32xf32, #tpu.memory_space<vmem>>, vector<32x32xf32>
    %cst = arith.constant dense<0.000000e+00> : vector<16x32xf32>
    %2 = tpu.matmul %0, %1, %cst {dimension_numbers = #tpu.dot_dimension_numbers<[1], [0], [0], [1], [0, 0, 1, 1], [], []>} : vector<16x32xf32>, vector<32x32xf32>, vector<16x32xf32> -> vector<16x32xf32>
    %c0_3 = arith.constant 0 : index
    %c0_4 = arith.constant 0 : index
    %3 = vector.load %arg3[%c0_3, %c0_4] : memref<1x32xf32, #tpu.memory_space<vmem>>, vector<1x32xf32>
    %4 = vector.broadcast %3 : vector<1x32xf32> to vector<16x32xf32>
    %5 = arith.addf %2, %4 : vector<16x32xf32>
    %c0_5 = arith.constant 0 : index
    %c0_6 = arith.constant 0 : index
    %6 = vector.load %arg4[%c0_5, %c0_6] : memref<32x32xf32, #tpu.memory_space<vmem>>, vector<32x32xf32>
    %cst_7 = arith.constant dense<0.000000e+00> : vector<16x32xf32>
    %7 = tpu.matmul %0, %6, %cst_7 {dimension_numbers = #tpu.dot_dimension_numbers<[1], [0], [0], [1], [0, 0, 1, 1], [], []>} : vector<16x32xf32>, vector<32x32xf32>, vector<16x32xf32> -> vector<16x32xf32>
    %c0_8 = arith.constant 0 : index
    %c0_9 = arith.constant 0 : index
    %8 = vector.load %arg5[%c0_8, %c0_9] : memref<1x32xf32, #tpu.memory_space<vmem>>, vector<1x32xf32>
    %9 = vector.broadcast %8 : vector<1x32xf32> to vector<16x32xf32>
    %10 = arith.addf %7, %9 : vector<16x32xf32>
    %c0_10 = arith.constant 0 : index
    %c0_11 = arith.constant 0 : index
    %11 = vector.load %arg6[%c0_10, %c0_11] : memref<32x32xf32, #tpu.memory_space<vmem>>, vector<32x32xf32>
    %cst_12 = arith.constant dense<0.000000e+00> : vector<16x32xf32>
    %12 = tpu.matmul %0, %11, %cst_12 {dimension_numbers = #tpu.dot_dimension_numbers<[1], [0], [0], [1], [0, 0, 1, 1], [], []>} : vector<16x32xf32>, vector<32x32xf32>, vector<16x32xf32> -> vector<16x32xf32>
    %c0_13 = arith.constant 0 : index
    %c0_14 = arith.constant 0 : index
    %13 = vector.load %arg7[%c0_13, %c0_14] : memref<1x32xf32, #tpu.memory_space<vmem>>, vector<1x32xf32>
    %14 = vector.broadcast %13 : vector<1x32xf32> to vector<16x32xf32>
    %15 = arith.addf %12, %14 : vector<16x32xf32>
    %16 = tpu.iota {dimensions = array<i32: 0>} : vector<32x4xi32>
    %17 = tpu.iota {dimensions = array<i32: 1>} : vector<32x4xi32>
    %c8_i32 = arith.constant 8 : i32
    %18 = vector.broadcast %c8_i32 : i32 to vector<32x4xi32>
    %19 = arith.muli %17, %18 : vector<32x4xi32>
    %20 = arith.cmpi sge, %16, %19 : vector<32x4xi32>
    %c1_i32 = arith.constant 1 : i32
    %21 = vector.broadcast %c1_i32 : i32 to vector<32x4xi32>
    %22 = arith.addi %17, %21 : vector<32x4xi32>
    %c8_i32_15 = arith.constant 8 : i32
    %23 = vector.broadcast %c8_i32_15 : i32 to vector<32x4xi32>
    %24 = arith.muli %22, %23 : vector<32x4xi32>
    %25 = arith.cmpi slt, %16, %24 : vector<32x4xi32>
    %26 = arith.andi %20, %25 : vector<32x4xi1>
    %27 = arith.extui %26 : vector<32x4xi1> to vector<32x4xi32>
    %28 = arith.sitofp %27 : vector<32x4xi32> to vector<32x4xf32>
    %29 = tpu.iota {dimensions = array<i32: 0>} : vector<4x32xi32>
    %30 = tpu.iota {dimensions = array<i32: 1>} : vector<4x32xi32>
    %c8_i32_16 = arith.constant 8 : i32
    %31 = vector.broadcast %c8_i32_16 : i32 to vector<4x32xi32>
    %32 = arith.muli %29, %31 : vector<4x32xi32>
    %33 = arith.cmpi sge, %30, %32 : vector<4x32xi32>
    %c1_i32_17 = arith.constant 1 : i32
    %34 = vector.broadcast %c1_i32_17 : i32 to vector<4x32xi32>
    %35 = arith.addi %29, %34 : vector<4x32xi32>
    %c8_i32_18 = arith.constant 8 : i32
    %36 = vector.broadcast %c8_i32_18 : i32 to vector<4x32xi32>
    %37 = arith.muli %35, %36 : vector<4x32xi32>
    %38 = arith.cmpi slt, %30, %37 : vector<4x32xi32>
    %39 = arith.andi %33, %38 : vector<4x32xi1>
    %40 = arith.extui %39 : vector<4x32xi1> to vector<4x32xi32>
    %41 = arith.sitofp %40 : vector<4x32xi32> to vector<4x32xf32>
    %42 = vector.extract_strided_slice %5 {offsets = [0, 0], sizes = [8, 32], strides = [1, 1]} : vector<16x32xf32> to vector<8x32xf32>
    %43 = vector.extract_strided_slice %5 {offsets = [8, 0], sizes = [8, 32], strides = [1, 1]} : vector<16x32xf32> to vector<8x32xf32>
    %44 = vector.extract_strided_slice %10 {offsets = [0, 0], sizes = [8, 32], strides = [1, 1]} : vector<16x32xf32> to vector<8x32xf32>
    %45 = vector.extract_strided_slice %10 {offsets = [8, 0], sizes = [8, 32], strides = [1, 1]} : vector<16x32xf32> to vector<8x32xf32>
    %46 = vector.extract_strided_slice %15 {offsets = [0, 0], sizes = [8, 32], strides = [1, 1]} : vector<16x32xf32> to vector<8x32xf32>
    %47 = vector.extract_strided_slice %15 {offsets = [8, 0], sizes = [8, 32], strides = [1, 1]} : vector<16x32xf32> to vector<8x32xf32>
    %48 = arith.mulf %42, %44 : vector<8x32xf32>
    %cst_19 = arith.constant dense<0.000000e+00> : vector<8x4xf32>
    %49 = tpu.matmul %48, %28, %cst_19 {dimension_numbers = #tpu.dot_dimension_numbers<[1], [0], [0], [1], [0, 0, 1, 1], [], []>} : vector<8x32xf32>, vector<32x4xf32>, vector<8x4xf32> -> vector<8x4xf32>
    %cst_20 = arith.constant 0.353553385 : f32
    %50 = vector.broadcast %cst_20 : f32 to vector<8x4xf32>
    %51 = arith.mulf %49, %50 : vector<8x4xf32>
    %52 = arith.mulf %42, %45 : vector<8x32xf32>
    %cst_21 = arith.constant dense<0.000000e+00> : vector<8x4xf32>
    %53 = tpu.matmul %52, %28, %cst_21 {dimension_numbers = #tpu.dot_dimension_numbers<[1], [0], [0], [1], [0, 0, 1, 1], [], []>} : vector<8x32xf32>, vector<32x4xf32>, vector<8x4xf32> -> vector<8x4xf32>
    %cst_22 = arith.constant 0.353553385 : f32
    %54 = vector.broadcast %cst_22 : f32 to vector<8x4xf32>
    %55 = arith.mulf %53, %54 : vector<8x4xf32>
    %56 = arith.maximumf %51, %55 : vector<8x4xf32>
    %57 = arith.subf %51, %56 : vector<8x4xf32>
    %58 = math.exp %57 : vector<8x4xf32>
    %59 = arith.subf %55, %56 : vector<8x4xf32>
    %60 = math.exp %59 : vector<8x4xf32>
    %61 = arith.addf %58, %60 : vector<8x4xf32>
    %cst_23 = arith.constant 1.000000e+00 : f32
    %62 = vector.broadcast %cst_23 : f32 to vector<8x4xf32>
    %63 = arith.divf %62, %61 : vector<8x4xf32>
    %cst_24 = arith.constant 0.000000e+00 : f32
    %64 = vector.broadcast %cst_24 : f32 to vector<8x32xf32>
    %65 = arith.mulf %58, %63 : vector<8x4xf32>
    %cst_25 = arith.constant dense<0.000000e+00> : vector<8x32xf32>
    %66 = tpu.matmul %65, %41, %cst_25 {dimension_numbers = #tpu.dot_dimension_numbers<[1], [0], [0], [1], [0, 0, 1, 1], [], []>} : vector<8x4xf32>, vector<4x32xf32>, vector<8x32xf32> -> vector<8x32xf32>
    %67 = arith.mulf %66, %46 : vector<8x32xf32>
    %68 = arith.addf %64, %67 : vector<8x32xf32>
    %69 = arith.mulf %60, %63 : vector<8x4xf32>
    %cst_26 = arith.constant dense<0.000000e+00> : vector<8x32xf32>
    %70 = tpu.matmul %69, %41, %cst_26 {dimension_numbers = #tpu.dot_dimension_numbers<[1], [0], [0], [1], [0, 0, 1, 1], [], []>} : vector<8x4xf32>, vector<4x32xf32>, vector<8x32xf32> -> vector<8x32xf32>
    %71 = arith.mulf %70, %47 : vector<8x32xf32>
    %72 = arith.addf %68, %71 : vector<8x32xf32>
    %73 = arith.mulf %43, %44 : vector<8x32xf32>
    %cst_27 = arith.constant dense<0.000000e+00> : vector<8x4xf32>
    %74 = tpu.matmul %73, %28, %cst_27 {dimension_numbers = #tpu.dot_dimension_numbers<[1], [0], [0], [1], [0, 0, 1, 1], [], []>} : vector<8x32xf32>, vector<32x4xf32>, vector<8x4xf32> -> vector<8x4xf32>
    %cst_28 = arith.constant 0.353553385 : f32
    %75 = vector.broadcast %cst_28 : f32 to vector<8x4xf32>
    %76 = arith.mulf %74, %75 : vector<8x4xf32>
    %77 = arith.mulf %43, %45 : vector<8x32xf32>
    %cst_29 = arith.constant dense<0.000000e+00> : vector<8x4xf32>
    %78 = tpu.matmul %77, %28, %cst_29 {dimension_numbers = #tpu.dot_dimension_numbers<[1], [0], [0], [1], [0, 0, 1, 1], [], []>} : vector<8x32xf32>, vector<32x4xf32>, vector<8x4xf32> -> vector<8x4xf32>
    %cst_30 = arith.constant 0.353553385 : f32
    %79 = vector.broadcast %cst_30 : f32 to vector<8x4xf32>
    %80 = arith.mulf %78, %79 : vector<8x4xf32>
    %81 = arith.maximumf %76, %80 : vector<8x4xf32>
    %82 = arith.subf %76, %81 : vector<8x4xf32>
    %83 = math.exp %82 : vector<8x4xf32>
    %84 = arith.subf %80, %81 : vector<8x4xf32>
    %85 = math.exp %84 : vector<8x4xf32>
    %86 = arith.addf %83, %85 : vector<8x4xf32>
    %cst_31 = arith.constant 1.000000e+00 : f32
    %87 = vector.broadcast %cst_31 : f32 to vector<8x4xf32>
    %88 = arith.divf %87, %86 : vector<8x4xf32>
    %cst_32 = arith.constant 0.000000e+00 : f32
    %89 = vector.broadcast %cst_32 : f32 to vector<8x32xf32>
    %90 = arith.mulf %83, %88 : vector<8x4xf32>
    %cst_33 = arith.constant dense<0.000000e+00> : vector<8x32xf32>
    %91 = tpu.matmul %90, %41, %cst_33 {dimension_numbers = #tpu.dot_dimension_numbers<[1], [0], [0], [1], [0, 0, 1, 1], [], []>} : vector<8x4xf32>, vector<4x32xf32>, vector<8x32xf32> -> vector<8x32xf32>
    %92 = arith.mulf %91, %46 : vector<8x32xf32>
    %93 = arith.addf %89, %92 : vector<8x32xf32>
    %94 = arith.mulf %85, %88 : vector<8x4xf32>
    %cst_34 = arith.constant dense<0.000000e+00> : vector<8x32xf32>
    %95 = tpu.matmul %94, %41, %cst_34 {dimension_numbers = #tpu.dot_dimension_numbers<[1], [0], [0], [1], [0, 0, 1, 1], [], []>} : vector<8x4xf32>, vector<4x32xf32>, vector<8x32xf32> -> vector<8x32xf32>
    %96 = arith.mulf %95, %47 : vector<8x32xf32>
    %97 = arith.addf %93, %96 : vector<8x32xf32>
    %98 = tpu.concatenate %72, %97 in 0 : vector<8x32xf32>, vector<8x32xf32> -> vector<16x32xf32>
    %c0_35 = arith.constant 0 : index
    %c0_36 = arith.constant 0 : index
    %99 = vector.load %arg8[%c0_35, %c0_36] : memref<32x32xf32, #tpu.memory_space<vmem>>, vector<32x32xf32>
    %cst_37 = arith.constant dense<0.000000e+00> : vector<16x32xf32>
    %100 = tpu.matmul %98, %99, %cst_37 {dimension_numbers = #tpu.dot_dimension_numbers<[1], [0], [0], [1], [0, 0, 1, 1], [], []>} : vector<16x32xf32>, vector<32x32xf32>, vector<16x32xf32> -> vector<16x32xf32>
    %c0_38 = arith.constant 0 : index
    %c0_39 = arith.constant 0 : index
    %101 = vector.load %arg9[%c0_38, %c0_39] : memref<1x32xf32, #tpu.memory_space<vmem>>, vector<1x32xf32>
    %102 = vector.broadcast %101 : vector<1x32xf32> to vector<16x32xf32>
    %103 = arith.addf %100, %102 : vector<16x32xf32>
    %104 = arith.addf %0, %103 : vector<16x32xf32>
    %c0_40 = arith.constant 0 : index
    %c0_41 = arith.constant 0 : index
    %105 = vector.load %arg14[%c0_40, %c0_41] : memref<1x32xf32, #tpu.memory_space<vmem>>, vector<1x32xf32>
    %c0_42 = arith.constant 0 : index
    %c0_43 = arith.constant 0 : index
    %106 = vector.load %arg15[%c0_42, %c0_43] : memref<1x32xf32, #tpu.memory_space<vmem>>, vector<1x32xf32>
    %cst_44 = arith.constant dense<0.000000e+00> : vector<16xf32>
    %107 = vector.multi_reduction <add>, %104, %cst_44 [1] : vector<16x32xf32> to vector<16xf32>
    %108 = vector.shape_cast %107 : vector<16xf32> to vector<16x1xf32>
    %cst_45 = arith.constant 3.200000e+01 : f32
    %109 = vector.broadcast %cst_45 : f32 to vector<16x1xf32>
    %110 = arith.divf %108, %109 : vector<16x1xf32>
    %111 = vector.broadcast %110 : vector<16x1xf32> to vector<16x32xf32>
    %112 = arith.subf %104, %111 : vector<16x32xf32>
    %113 = arith.mulf %112, %112 : vector<16x32xf32>
    %cst_46 = arith.constant dense<0.000000e+00> : vector<16xf32>
    %114 = vector.multi_reduction <add>, %113, %cst_46 [1] : vector<16x32xf32> to vector<16xf32>
    %115 = vector.shape_cast %114 : vector<16xf32> to vector<16x1xf32>
    %cst_47 = arith.constant 3.200000e+01 : f32
    %116 = vector.broadcast %cst_47 : f32 to vector<16x1xf32>
    %117 = arith.divf %115, %116 : vector<16x1xf32>
    %118 = vector.broadcast %110 : vector<16x1xf32> to vector<16x32xf32>
    %119 = arith.subf %104, %118 : vector<16x32xf32>
    %cst_48 = arith.constant 9.99999974E-6 : f32
    %120 = vector.broadcast %cst_48 : f32 to vector<16x1xf32>
    %121 = arith.addf %117, %120 : vector<16x1xf32>
    %122 = math.rsqrt %121 : vector<16x1xf32>
    %123 = vector.broadcast %122 : vector<16x1xf32> to vector<16x32xf32>
    %124 = arith.mulf %119, %123 : vector<16x32xf32>
    %125 = vector.broadcast %105 : vector<1x32xf32> to vector<16x32xf32>
    %126 = arith.mulf %124, %125 : vector<16x32xf32>
    %127 = vector.broadcast %106 : vector<1x32xf32> to vector<16x32xf32>
    %128 = arith.addf %126, %127 : vector<16x32xf32>
    %c0_49 = arith.constant 0 : index
    %c0_50 = arith.constant 0 : index
    %129 = vector.load %arg10[%c0_49, %c0_50] : memref<32x64xf32, #tpu.memory_space<vmem>>, vector<32x64xf32>
    %cst_51 = arith.constant dense<0.000000e+00> : vector<16x64xf32>
    %130 = tpu.matmul %128, %129, %cst_51 {dimension_numbers = #tpu.dot_dimension_numbers<[1], [0], [0], [1], [0, 0, 1, 1], [], []>} : vector<16x32xf32>, vector<32x64xf32>, vector<16x64xf32> -> vector<16x64xf32>
    %c0_52 = arith.constant 0 : index
    %c0_53 = arith.constant 0 : index
    %131 = vector.load %arg11[%c0_52, %c0_53] : memref<1x64xf32, #tpu.memory_space<vmem>>, vector<1x64xf32>
    %132 = vector.broadcast %131 : vector<1x64xf32> to vector<16x64xf32>
    %133 = arith.addf %130, %132 : vector<16x64xf32>
    %134 = math.absf %133 : vector<16x64xf32>
    %cst_54 = arith.constant 0.707106769 : f32
    %135 = vector.broadcast %cst_54 : f32 to vector<16x64xf32>
    %136 = arith.mulf %134, %135 : vector<16x64xf32>
    %cst_55 = arith.constant 0.327591091 : f32
    %137 = vector.broadcast %cst_55 : f32 to vector<16x64xf32>
    %138 = arith.mulf %137, %136 : vector<16x64xf32>
    %cst_56 = arith.constant 1.000000e+00 : f32
    %139 = vector.broadcast %cst_56 : f32 to vector<16x64xf32>
    %140 = arith.addf %139, %138 : vector<16x64xf32>
    %cst_57 = arith.constant 1.000000e+00 : f32
    %141 = vector.broadcast %cst_57 : f32 to vector<16x64xf32>
    %142 = arith.divf %141, %140 : vector<16x64xf32>
    %cst_58 = arith.constant 1.06140542 : f32
    %143 = vector.broadcast %cst_58 : f32 to vector<16x64xf32>
    %144 = arith.mulf %142, %143 : vector<16x64xf32>
    %cst_59 = arith.constant -1.45315206 : f32
    %145 = vector.broadcast %cst_59 : f32 to vector<16x64xf32>
    %146 = arith.addf %145, %144 : vector<16x64xf32>
    %147 = arith.mulf %142, %146 : vector<16x64xf32>
    %cst_60 = arith.constant 1.42141378 : f32
    %148 = vector.broadcast %cst_60 : f32 to vector<16x64xf32>
    %149 = arith.addf %148, %147 : vector<16x64xf32>
    %150 = arith.mulf %142, %149 : vector<16x64xf32>
    %cst_61 = arith.constant -0.284496725 : f32
    %151 = vector.broadcast %cst_61 : f32 to vector<16x64xf32>
    %152 = arith.addf %151, %150 : vector<16x64xf32>
    %153 = arith.mulf %142, %152 : vector<16x64xf32>
    %cst_62 = arith.constant 0.254829586 : f32
    %154 = vector.broadcast %cst_62 : f32 to vector<16x64xf32>
    %155 = arith.addf %154, %153 : vector<16x64xf32>
    %156 = arith.mulf %142, %155 : vector<16x64xf32>
    %cst_63 = arith.constant 0.000000e+00 : f32
    %157 = vector.broadcast %cst_63 : f32 to vector<16x64xf32>
    %158 = arith.subf %157, %136 : vector<16x64xf32>
    %159 = arith.mulf %158, %136 : vector<16x64xf32>
    %160 = math.exp %159 : vector<16x64xf32>
    %161 = arith.mulf %156, %160 : vector<16x64xf32>
    %cst_64 = arith.constant 1.000000e+00 : f32
    %162 = vector.broadcast %cst_64 : f32 to vector<16x64xf32>
    %163 = arith.subf %162, %161 : vector<16x64xf32>
    %cst_65 = arith.constant 5.000000e-01 : f32
    %164 = vector.broadcast %cst_65 : f32 to vector<16x64xf32>
    %165 = arith.mulf %164, %133 : vector<16x64xf32>
    %cst_66 = arith.constant 0.000000e+00 : f32
    %166 = vector.broadcast %cst_66 : f32 to vector<16x64xf32>
    %167 = arith.cmpf oge, %133, %166 : vector<16x64xf32>
    %cst_67 = arith.constant 0.000000e+00 : f32
    %168 = vector.broadcast %cst_67 : f32 to vector<16x64xf32>
    %169 = arith.subf %168, %163 : vector<16x64xf32>
    %170 = arith.select %167, %163, %169 : vector<16x64xi1>, vector<16x64xf32>
    %cst_68 = arith.constant 1.000000e+00 : f32
    %171 = vector.broadcast %cst_68 : f32 to vector<16x64xf32>
    %172 = arith.addf %171, %170 : vector<16x64xf32>
    %173 = arith.mulf %165, %172 : vector<16x64xf32>
    %c0_69 = arith.constant 0 : index
    %c0_70 = arith.constant 0 : index
    %174 = vector.load %arg12[%c0_69, %c0_70] : memref<64x32xf32, #tpu.memory_space<vmem>>, vector<64x32xf32>
    %cst_71 = arith.constant dense<0.000000e+00> : vector<16x32xf32>
    %175 = tpu.matmul %173, %174, %cst_71 {dimension_numbers = #tpu.dot_dimension_numbers<[1], [0], [0], [1], [0, 0, 1, 1], [], []>} : vector<16x64xf32>, vector<64x32xf32>, vector<16x32xf32> -> vector<16x32xf32>
    %c0_72 = arith.constant 0 : index
    %c0_73 = arith.constant 0 : index
    %176 = vector.load %arg13[%c0_72, %c0_73] : memref<1x32xf32, #tpu.memory_space<vmem>>, vector<1x32xf32>
    %177 = vector.broadcast %176 : vector<1x32xf32> to vector<16x32xf32>
    %178 = arith.addf %175, %177 : vector<16x32xf32>
    %179 = arith.addf %128, %178 : vector<16x32xf32>
    %c0_74 = arith.constant 0 : index
    %c0_75 = arith.constant 0 : index
    %180 = vector.load %arg16[%c0_74, %c0_75] : memref<1x32xf32, #tpu.memory_space<vmem>>, vector<1x32xf32>
    %c0_76 = arith.constant 0 : index
    %c0_77 = arith.constant 0 : index
    %181 = vector.load %arg17[%c0_76, %c0_77] : memref<1x32xf32, #tpu.memory_space<vmem>>, vector<1x32xf32>
    %cst_78 = arith.constant dense<0.000000e+00> : vector<16xf32>
    %182 = vector.multi_reduction <add>, %179, %cst_78 [1] : vector<16x32xf32> to vector<16xf32>
    %183 = vector.shape_cast %182 : vector<16xf32> to vector<16x1xf32>
    %cst_79 = arith.constant 3.200000e+01 : f32
    %184 = vector.broadcast %cst_79 : f32 to vector<16x1xf32>
    %185 = arith.divf %183, %184 : vector<16x1xf32>
    %186 = vector.broadcast %185 : vector<16x1xf32> to vector<16x32xf32>
    %187 = arith.subf %179, %186 : vector<16x32xf32>
    %188 = arith.mulf %187, %187 : vector<16x32xf32>
    %cst_80 = arith.constant dense<0.000000e+00> : vector<16xf32>
    %189 = vector.multi_reduction <add>, %188, %cst_80 [1] : vector<16x32xf32> to vector<16xf32>
    %190 = vector.shape_cast %189 : vector<16xf32> to vector<16x1xf32>
    %cst_81 = arith.constant 3.200000e+01 : f32
    %191 = vector.broadcast %cst_81 : f32 to vector<16x1xf32>
    %192 = arith.divf %190, %191 : vector<16x1xf32>
    %193 = vector.broadcast %185 : vector<16x1xf32> to vector<16x32xf32>
    %194 = arith.subf %179, %193 : vector<16x32xf32>
    %cst_82 = arith.constant 9.99999974E-6 : f32
    %195 = vector.broadcast %cst_82 : f32 to vector<16x1xf32>
    %196 = arith.addf %192, %195 : vector<16x1xf32>
    %197 = math.rsqrt %196 : vector<16x1xf32>
    %198 = vector.broadcast %197 : vector<16x1xf32> to vector<16x32xf32>
    %199 = arith.mulf %194, %198 : vector<16x32xf32>
    %200 = vector.broadcast %180 : vector<1x32xf32> to vector<16x32xf32>
    %201 = arith.mulf %199, %200 : vector<16x32xf32>
    %202 = vector.broadcast %181 : vector<1x32xf32> to vector<16x32xf32>
    %203 = arith.addf %201, %202 : vector<16x32xf32>
    %c0_83 = arith.constant 0 : index
    %c0_84 = arith.constant 0 : index
    %204 = vector.load %arg18[%c0_83, %c0_84] : memref<16x32xf32, #tpu.memory_space<vmem>>, vector<16x32xf32>
    tpu.vector_store %arg18[%c0_83, %c0_84], %203 {strides = array<i32>} : memref<16x32xf32, #tpu.memory_space<vmem>>, vector<16x32xf32>,
    return
  }
  func.func @transform_0(%arg0: i32) -> (i32, i32) {
    %c0_i32 = arith.constant 0 : i32
    %c0_i32_0 = arith.constant 0 : i32
    %c0_i32_1 = arith.constant 0 : i32
    return %c0_i32, %c0_i32_0 : i32, i32
  }
  func.func @transform_1(%arg0: i32) -> (i32, i32) {
    %c0_i32 = arith.constant 0 : i32
    %c0_i32_0 = arith.constant 0 : i32
    %c0_i32_1 = arith.constant 0 : i32
    return %c0_i32, %c0_i32_0 : i32, i32
  }
  func.func @transform_2(%arg0: i32) -> (i32, i32) {
    %c0_i32 = arith.constant 0 : i32
    %c0_i32_0 = arith.constant 0 : i32
    %c0_i32_1 = arith.constant 0 : i32
    return %c0_i32, %c0_i32_0 : i32, i32
  }
  func.func @transform_3(%arg0: i32) -> (i32, i32) {
    %c0_i32 = arith.constant 0 : i32
    %c0_i32_0 = arith.constant 0 : i32
    %c0_i32_1 = arith.constant 0 : i32
    return %c0_i32, %c0_i32_0 : i32, i32
  }
  func.func @transform_4(%arg0: i32) -> (i32, i32) {
    %c0_i32 = arith.constant 0 : i32
    %c0_i32_0 = arith.constant 0 : i32
    %c0_i32_1 = arith.constant 0 : i32
    return %c0_i32, %c0_i32_0 : i32, i32
  }
  func.func @transform_5(%arg0: i32) -> (i32, i32) {
    %c0_i32 = arith.constant 0 : i32
    %c0_i32_0 = arith.constant 0 : i32
    %c0_i32_1 = arith.constant 0 : i32
    return %c0_i32, %c0_i32_0 : i32, i32
  }
  func.func @transform_6(%arg0: i32) -> (i32, i32) {
    %c0_i32 = arith.constant 0 : i32
    %c0_i32_0 = arith.constant 0 : i32
    %c0_i32_1 = arith.constant 0 : i32
    return %c0_i32, %c0_i32_0 : i32, i32
  }
  func.func @transform_7(%arg0: i32) -> (i32, i32) {
    %c0_i32 = arith.constant 0 : i32
    %c0_i32_0 = arith.constant 0 : i32
    %c0_i32_1 = arith.constant 0 : i32
    return %c0_i32, %c0_i32_0 : i32, i32
  }
  func.func @transform_8(%arg0: i32) -> (i32, i32) {
    %c0_i32 = arith.constant 0 : i32
    %c0_i32_0 = arith.constant 0 : i32
    %c0_i32_1 = arith.constant 0 : i32
    return %c0_i32, %c0_i32_0 : i32, i32
  }
  func.func @transform_9(%arg0: i32) -> (i32, i32) {
    %c0_i32 = arith.constant 0 : i32
    %c0_i32_0 = arith.constant 0 : i32
    %c0_i32_1 = arith.constant 0 : i32
    return %c0_i32, %c0_i32_0 : i32, i32
  }
  func.func @transform_10(%arg0: i32) -> (i32, i32) {
    %c0_i32 = arith.constant 0 : i32
    %c0_i32_0 = arith.constant 0 : i32
    %c0_i32_1 = arith.constant 0 : i32
    return %c0_i32, %c0_i32_0 : i32, i32
  }
  func.func @transform_11(%arg0: i32) -> (i32, i32) {
    %c0_i32 = arith.constant 0 : i32
    %c0_i32_0 = arith.constant 0 : i32
    %c0_i32_1 = arith.constant 0 : i32
    return %c0_i32, %c0_i32_0 : i32, i32
  }
  func.func @transform_12(%arg0: i32) -> (i32, i32) {
    %c0_i32 = arith.constant 0 : i32
    %c0_i32_0 = arith.constant 0 : i32
    %c0_i32_1 = arith.constant 0 : i32
    return %c0_i32, %c0_i32_0 : i32, i32
  }
  func.func @transform_13(%arg0: i32) -> (i32, i32) {
    %c0_i32 = arith.constant 0 : i32
    %c0_i32_0 = arith.constant 0 : i32
    %c0_i32_1 = arith.constant 0 : i32
    return %c0_i32, %c0_i32_0 : i32, i32
  }
  func.func @transform_14(%arg0: i32) -> (i32, i32) {
    %c0_i32 = arith.constant 0 : i32
    %c0_i32_0 = arith.constant 0 : i32
    %c0_i32_1 = arith.constant 0 : i32
    return %c0_i32, %c0_i32_0 : i32, i32
  }
  func.func @transform_15(%arg0: i32) -> (i32, i32) {
    %c0_i32 = arith.constant 0 : i32
    %c0_i32_0 = arith.constant 0 : i32
    %c0_i32_1 = arith.constant 0 : i32
    return %c0_i32, %c0_i32_0 : i32, i32
  }
  func.func @transform_16(%arg0: i32) -> (i32, i32) {
    %c0_i32 = arith.constant 0 : i32
    %c0_i32_0 = arith.constant 0 : i32
    %c0_i32_1 = arith.constant 0 : i32
    return %c0_i32, %c0_i32_0 : i32, i32
  }
  func.func @transform_17(%arg0: i32) -> (i32, i32) {
    %c0_i32 = arith.constant 0 : i32
    %c0_i32_0 = arith.constant 0 : i32
    %c0_i32_1 = arith.constant 0 : i32
    return %c0_i32, %c0_i32_0 : i32, i32
  }
}

module attributes {stable_mosaic.version = 11 : i64} {
  func.func @kernel(%arg0: i32, %arg1: memref<64x8xf32, #tpu.memory_space<vmem>>, %arg2: memref<8x8xf32, #tpu.memory_space<vmem>>, %arg3: memref<1x8xf32, #tpu.memory_space<vmem>>, %arg4: memref<8x8xf32, #tpu.memory_space<vmem>>, %arg5: memref<1x8xf32, #tpu.memory_space<vmem>>, %arg6: memref<8x8xf32, #tpu.memory_space<vmem>>, %arg7: memref<1x8xf32, #tpu.memory_space<vmem>>, %arg8: memref<8x8xf32, #tpu.memory_space<vmem>>, %arg9: memref<1x8xf32, #tpu.memory_space<vmem>>, %arg10: memref<8x64xf32, #tpu.memory_space<vmem>>, %arg11: memref<1x64xf32, #tpu.memory_space<vmem>>, %arg12: memref<64x8xf32, #tpu.memory_space<vmem>>, %arg13: memref<1x8xf32, #tpu.memory_space<vmem>>, %arg14: memref<1x8xf32, #tpu.memory_space<vmem>>, %arg15: memref<1x8xf32, #tpu.memory_space<vmem>>, %arg16: memref<1x8xf32, #tpu.memory_space<vmem>>, %arg17: memref<1x8xf32, #tpu.memory_space<vmem>>, %arg18: memref<64x8xf32, #tpu.memory_space<vmem>>) attributes {dimension_semantics = [#tpu.dimension_semantics<arbitrary>], iteration_bounds = array<i64: 1>, scalar_prefetch = 0 : i64, scratch_operands = 0 : i64, tpu.core_type = #tpu.core_type<tc>, window_params = [{pipeline_mode = #tpu.pipeline_mode<synchronous>, transform_indices = @transform_0, window_bounds = array<i64: 64, 8>}, {pipeline_mode = #tpu.pipeline_mode<synchronous>, transform_indices = @transform_1, window_bounds = array<i64: 8, 8>}, {pipeline_mode = #tpu.pipeline_mode<synchronous>, transform_indices = @transform_2, window_bounds = array<i64: 1, 8>}, {pipeline_mode = #tpu.pipeline_mode<synchronous>, transform_indices = @transform_3, window_bounds = array<i64: 8, 8>}, {pipeline_mode = #tpu.pipeline_mode<synchronous>, transform_indices = @transform_4, window_bounds = array<i64: 1, 8>}, {pipeline_mode = #tpu.pipeline_mode<synchronous>, transform_indices = @transform_5, window_bounds = array<i64: 8, 8>}, {pipeline_mode = #tpu.pipeline_mode<synchronous>, transform_indices = @transform_6, window_bounds = array<i64: 1, 8>}, {pipeline_mode = #tpu.pipeline_mode<synchronous>, transform_indices = @transform_7, window_bounds = array<i64: 8, 8>}, {pipeline_mode = #tpu.pipeline_mode<synchronous>, transform_indices = @transform_8, window_bounds = array<i64: 1, 8>}, {pipeline_mode = #tpu.pipeline_mode<synchronous>, transform_indices = @transform_9, window_bounds = array<i64: 8, 64>}, {pipeline_mode = #tpu.pipeline_mode<synchronous>, transform_indices = @transform_10, window_bounds = array<i64: 1, 64>}, {pipeline_mode = #tpu.pipeline_mode<synchronous>, transform_indices = @transform_11, window_bounds = array<i64: 64, 8>}, {pipeline_mode = #tpu.pipeline_mode<synchronous>, transform_indices = @transform_12, window_bounds = array<i64: 1, 8>}, {pipeline_mode = #tpu.pipeline_mode<synchronous>, transform_indices = @transform_13, window_bounds = array<i64: 1, 8>}, {pipeline_mode = #tpu.pipeline_mode<synchronous>, transform_indices = @transform_14, window_bounds = array<i64: 1, 8>}, {pipeline_mode = #tpu.pipeline_mode<synchronous>, transform_indices = @transform_15, window_bounds = array<i64: 1, 8>}, {pipeline_mode = #tpu.pipeline_mode<synchronous>, transform_indices = @transform_16, window_bounds = array<i64: 1, 8>}, {pipeline_mode = #tpu.pipeline_mode<synchronous>, transform_indices = @transform_17, window_bounds = array<i64: 64, 8>}]} {
    %c0 = arith.constant 0 : index
    %c0_0 = arith.constant 0 : index
    %0 = vector.load %arg1[%c0, %c0_0] : memref<64x8xf32, #tpu.memory_space<vmem>>, vector<64x8xf32>
    %c0_1 = arith.constant 0 : index
    %c0_2 = arith.constant 0 : index
    %1 = vector.load %arg2[%c0_1, %c0_2] : memref<8x8xf32, #tpu.memory_space<vmem>>, vector<8x8xf32>
    %cst = arith.constant dense<0.000000e+00> : vector<64x8xf32>
    %2 = tpu.matmul %0, %1, %cst {dimension_numbers = #tpu.dot_dimension_numbers<[1], [0], [0], [1], [0, 0, 1, 1], [], []>} : vector<64x8xf32>, vector<8x8xf32>, vector<64x8xf32> -> vector<64x8xf32>
    %c0_3 = arith.constant 0 : index
    %c0_4 = arith.constant 0 : index
    %3 = vector.load %arg3[%c0_3, %c0_4] : memref<1x8xf32, #tpu.memory_space<vmem>>, vector<1x8xf32>
    %4 = vector.broadcast %3 : vector<1x8xf32> to vector<64x8xf32>
    %5 = arith.addf %2, %4 : vector<64x8xf32>
    %c0_5 = arith.constant 0 : index
    %c0_6 = arith.constant 0 : index
    %6 = vector.load %arg4[%c0_5, %c0_6] : memref<8x8xf32, #tpu.memory_space<vmem>>, vector<8x8xf32>
    %cst_7 = arith.constant dense<0.000000e+00> : vector<64x8xf32>
    %7 = tpu.matmul %0, %6, %cst_7 {dimension_numbers = #tpu.dot_dimension_numbers<[1], [0], [0], [1], [0, 0, 1, 1], [], []>} : vector<64x8xf32>, vector<8x8xf32>, vector<64x8xf32> -> vector<64x8xf32>
    %c0_8 = arith.constant 0 : index
    %c0_9 = arith.constant 0 : index
    %8 = vector.load %arg5[%c0_8, %c0_9] : memref<1x8xf32, #tpu.memory_space<vmem>>, vector<1x8xf32>
    %9 = vector.broadcast %8 : vector<1x8xf32> to vector<64x8xf32>
    %10 = arith.addf %7, %9 : vector<64x8xf32>
    %c0_10 = arith.constant 0 : index
    %c0_11 = arith.constant 0 : index
    %11 = vector.load %arg6[%c0_10, %c0_11] : memref<8x8xf32, #tpu.memory_space<vmem>>, vector<8x8xf32>
    %cst_12 = arith.constant dense<0.000000e+00> : vector<64x8xf32>
    %12 = tpu.matmul %0, %11, %cst_12 {dimension_numbers = #tpu.dot_dimension_numbers<[1], [0], [0], [1], [0, 0, 1, 1], [], []>} : vector<64x8xf32>, vector<8x8xf32>, vector<64x8xf32> -> vector<64x8xf32>
    %c0_13 = arith.constant 0 : index
    %c0_14 = arith.constant 0 : index
    %13 = vector.load %arg7[%c0_13, %c0_14] : memref<1x8xf32, #tpu.memory_space<vmem>>, vector<1x8xf32>
    %14 = vector.broadcast %13 : vector<1x8xf32> to vector<64x8xf32>
    %15 = arith.addf %12, %14 : vector<64x8xf32>
    %16 = tpu.iota {dimensions = array<i32: 0>} : vector<8x2xi32>
    %17 = tpu.iota {dimensions = array<i32: 1>} : vector<8x2xi32>
    %c4_i32 = arith.constant 4 : i32
    %18 = vector.broadcast %c4_i32 : i32 to vector<8x2xi32>
    %19 = arith.muli %17, %18 : vector<8x2xi32>
    %20 = arith.cmpi sge, %16, %19 : vector<8x2xi32>
    %c1_i32 = arith.constant 1 : i32
    %21 = vector.broadcast %c1_i32 : i32 to vector<8x2xi32>
    %22 = arith.addi %17, %21 : vector<8x2xi32>
    %c4_i32_15 = arith.constant 4 : i32
    %23 = vector.broadcast %c4_i32_15 : i32 to vector<8x2xi32>
    %24 = arith.muli %22, %23 : vector<8x2xi32>
    %25 = arith.cmpi slt, %16, %24 : vector<8x2xi32>
    %26 = arith.andi %20, %25 : vector<8x2xi1>
    %27 = arith.extui %26 : vector<8x2xi1> to vector<8x2xi32>
    %28 = arith.sitofp %27 : vector<8x2xi32> to vector<8x2xf32>
    %29 = tpu.iota {dimensions = array<i32: 0>} : vector<2x8xi32>
    %30 = tpu.iota {dimensions = array<i32: 1>} : vector<2x8xi32>
    %c4_i32_16 = arith.constant 4 : i32
    %31 = vector.broadcast %c4_i32_16 : i32 to vector<2x8xi32>
    %32 = arith.muli %29, %31 : vector<2x8xi32>
    %33 = arith.cmpi sge, %30, %32 : vector<2x8xi32>
    %c1_i32_17 = arith.constant 1 : i32
    %34 = vector.broadcast %c1_i32_17 : i32 to vector<2x8xi32>
    %35 = arith.addi %29, %34 : vector<2x8xi32>
    %c4_i32_18 = arith.constant 4 : i32
    %36 = vector.broadcast %c4_i32_18 : i32 to vector<2x8xi32>
    %37 = arith.muli %35, %36 : vector<2x8xi32>
    %38 = arith.cmpi slt, %30, %37 : vector<2x8xi32>
    %39 = arith.andi %33, %38 : vector<2x8xi1>
    %40 = arith.extui %39 : vector<2x8xi1> to vector<2x8xi32>
    %41 = arith.sitofp %40 : vector<2x8xi32> to vector<2x8xf32>
    %42 = vector.extract_strided_slice %5 {offsets = [0, 0], sizes = [32, 8], strides = [1, 1]} : vector<64x8xf32> to vector<32x8xf32>
    %43 = vector.extract_strided_slice %5 {offsets = [32, 0], sizes = [32, 8], strides = [1, 1]} : vector<64x8xf32> to vector<32x8xf32>
    %44 = vector.extract_strided_slice %10 {offsets = [0, 0], sizes = [32, 8], strides = [1, 1]} : vector<64x8xf32> to vector<32x8xf32>
    %45 = vector.extract_strided_slice %10 {offsets = [32, 0], sizes = [32, 8], strides = [1, 1]} : vector<64x8xf32> to vector<32x8xf32>
    %46 = vector.extract_strided_slice %15 {offsets = [0, 0], sizes = [32, 8], strides = [1, 1]} : vector<64x8xf32> to vector<32x8xf32>
    %47 = vector.extract_strided_slice %15 {offsets = [32, 0], sizes = [32, 8], strides = [1, 1]} : vector<64x8xf32> to vector<32x8xf32>
    %48 = arith.mulf %42, %44 : vector<32x8xf32>
    %cst_19 = arith.constant dense<0.000000e+00> : vector<32x2xf32>
    %49 = tpu.matmul %48, %28, %cst_19 {dimension_numbers = #tpu.dot_dimension_numbers<[1], [0], [0], [1], [0, 0, 1, 1], [], []>} : vector<32x8xf32>, vector<8x2xf32>, vector<32x2xf32> -> vector<32x2xf32>
    %cst_20 = arith.constant 5.000000e-01 : f32
    %50 = vector.broadcast %cst_20 : f32 to vector<32x2xf32>
    %51 = arith.mulf %49, %50 : vector<32x2xf32>
    %52 = arith.mulf %42, %45 : vector<32x8xf32>
    %cst_21 = arith.constant dense<0.000000e+00> : vector<32x2xf32>
    %53 = tpu.matmul %52, %28, %cst_21 {dimension_numbers = #tpu.dot_dimension_numbers<[1], [0], [0], [1], [0, 0, 1, 1], [], []>} : vector<32x8xf32>, vector<8x2xf32>, vector<32x2xf32> -> vector<32x2xf32>
    %cst_22 = arith.constant 5.000000e-01 : f32
    %54 = vector.broadcast %cst_22 : f32 to vector<32x2xf32>
    %55 = arith.mulf %53, %54 : vector<32x2xf32>
    %56 = arith.maximumf %51, %55 : vector<32x2xf32>
    %57 = arith.subf %51, %56 : vector<32x2xf32>
    %58 = math.exp %57 : vector<32x2xf32>
    %59 = arith.subf %55, %56 : vector<32x2xf32>
    %60 = math.exp %59 : vector<32x2xf32>
    %61 = arith.addf %58, %60 : vector<32x2xf32>
    %cst_23 = arith.constant 1.000000e+00 : f32
    %62 = vector.broadcast %cst_23 : f32 to vector<32x2xf32>
    %63 = arith.divf %62, %61 : vector<32x2xf32>
    %cst_24 = arith.constant 0.000000e+00 : f32
    %64 = vector.broadcast %cst_24 : f32 to vector<32x8xf32>
    %65 = arith.mulf %58, %63 : vector<32x2xf32>
    %cst_25 = arith.constant dense<0.000000e+00> : vector<32x8xf32>
    %66 = tpu.matmul %65, %41, %cst_25 {dimension_numbers = #tpu.dot_dimension_numbers<[1], [0], [0], [1], [0, 0, 1, 1], [], []>} : vector<32x2xf32>, vector<2x8xf32>, vector<32x8xf32> -> vector<32x8xf32>
    %67 = arith.mulf %66, %46 : vector<32x8xf32>
    %68 = arith.addf %64, %67 : vector<32x8xf32>
    %69 = arith.mulf %60, %63 : vector<32x2xf32>
    %cst_26 = arith.constant dense<0.000000e+00> : vector<32x8xf32>
    %70 = tpu.matmul %69, %41, %cst_26 {dimension_numbers = #tpu.dot_dimension_numbers<[1], [0], [0], [1], [0, 0, 1, 1], [], []>} : vector<32x2xf32>, vector<2x8xf32>, vector<32x8xf32> -> vector<32x8xf32>
    %71 = arith.mulf %70, %47 : vector<32x8xf32>
    %72 = arith.addf %68, %71 : vector<32x8xf32>
    %73 = arith.mulf %43, %44 : vector<32x8xf32>
    %cst_27 = arith.constant dense<0.000000e+00> : vector<32x2xf32>
    %74 = tpu.matmul %73, %28, %cst_27 {dimension_numbers = #tpu.dot_dimension_numbers<[1], [0], [0], [1], [0, 0, 1, 1], [], []>} : vector<32x8xf32>, vector<8x2xf32>, vector<32x2xf32> -> vector<32x2xf32>
    %cst_28 = arith.constant 5.000000e-01 : f32
    %75 = vector.broadcast %cst_28 : f32 to vector<32x2xf32>
    %76 = arith.mulf %74, %75 : vector<32x2xf32>
    %77 = arith.mulf %43, %45 : vector<32x8xf32>
    %cst_29 = arith.constant dense<0.000000e+00> : vector<32x2xf32>
    %78 = tpu.matmul %77, %28, %cst_29 {dimension_numbers = #tpu.dot_dimension_numbers<[1], [0], [0], [1], [0, 0, 1, 1], [], []>} : vector<32x8xf32>, vector<8x2xf32>, vector<32x2xf32> -> vector<32x2xf32>
    %cst_30 = arith.constant 5.000000e-01 : f32
    %79 = vector.broadcast %cst_30 : f32 to vector<32x2xf32>
    %80 = arith.mulf %78, %79 : vector<32x2xf32>
    %81 = arith.maximumf %76, %80 : vector<32x2xf32>
    %82 = arith.subf %76, %81 : vector<32x2xf32>
    %83 = math.exp %82 : vector<32x2xf32>
    %84 = arith.subf %80, %81 : vector<32x2xf32>
    %85 = math.exp %84 : vector<32x2xf32>
    %86 = arith.addf %83, %85 : vector<32x2xf32>
    %cst_31 = arith.constant 1.000000e+00 : f32
    %87 = vector.broadcast %cst_31 : f32 to vector<32x2xf32>
    %88 = arith.divf %87, %86 : vector<32x2xf32>
    %cst_32 = arith.constant 0.000000e+00 : f32
    %89 = vector.broadcast %cst_32 : f32 to vector<32x8xf32>
    %90 = arith.mulf %83, %88 : vector<32x2xf32>
    %cst_33 = arith.constant dense<0.000000e+00> : vector<32x8xf32>
    %91 = tpu.matmul %90, %41, %cst_33 {dimension_numbers = #tpu.dot_dimension_numbers<[1], [0], [0], [1], [0, 0, 1, 1], [], []>} : vector<32x2xf32>, vector<2x8xf32>, vector<32x8xf32> -> vector<32x8xf32>
    %92 = arith.mulf %91, %46 : vector<32x8xf32>
    %93 = arith.addf %89, %92 : vector<32x8xf32>
    %94 = arith.mulf %85, %88 : vector<32x2xf32>
    %cst_34 = arith.constant dense<0.000000e+00> : vector<32x8xf32>
    %95 = tpu.matmul %94, %41, %cst_34 {dimension_numbers = #tpu.dot_dimension_numbers<[1], [0], [0], [1], [0, 0, 1, 1], [], []>} : vector<32x2xf32>, vector<2x8xf32>, vector<32x8xf32> -> vector<32x8xf32>
    %96 = arith.mulf %95, %47 : vector<32x8xf32>
    %97 = arith.addf %93, %96 : vector<32x8xf32>
    %98 = tpu.concatenate %72, %97 in 0 : vector<32x8xf32>, vector<32x8xf32> -> vector<64x8xf32>
    %c0_35 = arith.constant 0 : index
    %c0_36 = arith.constant 0 : index
    %99 = vector.load %arg8[%c0_35, %c0_36] : memref<8x8xf32, #tpu.memory_space<vmem>>, vector<8x8xf32>
    %cst_37 = arith.constant dense<0.000000e+00> : vector<64x8xf32>
    %100 = tpu.matmul %98, %99, %cst_37 {dimension_numbers = #tpu.dot_dimension_numbers<[1], [0], [0], [1], [0, 0, 1, 1], [], []>} : vector<64x8xf32>, vector<8x8xf32>, vector<64x8xf32> -> vector<64x8xf32>
    %c0_38 = arith.constant 0 : index
    %c0_39 = arith.constant 0 : index
    %101 = vector.load %arg9[%c0_38, %c0_39] : memref<1x8xf32, #tpu.memory_space<vmem>>, vector<1x8xf32>
    %102 = vector.broadcast %101 : vector<1x8xf32> to vector<64x8xf32>
    %103 = arith.addf %100, %102 : vector<64x8xf32>
    %104 = arith.addf %0, %103 : vector<64x8xf32>
    %c0_40 = arith.constant 0 : index
    %c0_41 = arith.constant 0 : index
    %105 = vector.load %arg14[%c0_40, %c0_41] : memref<1x8xf32, #tpu.memory_space<vmem>>, vector<1x8xf32>
    %c0_42 = arith.constant 0 : index
    %c0_43 = arith.constant 0 : index
    %106 = vector.load %arg15[%c0_42, %c0_43] : memref<1x8xf32, #tpu.memory_space<vmem>>, vector<1x8xf32>
    %cst_44 = arith.constant dense<0.000000e+00> : vector<64xf32>
    %107 = vector.multi_reduction <add>, %104, %cst_44 [1] : vector<64x8xf32> to vector<64xf32>
    %108 = vector.shape_cast %107 : vector<64xf32> to vector<64x1xf32>
    %cst_45 = arith.constant 8.000000e+00 : f32
    %109 = vector.broadcast %cst_45 : f32 to vector<64x1xf32>
    %110 = arith.divf %108, %109 : vector<64x1xf32>
    %111 = vector.broadcast %110 : vector<64x1xf32> to vector<64x8xf32>
    %112 = arith.subf %104, %111 : vector<64x8xf32>
    %113 = arith.mulf %112, %112 : vector<64x8xf32>
    %cst_46 = arith.constant dense<0.000000e+00> : vector<64xf32>
    %114 = vector.multi_reduction <add>, %113, %cst_46 [1] : vector<64x8xf32> to vector<64xf32>
    %115 = vector.shape_cast %114 : vector<64xf32> to vector<64x1xf32>
    %cst_47 = arith.constant 8.000000e+00 : f32
    %116 = vector.broadcast %cst_47 : f32 to vector<64x1xf32>
    %117 = arith.divf %115, %116 : vector<64x1xf32>
    %118 = vector.broadcast %110 : vector<64x1xf32> to vector<64x8xf32>
    %119 = arith.subf %104, %118 : vector<64x8xf32>
    %cst_48 = arith.constant 9.99999974E-6 : f32
    %120 = vector.broadcast %cst_48 : f32 to vector<64x1xf32>
    %121 = arith.addf %117, %120 : vector<64x1xf32>
    %122 = math.rsqrt %121 : vector<64x1xf32>
    %123 = vector.broadcast %122 : vector<64x1xf32> to vector<64x8xf32>
    %124 = arith.mulf %119, %123 : vector<64x8xf32>
    %125 = vector.broadcast %105 : vector<1x8xf32> to vector<64x8xf32>
    %126 = arith.mulf %124, %125 : vector<64x8xf32>
    %127 = vector.broadcast %106 : vector<1x8xf32> to vector<64x8xf32>
    %128 = arith.addf %126, %127 : vector<64x8xf32>
    %c0_49 = arith.constant 0 : index
    %c0_50 = arith.constant 0 : index
    %129 = vector.load %arg10[%c0_49, %c0_50] : memref<8x64xf32, #tpu.memory_space<vmem>>, vector<8x64xf32>
    %cst_51 = arith.constant dense<0.000000e+00> : vector<64x64xf32>
    %130 = tpu.matmul %128, %129, %cst_51 {dimension_numbers = #tpu.dot_dimension_numbers<[1], [0], [0], [1], [0, 0, 1, 1], [], []>} : vector<64x8xf32>, vector<8x64xf32>, vector<64x64xf32> -> vector<64x64xf32>
    %c0_52 = arith.constant 0 : index
    %c0_53 = arith.constant 0 : index
    %131 = vector.load %arg11[%c0_52, %c0_53] : memref<1x64xf32, #tpu.memory_space<vmem>>, vector<1x64xf32>
    %132 = vector.broadcast %131 : vector<1x64xf32> to vector<64x64xf32>
    %133 = arith.addf %130, %132 : vector<64x64xf32>
    %134 = math.absf %133 : vector<64x64xf32>
    %cst_54 = arith.constant 0.707106769 : f32
    %135 = vector.broadcast %cst_54 : f32 to vector<64x64xf32>
    %136 = arith.mulf %134, %135 : vector<64x64xf32>
    %cst_55 = arith.constant 0.327591091 : f32
    %137 = vector.broadcast %cst_55 : f32 to vector<64x64xf32>
    %138 = arith.mulf %137, %136 : vector<64x64xf32>
    %cst_56 = arith.constant 1.000000e+00 : f32
    %139 = vector.broadcast %cst_56 : f32 to vector<64x64xf32>
    %140 = arith.addf %139, %138 : vector<64x64xf32>
    %cst_57 = arith.constant 1.000000e+00 : f32
    %141 = vector.broadcast %cst_57 : f32 to vector<64x64xf32>
    %142 = arith.divf %141, %140 : vector<64x64xf32>
    %cst_58 = arith.constant 1.06140542 : f32
    %143 = vector.broadcast %cst_58 : f32 to vector<64x64xf32>
    %144 = arith.mulf %142, %143 : vector<64x64xf32>
    %cst_59 = arith.constant -1.45315206 : f32
    %145 = vector.broadcast %cst_59 : f32 to vector<64x64xf32>
    %146 = arith.addf %145, %144 : vector<64x64xf32>
    %147 = arith.mulf %142, %146 : vector<64x64xf32>
    %cst_60 = arith.constant 1.42141378 : f32
    %148 = vector.broadcast %cst_60 : f32 to vector<64x64xf32>
    %149 = arith.addf %148, %147 : vector<64x64xf32>
    %150 = arith.mulf %142, %149 : vector<64x64xf32>
    %cst_61 = arith.constant -0.284496725 : f32
    %151 = vector.broadcast %cst_61 : f32 to vector<64x64xf32>
    %152 = arith.addf %151, %150 : vector<64x64xf32>
    %153 = arith.mulf %142, %152 : vector<64x64xf32>
    %cst_62 = arith.constant 0.254829586 : f32
    %154 = vector.broadcast %cst_62 : f32 to vector<64x64xf32>
    %155 = arith.addf %154, %153 : vector<64x64xf32>
    %156 = arith.mulf %142, %155 : vector<64x64xf32>
    %cst_63 = arith.constant 0.000000e+00 : f32
    %157 = vector.broadcast %cst_63 : f32 to vector<64x64xf32>
    %158 = arith.subf %157, %136 : vector<64x64xf32>
    %159 = arith.mulf %158, %136 : vector<64x64xf32>
    %160 = math.exp %159 : vector<64x64xf32>
    %161 = arith.mulf %156, %160 : vector<64x64xf32>
    %cst_64 = arith.constant 1.000000e+00 : f32
    %162 = vector.broadcast %cst_64 : f32 to vector<64x64xf32>
    %163 = arith.subf %162, %161 : vector<64x64xf32>
    %cst_65 = arith.constant 5.000000e-01 : f32
    %164 = vector.broadcast %cst_65 : f32 to vector<64x64xf32>
    %165 = arith.mulf %164, %133 : vector<64x64xf32>
    %cst_66 = arith.constant 0.000000e+00 : f32
    %166 = vector.broadcast %cst_66 : f32 to vector<64x64xf32>
    %167 = arith.cmpf oge, %133, %166 : vector<64x64xf32>
    %cst_67 = arith.constant 0.000000e+00 : f32
    %168 = vector.broadcast %cst_67 : f32 to vector<64x64xf32>
    %169 = arith.subf %168, %163 : vector<64x64xf32>
    %170 = arith.select %167, %163, %169 : vector<64x64xi1>, vector<64x64xf32>
    %cst_68 = arith.constant 1.000000e+00 : f32
    %171 = vector.broadcast %cst_68 : f32 to vector<64x64xf32>
    %172 = arith.addf %171, %170 : vector<64x64xf32>
    %173 = arith.mulf %165, %172 : vector<64x64xf32>
    %c0_69 = arith.constant 0 : index
    %c0_70 = arith.constant 0 : index
    %174 = vector.load %arg12[%c0_69, %c0_70] : memref<64x8xf32, #tpu.memory_space<vmem>>, vector<64x8xf32>
    %cst_71 = arith.constant dense<0.000000e+00> : vector<64x8xf32>
    %175 = tpu.matmul %173, %174, %cst_71 {dimension_numbers = #tpu.dot_dimension_numbers<[1], [0], [0], [1], [0, 0, 1, 1], [], []>} : vector<64x64xf32>, vector<64x8xf32>, vector<64x8xf32> -> vector<64x8xf32>
    %c0_72 = arith.constant 0 : index
    %c0_73 = arith.constant 0 : index
    %176 = vector.load %arg13[%c0_72, %c0_73] : memref<1x8xf32, #tpu.memory_space<vmem>>, vector<1x8xf32>
    %177 = vector.broadcast %176 : vector<1x8xf32> to vector<64x8xf32>
    %178 = arith.addf %175, %177 : vector<64x8xf32>
    %179 = arith.addf %128, %178 : vector<64x8xf32>
    %c0_74 = arith.constant 0 : index
    %c0_75 = arith.constant 0 : index
    %180 = vector.load %arg16[%c0_74, %c0_75] : memref<1x8xf32, #tpu.memory_space<vmem>>, vector<1x8xf32>
    %c0_76 = arith.constant 0 : index
    %c0_77 = arith.constant 0 : index
    %181 = vector.load %arg17[%c0_76, %c0_77] : memref<1x8xf32, #tpu.memory_space<vmem>>, vector<1x8xf32>
    %cst_78 = arith.constant dense<0.000000e+00> : vector<64xf32>
    %182 = vector.multi_reduction <add>, %179, %cst_78 [1] : vector<64x8xf32> to vector<64xf32>
    %183 = vector.shape_cast %182 : vector<64xf32> to vector<64x1xf32>
    %cst_79 = arith.constant 8.000000e+00 : f32
    %184 = vector.broadcast %cst_79 : f32 to vector<64x1xf32>
    %185 = arith.divf %183, %184 : vector<64x1xf32>
    %186 = vector.broadcast %185 : vector<64x1xf32> to vector<64x8xf32>
    %187 = arith.subf %179, %186 : vector<64x8xf32>
    %188 = arith.mulf %187, %187 : vector<64x8xf32>
    %cst_80 = arith.constant dense<0.000000e+00> : vector<64xf32>
    %189 = vector.multi_reduction <add>, %188, %cst_80 [1] : vector<64x8xf32> to vector<64xf32>
    %190 = vector.shape_cast %189 : vector<64xf32> to vector<64x1xf32>
    %cst_81 = arith.constant 8.000000e+00 : f32
    %191 = vector.broadcast %cst_81 : f32 to vector<64x1xf32>
    %192 = arith.divf %190, %191 : vector<64x1xf32>
    %193 = vector.broadcast %185 : vector<64x1xf32> to vector<64x8xf32>
    %194 = arith.subf %179, %193 : vector<64x8xf32>
    %cst_82 = arith.constant 9.99999974E-6 : f32
    %195 = vector.broadcast %cst_82 : f32 to vector<64x1xf32>
    %196 = arith.addf %192, %195 : vector<64x1xf32>
    %197 = math.rsqrt %196 : vector<64x1xf32>
    %198 = vector.broadcast %197 : vector<64x1xf32> to vector<64x8xf32>
    %199 = arith.mulf %194, %198 : vector<64x8xf32>
    %200 = vector.broadcast %180 : vector<1x8xf32> to vector<64x8xf32>
    %201 = arith.mulf %199, %200 : vector<64x8xf32>
    %202 = vector.broadcast %181 : vector<1x8xf32> to vector<64x8xf32>
    %203 = arith.addf %201, %202 : vector<64x8xf32>
    %c0_83 = arith.constant 0 : index
    %c0_84 = arith.constant 0 : index
    %204 = vector.load %arg18[%c0_83, %c0_84] : memref<64x8xf32, #tpu.memory_space<vmem>>, vector<64x8xf32>
    tpu.vector_store %arg18[%c0_83, %c0_84], %203 {strides = array<i32>} : memref<64x8xf32, #tpu.memory_space<vmem>>, vector<64x8xf32>,
    return
  }
  func.func @transform_0(%arg0: i32) -> (i32, i32) {
    %c0_i32 = arith.constant 0 : i32
    %c0_i32_0 = arith.constant 0 : i32
    %c0_i32_1 = arith.constant 0 : i32
    return %c0_i32, %c0_i32_0 : i32, i32
  }
  func.func @transform_1(%arg0: i32) -> (i32, i32) {
    %c0_i32 = arith.constant 0 : i32
    %c0_i32_0 = arith.constant 0 : i32
    %c0_i32_1 = arith.constant 0 : i32
    return %c0_i32, %c0_i32_0 : i32, i32
  }
  func.func @transform_2(%arg0: i32) -> (i32, i32) {
    %c0_i32 = arith.constant 0 : i32
    %c0_i32_0 = arith.constant 0 : i32
    %c0_i32_1 = arith.constant 0 : i32
    return %c0_i32, %c0_i32_0 : i32, i32
  }
  func.func @transform_3(%arg0: i32) -> (i32, i32) {
    %c0_i32 = arith.constant 0 : i32
    %c0_i32_0 = arith.constant 0 : i32
    %c0_i32_1 = arith.constant 0 : i32
    return %c0_i32, %c0_i32_0 : i32, i32
  }
  func.func @transform_4(%arg0: i32) -> (i32, i32) {
    %c0_i32 = arith.constant 0 : i32
    %c0_i32_0 = arith.constant 0 : i32
    %c0_i32_1 = arith.constant 0 : i32
    return %c0_i32, %c0_i32_0 : i32, i32
  }
  func.func @transform_5(%arg0: i32) -> (i32, i32) {
    %c0_i32 = arith.constant 0 : i32
    %c0_i32_0 = arith.constant 0 : i32
    %c0_i32_1 = arith.constant 0 : i32
    return %c0_i32, %c0_i32_0 : i32, i32
  }
  func.func @transform_6(%arg0: i32) -> (i32, i32) {
    %c0_i32 = arith.constant 0 : i32
    %c0_i32_0 = arith.constant 0 : i32
    %c0_i32_1 = arith.constant 0 : i32
    return %c0_i32, %c0_i32_0 : i32, i32
  }
  func.func @transform_7(%arg0: i32) -> (i32, i32) {
    %c0_i32 = arith.constant 0 : i32
    %c0_i32_0 = arith.constant 0 : i32
    %c0_i32_1 = arith.constant 0 : i32
    return %c0_i32, %c0_i32_0 : i32, i32
  }
  func.func @transform_8(%arg0: i32) -> (i32, i32) {
    %c0_i32 = arith.constant 0 : i32
    %c0_i32_0 = arith.constant 0 : i32
    %c0_i32_1 = arith.constant 0 : i32
    return %c0_i32, %c0_i32_0 : i32, i32
  }
  func.func @transform_9(%arg0: i32) -> (i32, i32) {
    %c0_i32 = arith.constant 0 : i32
    %c0_i32_0 = arith.constant 0 : i32
    %c0_i32_1 = arith.constant 0 : i32
    return %c0_i32, %c0_i32_0 : i32, i32
  }
  func.func @transform_10(%arg0: i32) -> (i32, i32) {
    %c0_i32 = arith.constant 0 : i32
    %c0_i32_0 = arith.constant 0 : i32
    %c0_i32_1 = arith.constant 0 : i32
    return %c0_i32, %c0_i32_0 : i32, i32
  }
  func.func @transform_11(%arg0: i32) -> (i32, i32) {
    %c0_i32 = arith.constant 0 : i32
    %c0_i32_0 = arith.constant 0 : i32
    %c0_i32_1 = arith.constant 0 : i32
    return %c0_i32, %c0_i32_0 : i32, i32
  }
  func.func @transform_12(%arg0: i32) -> (i32, i32) {
    %c0_i32 = arith.constant 0 : i32
    %c0_i32_0 = arith.constant 0 : i32
    %c0_i32_1 = arith.constant 0 : i32
    return %c0_i32, %c0_i32_0 : i32, i32
  }
  func.func @transform_13(%arg0: i32) -> (i32, i32) {
    %c0_i32 = arith.constant 0 : i32
    %c0_i32_0 = arith.constant 0 : i32
    %c0_i32_1 = arith.constant 0 : i32
    return %c0_i32, %c0_i32_0 : i32, i32
  }
  func.func @transform_14(%arg0: i32) -> (i32, i32) {
    %c0_i32 = arith.constant 0 : i32
    %c0_i32_0 = arith.constant 0 : i32
    %c0_i32_1 = arith.constant 0 : i32
    return %c0_i32, %c0_i32_0 : i32, i32
  }
  func.func @transform_15(%arg0: i32) -> (i32, i32) {
    %c0_i32 = arith.constant 0 : i32
    %c0_i32_0 = arith.constant 0 : i32
    %c0_i32_1 = arith.constant 0 : i32
    return %c0_i32, %c0_i32_0 : i32, i32
  }
  func.func @transform_16(%arg0: i32) -> (i32, i32) {
    %c0_i32 = arith.constant 0 : i32
    %c0_i32_0 = arith.constant 0 : i32
    %c0_i32_1 = arith.constant 0 : i32
    return %c0_i32, %c0_i32_0 : i32, i32
  }
  func.func @transform_17(%arg0: i32) -> (i32, i32) {
    %c0_i32 = arith.constant 0 : i32
    %c0_i32_0 = arith.constant 0 : i32
    %c0_i32_1 = arith.constant 0 : i32
    return %c0_i32, %c0_i32_0 : i32, i32
  }
}

module attributes {stable_mosaic.version = 11 : i64} {
  func.func @kernel(%arg0: i32, %arg1: memref<16x32xf32, #tpu.memory_space<vmem>>, %arg2: memref<16x32xf32, #tpu.memory_space<vmem>>, %arg3: memref<32x32xf32, #tpu.memory_space<vmem>>, %arg4: memref<32x32xf32, #tpu.memory_space<vmem>>, %arg5: memref<1x32xf32, #tpu.memory_space<vmem>>, %arg6: memref<32x4xf32, #tpu.memory_space<vmem>>, %arg7: memref<1x4xf32, #tpu.memory_space<vmem>>, %arg8: memref<16x4xf32, #tpu.memory_space<vmem>>) attributes {dimension_semantics = [#tpu.dimension_semantics<arbitrary>], iteration_bounds = array<i64: 1>, scalar_prefetch = 0 : i64, scratch_operands = 0 : i64, tpu.core_type = #tpu.core_type<tc>, window_params = [{pipeline_mode = #tpu.pipeline_mode<synchronous>, transform_indices = @transform_0, window_bounds = array<i64: 16, 32>}, {pipeline_mode = #tpu.pipeline_mode<synchronous>, transform_indices = @transform_1, window_bounds = array<i64: 16, 32>}, {pipeline_mode = #tpu.pipeline_mode<synchronous>, transform_indices = @transform_2, window_bounds = array<i64: 32, 32>}, {pipeline_mode = #tpu.pipeline_mode<synchronous>, transform_indices = @transform_3, window_bounds = array<i64: 32, 32>}, {pipeline_mode = #tpu.pipeline_mode<synchronous>, transform_indices = @transform_4, window_bounds = array<i64: 1, 32>}, {pipeline_mode = #tpu.pipeline_mode<synchronous>, transform_indices = @transform_5, window_bounds = array<i64: 32, 4>}, {pipeline_mode = #tpu.pipeline_mode<synchronous>, transform_indices = @transform_6, window_bounds = array<i64: 1, 4>}, {pipeline_mode = #tpu.pipeline_mode<synchronous>, transform_indices = @transform_7, window_bounds = array<i64: 16, 4>}]} {
    %c0 = arith.constant 0 : index
    %c0_0 = arith.constant 0 : index
    %0 = vector.load %arg1[%c0, %c0_0] : memref<16x32xf32, #tpu.memory_space<vmem>>, vector<16x32xf32>
    %c0_1 = arith.constant 0 : index
    %c0_2 = arith.constant 0 : index
    %1 = vector.load %arg3[%c0_1, %c0_2] : memref<32x32xf32, #tpu.memory_space<vmem>>, vector<32x32xf32>
    %cst = arith.constant dense<0.000000e+00> : vector<16x32xf32>
    %2 = tpu.matmul %0, %1, %cst {dimension_numbers = #tpu.dot_dimension_numbers<[1], [0], [0], [1], [0, 0, 1, 1], [], []>} : vector<16x32xf32>, vector<32x32xf32>, vector<16x32xf32> -> vector<16x32xf32>
    %c0_3 = arith.constant 0 : index
    %c0_4 = arith.constant 0 : index
    %3 = vector.load %arg2[%c0_3, %c0_4] : memref<16x32xf32, #tpu.memory_space<vmem>>, vector<16x32xf32>
    %c0_5 = arith.constant 0 : index
    %c0_6 = arith.constant 0 : index
    %4 = vector.load %arg4[%c0_5, %c0_6] : memref<32x32xf32, #tpu.memory_space<vmem>>, vector<32x32xf32>
    %cst_7 = arith.constant dense<0.000000e+00> : vector<16x32xf32>
    %5 = tpu.matmul %3, %4, %cst_7 {dimension_numbers = #tpu.dot_dimension_numbers<[1], [0], [0], [1], [0, 0, 1, 1], [], []>} : vector<16x32xf32>, vector<32x32xf32>, vector<16x32xf32> -> vector<16x32xf32>
    %6 = arith.addf %2, %5 : vector<16x32xf32>
    %c0_8 = arith.constant 0 : index
    %c0_9 = arith.constant 0 : index
    %7 = vector.load %arg5[%c0_8, %c0_9] : memref<1x32xf32, #tpu.memory_space<vmem>>, vector<1x32xf32>
    %8 = vector.broadcast %7 : vector<1x32xf32> to vector<16x32xf32>
    %9 = arith.addf %6, %8 : vector<16x32xf32>
    %cst_10 = arith.constant 0.000000e+00 : f32
    %10 = vector.broadcast %cst_10 : f32 to vector<16x32xf32>
    %11 = arith.maximumf %9, %10 : vector<16x32xf32>
    %c0_11 = arith.constant 0 : index
    %c0_12 = arith.constant 0 : index
    %12 = vector.load %arg6[%c0_11, %c0_12] : memref<32x4xf32, #tpu.memory_space<vmem>>, vector<32x4xf32>
    %cst_13 = arith.constant dense<0.000000e+00> : vector<16x4xf32>
    %13 = tpu.matmul %11, %12, %cst_13 {dimension_numbers = #tpu.dot_dimension_numbers<[1], [0], [0], [1], [0, 0, 1, 1], [], []>} : vector<16x32xf32>, vector<32x4xf32>, vector<16x4xf32> -> vector<16x4xf32>
    %c0_14 = arith.constant 0 : index
    %c0_15 = arith.constant 0 : index
    %14 = vector.load %arg7[%c0_14, %c0_15] : memref<1x4xf32, #tpu.memory_space<vmem>>, vector<1x4xf32>
    %15 = vector.broadcast %14 : vector<1x4xf32> to vector<16x4xf32>
    %16 = arith.addf %13, %15 : vector<16x4xf32>
    %c0_16 = arith.constant 0 : index
    %c0_17 = arith.constant 0 : index
    %17 = vector.load %arg8[%c0_16, %c0_17] : memref<16x4xf32, #tpu.memory_space<vmem>>, vector<16x4xf32>
    tpu.vector_store %arg8[%c0_16, %c0_17], %16 {strides = array<i32>} : memref<16x4xf32, #tpu.memory_space<vmem>>, vector<16x4xf32>,
    return
  }
  func.func @transform_0(%arg0: i32) -> (i32, i32) {
    %c0_i32 = arith.constant 0 : i32
    %c0_i32_0 = arith.constant 0 : i32
    %c0_i32_1 = arith.constant 0 : i32
    return %c0_i32, %c0_i32_0 : i32, i32
  }
  func.func @transform_1(%arg0: i32) -> (i32, i32) {
    %c0_i32 = arith.constant 0 : i32
    %c0_i32_0 = arith.constant 0 : i32
    %c0_i32_1 = arith.constant 0 : i32
    return %c0_i32, %c0_i32_0 : i32, i32
  }
  func.func @transform_2(%arg0: i32) -> (i32, i32) {
    %c0_i32 = arith.constant 0 : i32
    %c0_i32_0 = arith.constant 0 : i32
    %c0_i32_1 = arith.constant 0 : i32
    return %c0_i32, %c0_i32_0 : i32, i32
  }
  func.func @transform_3(%arg0: i32) -> (i32, i32) {
    %c0_i32 = arith.constant 0 : i32
    %c0_i32_0 = arith.constant 0 : i32
    %c0_i32_1 = arith.constant 0 : i32
    return %c0_i32, %c0_i32_0 : i32, i32
  }
  func.func @transform_4(%arg0: i32) -> (i32, i32) {
    %c0_i32 = arith.constant 0 : i32
    %c0_i32_0 = arith.constant 0 : i32
    %c0_i32_1 = arith.constant 0 : i32
    return %c0_i32, %c0_i32_0 : i32, i32
  }
  func.func @transform_5(%arg0: i32) -> (i32, i32) {
    %c0_i32 = arith.constant 0 : i32
    %c0_i32_0 = arith.constant 0 : i32
    %c0_i32_1 = arith.constant 0 : i32
    return %c0_i32, %c0_i32_0 : i32, i32
  }
  func.func @transform_6(%arg0: i32) -> (i32, i32) {
    %c0_i32 = arith.constant 0 : i32
    %c0_i32_0 = arith.constant 0 : i32
    %c0_i32_1 = arith.constant 0 : i32
    return %c0_i32, %c0_i32_0 : i32, i32
  }
  func.func @transform_7(%arg0: i32) -> (i32, i32) {
    %c0_i32 = arith.constant 0 : i32
    %c0_i32_0 = arith.constant 0 : i32
    %c0_i32_1 = arith.constant 0 : i32
    return %c0_i32, %c0_i32_0 : i32, i32
  }
}

</mosaic_0001>

<llo_original>
// kernel: _lambda_.13
$region0: #{_lambda_.13}
  #allocation0 [shape = 'u32[]', space=smem, size = 0x4, offset = 0x4, fixed_abs, tag = 'smem constant byte address 0x4 - core index']
  #allocation1 [shape = 'u32[144,128]{1,0:T(1,128)}', space=vmem, size = 0x12000, scoped, tag = 'internal scratch']
  %s0 = inlined_call_operand.vmem [shape: f32[16,32], index: 0, kind: input, shape index: {}]
  %s1 = inlined_call_operand.vmem [shape: f32[16,4], index: 1, kind: input, shape index: {}]
  %s2 = inlined_call_operand.vmem [shape: f32[32,32], index: 2, kind: input, shape index: {}]
  %s3 = inlined_call_operand.vmem [shape: f32[1,32], index: 3, kind: input, shape index: {}]
  %s4 = inlined_call_operand.vmem [shape: f32[1,32,32], index: 4, kind: input, shape index: {}]
  %s5 = inlined_call_operand.vmem [shape: f32[1,1,32], index: 5, kind: input, shape index: {}]
  %s6 = inlined_call_operand.vmem [shape: f32[32,128], index: 6, kind: input, shape index: {}]
  %s7 = inlined_call_operand.vmem [shape: f32[1,128], index: 7, kind: input, shape index: {}]
  %s8 = inlined_call_operand.vmem [shape: f32[32,4], index: 8, kind: input, shape index: {}]
  %s9 = inlined_call_operand.vmem [shape: f32[1,4], index: 9, kind: input, shape index: {}]
  %s10 = inlined_call_operand.vmem [shape: f32[4,4], index: 10, kind: input, shape index: {}]
  %s11 = inlined_call_operand.vmem [shape: f32[1,4], index: 11, kind: input, shape index: {}]
  %s12 = inlined_call_operand.vmem [shape: f32[4,8], index: 12, kind: input, shape index: {}]
  %s13 = inlined_call_operand.vmem [shape: f32[1,8], index: 13, kind: input, shape index: {}]
  %s14 = inlined_call_operand.vmem [shape: f32[8,4], index: 14, kind: input, shape index: {}]
  %s15 = inlined_call_operand.vmem [shape: f32[1,4], index: 15, kind: input, shape index: {}]
  %s16 = inlined_call_operand.vmem [shape: f32[16,4], index: 16, kind: output, shape index: {0}]
  %s17 = inlined_call_operand.vmem [shape: f32[16,4], index: 17, kind: output, shape index: {1}]
  %18 = xla_tuple %s16, %s17
  %s19 = sld [smem:[#allocation0]]
  $region82: #{_lambda_.13} parent=0
    _
  %s21 = ssub.s32 1, %s19
  %s22 = scalar_select 0, %s21, %s19
  // Predicated region
  $region2: #{_lambda_.13} parent=0 // pred_check
    _
  $region3: #{_lambda_.13} parent=0 // pred_check_branch
    %24 = sbr.rel (0) target = $region5
  $region4: #{_lambda_.13} parent=0 // pred_region
    _
  $region5: #{_lambda_.13} parent=0 // pred_fallthru
    _
  // Predicated region
  $region6: #{_lambda_.13} parent=0 // pred_check
    _
  $region7: #{_lambda_.13} parent=0 // pred_check_branch
    %26 = sbr.rel (0) target = $region9
  $region8: #{_lambda_.13} parent=0 // pred_region
    _
  $region9: #{_lambda_.13} parent=0 // pred_fallthru
    _
  // Predicated region
  $region10: #{_lambda_.13} parent=0 // pred_check
    _
  $region11: #{_lambda_.13} parent=0 // pred_check_branch
    %28 = sbr.rel (0) target = $region13
  $region12: #{_lambda_.13} parent=0 // pred_region
    _
  $region13: #{_lambda_.13} parent=0 // pred_fallthru
    _
  // Predicated region
  $region14: #{_lambda_.13} parent=0 // pred_check
    _
  $region15: #{_lambda_.13} parent=0 // pred_check_branch
    %30 = sbr.rel (0) target = $region17
  $region16: #{_lambda_.13} parent=0 // pred_region
    _
  $region17: #{_lambda_.13} parent=0 // pred_fallthru
    _
  // Predicated region
  $region18: #{_lambda_.13} parent=0 // pred_check
    _
  $region19: #{_lambda_.13} parent=0 // pred_check_branch
    %32 = sbr.rel (0) target = $region21
  $region20: #{_lambda_.13} parent=0 // pred_region
    _
  $region21: #{_lambda_.13} parent=0 // pred_fallthru
    _
  // Predicated region
  $region22: #{_lambda_.13} parent=0 // pred_check
    _
  $region23: #{_lambda_.13} parent=0 // pred_check_branch
    %34 = sbr.rel (0) target = $region25
  $region24: #{_lambda_.13} parent=0 // pred_region
    _
  $region25: #{_lambda_.13} parent=0 // pred_fallthru
    _
  // Predicated region
  $region26: #{_lambda_.13} parent=0 // pred_check
    _
  $region27: #{_lambda_.13} parent=0 // pred_check_branch
    %36 = sbr.rel (0) target = $region29
  $region28: #{_lambda_.13} parent=0 // pred_region
    _
  $region29: #{_lambda_.13} parent=0 // pred_fallthru
    _
  // Predicated region
  $region30: #{_lambda_.13} parent=0 // pred_check
    _
  $region31: #{_lambda_.13} parent=0 // pred_check_branch
    %38 = sbr.rel (0) target = $region33
  $region32: #{_lambda_.13} parent=0 // pred_region
    _
  $region33: #{_lambda_.13} parent=0 // pred_fallthru
    _
  // Predicated region
  $region34: #{_lambda_.13} parent=0 // pred_check
    _
  $region35: #{_lambda_.13} parent=0 // pred_check_branch
    %40 = sbr.rel (0) target = $region37
  $region36: #{_lambda_.13} parent=0 // pred_region
    _
  $region37: #{_lambda_.13} parent=0 // pred_fallthru
    _
  // Predicated region
  $region38: #{_lambda_.13} parent=0 // pred_check
    _
  $region39: #{_lambda_.13} parent=0 // pred_check_branch
    %42 = sbr.rel (0) target = $region41
  $region40: #{_lambda_.13} parent=0 // pred_region
    _
  $region41: #{_lambda_.13} parent=0 // pred_fallthru
    _
  // Predicated region
  $region42: #{_lambda_.13} parent=0 // pred_check
    _
  $region43: #{_lambda_.13} parent=0 // pred_check_branch
    %44 = sbr.rel (0) target = $region45
  $region44: #{_lambda_.13} parent=0 // pred_region
    _
  $region45: #{_lambda_.13} parent=0 // pred_fallthru
    _
  // Predicated region
  $region46: #{_lambda_.13} parent=0 // pred_check
    _
  $region47: #{_lambda_.13} parent=0 // pred_check_branch
    %46 = sbr.rel (0) target = $region49
  $region48: #{_lambda_.13} parent=0 // pred_region
    _
  $region49: #{_lambda_.13} parent=0 // pred_fallthru
    _
  // Predicated region
  $region50: #{_lambda_.13} parent=0 // pred_check
    _
  $region51: #{_lambda_.13} parent=0 // pred_check_branch
    %48 = sbr.rel (0) target = $region53
  $region52: #{_lambda_.13} parent=0 // pred_region
    _
  $region53: #{_lambda_.13} parent=0 // pred_fallthru
    _
  // Predicated region
  $region54: #{_lambda_.13} parent=0 // pred_check
    _
  $region55: #{_lambda_.13} parent=0 // pred_check_branch
    %50 = sbr.rel (0) target = $region57
  $region56: #{_lambda_.13} parent=0 // pred_region
    _
  $region57: #{_lambda_.13} parent=0 // pred_fallthru
    _
  // Predicated region
  $region58: #{_lambda_.13} parent=0 // pred_check
    _
  $region59: #{_lambda_.13} parent=0 // pred_check_branch
    %52 = sbr.rel (0) target = $region61
  $region60: #{_lambda_.13} parent=0 // pred_region
    _
  $region61: #{_lambda_.13} parent=0 // pred_fallthru
    _
  // Predicated region
  $region62: #{_lambda_.13} parent=0 // pred_check
    _
  $region63: #{_lambda_.13} parent=0 // pred_check_branch
    %54 = sbr.rel (0) target = $region65
  $region64: #{_lambda_.13} parent=0 // pred_region
    _
  $region65: #{_lambda_.13} parent=0 // pred_fallthru
    _
  %v55 = vld [vmem:[%s0] sm:$0xff]
  %v56 = vld [vmem:[%s0 + $0x8] sm:$0xff]
  %v57 = vld [vmem:[%s2] sm:$0xff]
  %v58 = vld [vmem:[%s2 + $0x8] sm:$0xff]
  %v59 = vld [vmem:[%s2 + $0x10] sm:$0xff]
  %v60 = vld [vmem:[%s2 + $0x18] sm:$0xff]
  %v61 = vld [vmem:[%s3] sm:$0x1]
  %v63 = vlaneseq
  %v64 = vshrl.u32 %v63, 7
  %v65 = vsub.s32 0, %v64
  %v66 = vrot.slane %v61, %v65
  %vm68 = vcmask 261120
  %v70 = vsel %vm68, %v55, 0
  %v73 = vsel %vm68, %v56, 0
  %75 = vmatprep.subr.mxu0 0.0
  %76 = vmatpush1.msra.mxu0 0.0
  %77 = vmatprep.subr.mxu0 0.0
  %78 = vmatpush1.msra.mxu0 0.0
  %79 = vmatprep.subr.mxu0 0.0
  %80 = vmatpush1.msra.mxu0 0.0
  %81 = vmatprep.subr.mxu0 0.0
  %82 = vmatpush1.msra.mxu0 0.0
  %83 = vmatprep.subr.mxu0 0.0
  %84 = vmatpush1.msra.mxu0 0.0
  %85 = vmatprep.subr.mxu0 0.0
  %86 = vmatpush1.msra.mxu0 0.0
  %87 = vmatprep.subr.mxu0 0.0
  %88 = vmatpush1.msra.mxu0 0.0
  %89 = vmatprep.subr.mxu0 0.0
  %90 = vmatpush1.msra.mxu0 0.0
  %91 = vmatprep.subr.mxu0 0.0
  %92 = vmatpush1.msra.mxu0 0.0
  %93 = vmatprep.subr.mxu0 0.0
  %94 = vmatpush1.msra.mxu0 0.0
  %95 = vmatprep.subr.mxu0 0.0
  %96 = vmatpush1.msra.mxu0 0.0
  %97 = vmatprep.subr.mxu0 0.0
  %98 = vmatpush1.msra.mxu0 0.0
  %99 = vmatprep.subr.mxu0 0.0
  %100 = vmatpush1.msra.mxu0 %v60
  %101 = vmatprep.subr.mxu0 0.0
  %102 = vmatpush1.msra.mxu0 %v59
  %103 = vmatprep.subr.mxu0 0.0
  %104 = vmatpush1.msra.mxu0 %v58
  %105 = vmatprep.subr.mxu0 0.0
  %106 = vmatpush1.msra.mxu0 %v57
  %107 = vmatprep.subr.mxu0 0.0
  %108 = vmatpush2.msra.mxu0 0.0
  %109 = vmatprep.subr.mxu0 0.0
  %110 = vmatpush2.msra.mxu0 0.0
  %111 = vmatprep.subr.mxu0 0.0
  %112 = vmatpush2.msra.mxu0 0.0
  %113 = vmatprep.subr.mxu0 0.0
  %114 = vmatpush2.msra.mxu0 0.0
  %115 = vmatprep.subr.mxu0 0.0
  %116 = vmatpush2.msra.mxu0 0.0
  %117 = vmatprep.subr.mxu0 0.0
  %118 = vmatpush2.msra.mxu0 0.0
  %119 = vmatprep.subr.mxu0 0.0
  %120 = vmatpush2.msra.mxu0 0.0
  %121 = vmatprep.subr.mxu0 0.0
  %122 = vmatpush2.msra.mxu0 0.0
  %123 = vmatprep.subr.mxu0 0.0
  %124 = vmatpush2.msra.mxu0 0.0
  %125 = vmatprep.subr.mxu0 0.0
  %126 = vmatpush2.msra.mxu0 0.0
  %127 = vmatprep.subr.mxu0 0.0
  %128 = vmatpush2.msra.mxu0 0.0
  %129 = vmatprep.subr.mxu0 0.0
  %130 = vmatpush2.msra.mxu0 0.0
  %131 = vmatprep.subr.mxu0 0.0
  %132 = vmatpush2.msra.mxu0 0.0
  %133 = vmatprep.subr.mxu0 0.0
  %134 = vmatpush2.msra.mxu0 0.0
  %135 = vmatprep.subr.mxu0 0.0
  %136 = vmatpush2.msra.mxu0 0.0
  %137 = vmatprep.subr.mxu0 0.0
  %138 = vmatpush2.msra.mxu0 0.0
  %139 = vmatprep.mubr.f32.mxu0 0.0
  %140 = vmatmul.mubr.f32.gmra.mxu0 %v70
  %v141 = vpop.f32.mrf.mxu0
  %v142 = vadd.f32 %v66, %v141
  %v143 = vpop.f32.mrf.mxu0
  %144 = vmatprep.mubr.f32.mxu0 0.0
  %145 = vmatmul.mubr.f32.gmra.mxu0 %v73
  %v146 = vpop.f32.mrf.mxu0
  %v147 = vadd.f32 %v66, %v146
  %v148 = vpop.f32.mrf.mxu0
  %149 = vdwg.mxu0
  %v150 = vmax.f32 %v142, 0.0
  %v151 = vmax.f32 %v147, 0.0
  %v152 = vld [vmem:[%s4] sm:$0xff]
  %v153 = vld [vmem:[%s4 + $0x8] sm:$0xff]
  %v154 = vld [vmem:[%s4 + $0x10] sm:$0xff]
  %v155 = vld [vmem:[%s4 + $0x18] sm:$0xff]
  %v156 = vld [vmem:[%s5] sm:$0x1]
  %v158 = vlaneseq
  %v159 = vshrl.u32 %v158, 7
  %v160 = vsub.s32 0, %v159
  %v161 = vrot.slane %v156, %v160
  %v164 = vsel %vm68, %v150, 0
  %v167 = vsel %vm68, %v151, 0
  %169 = vmatprep.subr.mxu0 0.0
  %170 = vmatpush1.msra.mxu0 0.0
  %171 = vmatprep.subr.mxu0 0.0
  %172 = vmatpush1.msra.mxu0 0.0
  %173 = vmatprep.subr.mxu0 0.0
  %174 = vmatpush1.msra.mxu0 0.0
  %175 = vmatprep.subr.mxu0 0.0
  %176 = vmatpush1.msra.mxu0 0.0
  %177 = vmatprep.subr.mxu0 0.0
  %178 = vmatpush1.msra.mxu0 0.0
  %179 = vmatprep.subr.mxu0 0.0
  %180 = vmatpush1.msra.mxu0 0.0
  %181 = vmatprep.subr.mxu0 0.0
  %182 = vmatpush1.msra.mxu0 0.0
  %183 = vmatprep.subr.mxu0 0.0
  %184 = vmatpush1.msra.mxu0 0.0
  %185 = vmatprep.subr.mxu0 0.0
  %186 = vmatpush1.msra.mxu0 0.0
  %187 = vmatprep.subr.mxu0 0.0
  %188 = vmatpush1.msra.mxu0 0.0
  %189 = vmatprep.subr.mxu0 0.0
  %190 = vmatpush1.msra.mxu0 0.0
  %191 = vmatprep.subr.mxu0 0.0
  %192 = vmatpush1.msra.mxu0 0.0
  %193 = vmatprep.subr.mxu0 0.0
  %194 = vmatpush1.msra.mxu0 %v155
  %195 = vmatprep.subr.mxu0 0.0
  %196 = vmatpush1.msra.mxu0 %v154
  %197 = vmatprep.subr.mxu0 0.0
  %198 = vmatpush1.msra.mxu0 %v153
  %199 = vmatprep.subr.mxu0 0.0
  %200 = vmatpush1.msra.mxu0 %v152
  %201 = vmatprep.subr.mxu0 0.0
  %202 = vmatpush2.msra.mxu0 0.0
  %203 = vmatprep.subr.mxu0 0.0
  %204 = vmatpush2.msra.mxu0 0.0
  %205 = vmatprep.subr.mxu0 0.0
  %206 = vmatpush2.msra.mxu0 0.0
  %207 = vmatprep.subr.mxu0 0.0
  %208 = vmatpush2.msra.mxu0 0.0
  %209 = vmatprep.subr.mxu0 0.0
  %210 = vmatpush2.msra.mxu0 0.0
  %211 = vmatprep.subr.mxu0 0.0
  %212 = vmatpush2.msra.mxu0 0.0
  %213 = vmatprep.subr.mxu0 0.0
  %214 = vmatpush2.msra.mxu0 0.0
  %215 = vmatprep.subr.mxu0 0.0
  %216 = vmatpush2.msra.mxu0 0.0
  %217 = vmatprep.subr.mxu0 0.0
  %218 = vmatpush2.msra.mxu0 0.0
  %219 = vmatprep.subr.mxu0 0.0
  %220 = vmatpush2.msra.mxu0 0.0
  %221 = vmatprep.subr.mxu0 0.0
  %222 = vmatpush2.msra.mxu0 0.0
  %223 = vmatprep.subr.mxu0 0.0
  %224 = vmatpush2.msra.mxu0 0.0
  %225 = vmatprep.subr.mxu0 0.0
  %226 = vmatpush2.msra.mxu0 0.0
  %227 = vmatprep.subr.mxu0 0.0
  %228 = vmatpush2.msra.mxu0 0.0
  %229 = vmatprep.subr.mxu0 0.0
  %230 = vmatpush2.msra.mxu0 0.0
  %231 = vmatprep.subr.mxu0 0.0
  %232 = vmatpush2.msra.mxu0 0.0
  %233 = vmatprep.mubr.f32.mxu0 0.0
  %234 = vmatmul.mubr.f32.gmra.mxu0 %v164
  %v235 = vpop.f32.mrf.mxu0
  %v236 = vadd.f32 %v161, %v235
  %v237 = vpop.f32.mrf.mxu0
  %238 = vmatprep.mubr.f32.mxu0 0.0
  %239 = vmatmul.mubr.f32.gmra.mxu0 %v167
  %v240 = vpop.f32.mrf.mxu0
  %v241 = vadd.f32 %v161, %v240
  %v242 = vpop.f32.mrf.mxu0
  %243 = vdwg.mxu0
  %v244 = vmax.f32 %v236, 0.0
  %v245 = vmax.f32 %v241, 0.0
  %v246 = vld [vmem:[%s6] sm:$0xff]
  %v247 = vld [vmem:[%s6 + $0x8] sm:$0xff]
  %v248 = vld [vmem:[%s6 + $0x10] sm:$0xff]
  %v249 = vld [vmem:[%s6 + $0x18] sm:$0xff]
  %v250 = vld [vmem:[%s7] sm:$0x1]
  %v252 = vlaneseq
  %v253 = vshrl.u32 %v252, 7
  %v254 = vsub.s32 0, %v253
  %v255 = vrot.slane %v250, %v254
  %v258 = vsel %vm68, %v244, 0
  %v261 = vsel %vm68, %v245, 0
  %263 = vmatprep.subr.mxu0 0.0
  %264 = vmatpush1.msra.mxu0 0.0
  %265 = vmatprep.subr.mxu0 0.0
  %266 = vmatpush1.msra.mxu0 0.0
  %267 = vmatprep.subr.mxu0 0.0
  %268 = vmatpush1.msra.mxu0 0.0
  %269 = vmatprep.subr.mxu0 0.0
  %270 = vmatpush1.msra.mxu0 0.0
  %271 = vmatprep.subr.mxu0 0.0
  %272 = vmatpush1.msra.mxu0 0.0
  %273 = vmatprep.subr.mxu0 0.0
  %274 = vmatpush1.msra.mxu0 0.0
  %275 = vmatprep.subr.mxu0 0.0
  %276 = vmatpush1.msra.mxu0 0.0
  %277 = vmatprep.subr.mxu0 0.0
  %278 = vmatpush1.msra.mxu0 0.0
  %279 = vmatprep.subr.mxu0 0.0
  %280 = vmatpush1.msra.mxu0 0.0
  %281 = vmatprep.subr.mxu0 0.0
  %282 = vmatpush1.msra.mxu0 0.0
  %283 = vmatprep.subr.mxu0 0.0
  %284 = vmatpush1.msra.mxu0 0.0
  %285 = vmatprep.subr.mxu0 0.0
  %286 = vmatpush1.msra.mxu0 0.0
  %287 = vmatprep.subr.mxu0 0.0
  %288 = vmatpush1.msra.mxu0 %v249
  %289 = vmatprep.subr.mxu0 0.0
  %290 = vmatpush1.msra.mxu0 %v248
  %291 = vmatprep.subr.mxu0 0.0
  %292 = vmatpush1.msra.mxu0 %v247
  %293 = vmatprep.subr.mxu0 0.0
  %294 = vmatpush1.msra.mxu0 %v246
  %295 = vmatprep.subr.mxu0 0.0
  %296 = vmatpush2.msra.mxu0 0.0
  %297 = vmatprep.subr.mxu0 0.0
  %298 = vmatpush2.msra.mxu0 0.0
  %299 = vmatprep.subr.mxu0 0.0
  %300 = vmatpush2.msra.mxu0 0.0
  %301 = vmatprep.subr.mxu0 0.0
  %302 = vmatpush2.msra.mxu0 0.0
  %303 = vmatprep.subr.mxu0 0.0
  %304 = vmatpush2.msra.mxu0 0.0
  %305 = vmatprep.subr.mxu0 0.0
  %306 = vmatpush2.msra.mxu0 0.0
  %307 = vmatprep.subr.mxu0 0.0
  %308 = vmatpush2.msra.mxu0 0.0
  %309 = vmatprep.subr.mxu0 0.0
  %310 = vmatpush2.msra.mxu0 0.0
  %311 = vmatprep.subr.mxu0 0.0
  %312 = vmatpush2.msra.mxu0 0.0
  %313 = vmatprep.subr.mxu0 0.0
  %314 = vmatpush2.msra.mxu0 0.0
  %315 = vmatprep.subr.mxu0 0.0
  %316 = vmatpush2.msra.mxu0 0.0
  %317 = vmatprep.subr.mxu0 0.0
  %318 = vmatpush2.msra.mxu0 0.0
  %319 = vmatprep.subr.mxu0 0.0
  %320 = vmatpush2.msra.mxu0 0.0
  %321 = vmatprep.subr.mxu0 0.0
  %322 = vmatpush2.msra.mxu0 0.0
  %323 = vmatprep.subr.mxu0 0.0
  %324 = vmatpush2.msra.mxu0 0.0
  %325 = vmatprep.subr.mxu0 0.0
  %326 = vmatpush2.msra.mxu0 0.0
  %327 = vmatprep.mubr.f32.mxu0 0.0
  %328 = vmatmul.mubr.f32.gmra.mxu0 %v258
  %v329 = vpop.f32.mrf.mxu0
  %v330 = vadd.f32 %v255, %v329
  %v331 = vpop.f32.mrf.mxu0
  %332 = vmatprep.mubr.f32.mxu0 0.0
  %333 = vmatmul.mubr.f32.gmra.mxu0 %v261
  %v334 = vpop.f32.mrf.mxu0
  %v335 = vadd.f32 %v255, %v334
  %v336 = vpop.f32.mrf.mxu0
  %337 = vdwg.mxu0
  %v338 = vld [vmem:[%s1] sm:$0xff]
  %v339 = vld [vmem:[%s1 + $0x8] sm:$0xff]
  %341 = vset.pattern.permute.xlu0 0
  %342 = vperm.xlu0 %341, %v338
  %v343 = vpop.permute.xlu0 %342
  %346 = vset.pattern.permute.xlu0 0
  %347 = vperm.xlu0 %346, %v339
  %v348 = vpop.permute.xlu0 %347
  %v350 = vmul.f32 %v330, %v343
  %v351 = vmul.f32 %v335, %v348
  %v352 = vadd.f32 %v350, 0.0
  %v353 = vadd.f32 %v351, 0.0
  %354 = vset.pattern.permute.xlu0 1
  %355 = vperm.xlu0 %354, %v338
  %v356 = vpop.permute.xlu0 %355
  %358 = vset.pattern.permute.xlu0 1
  %359 = vperm.xlu0 %358, %v339
  %v360 = vpop.permute.xlu0 %359
  %v362 = vmul.f32 %v330, %v356
  %v363 = vmul.f32 %v335, %v360
  %366 = vrot.lane.b32.xlu0 %v362, 96
  %v367 = vpop.permute.xlu0 %366
  %368 = vrot.lane.b32.xlu0 %v363, 96
  %v369 = vpop.permute.xlu0 %368
  %v372 = vadd.f32 %v352, %v367
  %v373 = vadd.f32 %v353, %v369
  %374 = vset.pattern.permute.xlu0 2
  %375 = vperm.xlu0 %374, %v338
  %v376 = vpop.permute.xlu0 %375
  %378 = vset.pattern.permute.xlu0 2
  %379 = vperm.xlu0 %378, %v339
  %v380 = vpop.permute.xlu0 %379
  %v382 = vmul.f32 %v330, %v376
  %v383 = vmul.f32 %v335, %v380
  %386 = vrot.lane.b32.xlu0 %v382, 64
  %v387 = vpop.permute.xlu0 %386
  %388 = vrot.lane.b32.xlu0 %v383, 64
  %v389 = vpop.permute.xlu0 %388
  %v392 = vadd.f32 %v372, %v387
  %v393 = vadd.f32 %v373, %v389
  %394 = vset.pattern.permute.xlu0 3
  %395 = vperm.xlu0 %394, %v338
  %v396 = vpop.permute.xlu0 %395
  %398 = vset.pattern.permute.xlu0 3
  %399 = vperm.xlu0 %398, %v339
  %v400 = vpop.permute.xlu0 %399
  %v402 = vmul.f32 %v330, %v396
  %v403 = vmul.f32 %v335, %v400
  %406 = vrot.lane.b32.xlu0 %v402, 32
  %v407 = vpop.permute.xlu0 %406
  %408 = vrot.lane.b32.xlu0 %v403, 32
  %v409 = vpop.permute.xlu0 %408
  %v412 = vadd.f32 %v392, %v407
  %v413 = vadd.f32 %v393, %v409
  %v414 = vld [vmem:[%s8] sm:$0xff]
  %v415 = vld [vmem:[%s8 + $0x8] sm:$0xff]
  %v416 = vld [vmem:[%s8 + $0x10] sm:$0xff]
  %v417 = vld [vmem:[%s8 + $0x18] sm:$0xff]
  %v418 = vld [vmem:[%s9] sm:$0x1]
  %v420 = vlaneseq
  %v421 = vshrl.u32 %v420, 7
  %v422 = vsub.s32 0, %v421
  %v423 = vrot.slane %v418, %v422
  %v426 = vsel %vm68, %v412, 0
  %v429 = vsel %vm68, %v413, 0
  %431 = vmatprep.subr.mxu0 0.0
  %432 = vmatpush1.msra.mxu0 0.0
  %433 = vmatprep.subr.mxu0 0.0
  %434 = vmatpush1.msra.mxu0 0.0
  %435 = vmatprep.subr.mxu0 0.0
  %436 = vmatpush1.msra.mxu0 0.0
  %437 = vmatprep.subr.mxu0 0.0
  %438 = vmatpush1.msra.mxu0 0.0
  %439 = vmatprep.subr.mxu0 0.0
  %440 = vmatpush1.msra.mxu0 0.0
  %441 = vmatprep.subr.mxu0 0.0
  %442 = vmatpush1.msra.mxu0 0.0
  %443 = vmatprep.subr.mxu0 0.0
  %444 = vmatpush1.msra.mxu0 0.0
  %445 = vmatprep.subr.mxu0 0.0
  %446 = vmatpush1.msra.mxu0 0.0
  %447 = vmatprep.subr.mxu0 0.0
  %448 = vmatpush1.msra.mxu0 0.0
  %449 = vmatprep.subr.mxu0 0.0
  %450 = vmatpush1.msra.mxu0 0.0
  %451 = vmatprep.subr.mxu0 0.0
  %452 = vmatpush1.msra.mxu0 0.0
  %453 = vmatprep.subr.mxu0 0.0
  %454 = vmatpush1.msra.mxu0 0.0
  %455 = vmatprep.subr.mxu0 0.0
  %456 = vmatpush1.msra.mxu0 %v417
  %457 = vmatprep.subr.mxu0 0.0
  %458 = vmatpush1.msra.mxu0 %v416
  %459 = vmatprep.subr.mxu0 0.0
  %460 = vmatpush1.msra.mxu0 %v415
  %461 = vmatprep.subr.mxu0 0.0
  %462 = vmatpush1.msra.mxu0 %v414
  %463 = vmatprep.subr.mxu0 0.0
  %464 = vmatpush2.msra.mxu0 0.0
  %465 = vmatprep.subr.mxu0 0.0
  %466 = vmatpush2.msra.mxu0 0.0
  %467 = vmatprep.subr.mxu0 0.0
  %468 = vmatpush2.msra.mxu0 0.0
  %469 = vmatprep.subr.mxu0 0.0
  %470 = vmatpush2.msra.mxu0 0.0
  %471 = vmatprep.subr.mxu0 0.0
  %472 = vmatpush2.msra.mxu0 0.0
  %473 = vmatprep.subr.mxu0 0.0
  %474 = vmatpush2.msra.mxu0 0.0
  %475 = vmatprep.subr.mxu0 0.0
  %476 = vmatpush2.msra.mxu0 0.0
  %477 = vmatprep.subr.mxu0 0.0
  %478 = vmatpush2.msra.mxu0 0.0
  %479 = vmatprep.subr.mxu0 0.0
  %480 = vmatpush2.msra.mxu0 0.0
  %481 = vmatprep.subr.mxu0 0.0
  %482 = vmatpush2.msra.mxu0 0.0
  %483 = vmatprep.subr.mxu0 0.0
  %484 = vmatpush2.msra.mxu0 0.0
  %485 = vmatprep.subr.mxu0 0.0
  %486 = vmatpush2.msra.mxu0 0.0
  %487 = vmatprep.subr.mxu0 0.0
  %488 = vmatpush2.msra.mxu0 0.0
  %489 = vmatprep.subr.mxu0 0.0
  %490 = vmatpush2.msra.mxu0 0.0
  %491 = vmatprep.subr.mxu0 0.0
  %492 = vmatpush2.msra.mxu0 0.0
  %493 = vmatprep.subr.mxu0 0.0
  %494 = vmatpush2.msra.mxu0 0.0
  %495 = vmatprep.mubr.f32.mxu0 0.0
  %496 = vmatmul.mubr.f32.gmra.mxu0 %v426
  %v497 = vpop.f32.mrf.mxu0
  %v498 = vadd.f32 %v423, %v497
  %v499 = vpop.f32.mrf.mxu0
  %500 = vmatprep.mubr.f32.mxu0 0.0
  %501 = vmatmul.mubr.f32.gmra.mxu0 %v429
  %v502 = vpop.f32.mrf.mxu0
  %v503 = vadd.f32 %v423, %v502
  %v504 = vpop.f32.mrf.mxu0
  %505 = vdwg.mxu0
  %v506 = vmax.f32 %v498, 0.0
  %v507 = vmax.f32 %v503, 0.0
  %v508 = vld [vmem:[%s10] sm:$0xf]
  %v509 = vld [vmem:[%s11] sm:$0x1]
  %v511 = vlaneseq
  %v512 = vshrl.u32 %v511, 7
  %v513 = vsub.s32 0, %v512
  %v514 = vrot.slane %v509, %v513
  %vm516 = vcmask 31744
  %v518 = vsel %vm516, %v506, 0
  %v521 = vsel %vm516, %v507, 0
  %vm523 = vcmask 1043456
  %v525 = vsel %vm523, %v508, 0
  %527 = vmatprep.subr.mxu0 0.0
  %528 = vmatpush1.msra.mxu0 0.0
  %529 = vmatprep.subr.mxu0 0.0
  %530 = vmatpush1.msra.mxu0 0.0
  %531 = vmatprep.subr.mxu0 0.0
  %532 = vmatpush1.msra.mxu0 0.0
  %533 = vmatprep.subr.mxu0 0.0
  %534 = vmatpush1.msra.mxu0 0.0
  %535 = vmatprep.subr.mxu0 0.0
  %536 = vmatpush1.msra.mxu0 0.0
  %537 = vmatprep.subr.mxu0 0.0
  %538 = vmatpush1.msra.mxu0 0.0
  %539 = vmatprep.subr.mxu0 0.0
  %540 = vmatpush1.msra.mxu0 0.0
  %541 = vmatprep.subr.mxu0 0.0
  %542 = vmatpush1.msra.mxu0 0.0
  %543 = vmatprep.subr.mxu0 0.0
  %544 = vmatpush1.msra.mxu0 0.0
  %545 = vmatprep.subr.mxu0 0.0
  %546 = vmatpush1.msra.mxu0 0.0
  %547 = vmatprep.subr.mxu0 0.0
  %548 = vmatpush1.msra.mxu0 0.0
  %549 = vmatprep.subr.mxu0 0.0
  %550 = vmatpush1.msra.mxu0 0.0
  %551 = vmatprep.subr.mxu0 0.0
  %552 = vmatpush1.msra.mxu0 0.0
  %553 = vmatprep.subr.mxu0 0.0
  %554 = vmatpush1.msra.mxu0 0.0
  %555 = vmatprep.subr.mxu0 0.0
  %556 = vmatpush1.msra.mxu0 0.0
  %557 = vmatprep.subr.mxu0 0.0
  %558 = vmatpush1.msra.mxu0 %v525
  %559 = vmatprep.subr.mxu0 0.0
  %560 = vmatpush2.msra.mxu0 0.0
  %561 = vmatprep.subr.mxu0 0.0
  %562 = vmatpush2.msra.mxu0 0.0
  %563 = vmatprep.subr.mxu0 0.0
  %564 = vmatpush2.msra.mxu0 0.0
  %565 = vmatprep.subr.mxu0 0.0
  %566 = vmatpush2.msra.mxu0 0.0
  %567 = vmatprep.subr.mxu0 0.0
  %568 = vmatpush2.msra.mxu0 0.0
  %569 = vmatprep.subr.mxu0 0.0
  %570 = vmatpush2.msra.mxu0 0.0
  %571 = vmatprep.subr.mxu0 0.0
  %572 = vmatpush2.msra.mxu0 0.0
  %573 = vmatprep.subr.mxu0 0.0
  %574 = vmatpush2.msra.mxu0 0.0
  %575 = vmatprep.subr.mxu0 0.0
  %576 = vmatpush2.msra.mxu0 0.0
  %577 = vmatprep.subr.mxu0 0.0
  %578 = vmatpush2.msra.mxu0 0.0
  %579 = vmatprep.subr.mxu0 0.0
  %580 = vmatpush2.msra.mxu0 0.0
  %581 = vmatprep.subr.mxu0 0.0
  %582 = vmatpush2.msra.mxu0 0.0
  %583 = vmatprep.subr.mxu0 0.0
  %584 = vmatpush2.msra.mxu0 0.0
  %585 = vmatprep.subr.mxu0 0.0
  %586 = vmatpush2.msra.mxu0 0.0
  %587 = vmatprep.subr.mxu0 0.0
  %588 = vmatpush2.msra.mxu0 0.0
  %589 = vmatprep.subr.mxu0 0.0
  %590 = vmatpush2.msra.mxu0 0.0
  %591 = vmatprep.mubr.f32.mxu0 0.0
  %592 = vmatmul.mubr.f32.gmra.mxu0 %v518
  %v593 = vpop.f32.mrf.mxu0
  %v594 = vadd.f32 %v514, %v593
  %v595 = vpop.f32.mrf.mxu0
  %596 = vmatprep.mubr.f32.mxu0 0.0
  %597 = vmatmul.mubr.f32.gmra.mxu0 %v521
  %v598 = vpop.f32.mrf.mxu0
  %v599 = vadd.f32 %v514, %v598
  %v600 = vpop.f32.mrf.mxu0
  %601 = vdwg.mxu0
  %602 = vst.msk [vmem:[%s16] sm:$0xff] %vm516, %v594
  %603 = vst.msk [vmem:[%s16 + $0x8] sm:$0xff] %vm516, %v599
  %v604 = vld [vmem:[%s12] sm:$0xf]
  %v605 = vld [vmem:[%s13] sm:$0x1]
  %v607 = vlaneseq
  %v608 = vshrl.u32 %v607, 7
  %v609 = vsub.s32 0, %v608
  %v610 = vrot.slane %v605, %v609
  %v613 = vsel %vm516, %v594, 0
  %v616 = vsel %vm516, %v599, 0
  %v619 = vsel %vm523, %v604, 0
  %621 = vmatprep.subr.mxu0 0.0
  %622 = vmatpush1.msra.mxu0 0.0
  %623 = vmatprep.subr.mxu0 0.0
  %624 = vmatpush1.msra.mxu0 0.0
  %625 = vmatprep.subr.mxu0 0.0
  %626 = vmatpush1.msra.mxu0 0.0
  %627 = vmatprep.subr.mxu0 0.0
  %628 = vmatpush1.msra.mxu0 0.0
  %629 = vmatprep.subr.mxu0 0.0
  %630 = vmatpush1.msra.mxu0 0.0
  %631 = vmatprep.subr.mxu0 0.0
  %632 = vmatpush1.msra.mxu0 0.0
  %633 = vmatprep.subr.mxu0 0.0
  %634 = vmatpush1.msra.mxu0 0.0
  %635 = vmatprep.subr.mxu0 0.0
  %636 = vmatpush1.msra.mxu0 0.0
  %637 = vmatprep.subr.mxu0 0.0
  %638 = vmatpush1.msra.mxu0 0.0
  %639 = vmatprep.subr.mxu0 0.0
  %640 = vmatpush1.msra.mxu0 0.0
  %641 = vmatprep.subr.mxu0 0.0
  %642 = vmatpush1.msra.mxu0 0.0
  %643 = vmatprep.subr.mxu0 0.0
  %644 = vmatpush1.msra.mxu0 0.0
  %645 = vmatprep.subr.mxu0 0.0
  %646 = vmatpush1.msra.mxu0 0.0
  %647 = vmatprep.subr.mxu0 0.0
  %648 = vmatpush1.msra.mxu0 0.0
  %649 = vmatprep.subr.mxu0 0.0
  %650 = vmatpush1.msra.mxu0 0.0
  %651 = vmatprep.subr.mxu0 0.0
  %652 = vmatpush1.msra.mxu0 %v619
  %653 = vmatprep.subr.mxu0 0.0
  %654 = vmatpush2.msra.mxu0 0.0
  %655 = vmatprep.subr.mxu0 0.0
  %656 = vmatpush2.msra.mxu0 0.0
  %657 = vmatprep.subr.mxu0 0.0
  %658 = vmatpush2.msra.mxu0 0.0
  %659 = vmatprep.subr.mxu0 0.0
  %660 = vmatpush2.msra.mxu0 0.0
  %661 = vmatprep.subr.mxu0 0.0
  %662 = vmatpush2.msra.mxu0 0.0
  %663 = vmatprep.subr.mxu0 0.0
  %664 = vmatpush2.msra.mxu0 0.0
  %665 = vmatprep.subr.mxu0 0.0
  %666 = vmatpush2.msra.mxu0 0.0
  %667 = vmatprep.subr.mxu0 0.0
  %668 = vmatpush2.msra.mxu0 0.0
  %669 = vmatprep.subr.mxu0 0.0
  %670 = vmatpush2.msra.mxu0 0.0
  %671 = vmatprep.subr.mxu0 0.0
  %672 = vmatpush2.msra.mxu0 0.0
  %673 = vmatprep.subr.mxu0 0.0
  %674 = vmatpush2.msra.mxu0 0.0
  %675 = vmatprep.subr.mxu0 0.0
  %676 = vmatpush2.msra.mxu0 0.0
  %677 = vmatprep.subr.mxu0 0.0
  %678 = vmatpush2.msra.mxu0 0.0
  %679 = vmatprep.subr.mxu0 0.0
  %680 = vmatpush2.msra.mxu0 0.0
  %681 = vmatprep.subr.mxu0 0.0
  %682 = vmatpush2.msra.mxu0 0.0
  %683 = vmatprep.subr.mxu0 0.0
  %684 = vmatpush2.msra.mxu0 0.0
  %685 = vmatprep.mubr.f32.mxu0 0.0
  %686 = vmatmul.mubr.f32.gmra.mxu0 %v613
  %v687 = vpop.f32.mrf.mxu0
  %v688 = vadd.f32 %v610, %v687
  %v689 = vpop.f32.mrf.mxu0
  %690 = vmatprep.mubr.f32.mxu0 0.0
  %691 = vmatmul.mubr.f32.gmra.mxu0 %v616
  %v692 = vpop.f32.mrf.mxu0
  %v693 = vadd.f32 %v610, %v692
  %v694 = vpop.f32.mrf.mxu0
  %695 = vdwg.mxu0
  %v696 = vmax.f32 %v688, 0.0
  %v697 = vmax.f32 %v693, 0.0
  %v698 = vld [vmem:[%s14] sm:$0xff]
  %v699 = vld [vmem:[%s15] sm:$0x1]
  %v701 = vlaneseq
  %v702 = vshrl.u32 %v701, 7
  %v703 = vsub.s32 0, %v702
  %v704 = vrot.slane %v699, %v703
  %vm706 = vcmask 64512
  %v708 = vsel %vm706, %v696, 0
  %v711 = vsel %vm706, %v697, 0
  %713 = vmatprep.subr.mxu0 0.0
  %714 = vmatpush1.msra.mxu0 0.0
  %715 = vmatprep.subr.mxu0 0.0
  %716 = vmatpush1.msra.mxu0 0.0
  %717 = vmatprep.subr.mxu0 0.0
  %718 = vmatpush1.msra.mxu0 0.0
  %719 = vmatprep.subr.mxu0 0.0
  %720 = vmatpush1.msra.mxu0 0.0
  %721 = vmatprep.subr.mxu0 0.0
  %722 = vmatpush1.msra.mxu0 0.0
  %723 = vmatprep.subr.mxu0 0.0
  %724 = vmatpush1.msra.mxu0 0.0
  %725 = vmatprep.subr.mxu0 0.0
  %726 = vmatpush1.msra.mxu0 0.0
  %727 = vmatprep.subr.mxu0 0.0
  %728 = vmatpush1.msra.mxu0 0.0
  %729 = vmatprep.subr.mxu0 0.0
  %730 = vmatpush1.msra.mxu0 0.0
  %731 = vmatprep.subr.mxu0 0.0
  %732 = vmatpush1.msra.mxu0 0.0
  %733 = vmatprep.subr.mxu0 0.0
  %734 = vmatpush1.msra.mxu0 0.0
  %735 = vmatprep.subr.mxu0 0.0
  %736 = vmatpush1.msra.mxu0 0.0
  %737 = vmatprep.subr.mxu0 0.0
  %738 = vmatpush1.msra.mxu0 0.0
  %739 = vmatprep.subr.mxu0 0.0
  %740 = vmatpush1.msra.mxu0 0.0
  %741 = vmatprep.subr.mxu0 0.0
  %742 = vmatpush1.msra.mxu0 0.0
  %743 = vmatprep.subr.mxu0 0.0
  %744 = vmatpush1.msra.mxu0 %v698
  %745 = vmatprep.subr.mxu0 0.0
  %746 = vmatpush2.msra.mxu0 0.0
  %747 = vmatprep.subr.mxu0 0.0
  %748 = vmatpush2.msra.mxu0 0.0
  %749 = vmatprep.subr.mxu0 0.0
  %750 = vmatpush2.msra.mxu0 0.0
  %751 = vmatprep.subr.mxu0 0.0
  %752 = vmatpush2.msra.mxu0 0.0
  %753 = vmatprep.subr.mxu0 0.0
  %754 = vmatpush2.msra.mxu0 0.0
  %755 = vmatprep.subr.mxu0 0.0
  %756 = vmatpush2.msra.mxu0 0.0
  %757 = vmatprep.subr.mxu0 0.0
  %758 = vmatpush2.msra.mxu0 0.0
  %759 = vmatprep.subr.mxu0 0.0
  %760 = vmatpush2.msra.mxu0 0.0
  %761 = vmatprep.subr.mxu0 0.0
  %762 = vmatpush2.msra.mxu0 0.0
  %763 = vmatprep.subr.mxu0 0.0
  %764 = vmatpush2.msra.mxu0 0.0
  %765 = vmatprep.subr.mxu0 0.0
  %766 = vmatpush2.msra.mxu0 0.0
  %767 = vmatprep.subr.mxu0 0.0
  %768 = vmatpush2.msra.mxu0 0.0
  %769 = vmatprep.subr.mxu0 0.0
  %770 = vmatpush2.msra.mxu0 0.0
  %771 = vmatprep.subr.mxu0 0.0
  %772 = vmatpush2.msra.mxu0 0.0
  %773 = vmatprep.subr.mxu0 0.0
  %774 = vmatpush2.msra.mxu0 0.0
  %775 = vmatprep.subr.mxu0 0.0
  %776 = vmatpush2.msra.mxu0 0.0
  %777 = vmatprep.mubr.f32.mxu0 0.0
  %778 = vmatmul.mubr.f32.gmra.mxu0 %v708
  %v779 = vpop.f32.mrf.mxu0
  %v780 = vadd.f32 %v704, %v779
  %v781 = vpop.f32.mrf.mxu0
  %782 = vmatprep.mubr.f32.mxu0 0.0
  %783 = vmatmul.mubr.f32.gmra.mxu0 %v711
  %v784 = vpop.f32.mrf.mxu0
  %v785 = vadd.f32 %v704, %v784
  %v786 = vpop.f32.mrf.mxu0
  %787 = vdwg.mxu0
  %788 = vst.msk [vmem:[%s17] sm:$0xff] %vm516, %v780
  %789 = vst.msk [vmem:[%s17 + $0x8] sm:$0xff] %vm516, %v785
  // Predicated region
  $region66: #{_lambda_.13} parent=0 // pred_check
    _
  $region67: #{_lambda_.13} parent=0 // pred_check_branch
    %791 = sbr.rel (0) target = $region69
  $region68: #{_lambda_.13} parent=0 // pred_region
    _
  $region69: #{_lambda_.13} parent=0 // pred_fallthru
    _
  // Predicated region
  $region70: #{_lambda_.13} parent=0 // pred_check
    _
  $region71: #{_lambda_.13} parent=0 // pred_check_branch
    %793 = sbr.rel (0) target = $region73
  $region72: #{_lambda_.13} parent=0 // pred_region
    _
  $region73: #{_lambda_.13} parent=0 // pred_fallthru
    _
  // Predicated region
  $region74: #{_lambda_.13} parent=0 // pred_check
    _
  $region75: #{_lambda_.13} parent=0 // pred_check_branch
    %795 = sbr.rel (0) target = $region77
  $region76: #{_lambda_.13} parent=0 // pred_region
    _
  $region77: #{_lambda_.13} parent=0 // pred_fallthru
    _
  // Predicated region
  $region78: #{_lambda_.13} parent=0 // pred_check
    _
  $region79: #{_lambda_.13} parent=0 // pred_check_branch
    %797 = sbr.rel (0) target = $region81
  $region80: #{_lambda_.13} parent=0 // pred_region
    _
  $region81: #{_lambda_.13} parent=0 // pred_fallthru
    _

// kernel: _lambda_.10
$region0: #{_lambda_.10}
  #allocation0 [shape = 'u32[]', space=smem, size = 0x4, offset = 0x4, fixed_abs, tag = 'smem constant byte address 0x4 - core index']
  #allocation1 [shape = 'u32[144,128]{1,0:T(1,128)}', space=vmem, size = 0x12000, scoped, tag = 'internal scratch']
  %s0 = inlined_call_operand.vmem [shape: f32[16,32], index: 0, kind: input, shape index: {}]
  %s1 = inlined_call_operand.vmem [shape: f32[32,32], index: 1, kind: input, shape index: {}]
  %s2 = inlined_call_operand.vmem [shape: f32[1,32], index: 2, kind: input, shape index: {}]
  %s3 = inlined_call_operand.vmem [shape: f32[32,32], index: 3, kind: input, shape index: {}]
  %s4 = inlined_call_operand.vmem [shape: f32[1,32], index: 4, kind: input, shape index: {}]
  %s5 = inlined_call_operand.vmem [shape: f32[32,32], index: 5, kind: input, shape index: {}]
  %s6 = inlined_call_operand.vmem [shape: f32[1,32], index: 6, kind: input, shape index: {}]
  %s7 = inlined_call_operand.vmem [shape: f32[32,32], index: 7, kind: input, shape index: {}]
  %s8 = inlined_call_operand.vmem [shape: f32[1,32], index: 8, kind: input, shape index: {}]
  %s9 = inlined_call_operand.vmem [shape: f32[32,64], index: 9, kind: input, shape index: {}]
  %s10 = inlined_call_operand.vmem [shape: f32[1,64], index: 10, kind: input, shape index: {}]
  %s11 = inlined_call_operand.vmem [shape: f32[64,32], index: 11, kind: input, shape index: {}]
  %s12 = inlined_call_operand.vmem [shape: f32[1,32], index: 12, kind: input, shape index: {}]
  %s13 = inlined_call_operand.vmem [shape: f32[1,32], index: 13, kind: input, shape index: {}, may-alias: {13,15}]
  %s14 = inlined_call_operand.vmem [shape: f32[1,32], index: 14, kind: input, shape index: {}, may-alias: {14,16}]
  %s15 = inlined_call_operand.vmem [shape: f32[1,32], index: 15, kind: input, shape index: {}, may-alias: {13,15}]
  %s16 = inlined_call_operand.vmem [shape: f32[1,32], index: 16, kind: input, shape index: {}, may-alias: {14,16}]
  %s17 = inlined_call_operand.vmem [shape: f32[16,32], index: 17, kind: output, shape index: {}]
  %s18 = sld [smem:[#allocation0]]
  $region78: #{_lambda_.10} parent=0
    _
  %s20 = ssub.s32 1, %s18
  %s21 = scalar_select 0, %s20, %s18
  // Predicated region
  $region2: #{_lambda_.10} parent=0 // pred_check
    _
  $region3: #{_lambda_.10} parent=0 // pred_check_branch
    %23 = sbr.rel (0) target = $region5
  $region4: #{_lambda_.10} parent=0 // pred_region
    _
  $region5: #{_lambda_.10} parent=0 // pred_fallthru
    _
  // Predicated region
  $region6: #{_lambda_.10} parent=0 // pred_check
    _
  $region7: #{_lambda_.10} parent=0 // pred_check_branch
    %25 = sbr.rel (0) target = $region9
  $region8: #{_lambda_.10} parent=0 // pred_region
    _
  $region9: #{_lambda_.10} parent=0 // pred_fallthru
    _
  // Predicated region
  $region10: #{_lambda_.10} parent=0 // pred_check
    _
  $region11: #{_lambda_.10} parent=0 // pred_check_branch
    %27 = sbr.rel (0) target = $region13
  $region12: #{_lambda_.10} parent=0 // pred_region
    _
  $region13: #{_lambda_.10} parent=0 // pred_fallthru
    _
  // Predicated region
  $region14: #{_lambda_.10} parent=0 // pred_check
    _
  $region15: #{_lambda_.10} parent=0 // pred_check_branch
    %29 = sbr.rel (0) target = $region17
  $region16: #{_lambda_.10} parent=0 // pred_region
    _
  $region17: #{_lambda_.10} parent=0 // pred_fallthru
    _
  // Predicated region
  $region18: #{_lambda_.10} parent=0 // pred_check
    _
  $region19: #{_lambda_.10} parent=0 // pred_check_branch
    %31 = sbr.rel (0) target = $region21
  $region20: #{_lambda_.10} parent=0 // pred_region
    _
  $region21: #{_lambda_.10} parent=0 // pred_fallthru
    _
  // Predicated region
  $region22: #{_lambda_.10} parent=0 // pred_check
    _
  $region23: #{_lambda_.10} parent=0 // pred_check_branch
    %33 = sbr.rel (0) target = $region25
  $region24: #{_lambda_.10} parent=0 // pred_region
    _
  $region25: #{_lambda_.10} parent=0 // pred_fallthru
    _
  // Predicated region
  $region26: #{_lambda_.10} parent=0 // pred_check
    _
  $region27: #{_lambda_.10} parent=0 // pred_check_branch
    %35 = sbr.rel (0) target = $region29
  $region28: #{_lambda_.10} parent=0 // pred_region
    _
  $region29: #{_lambda_.10} parent=0 // pred_fallthru
    _
  // Predicated region
  $region30: #{_lambda_.10} parent=0 // pred_check
    _
  $region31: #{_lambda_.10} parent=0 // pred_check_branch
    %37 = sbr.rel (0) target = $region33
  $region32: #{_lambda_.10} parent=0 // pred_region
    _
  $region33: #{_lambda_.10} parent=0 // pred_fallthru
    _
  // Predicated region
  $region34: #{_lambda_.10} parent=0 // pred_check
    _
  $region35: #{_lambda_.10} parent=0 // pred_check_branch
    %39 = sbr.rel (0) target = $region37
  $region36: #{_lambda_.10} parent=0 // pred_region
    _
  $region37: #{_lambda_.10} parent=0 // pred_fallthru
    _
  // Predicated region
  $region38: #{_lambda_.10} parent=0 // pred_check
    _
  $region39: #{_lambda_.10} parent=0 // pred_check_branch
    %41 = sbr.rel (0) target = $region41
  $region40: #{_lambda_.10} parent=0 // pred_region
    _
  $region41: #{_lambda_.10} parent=0 // pred_fallthru
    _
  // Predicated region
  $region42: #{_lambda_.10} parent=0 // pred_check
    _
  $region43: #{_lambda_.10} parent=0 // pred_check_branch
    %43 = sbr.rel (0) target = $region45
  $region44: #{_lambda_.10} parent=0 // pred_region
    _
  $region45: #{_lambda_.10} parent=0 // pred_fallthru
    _
  // Predicated region
  $region46: #{_lambda_.10} parent=0 // pred_check
    _
  $region47: #{_lambda_.10} parent=0 // pred_check_branch
    %45 = sbr.rel (0) target = $region49
  $region48: #{_lambda_.10} parent=0 // pred_region
    _
  $region49: #{_lambda_.10} parent=0 // pred_fallthru
    _
  // Predicated region
  $region50: #{_lambda_.10} parent=0 // pred_check
    _
  $region51: #{_lambda_.10} parent=0 // pred_check_branch
    %47 = sbr.rel (0) target = $region53
  $region52: #{_lambda_.10} parent=0 // pred_region
    _
  $region53: #{_lambda_.10} parent=0 // pred_fallthru
    _
  // Predicated region
  $region54: #{_lambda_.10} parent=0 // pred_check
    _
  $region55: #{_lambda_.10} parent=0 // pred_check_branch
    %49 = sbr.rel (0) target = $region57
  $region56: #{_lambda_.10} parent=0 // pred_region
    _
  $region57: #{_lambda_.10} parent=0 // pred_fallthru
    _
  // Predicated region
  $region58: #{_lambda_.10} parent=0 // pred_check
    _
  $region59: #{_lambda_.10} parent=0 // pred_check_branch
    %51 = sbr.rel (0) target = $region61
  $region60: #{_lambda_.10} parent=0 // pred_region
    _
  $region61: #{_lambda_.10} parent=0 // pred_fallthru
    _
  // Predicated region
  $region62: #{_lambda_.10} parent=0 // pred_check
    _
  $region63: #{_lambda_.10} parent=0 // pred_check_branch
    %53 = sbr.rel (0) target = $region65
  $region64: #{_lambda_.10} parent=0 // pred_region
    _
  $region65: #{_lambda_.10} parent=0 // pred_fallthru
    _
  // Predicated region
  $region66: #{_lambda_.10} parent=0 // pred_check
    _
  $region67: #{_lambda_.10} parent=0 // pred_check_branch
    %55 = sbr.rel (0) target = $region69
  $region68: #{_lambda_.10} parent=0 // pred_region
    _
  $region69: #{_lambda_.10} parent=0 // pred_fallthru
    _
  %v56 = vld [vmem:[%s0] sm:$0xff]
  %v57 = vld [vmem:[%s0 + $0x8] sm:$0xff]
  %v58 = vld [vmem:[%s1] sm:$0xff]
  %v59 = vld [vmem:[%s1 + $0x8] sm:$0xff]
  %v60 = vld [vmem:[%s1 + $0x10] sm:$0xff]
  %v61 = vld [vmem:[%s1 + $0x18] sm:$0xff]
  %v62 = vld [vmem:[%s2] sm:$0x1]
  %v64 = vlaneseq
  %v65 = vshrl.u32 %v64, 7
  %v66 = vsub.s32 0, %v65
  %v67 = vrot.slane %v62, %v66
  %vm69 = vcmask 261120
  %v71 = vsel %vm69, %v56, 0
  %v74 = vsel %vm69, %v57, 0
  %76 = vmatprep.subr.mxu0 0.0
  %77 = vmatpush1.msra.mxu0 0.0
  %78 = vmatprep.subr.mxu0 0.0
  %79 = vmatpush1.msra.mxu0 0.0
  %80 = vmatprep.subr.mxu0 0.0
  %81 = vmatpush1.msra.mxu0 0.0
  %82 = vmatprep.subr.mxu0 0.0
  %83 = vmatpush1.msra.mxu0 0.0
  %84 = vmatprep.subr.mxu0 0.0
  %85 = vmatpush1.msra.mxu0 0.0
  %86 = vmatprep.subr.mxu0 0.0
  %87 = vmatpush1.msra.mxu0 0.0
  %88 = vmatprep.subr.mxu0 0.0
  %89 = vmatpush1.msra.mxu0 0.0
  %90 = vmatprep.subr.mxu0 0.0
  %91 = vmatpush1.msra.mxu0 0.0
  %92 = vmatprep.subr.mxu0 0.0
  %93 = vmatpush1.msra.mxu0 0.0
  %94 = vmatprep.subr.mxu0 0.0
  %95 = vmatpush1.msra.mxu0 0.0
  %96 = vmatprep.subr.mxu0 0.0
  %97 = vmatpush1.msra.mxu0 0.0
  %98 = vmatprep.subr.mxu0 0.0
  %99 = vmatpush1.msra.mxu0 0.0
  %100 = vmatprep.subr.mxu0 0.0
  %101 = vmatpush1.msra.mxu0 %v61
  %102 = vmatprep.subr.mxu0 0.0
  %103 = vmatpush1.msra.mxu0 %v60
  %104 = vmatprep.subr.mxu0 0.0
  %105 = vmatpush1.msra.mxu0 %v59
  %106 = vmatprep.subr.mxu0 0.0
  %107 = vmatpush1.msra.mxu0 %v58
  %108 = vmatprep.subr.mxu0 0.0
  %109 = vmatpush2.msra.mxu0 0.0
  %110 = vmatprep.subr.mxu0 0.0
  %111 = vmatpush2.msra.mxu0 0.0
  %112 = vmatprep.subr.mxu0 0.0
  %113 = vmatpush2.msra.mxu0 0.0
  %114 = vmatprep.subr.mxu0 0.0
  %115 = vmatpush2.msra.mxu0 0.0
  %116 = vmatprep.subr.mxu0 0.0
  %117 = vmatpush2.msra.mxu0 0.0
  %118 = vmatprep.subr.mxu0 0.0
  %119 = vmatpush2.msra.mxu0 0.0
  %120 = vmatprep.subr.mxu0 0.0
  %121 = vmatpush2.msra.mxu0 0.0
  %122 = vmatprep.subr.mxu0 0.0
  %123 = vmatpush2.msra.mxu0 0.0
  %124 = vmatprep.subr.mxu0 0.0
  %125 = vmatpush2.msra.mxu0 0.0
  %126 = vmatprep.subr.mxu0 0.0
  %127 = vmatpush2.msra.mxu0 0.0
  %128 = vmatprep.subr.mxu0 0.0
  %129 = vmatpush2.msra.mxu0 0.0
  %130 = vmatprep.subr.mxu0 0.0
  %131 = vmatpush2.msra.mxu0 0.0
  %132 = vmatprep.subr.mxu0 0.0
  %133 = vmatpush2.msra.mxu0 0.0
  %134 = vmatprep.subr.mxu0 0.0
  %135 = vmatpush2.msra.mxu0 0.0
  %136 = vmatprep.subr.mxu0 0.0
  %137 = vmatpush2.msra.mxu0 0.0
  %138 = vmatprep.subr.mxu0 0.0
  %139 = vmatpush2.msra.mxu0 0.0
  %140 = vmatprep.mubr.f32.mxu0 0.0
  %141 = vmatmul.mubr.f32.gmra.mxu0 %v71
  %v142 = vpop.f32.mrf.mxu0
  %v143 = vadd.f32 %v67, %v142
  %v144 = vpop.f32.mrf.mxu0
  %145 = vmatprep.mubr.f32.mxu0 0.0
  %146 = vmatmul.mubr.f32.gmra.mxu0 %v74
  %v147 = vpop.f32.mrf.mxu0
  %v148 = vadd.f32 %v67, %v147
  %v149 = vpop.f32.mrf.mxu0
  %150 = vdwg.mxu0
  %v151 = vld [vmem:[%s3] sm:$0xff]
  %v152 = vld [vmem:[%s3 + $0x8] sm:$0xff]
  %v153 = vld [vmem:[%s3 + $0x10] sm:$0xff]
  %v154 = vld [vmem:[%s3 + $0x18] sm:$0xff]
  %v155 = vld [vmem:[%s4] sm:$0x1]
  %v157 = vlaneseq
  %v158 = vshrl.u32 %v157, 7
  %v159 = vsub.s32 0, %v158
  %v160 = vrot.slane %v155, %v159
  %162 = vmatprep.subr.mxu0 0.0
  %163 = vmatpush1.msra.mxu0 0.0
  %164 = vmatprep.subr.mxu0 0.0
  %165 = vmatpush1.msra.mxu0 0.0
  %166 = vmatprep.subr.mxu0 0.0
  %167 = vmatpush1.msra.mxu0 0.0
  %168 = vmatprep.subr.mxu0 0.0
  %169 = vmatpush1.msra.mxu0 0.0
  %170 = vmatprep.subr.mxu0 0.0
  %171 = vmatpush1.msra.mxu0 0.0
  %172 = vmatprep.subr.mxu0 0.0
  %173 = vmatpush1.msra.mxu0 0.0
  %174 = vmatprep.subr.mxu0 0.0
  %175 = vmatpush1.msra.mxu0 0.0
  %176 = vmatprep.subr.mxu0 0.0
  %177 = vmatpush1.msra.mxu0 0.0
  %178 = vmatprep.subr.mxu0 0.0
  %179 = vmatpush1.msra.mxu0 0.0
  %180 = vmatprep.subr.mxu0 0.0
  %181 = vmatpush1.msra.mxu0 0.0
  %182 = vmatprep.subr.mxu0 0.0
  %183 = vmatpush1.msra.mxu0 0.0
  %184 = vmatprep.subr.mxu0 0.0
  %185 = vmatpush1.msra.mxu0 0.0
  %186 = vmatprep.subr.mxu0 0.0
  %187 = vmatpush1.msra.mxu0 %v154
  %188 = vmatprep.subr.mxu0 0.0
  %189 = vmatpush1.msra.mxu0 %v153
  %190 = vmatprep.subr.mxu0 0.0
  %191 = vmatpush1.msra.mxu0 %v152
  %192 = vmatprep.subr.mxu0 0.0
  %193 = vmatpush1.msra.mxu0 %v151
  %194 = vmatprep.subr.mxu0 0.0
  %195 = vmatpush2.msra.mxu0 0.0
  %196 = vmatprep.subr.mxu0 0.0
  %197 = vmatpush2.msra.mxu0 0.0
  %198 = vmatprep.subr.mxu0 0.0
  %199 = vmatpush2.msra.mxu0 0.0
  %200 = vmatprep.subr.mxu0 0.0
  %201 = vmatpush2.msra.mxu0 0.0
  %202 = vmatprep.subr.mxu0 0.0
  %203 = vmatpush2.msra.mxu0 0.0
  %204 = vmatprep.subr.mxu0 0.0
  %205 = vmatpush2.msra.mxu0 0.0
  %206 = vmatprep.subr.mxu0 0.0
  %207 = vmatpush2.msra.mxu0 0.0
  %208 = vmatprep.subr.mxu0 0.0
  %209 = vmatpush2.msra.mxu0 0.0
  %210 = vmatprep.subr.mxu0 0.0
  %211 = vmatpush2.msra.mxu0 0.0
  %212 = vmatprep.subr.mxu0 0.0
  %213 = vmatpush2.msra.mxu0 0.0
  %214 = vmatprep.subr.mxu0 0.0
  %215 = vmatpush2.msra.mxu0 0.0
  %216 = vmatprep.subr.mxu0 0.0
  %217 = vmatpush2.msra.mxu0 0.0
  %218 = vmatprep.subr.mxu0 0.0
  %219 = vmatpush2.msra.mxu0 0.0
  %220 = vmatprep.subr.mxu0 0.0
  %221 = vmatpush2.msra.mxu0 0.0
  %222 = vmatprep.subr.mxu0 0.0
  %223 = vmatpush2.msra.mxu0 0.0
  %224 = vmatprep.subr.mxu0 0.0
  %225 = vmatpush2.msra.mxu0 0.0
  %226 = vmatprep.mubr.f32.mxu0 0.0
  %227 = vmatmul.mubr.f32.gmra.mxu0 %v71
  %v228 = vpop.f32.mrf.mxu0
  %v229 = vadd.f32 %v160, %v228
  %v230 = vpop.f32.mrf.mxu0
  %231 = vmatprep.mubr.f32.mxu0 0.0
  %232 = vmatmul.mubr.f32.gmra.mxu0 %v74
  %v233 = vpop.f32.mrf.mxu0
  %v234 = vadd.f32 %v160, %v233
  %v235 = vpop.f32.mrf.mxu0
  %236 = vdwg.mxu0
  %v237 = vld [vmem:[%s5] sm:$0xff]
  %v238 = vld [vmem:[%s5 + $0x8] sm:$0xff]
  %v239 = vld [vmem:[%s5 + $0x10] sm:$0xff]
  %v240 = vld [vmem:[%s5 + $0x18] sm:$0xff]
  %v241 = vld [vmem:[%s6] sm:$0x1]
  %v243 = vlaneseq
  %v244 = vshrl.u32 %v243, 7
  %v245 = vsub.s32 0, %v244
  %v246 = vrot.slane %v241, %v245
  %248 = vmatprep.subr.mxu0 0.0
  %249 = vmatpush1.msra.mxu0 0.0
  %250 = vmatprep.subr.mxu0 0.0
  %251 = vmatpush1.msra.mxu0 0.0
  %252 = vmatprep.subr.mxu0 0.0
  %253 = vmatpush1.msra.mxu0 0.0
  %254 = vmatprep.subr.mxu0 0.0
  %255 = vmatpush1.msra.mxu0 0.0
  %256 = vmatprep.subr.mxu0 0.0
  %257 = vmatpush1.msra.mxu0 0.0
  %258 = vmatprep.subr.mxu0 0.0
  %259 = vmatpush1.msra.mxu0 0.0
  %260 = vmatprep.subr.mxu0 0.0
  %261 = vmatpush1.msra.mxu0 0.0
  %262 = vmatprep.subr.mxu0 0.0
  %263 = vmatpush1.msra.mxu0 0.0
  %264 = vmatprep.subr.mxu0 0.0
  %265 = vmatpush1.msra.mxu0 0.0
  %266 = vmatprep.subr.mxu0 0.0
  %267 = vmatpush1.msra.mxu0 0.0
  %268 = vmatprep.subr.mxu0 0.0
  %269 = vmatpush1.msra.mxu0 0.0
  %270 = vmatprep.subr.mxu0 0.0
  %271 = vmatpush1.msra.mxu0 0.0
  %272 = vmatprep.subr.mxu0 0.0
  %273 = vmatpush1.msra.mxu0 %v240
  %274 = vmatprep.subr.mxu0 0.0
  %275 = vmatpush1.msra.mxu0 %v239
  %276 = vmatprep.subr.mxu0 0.0
  %277 = vmatpush1.msra.mxu0 %v238
  %278 = vmatprep.subr.mxu0 0.0
  %279 = vmatpush1.msra.mxu0 %v237
  %280 = vmatprep.subr.mxu0 0.0
  %281 = vmatpush2.msra.mxu0 0.0
  %282 = vmatprep.subr.mxu0 0.0
  %283 = vmatpush2.msra.mxu0 0.0
  %284 = vmatprep.subr.mxu0 0.0
  %285 = vmatpush2.msra.mxu0 0.0
  %286 = vmatprep.subr.mxu0 0.0
  %287 = vmatpush2.msra.mxu0 0.0
  %288 = vmatprep.subr.mxu0 0.0
  %289 = vmatpush2.msra.mxu0 0.0
  %290 = vmatprep.subr.mxu0 0.0
  %291 = vmatpush2.msra.mxu0 0.0
  %292 = vmatprep.subr.mxu0 0.0
  %293 = vmatpush2.msra.mxu0 0.0
  %294 = vmatprep.subr.mxu0 0.0
  %295 = vmatpush2.msra.mxu0 0.0
  %296 = vmatprep.subr.mxu0 0.0
  %297 = vmatpush2.msra.mxu0 0.0
  %298 = vmatprep.subr.mxu0 0.0
  %299 = vmatpush2.msra.mxu0 0.0
  %300 = vmatprep.subr.mxu0 0.0
  %301 = vmatpush2.msra.mxu0 0.0
  %302 = vmatprep.subr.mxu0 0.0
  %303 = vmatpush2.msra.mxu0 0.0
  %304 = vmatprep.subr.mxu0 0.0
  %305 = vmatpush2.msra.mxu0 0.0
  %306 = vmatprep.subr.mxu0 0.0
  %307 = vmatpush2.msra.mxu0 0.0
  %308 = vmatprep.subr.mxu0 0.0
  %309 = vmatpush2.msra.mxu0 0.0
  %310 = vmatprep.subr.mxu0 0.0
  %311 = vmatpush2.msra.mxu0 0.0
  %312 = vmatprep.mubr.f32.mxu0 0.0
  %313 = vmatmul.mubr.f32.gmra.mxu0 %v71
  %v314 = vpop.f32.mrf.mxu0
  %v315 = vadd.f32 %v246, %v314
  %v316 = vpop.f32.mrf.mxu0
  %317 = vmatprep.mubr.f32.mxu0 0.0
  %318 = vmatmul.mubr.f32.gmra.mxu0 %v74
  %v319 = vpop.f32.mrf.mxu0
  %v320 = vadd.f32 %v246, %v319
  %v321 = vpop.f32.mrf.mxu0
  %322 = vdwg.mxu0
  %v323 = vlaneseq
  %v324 = vshrl.u32 %v323, 7
  %v325 = vadd.s32 %v324, 8
  %v326 = vadd.s32 %v324, 16
  %v327 = vadd.s32 %v324, 24
  %v328 = vlaneseq
  %v329 = vand.u32 %v328, 127
  %v330 = vmul.u32 %v329, 8
  %vm331 = vcmp.ge.s32.totalorder %v324, %v330
  %vm332 = vcmp.ge.s32.totalorder %v325, %v330
  %vm333 = vcmp.ge.s32.totalorder %v326, %v330
  %vm334 = vcmp.ge.s32.totalorder %v327, %v330
  %v335 = vadd.s32 %v329, 1
  %v336 = vmul.u32 %v335, 8
  %vm337 = vcmp.lt.s32.totalorder %v324, %v336
  %vm338 = vcmp.lt.s32.totalorder %v325, %v336
  %vm339 = vcmp.lt.s32.totalorder %v326, %v336
  %vm340 = vcmp.lt.s32.totalorder %v327, %v336
  %vm341 = vmand %vm331, %vm337
  %vm342 = vmand %vm332, %vm338
  %vm343 = vmand %vm333, %vm339
  %vm344 = vmand %vm334, %vm340
  %v345 = vsel %vm341, 1, 0
  %v346 = vsel %vm342, 1, 0
  %v347 = vsel %vm343, 1, 0
  %v348 = vsel %vm344, 1, 0
  %v349 = vcvt.s32.f32 %v345
  %v350 = vcvt.s32.f32 %v346
  %v351 = vcvt.s32.f32 %v347
  %v352 = vcvt.s32.f32 %v348
  %v353 = vmul.u32 %v324, 8
  %vm354 = vcmp.ge.s32.totalorder %v329, %v353
  %v355 = vadd.s32 %v324, 1
  %v356 = vmul.u32 %v355, 8
  %vm357 = vcmp.lt.s32.totalorder %v329, %v356
  %vm358 = vmand %vm354, %vm357
  %v359 = vsel %vm358, 1, 0
  %v360 = vcvt.s32.f32 %v359
  %v361 = vmul.f32 %v143, %v229
  %v363 = vsel %vm69, %v361, 0
  %365 = vmatprep.subr.mxu0 0.0
  %366 = vmatpush1.msra.mxu0 0.0
  %367 = vmatprep.subr.mxu0 0.0
  %368 = vmatpush1.msra.mxu0 0.0
  %369 = vmatprep.subr.mxu0 0.0
  %370 = vmatpush1.msra.mxu0 0.0
  %371 = vmatprep.subr.mxu0 0.0
  %372 = vmatpush1.msra.mxu0 0.0
  %373 = vmatprep.subr.mxu0 0.0
  %374 = vmatpush1.msra.mxu0 0.0
  %375 = vmatprep.subr.mxu0 0.0
  %376 = vmatpush1.msra.mxu0 0.0
  %377 = vmatprep.subr.mxu0 0.0
  %378 = vmatpush1.msra.mxu0 0.0
  %379 = vmatprep.subr.mxu0 0.0
  %380 = vmatpush1.msra.mxu0 0.0
  %381 = vmatprep.subr.mxu0 0.0
  %382 = vmatpush1.msra.mxu0 0.0
  %383 = vmatprep.subr.mxu0 0.0
  %384 = vmatpush1.msra.mxu0 0.0
  %385 = vmatprep.subr.mxu0 0.0
  %386 = vmatpush1.msra.mxu0 0.0
  %387 = vmatprep.subr.mxu0 0.0
  %388 = vmatpush1.msra.mxu0 0.0
  %389 = vmatprep.subr.mxu0 0.0
  %390 = vmatpush1.msra.mxu0 %v352
  %391 = vmatprep.subr.mxu0 0.0
  %392 = vmatpush1.msra.mxu0 %v351
  %393 = vmatprep.subr.mxu0 0.0
  %394 = vmatpush1.msra.mxu0 %v350
  %395 = vmatprep.subr.mxu0 0.0
  %396 = vmatpush1.msra.mxu0 %v349
  %397 = vmatprep.subr.mxu0 0.0
  %398 = vmatpush2.msra.mxu0 0.0
  %399 = vmatprep.subr.mxu0 0.0
  %400 = vmatpush2.msra.mxu0 0.0
  %401 = vmatprep.subr.mxu0 0.0
  %402 = vmatpush2.msra.mxu0 0.0
  %403 = vmatprep.subr.mxu0 0.0
  %404 = vmatpush2.msra.mxu0 0.0
  %405 = vmatprep.subr.mxu0 0.0
  %406 = vmatpush2.msra.mxu0 0.0
  %407 = vmatprep.subr.mxu0 0.0
  %408 = vmatpush2.msra.mxu0 0.0
  %409 = vmatprep.subr.mxu0 0.0
  %410 = vmatpush2.msra.mxu0 0.0
  %411 = vmatprep.subr.mxu0 0.0
  %412 = vmatpush2.msra.mxu0 0.0
  %413 = vmatprep.subr.mxu0 0.0
  %414 = vmatpush2.msra.mxu0 0.0
  %415 = vmatprep.subr.mxu0 0.0
  %416 = vmatpush2.msra.mxu0 0.0
  %417 = vmatprep.subr.mxu0 0.0
  %418 = vmatpush2.msra.mxu0 0.0
  %419 = vmatprep.subr.mxu0 0.0
  %420 = vmatpush2.msra.mxu0 0.0
  %421 = vmatprep.subr.mxu0 0.0
  %422 = vmatpush2.msra.mxu0 0.0
  %423 = vmatprep.subr.mxu0 0.0
  %424 = vmatpush2.msra.mxu0 0.0
  %425 = vmatprep.subr.mxu0 0.0
  %426 = vmatpush2.msra.mxu0 0.0
  %427 = vmatprep.subr.mxu0 0.0
  %428 = vmatpush2.msra.mxu0 0.0
  %429 = vmatprep.mubr.f32.mxu0 0.0
  %430 = vmatmul.mubr.f32.gmra.mxu0 %v363
  %v431 = vpop.f32.mrf.mxu0
  %v432 = vadd.f32 0.0, %v431
  %v433 = vpop.f32.mrf.mxu0
  %434 = vdwg.mxu0
  %v435 = vmul.f32 %v432, 0.35355338
  %v436 = vmul.f32 %v143, %v234
  %v438 = vsel %vm69, %v436, 0
  %440 = vmatprep.subr.mxu0 0.0
  %441 = vmatpush1.msra.mxu0 0.0
  %442 = vmatprep.subr.mxu0 0.0
  %443 = vmatpush1.msra.mxu0 0.0
  %444 = vmatprep.subr.mxu0 0.0
  %445 = vmatpush1.msra.mxu0 0.0
  %446 = vmatprep.subr.mxu0 0.0
  %447 = vmatpush1.msra.mxu0 0.0
  %448 = vmatprep.subr.mxu0 0.0
  %449 = vmatpush1.msra.mxu0 0.0
  %450 = vmatprep.subr.mxu0 0.0
  %451 = vmatpush1.msra.mxu0 0.0
  %452 = vmatprep.subr.mxu0 0.0
  %453 = vmatpush1.msra.mxu0 0.0
  %454 = vmatprep.subr.mxu0 0.0
  %455 = vmatpush1.msra.mxu0 0.0
  %456 = vmatprep.subr.mxu0 0.0
  %457 = vmatpush1.msra.mxu0 0.0
  %458 = vmatprep.subr.mxu0 0.0
  %459 = vmatpush1.msra.mxu0 0.0
  %460 = vmatprep.subr.mxu0 0.0
  %461 = vmatpush1.msra.mxu0 0.0
  %462 = vmatprep.subr.mxu0 0.0
  %463 = vmatpush1.msra.mxu0 0.0
  %464 = vmatprep.subr.mxu0 0.0
  %465 = vmatpush1.msra.mxu0 %v352
  %466 = vmatprep.subr.mxu0 0.0
  %467 = vmatpush1.msra.mxu0 %v351
  %468 = vmatprep.subr.mxu0 0.0
  %469 = vmatpush1.msra.mxu0 %v350
  %470 = vmatprep.subr.mxu0 0.0
  %471 = vmatpush1.msra.mxu0 %v349
  %472 = vmatprep.subr.mxu0 0.0
  %473 = vmatpush2.msra.mxu0 0.0
  %474 = vmatprep.subr.mxu0 0.0
  %475 = vmatpush2.msra.mxu0 0.0
  %476 = vmatprep.subr.mxu0 0.0
  %477 = vmatpush2.msra.mxu0 0.0
  %478 = vmatprep.subr.mxu0 0.0
  %479 = vmatpush2.msra.mxu0 0.0
  %480 = vmatprep.subr.mxu0 0.0
  %481 = vmatpush2.msra.mxu0 0.0
  %482 = vmatprep.subr.mxu0 0.0
  %483 = vmatpush2.msra.mxu0 0.0
  %484 = vmatprep.subr.mxu0 0.0
  %485 = vmatpush2.msra.mxu0 0.0
  %486 = vmatprep.subr.mxu0 0.0
  %487 = vmatpush2.msra.mxu0 0.0
  %488 = vmatprep.subr.mxu0 0.0
  %489 = vmatpush2.msra.mxu0 0.0
  %490 = vmatprep.subr.mxu0 0.0
  %491 = vmatpush2.msra.mxu0 0.0
  %492 = vmatprep.subr.mxu0 0.0
  %493 = vmatpush2.msra.mxu0 0.0
  %494 = vmatprep.subr.mxu0 0.0
  %495 = vmatpush2.msra.mxu0 0.0
  %496 = vmatprep.subr.mxu0 0.0
  %497 = vmatpush2.msra.mxu0 0.0
  %498 = vmatprep.subr.mxu0 0.0
  %499 = vmatpush2.msra.mxu0 0.0
  %500 = vmatprep.subr.mxu0 0.0
  %501 = vmatpush2.msra.mxu0 0.0
  %502 = vmatprep.subr.mxu0 0.0
  %503 = vmatpush2.msra.mxu0 0.0
  %504 = vmatprep.mubr.f32.mxu0 0.0
  %505 = vmatmul.mubr.f32.gmra.mxu0 %v438
  %v506 = vpop.f32.mrf.mxu0
  %v507 = vadd.f32 0.0, %v506
  %v508 = vpop.f32.mrf.mxu0
  %509 = vdwg.mxu0
  %v510 = vmul.f32 %v507, 0.35355338
  %v511 = vmax.f32 %v435, %v510
  %v512 = vsub.f32 %v435, %v511
  %v513 = vmul.f32 %v512, 1.442695
  %v514 = vpow.pop %v513
  %v515 = vsub.f32 %v510, %v511
  %v516 = vmul.f32 %v515, 1.442695
  %v517 = vpow.pop %v516
  %v518 = vadd.f32 %v514, %v517
  %v519 = vrcp.pop %v518
  %v520 = vmul.f32 1.0, %v519
  %v521 = vmul.f32 %v514, %v520
  %vm522 = vcmask 31744
  %v524 = vsel %vm522, %v521, 0
  %vm526 = vcmask 1043456
  %v528 = vsel %vm526, %v360, 0
  %530 = vmatprep.subr.mxu0 0.0
  %531 = vmatpush1.msra.mxu0 0.0
  %532 = vmatprep.subr.mxu0 0.0
  %533 = vmatpush1.msra.mxu0 0.0
  %534 = vmatprep.subr.mxu0 0.0
  %535 = vmatpush1.msra.mxu0 0.0
  %536 = vmatprep.subr.mxu0 0.0
  %537 = vmatpush1.msra.mxu0 0.0
  %538 = vmatprep.subr.mxu0 0.0
  %539 = vmatpush1.msra.mxu0 0.0
  %540 = vmatprep.subr.mxu0 0.0
  %541 = vmatpush1.msra.mxu0 0.0
  %542 = vmatprep.subr.mxu0 0.0
  %543 = vmatpush1.msra.mxu0 0.0
  %544 = vmatprep.subr.mxu0 0.0
  %545 = vmatpush1.msra.mxu0 0.0
  %546 = vmatprep.subr.mxu0 0.0
  %547 = vmatpush1.msra.mxu0 0.0
  %548 = vmatprep.subr.mxu0 0.0
  %549 = vmatpush1.msra.mxu0 0.0
  %550 = vmatprep.subr.mxu0 0.0
  %551 = vmatpush1.msra.mxu0 0.0
  %552 = vmatprep.subr.mxu0 0.0
  %553 = vmatpush1.msra.mxu0 0.0
  %554 = vmatprep.subr.mxu0 0.0
  %555 = vmatpush1.msra.mxu0 0.0
  %556 = vmatprep.subr.mxu0 0.0
  %557 = vmatpush1.msra.mxu0 0.0
  %558 = vmatprep.subr.mxu0 0.0
  %559 = vmatpush1.msra.mxu0 0.0
  %560 = vmatprep.subr.mxu0 0.0
  %561 = vmatpush1.msra.mxu0 %v528
  %562 = vmatprep.subr.mxu0 0.0
  %563 = vmatpush2.msra.mxu0 0.0
  %564 = vmatprep.subr.mxu0 0.0
  %565 = vmatpush2.msra.mxu0 0.0
  %566 = vmatprep.subr.mxu0 0.0
  %567 = vmatpush2.msra.mxu0 0.0
  %568 = vmatprep.subr.mxu0 0.0
  %569 = vmatpush2.msra.mxu0 0.0
  %570 = vmatprep.subr.mxu0 0.0
  %571 = vmatpush2.msra.mxu0 0.0
  %572 = vmatprep.subr.mxu0 0.0
  %573 = vmatpush2.msra.mxu0 0.0
  %574 = vmatprep.subr.mxu0 0.0
  %575 = vmatpush2.msra.mxu0 0.0
  %576 = vmatprep.subr.mxu0 0.0
  %577 = vmatpush2.msra.mxu0 0.0
  %578 = vmatprep.subr.mxu0 0.0
  %579 = vmatpush2.msra.mxu0 0.0
  %580 = vmatprep.subr.mxu0 0.0
  %581 = vmatpush2.msra.mxu0 0.0
  %582 = vmatprep.subr.mxu0 0.0
  %583 = vmatpush2.msra.mxu0 0.0
  %584 = vmatprep.subr.mxu0 0.0
  %585 = vmatpush2.msra.mxu0 0.0
  %586 = vmatprep.subr.mxu0 0.0
  %587 = vmatpush2.msra.mxu0 0.0
  %588 = vmatprep.subr.mxu0 0.0
  %589 = vmatpush2.msra.mxu0 0.0
  %590 = vmatprep.subr.mxu0 0.0
  %591 = vmatpush2.msra.mxu0 0.0
  %592 = vmatprep.subr.mxu0 0.0
  %593 = vmatpush2.msra.mxu0 0.0
  %594 = vmatprep.mubr.f32.mxu0 0.0
  %595 = vmatmul.mubr.f32.gmra.mxu0 %v524
  %v596 = vpop.f32.mrf.mxu0
  %v597 = vadd.f32 0.0, %v596
  %v598 = vpop.f32.mrf.mxu0
  %599 = vdwg.mxu0
  %v600 = vmul.f32 %v597, %v315
  %v601 = vadd.f32 %v600, 0.0
  %v602 = vmul.f32 %v517, %v520
  %v604 = vsel %vm522, %v602, 0
  %606 = vmatprep.subr.mxu0 0.0
  %607 = vmatpush1.msra.mxu0 0.0
  %608 = vmatprep.subr.mxu0 0.0
  %609 = vmatpush1.msra.mxu0 0.0
  %610 = vmatprep.subr.mxu0 0.0
  %611 = vmatpush1.msra.mxu0 0.0
  %612 = vmatprep.subr.mxu0 0.0
  %613 = vmatpush1.msra.mxu0 0.0
  %614 = vmatprep.subr.mxu0 0.0
  %615 = vmatpush1.msra.mxu0 0.0
  %616 = vmatprep.subr.mxu0 0.0
  %617 = vmatpush1.msra.mxu0 0.0
  %618 = vmatprep.subr.mxu0 0.0
  %619 = vmatpush1.msra.mxu0 0.0
  %620 = vmatprep.subr.mxu0 0.0
  %621 = vmatpush1.msra.mxu0 0.0
  %622 = vmatprep.subr.mxu0 0.0
  %623 = vmatpush1.msra.mxu0 0.0
  %624 = vmatprep.subr.mxu0 0.0
  %625 = vmatpush1.msra.mxu0 0.0
  %626 = vmatprep.subr.mxu0 0.0
  %627 = vmatpush1.msra.mxu0 0.0
  %628 = vmatprep.subr.mxu0 0.0
  %629 = vmatpush1.msra.mxu0 0.0
  %630 = vmatprep.subr.mxu0 0.0
  %631 = vmatpush1.msra.mxu0 0.0
  %632 = vmatprep.subr.mxu0 0.0
  %633 = vmatpush1.msra.mxu0 0.0
  %634 = vmatprep.subr.mxu0 0.0
  %635 = vmatpush1.msra.mxu0 0.0
  %636 = vmatprep.subr.mxu0 0.0
  %637 = vmatpush1.msra.mxu0 %v528
  %638 = vmatprep.subr.mxu0 0.0
  %639 = vmatpush2.msra.mxu0 0.0
  %640 = vmatprep.subr.mxu0 0.0
  %641 = vmatpush2.msra.mxu0 0.0
  %642 = vmatprep.subr.mxu0 0.0
  %643 = vmatpush2.msra.mxu0 0.0
  %644 = vmatprep.subr.mxu0 0.0
  %645 = vmatpush2.msra.mxu0 0.0
  %646 = vmatprep.subr.mxu0 0.0
  %647 = vmatpush2.msra.mxu0 0.0
  %648 = vmatprep.subr.mxu0 0.0
  %649 = vmatpush2.msra.mxu0 0.0
  %650 = vmatprep.subr.mxu0 0.0
  %651 = vmatpush2.msra.mxu0 0.0
  %652 = vmatprep.subr.mxu0 0.0
  %653 = vmatpush2.msra.mxu0 0.0
  %654 = vmatprep.subr.mxu0 0.0
  %655 = vmatpush2.msra.mxu0 0.0
  %656 = vmatprep.subr.mxu0 0.0
  %657 = vmatpush2.msra.mxu0 0.0
  %658 = vmatprep.subr.mxu0 0.0
  %659 = vmatpush2.msra.mxu0 0.0
  %660 = vmatprep.subr.mxu0 0.0
  %661 = vmatpush2.msra.mxu0 0.0
  %662 = vmatprep.subr.mxu0 0.0
  %663 = vmatpush2.msra.mxu0 0.0
  %664 = vmatprep.subr.mxu0 0.0
  %665 = vmatpush2.msra.mxu0 0.0
  %666 = vmatprep.subr.mxu0 0.0
  %667 = vmatpush2.msra.mxu0 0.0
  %668 = vmatprep.subr.mxu0 0.0
  %669 = vmatpush2.msra.mxu0 0.0
  %670 = vmatprep.mubr.f32.mxu0 0.0
  %671 = vmatmul.mubr.f32.gmra.mxu0 %v604
  %v672 = vpop.f32.mrf.mxu0
  %v673 = vadd.f32 0.0, %v672
  %v674 = vpop.f32.mrf.mxu0
  %675 = vdwg.mxu0
  %v676 = vmul.f32 %v673, %v320
  %v677 = vadd.f32 %v601, %v676
  %v678 = vmul.f32 %v148, %v229
  %v680 = vsel %vm69, %v678, 0
  %682 = vmatprep.subr.mxu0 0.0
  %683 = vmatpush1.msra.mxu0 0.0
  %684 = vmatprep.subr.mxu0 0.0
  %685 = vmatpush1.msra.mxu0 0.0
  %686 = vmatprep.subr.mxu0 0.0
  %687 = vmatpush1.msra.mxu0 0.0
  %688 = vmatprep.subr.mxu0 0.0
  %689 = vmatpush1.msra.mxu0 0.0
  %690 = vmatprep.subr.mxu0 0.0
  %691 = vmatpush1.msra.mxu0 0.0
  %692 = vmatprep.subr.mxu0 0.0
  %693 = vmatpush1.msra.mxu0 0.0
  %694 = vmatprep.subr.mxu0 0.0
  %695 = vmatpush1.msra.mxu0 0.0
  %696 = vmatprep.subr.mxu0 0.0
  %697 = vmatpush1.msra.mxu0 0.0
  %698 = vmatprep.subr.mxu0 0.0
  %699 = vmatpush1.msra.mxu0 0.0
  %700 = vmatprep.subr.mxu0 0.0
  %701 = vmatpush1.msra.mxu0 0.0
  %702 = vmatprep.subr.mxu0 0.0
  %703 = vmatpush1.msra.mxu0 0.0
  %704 = vmatprep.subr.mxu0 0.0
  %705 = vmatpush1.msra.mxu0 0.0
  %706 = vmatprep.subr.mxu0 0.0
  %707 = vmatpush1.msra.mxu0 %v352
  %708 = vmatprep.subr.mxu0 0.0
  %709 = vmatpush1.msra.mxu0 %v351
  %710 = vmatprep.subr.mxu0 0.0
  %711 = vmatpush1.msra.mxu0 %v350
  %712 = vmatprep.subr.mxu0 0.0
  %713 = vmatpush1.msra.mxu0 %v349
  %714 = vmatprep.subr.mxu0 0.0
  %715 = vmatpush2.msra.mxu0 0.0
  %716 = vmatprep.subr.mxu0 0.0
  %717 = vmatpush2.msra.mxu0 0.0
  %718 = vmatprep.subr.mxu0 0.0
  %719 = vmatpush2.msra.mxu0 0.0
  %720 = vmatprep.subr.mxu0 0.0
  %721 = vmatpush2.msra.mxu0 0.0
  %722 = vmatprep.subr.mxu0 0.0
  %723 = vmatpush2.msra.mxu0 0.0
  %724 = vmatprep.subr.mxu0 0.0
  %725 = vmatpush2.msra.mxu0 0.0
  %726 = vmatprep.subr.mxu0 0.0
  %727 = vmatpush2.msra.mxu0 0.0
  %728 = vmatprep.subr.mxu0 0.0
  %729 = vmatpush2.msra.mxu0 0.0
  %730 = vmatprep.subr.mxu0 0.0
  %731 = vmatpush2.msra.mxu0 0.0
  %732 = vmatprep.subr.mxu0 0.0
  %733 = vmatpush2.msra.mxu0 0.0
  %734 = vmatprep.subr.mxu0 0.0
  %735 = vmatpush2.msra.mxu0 0.0
  %736 = vmatprep.subr.mxu0 0.0
  %737 = vmatpush2.msra.mxu0 0.0
  %738 = vmatprep.subr.mxu0 0.0
  %739 = vmatpush2.msra.mxu0 0.0
  %740 = vmatprep.subr.mxu0 0.0
  %741 = vmatpush2.msra.mxu0 0.0
  %742 = vmatprep.subr.mxu0 0.0
  %743 = vmatpush2.msra.mxu0 0.0
  %744 = vmatprep.subr.mxu0 0.0
  %745 = vmatpush2.msra.mxu0 0.0
  %746 = vmatprep.mubr.f32.mxu0 0.0
  %747 = vmatmul.mubr.f32.gmra.mxu0 %v680
  %v748 = vpop.f32.mrf.mxu0
  %v749 = vadd.f32 0.0, %v748
  %v750 = vpop.f32.mrf.mxu0
  %751 = vdwg.mxu0
  %v752 = vmul.f32 %v749, 0.35355338
  %v753 = vmul.f32 %v148, %v234
  %v755 = vsel %vm69, %v753, 0
  %757 = vmatprep.subr.mxu0 0.0
  %758 = vmatpush1.msra.mxu0 0.0
  %759 = vmatprep.subr.mxu0 0.0
  %760 = vmatpush1.msra.mxu0 0.0
  %761 = vmatprep.subr.mxu0 0.0
  %762 = vmatpush1.msra.mxu0 0.0
  %763 = vmatprep.subr.mxu0 0.0
  %764 = vmatpush1.msra.mxu0 0.0
  %765 = vmatprep.subr.mxu0 0.0
  %766 = vmatpush1.msra.mxu0 0.0
  %767 = vmatprep.subr.mxu0 0.0
  %768 = vmatpush1.msra.mxu0 0.0
  %769 = vmatprep.subr.mxu0 0.0
  %770 = vmatpush1.msra.mxu0 0.0
  %771 = vmatprep.subr.mxu0 0.0
  %772 = vmatpush1.msra.mxu0 0.0
  %773 = vmatprep.subr.mxu0 0.0
  %774 = vmatpush1.msra.mxu0 0.0
  %775 = vmatprep.subr.mxu0 0.0
  %776 = vmatpush1.msra.mxu0 0.0
  %777 = vmatprep.subr.mxu0 0.0
  %778 = vmatpush1.msra.mxu0 0.0
  %779 = vmatprep.subr.mxu0 0.0
  %780 = vmatpush1.msra.mxu0 0.0
  %781 = vmatprep.subr.mxu0 0.0
  %782 = vmatpush1.msra.mxu0 %v352
  %783 = vmatprep.subr.mxu0 0.0
  %784 = vmatpush1.msra.mxu0 %v351
  %785 = vmatprep.subr.mxu0 0.0
  %786 = vmatpush1.msra.mxu0 %v350
  %787 = vmatprep.subr.mxu0 0.0
  %788 = vmatpush1.msra.mxu0 %v349
  %789 = vmatprep.subr.mxu0 0.0
  %790 = vmatpush2.msra.mxu0 0.0
  %791 = vmatprep.subr.mxu0 0.0
  %792 = vmatpush2.msra.mxu0 0.0
  %793 = vmatprep.subr.mxu0 0.0
  %794 = vmatpush2.msra.mxu0 0.0
  %795 = vmatprep.subr.mxu0 0.0
  %796 = vmatpush2.msra.mxu0 0.0
  %797 = vmatprep.subr.mxu0 0.0
  %798 = vmatpush2.msra.mxu0 0.0
  %799 = vmatprep.subr.mxu0 0.0
  %800 = vmatpush2.msra.mxu0 0.0
  %801 = vmatprep.subr.mxu0 0.0
  %802 = vmatpush2.msra.mxu0 0.0
  %803 = vmatprep.subr.mxu0 0.0
  %804 = vmatpush2.msra.mxu0 0.0
  %805 = vmatprep.subr.mxu0 0.0
  %806 = vmatpush2.msra.mxu0 0.0
  %807 = vmatprep.subr.mxu0 0.0
  %808 = vmatpush2.msra.mxu0 0.0
  %809 = vmatprep.subr.mxu0 0.0
  %810 = vmatpush2.msra.mxu0 0.0
  %811 = vmatprep.subr.mxu0 0.0
  %812 = vmatpush2.msra.mxu0 0.0
  %813 = vmatprep.subr.mxu0 0.0
  %814 = vmatpush2.msra.mxu0 0.0
  %815 = vmatprep.subr.mxu0 0.0
  %816 = vmatpush2.msra.mxu0 0.0
  %817 = vmatprep.subr.mxu0 0.0
  %818 = vmatpush2.msra.mxu0 0.0
  %819 = vmatprep.subr.mxu0 0.0
  %820 = vmatpush2.msra.mxu0 0.0
  %821 = vmatprep.mubr.f32.mxu0 0.0
  %822 = vmatmul.mubr.f32.gmra.mxu0 %v755
  %v823 = vpop.f32.mrf.mxu0
  %v824 = vadd.f32 0.0, %v823
  %v825 = vpop.f32.mrf.mxu0
  %826 = vdwg.mxu0
  %v827 = vmul.f32 %v824, 0.35355338
  %v828 = vmax.f32 %v752, %v827
  %v829 = vsub.f32 %v752, %v828
  %v830 = vmul.f32 %v829, 1.442695
  %v831 = vpow.pop %v830
  %v832 = vsub.f32 %v827, %v828
  %v833 = vmul.f32 %v832, 1.442695
  %v834 = vpow.pop %v833
  %v835 = vadd.f32 %v831, %v834
  %v836 = vrcp.pop %v835
  %v837 = vmul.f32 1.0, %v836
  %v838 = vmul.f32 %v831, %v837
  %v840 = vsel %vm522, %v838, 0
  %842 = vmatprep.subr.mxu0 0.0
  %843 = vmatpush1.msra.mxu0 0.0
  %844 = vmatprep.subr.mxu0 0.0
  %845 = vmatpush1.msra.mxu0 0.0
  %846 = vmatprep.subr.mxu0 0.0
  %847 = vmatpush1.msra.mxu0 0.0
  %848 = vmatprep.subr.mxu0 0.0
  %849 = vmatpush1.msra.mxu0 0.0
  %850 = vmatprep.subr.mxu0 0.0
  %851 = vmatpush1.msra.mxu0 0.0
  %852 = vmatprep.subr.mxu0 0.0
  %853 = vmatpush1.msra.mxu0 0.0
  %854 = vmatprep.subr.mxu0 0.0
  %855 = vmatpush1.msra.mxu0 0.0
  %856 = vmatprep.subr.mxu0 0.0
  %857 = vmatpush1.msra.mxu0 0.0
  %858 = vmatprep.subr.mxu0 0.0
  %859 = vmatpush1.msra.mxu0 0.0
  %860 = vmatprep.subr.mxu0 0.0
  %861 = vmatpush1.msra.mxu0 0.0
  %862 = vmatprep.subr.mxu0 0.0
  %863 = vmatpush1.msra.mxu0 0.0
  %864 = vmatprep.subr.mxu0 0.0
  %865 = vmatpush1.msra.mxu0 0.0
  %866 = vmatprep.subr.mxu0 0.0
  %867 = vmatpush1.msra.mxu0 0.0
  %868 = vmatprep.subr.mxu0 0.0
  %869 = vmatpush1.msra.mxu0 0.0
  %870 = vmatprep.subr.mxu0 0.0
  %871 = vmatpush1.msra.mxu0 0.0
  %872 = vmatprep.subr.mxu0 0.0
  %873 = vmatpush1.msra.mxu0 %v528
  %874 = vmatprep.subr.mxu0 0.0
  %875 = vmatpush2.msra.mxu0 0.0
  %876 = vmatprep.subr.mxu0 0.0
  %877 = vmatpush2.msra.mxu0 0.0
  %878 = vmatprep.subr.mxu0 0.0
  %879 = vmatpush2.msra.mxu0 0.0
  %880 = vmatprep.subr.mxu0 0.0
  %881 = vmatpush2.msra.mxu0 0.0
  %882 = vmatprep.subr.mxu0 0.0
  %883 = vmatpush2.msra.mxu0 0.0
  %884 = vmatprep.subr.mxu0 0.0
  %885 = vmatpush2.msra.mxu0 0.0
  %886 = vmatprep.subr.mxu0 0.0
  %887 = vmatpush2.msra.mxu0 0.0
  %888 = vmatprep.subr.mxu0 0.0
  %889 = vmatpush2.msra.mxu0 0.0
  %890 = vmatprep.subr.mxu0 0.0
  %891 = vmatpush2.msra.mxu0 0.0
  %892 = vmatprep.subr.mxu0 0.0
  %893 = vmatpush2.msra.mxu0 0.0
  %894 = vmatprep.subr.mxu0 0.0
  %895 = vmatpush2.msra.mxu0 0.0
  %896 = vmatprep.subr.mxu0 0.0
  %897 = vmatpush2.msra.mxu0 0.0
  %898 = vmatprep.subr.mxu0 0.0
  %899 = vmatpush2.msra.mxu0 0.0
  %900 = vmatprep.subr.mxu0 0.0
  %901 = vmatpush2.msra.mxu0 0.0
  %902 = vmatprep.subr.mxu0 0.0
  %903 = vmatpush2.msra.mxu0 0.0
  %904 = vmatprep.subr.mxu0 0.0
  %905 = vmatpush2.msra.mxu0 0.0
  %906 = vmatprep.mubr.f32.mxu0 0.0
  %907 = vmatmul.mubr.f32.gmra.mxu0 %v840
  %v908 = vpop.f32.mrf.mxu0
  %v909 = vadd.f32 0.0, %v908
  %v910 = vpop.f32.mrf.mxu0
  %911 = vdwg.mxu0
  %v912 = vmul.f32 %v909, %v315
  %v913 = vadd.f32 %v912, 0.0
  %v914 = vmul.f32 %v834, %v837
  %v916 = vsel %vm522, %v914, 0
  %918 = vmatprep.subr.mxu0 0.0
  %919 = vmatpush1.msra.mxu0 0.0
  %920 = vmatprep.subr.mxu0 0.0
  %921 = vmatpush1.msra.mxu0 0.0
  %922 = vmatprep.subr.mxu0 0.0
  %923 = vmatpush1.msra.mxu0 0.0
  %924 = vmatprep.subr.mxu0 0.0
  %925 = vmatpush1.msra.mxu0 0.0
  %926 = vmatprep.subr.mxu0 0.0
  %927 = vmatpush1.msra.mxu0 0.0
  %928 = vmatprep.subr.mxu0 0.0
  %929 = vmatpush1.msra.mxu0 0.0
  %930 = vmatprep.subr.mxu0 0.0
  %931 = vmatpush1.msra.mxu0 0.0
  %932 = vmatprep.subr.mxu0 0.0
  %933 = vmatpush1.msra.mxu0 0.0
  %934 = vmatprep.subr.mxu0 0.0
  %935 = vmatpush1.msra.mxu0 0.0
  %936 = vmatprep.subr.mxu0 0.0
  %937 = vmatpush1.msra.mxu0 0.0
  %938 = vmatprep.subr.mxu0 0.0
  %939 = vmatpush1.msra.mxu0 0.0
  %940 = vmatprep.subr.mxu0 0.0
  %941 = vmatpush1.msra.mxu0 0.0
  %942 = vmatprep.subr.mxu0 0.0
  %943 = vmatpush1.msra.mxu0 0.0
  %944 = vmatprep.subr.mxu0 0.0
  %945 = vmatpush1.msra.mxu0 0.0
  %946 = vmatprep.subr.mxu0 0.0
  %947 = vmatpush1.msra.mxu0 0.0
  %948 = vmatprep.subr.mxu0 0.0
  %949 = vmatpush1.msra.mxu0 %v528
  %950 = vmatprep.subr.mxu0 0.0
  %951 = vmatpush2.msra.mxu0 0.0
  %952 = vmatprep.subr.mxu0 0.0
  %953 = vmatpush2.msra.mxu0 0.0
  %954 = vmatprep.subr.mxu0 0.0
  %955 = vmatpush2.msra.mxu0 0.0
  %956 = vmatprep.subr.mxu0 0.0
  %957 = vmatpush2.msra.mxu0 0.0
  %958 = vmatprep.subr.mxu0 0.0
  %959 = vmatpush2.msra.mxu0 0.0
  %960 = vmatprep.subr.mxu0 0.0
  %961 = vmatpush2.msra.mxu0 0.0
  %962 = vmatprep.subr.mxu0 0.0
  %963 = vmatpush2.msra.mxu0 0.0
  %964 = vmatprep.subr.mxu0 0.0
  %965 = vmatpush2.msra.mxu0 0.0
  %966 = vmatprep.subr.mxu0 0.0
  %967 = vmatpush2.msra.mxu0 0.0
  %968 = vmatprep.subr.mxu0 0.0
  %969 = vmatpush2.msra.mxu0 0.0
  %970 = vmatprep.subr.mxu0 0.0
  %971 = vmatpush2.msra.mxu0 0.0
  %972 = vmatprep.subr.mxu0 0.0
  %973 = vmatpush2.msra.mxu0 0.0
  %974 = vmatprep.subr.mxu0 0.0
  %975 = vmatpush2.msra.mxu0 0.0
  %976 = vmatprep.subr.mxu0 0.0
  %977 = vmatpush2.msra.mxu0 0.0
  %978 = vmatprep.subr.mxu0 0.0
  %979 = vmatpush2.msra.mxu0 0.0
  %980 = vmatprep.subr.mxu0 0.0
  %981 = vmatpush2.msra.mxu0 0.0
  %982 = vmatprep.mubr.f32.mxu0 0.0
  %983 = vmatmul.mubr.f32.gmra.mxu0 %v916
  %v984 = vpop.f32.mrf.mxu0
  %v985 = vadd.f32 0.0, %v984
  %v986 = vpop.f32.mrf.mxu0
  %987 = vdwg.mxu0
  %v988 = vmul.f32 %v985, %v320
  %v989 = vadd.f32 %v913, %v988
  %v990 = vld [vmem:[%s7] sm:$0xff]
  %v991 = vld [vmem:[%s7 + $0x8] sm:$0xff]
  %v992 = vld [vmem:[%s7 + $0x10] sm:$0xff]
  %v993 = vld [vmem:[%s7 + $0x18] sm:$0xff]
  %v994 = vld [vmem:[%s8] sm:$0x1]
  %v996 = vlaneseq
  %v997 = vshrl.u32 %v996, 7
  %v998 = vsub.s32 0, %v997
  %v999 = vrot.slane %v994, %v998
  %v1002 = vsel %vm69, %v677, 0
  %v1005 = vsel %vm69, %v989, 0
  %1007 = vmatprep.subr.mxu0 0.0
  %1008 = vmatpush1.msra.mxu0 0.0
  %1009 = vmatprep.subr.mxu0 0.0
  %1010 = vmatpush1.msra.mxu0 0.0
  %1011 = vmatprep.subr.mxu0 0.0
  %1012 = vmatpush1.msra.mxu0 0.0
  %1013 = vmatprep.subr.mxu0 0.0
  %1014 = vmatpush1.msra.mxu0 0.0
  %1015 = vmatprep.subr.mxu0 0.0
  %1016 = vmatpush1.msra.mxu0 0.0
  %1017 = vmatprep.subr.mxu0 0.0
  %1018 = vmatpush1.msra.mxu0 0.0
  %1019 = vmatprep.subr.mxu0 0.0
  %1020 = vmatpush1.msra.mxu0 0.0
  %1021 = vmatprep.subr.mxu0 0.0
  %1022 = vmatpush1.msra.mxu0 0.0
  %1023 = vmatprep.subr.mxu0 0.0
  %1024 = vmatpush1.msra.mxu0 0.0
  %1025 = vmatprep.subr.mxu0 0.0
  %1026 = vmatpush1.msra.mxu0 0.0
  %1027 = vmatprep.subr.mxu0 0.0
  %1028 = vmatpush1.msra.mxu0 0.0
  %1029 = vmatprep.subr.mxu0 0.0
  %1030 = vmatpush1.msra.mxu0 0.0
  %1031 = vmatprep.subr.mxu0 0.0
  %1032 = vmatpush1.msra.mxu0 %v993
  %1033 = vmatprep.subr.mxu0 0.0
  %1034 = vmatpush1.msra.mxu0 %v992
  %1035 = vmatprep.subr.mxu0 0.0
  %1036 = vmatpush1.msra.mxu0 %v991
  %1037 = vmatprep.subr.mxu0 0.0
  %1038 = vmatpush1.msra.mxu0 %v990
  %1039 = vmatprep.subr.mxu0 0.0
  %1040 = vmatpush2.msra.mxu0 0.0
  %1041 = vmatprep.subr.mxu0 0.0
  %1042 = vmatpush2.msra.mxu0 0.0
  %1043 = vmatprep.subr.mxu0 0.0
  %1044 = vmatpush2.msra.mxu0 0.0
  %1045 = vmatprep.subr.mxu0 0.0
  %1046 = vmatpush2.msra.mxu0 0.0
  %1047 = vmatprep.subr.mxu0 0.0
  %1048 = vmatpush2.msra.mxu0 0.0
  %1049 = vmatprep.subr.mxu0 0.0
  %1050 = vmatpush2.msra.mxu0 0.0
  %1051 = vmatprep.subr.mxu0 0.0
  %1052 = vmatpush2.msra.mxu0 0.0
  %1053 = vmatprep.subr.mxu0 0.0
  %1054 = vmatpush2.msra.mxu0 0.0
  %1055 = vmatprep.subr.mxu0 0.0
  %1056 = vmatpush2.msra.mxu0 0.0
  %1057 = vmatprep.subr.mxu0 0.0
  %1058 = vmatpush2.msra.mxu0 0.0
  %1059 = vmatprep.subr.mxu0 0.0
  %1060 = vmatpush2.msra.mxu0 0.0
  %1061 = vmatprep.subr.mxu0 0.0
  %1062 = vmatpush2.msra.mxu0 0.0
  %1063 = vmatprep.subr.mxu0 0.0
  %1064 = vmatpush2.msra.mxu0 0.0
  %1065 = vmatprep.subr.mxu0 0.0
  %1066 = vmatpush2.msra.mxu0 0.0
  %1067 = vmatprep.subr.mxu0 0.0
  %1068 = vmatpush2.msra.mxu0 0.0
  %1069 = vmatprep.subr.mxu0 0.0
  %1070 = vmatpush2.msra.mxu0 0.0
  %1071 = vmatprep.mubr.f32.mxu0 0.0
  %1072 = vmatmul.mubr.f32.gmra.mxu0 %v1002
  %v1073 = vpop.f32.mrf.mxu0
  %v1074 = vadd.f32 %v999, %v1073
  %v1075 = vpop.f32.mrf.mxu0
  %1076 = vmatprep.mubr.f32.mxu0 0.0
  %1077 = vmatmul.mubr.f32.gmra.mxu0 %v1005
  %v1078 = vpop.f32.mrf.mxu0
  %v1079 = vadd.f32 %v999, %v1078
  %v1080 = vpop.f32.mrf.mxu0
  %1081 = vdwg.mxu0
  %v1082 = vadd.f32 %v56, %v1074
  %v1083 = vadd.f32 %v57, %v1079
  %v1084 = vld [vmem:[%s13] sm:$0x1]
  %v1085 = vld [vmem:[%s14] sm:$0x1]
  %v1086 = vsel %vm69, %v1082, 0.0
  %1087 = vadd.xlane.f32.xlu0 %v1086
  %v1088 = vpop.xlane.xlu0 %1087
  %v1089 = vsel %vm69, %v1083, 0.0
  %1090 = vadd.xlane.f32.xlu0 %v1089
  %v1091 = vpop.xlane.xlu0 %1090
  %v1092 = vrcp.pop 32.0
  %v1093 = vmul.f32 %v1088, %v1092
  %v1094 = vmul.f32 %v1091, %v1092
  %v1095 = vsub.f32 %v1082, %v1093
  %v1096 = vsub.f32 %v1083, %v1094
  %v1097 = vmul.f32 %v1095, %v1095
  %v1098 = vmul.f32 %v1096, %v1096
  %v1099 = vsel %vm69, %v1097, 0.0
  %1100 = vadd.xlane.f32.xlu0 %v1099
  %v1101 = vpop.xlane.xlu0 %1100
  %v1102 = vsel %vm69, %v1098, 0.0
  %1103 = vadd.xlane.f32.xlu0 %v1102
  %v1104 = vpop.xlane.xlu0 %1103
  %v1105 = vmul.f32 %v1101, %v1092
  %v1106 = vmul.f32 %v1104, %v1092
  %v1107 = vadd.f32 %v1105, 1e-05
  %v1108 = vadd.f32 %v1106, 1e-05
  %v1109 = vrsqrt.pop %v1107
  %v1110 = vrsqrt.pop %v1108
  %v1111 = vmul.f32 %v1095, %v1109
  %v1112 = vmul.f32 %v1096, %v1110
  %v1114 = vlaneseq
  %v1115 = vshrl.u32 %v1114, 7
  %v1116 = vsub.s32 0, %v1115
  %v1117 = vrot.slane %v1084, %v1116
  %v1119 = vmul.f32 %v1111, %v1117
  %v1120 = vmul.f32 %v1112, %v1117
  %v1122 = vlaneseq
  %v1123 = vshrl.u32 %v1122, 7
  %v1124 = vsub.s32 0, %v1123
  %v1125 = vrot.slane %v1085, %v1124
  %v1127 = vadd.f32 %v1119, %v1125
  %v1128 = vadd.f32 %v1120, %v1125
  %v1129 = vld [vmem:[%s9] sm:$0xff]
  %v1130 = vld [vmem:[%s9 + $0x8] sm:$0xff]
  %v1131 = vld [vmem:[%s9 + $0x10] sm:$0xff]
  %v1132 = vld [vmem:[%s9 + $0x18] sm:$0xff]
  %v1133 = vld [vmem:[%s10] sm:$0x1]
  %v1135 = vlaneseq
  %v1136 = vshrl.u32 %v1135, 7
  %v1137 = vsub.s32 0, %v1136
  %v1138 = vrot.slane %v1133, %v1137
  %v1141 = vsel %vm69, %v1127, 0
  %v1144 = vsel %vm69, %v1128, 0
  %1146 = vmatprep.subr.mxu0 0.0
  %1147 = vmatpush1.msra.mxu0 0.0
  %1148 = vmatprep.subr.mxu0 0.0
  %1149 = vmatpush1.msra.mxu0 0.0
  %1150 = vmatprep.subr.mxu0 0.0
  %1151 = vmatpush1.msra.mxu0 0.0
  %1152 = vmatprep.subr.mxu0 0.0
  %1153 = vmatpush1.msra.mxu0 0.0
  %1154 = vmatprep.subr.mxu0 0.0
  %1155 = vmatpush1.msra.mxu0 0.0
  %1156 = vmatprep.subr.mxu0 0.0
  %1157 = vmatpush1.msra.mxu0 0.0
  %1158 = vmatprep.subr.mxu0 0.0
  %1159 = vmatpush1.msra.mxu0 0.0
  %1160 = vmatprep.subr.mxu0 0.0
  %1161 = vmatpush1.msra.mxu0 0.0
  %1162 = vmatprep.subr.mxu0 0.0
  %1163 = vmatpush1.msra.mxu0 0.0
  %1164 = vmatprep.subr.mxu0 0.0
  %1165 = vmatpush1.msra.mxu0 0.0
  %1166 = vmatprep.subr.mxu0 0.0
  %1167 = vmatpush1.msra.mxu0 0.0
  %1168 = vmatprep.subr.mxu0 0.0
  %1169 = vmatpush1.msra.mxu0 0.0
  %1170 = vmatprep.subr.mxu0 0.0
  %1171 = vmatpush1.msra.mxu0 %v1132
  %1172 = vmatprep.subr.mxu0 0.0
  %1173 = vmatpush1.msra.mxu0 %v1131
  %1174 = vmatprep.subr.mxu0 0.0
  %1175 = vmatpush1.msra.mxu0 %v1130
  %1176 = vmatprep.subr.mxu0 0.0
  %1177 = vmatpush1.msra.mxu0 %v1129
  %1178 = vmatprep.subr.mxu0 0.0
  %1179 = vmatpush2.msra.mxu0 0.0
  %1180 = vmatprep.subr.mxu0 0.0
  %1181 = vmatpush2.msra.mxu0 0.0
  %1182 = vmatprep.subr.mxu0 0.0
  %1183 = vmatpush2.msra.mxu0 0.0
  %1184 = vmatprep.subr.mxu0 0.0
  %1185 = vmatpush2.msra.mxu0 0.0
  %1186 = vmatprep.subr.mxu0 0.0
  %1187 = vmatpush2.msra.mxu0 0.0
  %1188 = vmatprep.subr.mxu0 0.0
  %1189 = vmatpush2.msra.mxu0 0.0
  %1190 = vmatprep.subr.mxu0 0.0
  %1191 = vmatpush2.msra.mxu0 0.0
  %1192 = vmatprep.subr.mxu0 0.0
  %1193 = vmatpush2.msra.mxu0 0.0
  %1194 = vmatprep.subr.mxu0 0.0
  %1195 = vmatpush2.msra.mxu0 0.0
  %1196 = vmatprep.subr.mxu0 0.0
  %1197 = vmatpush2.msra.mxu0 0.0
  %1198 = vmatprep.subr.mxu0 0.0
  %1199 = vmatpush2.msra.mxu0 0.0
  %1200 = vmatprep.subr.mxu0 0.0
  %1201 = vmatpush2.msra.mxu0 0.0
  %1202 = vmatprep.subr.mxu0 0.0
  %1203 = vmatpush2.msra.mxu0 0.0
  %1204 = vmatprep.subr.mxu0 0.0
  %1205 = vmatpush2.msra.mxu0 0.0
  %1206 = vmatprep.subr.mxu0 0.0
  %1207 = vmatpush2.msra.mxu0 0.0
  %1208 = vmatprep.subr.mxu0 0.0
  %1209 = vmatpush2.msra.mxu0 0.0
  %1210 = vmatprep.mubr.f32.mxu0 0.0
  %1211 = vmatmul.mubr.f32.gmra.mxu0 %v1141
  %v1212 = vpop.f32.mrf.mxu0
  %v1213 = vadd.f32 %v1138, %v1212
  %v1214 = vpop.f32.mrf.mxu0
  %1215 = vmatprep.mubr.f32.mxu0 0.0
  %1216 = vmatmul.mubr.f32.gmra.mxu0 %v1144
  %v1217 = vpop.f32.mrf.mxu0
  %v1218 = vadd.f32 %v1138, %v1217
  %v1219 = vpop.f32.mrf.mxu0
  %1220 = vdwg.mxu0
  %v1221 = vand.u32 2147483647, %v1213
  %v1222 = vand.u32 2147483647, %v1218
  %v1223 = vmul.f32 %v1221, 0.70710677
  %v1224 = vmul.f32 %v1222, 0.70710677
  %v1225 = vmul.f32 %v1223, 0.3275911
  %v1226 = vmul.f32 %v1224, 0.3275911
  %v1227 = vadd.f32 %v1225, 1.0
  %v1228 = vadd.f32 %v1226, 1.0
  %v1229 = vrcp.pop %v1227
  %v1230 = vmul.f32 1.0, %v1229
  %v1231 = vrcp.pop %v1228
  %v1232 = vmul.f32 1.0, %v1231
  %v1233 = vmul.f32 %v1230, 1.0614054
  %v1234 = vmul.f32 %v1232, 1.0614054
  %v1235 = vadd.f32 %v1233, -1.4531521
  %v1236 = vadd.f32 %v1234, -1.4531521
  %v1237 = vmul.f32 %v1230, %v1235
  %v1238 = vmul.f32 %v1232, %v1236
  %v1239 = vadd.f32 %v1237, 1.4214138
  %v1240 = vadd.f32 %v1238, 1.4214138
  %v1241 = vmul.f32 %v1230, %v1239
  %v1242 = vmul.f32 %v1232, %v1240
  %v1243 = vadd.f32 %v1241, -0.28449672
  %v1244 = vadd.f32 %v1242, -0.28449672
  %v1245 = vmul.f32 %v1230, %v1243
  %v1246 = vmul.f32 %v1232, %v1244
  %v1247 = vadd.f32 %v1245, 0.2548296
  %v1248 = vadd.f32 %v1246, 0.2548296
  %v1249 = vmul.f32 %v1230, %v1247
  %v1250 = vmul.f32 %v1232, %v1248
  %v1251 = vsub.f32 0.0, %v1223
  %v1252 = vsub.f32 0.0, %v1224
  %v1253 = vmul.f32 %v1251, %v1223
  %v1254 = vmul.f32 %v1252, %v1224
  %v1255 = vmul.f32 %v1253, 1.442695
  %v1256 = vpow.pop %v1255
  %v1257 = vmul.f32 %v1254, 1.442695
  %v1258 = vpow.pop %v1257
  %v1259 = vmul.f32 %v1249, %v1256
  %v1260 = vmul.f32 %v1250, %v1258
  %v1261 = vsub.f32 1.0, %v1259
  %v1262 = vsub.f32 1.0, %v1260
  %v1263 = vmul.f32 %v1213, 0.5
  %v1264 = vmul.f32 %v1218, 0.5
  %vm1265 = vcmp.ge.f32.partialorder %v1213, 0.0
  %vm1266 = vcmp.ge.f32.partialorder %v1218, 0.0
  %v1267 = vsub.f32 0.0, %v1261
  %v1268 = vsub.f32 0.0, %v1262
  %v1269 = vsel %vm1265, %v1261, %v1267
  %v1270 = vsel %vm1266, %v1262, %v1268
  %v1271 = vadd.f32 %v1269, 1.0
  %v1272 = vadd.f32 %v1270, 1.0
  %v1273 = vmul.f32 %v1263, %v1271
  %v1274 = vmul.f32 %v1264, %v1272
  %v1275 = vld [vmem:[%s11] sm:$0xff]
  %v1276 = vld [vmem:[%s11 + $0x8] sm:$0xff]
  %v1277 = vld [vmem:[%s11 + $0x10] sm:$0xff]
  %v1278 = vld [vmem:[%s11 + $0x18] sm:$0xff]
  %v1279 = vld [vmem:[%s11 + $0x20] sm:$0xff]
  %v1280 = vld [vmem:[%s11 + $0x28] sm:$0xff]
  %v1281 = vld [vmem:[%s11 + $0x30] sm:$0xff]
  %v1282 = vld [vmem:[%s11 + $0x38] sm:$0xff]
  %v1283 = vld [vmem:[%s12] sm:$0x1]
  %v1285 = vlaneseq
  %v1286 = vshrl.u32 %v1285, 7
  %v1287 = vsub.s32 0, %v1286
  %v1288 = vrot.slane %v1283, %v1287
  %vm1290 = vcmask 523264
  %v1292 = vsel %vm1290, %v1273, 0
  %v1295 = vsel %vm1290, %v1274, 0
  %1297 = vmatprep.subr.mxu0 0.0
  %1298 = vmatpush1.msra.mxu0 0.0
  %1299 = vmatprep.subr.mxu0 0.0
  %1300 = vmatpush1.msra.mxu0 0.0
  %1301 = vmatprep.subr.mxu0 0.0
  %1302 = vmatpush1.msra.mxu0 0.0
  %1303 = vmatprep.subr.mxu0 0.0
  %1304 = vmatpush1.msra.mxu0 0.0
  %1305 = vmatprep.subr.mxu0 0.0
  %1306 = vmatpush1.msra.mxu0 0.0
  %1307 = vmatprep.subr.mxu0 0.0
  %1308 = vmatpush1.msra.mxu0 0.0
  %1309 = vmatprep.subr.mxu0 0.0
  %1310 = vmatpush1.msra.mxu0 0.0
  %1311 = vmatprep.subr.mxu0 0.0
  %1312 = vmatpush1.msra.mxu0 0.0
  %1313 = vmatprep.subr.mxu0 0.0
  %1314 = vmatpush1.msra.mxu0 %v1282
  %1315 = vmatprep.subr.mxu0 0.0
  %1316 = vmatpush1.msra.mxu0 %v1281
  %1317 = vmatprep.subr.mxu0 0.0
  %1318 = vmatpush1.msra.mxu0 %v1280
  %1319 = vmatprep.subr.mxu0 0.0
  %1320 = vmatpush1.msra.mxu0 %v1279
  %1321 = vmatprep.subr.mxu0 0.0
  %1322 = vmatpush1.msra.mxu0 %v1278
  %1323 = vmatprep.subr.mxu0 0.0
  %1324 = vmatpush1.msra.mxu0 %v1277
  %1325 = vmatprep.subr.mxu0 0.0
  %1326 = vmatpush1.msra.mxu0 %v1276
  %1327 = vmatprep.subr.mxu0 0.0
  %1328 = vmatpush1.msra.mxu0 %v1275
  %1329 = vmatprep.subr.mxu0 0.0
  %1330 = vmatpush2.msra.mxu0 0.0
  %1331 = vmatprep.subr.mxu0 0.0
  %1332 = vmatpush2.msra.mxu0 0.0
  %1333 = vmatprep.subr.mxu0 0.0
  %1334 = vmatpush2.msra.mxu0 0.0
  %1335 = vmatprep.subr.mxu0 0.0
  %1336 = vmatpush2.msra.mxu0 0.0
  %1337 = vmatprep.subr.mxu0 0.0
  %1338 = vmatpush2.msra.mxu0 0.0
  %1339 = vmatprep.subr.mxu0 0.0
  %1340 = vmatpush2.msra.mxu0 0.0
  %1341 = vmatprep.subr.mxu0 0.0
  %1342 = vmatpush2.msra.mxu0 0.0
  %1343 = vmatprep.subr.mxu0 0.0
  %1344 = vmatpush2.msra.mxu0 0.0
  %1345 = vmatprep.subr.mxu0 0.0
  %1346 = vmatpush2.msra.mxu0 0.0
  %1347 = vmatprep.subr.mxu0 0.0
  %1348 = vmatpush2.msra.mxu0 0.0
  %1349 = vmatprep.subr.mxu0 0.0
  %1350 = vmatpush2.msra.mxu0 0.0
  %1351 = vmatprep.subr.mxu0 0.0
  %1352 = vmatpush2.msra.mxu0 0.0
  %1353 = vmatprep.subr.mxu0 0.0
  %1354 = vmatpush2.msra.mxu0 0.0
  %1355 = vmatprep.subr.mxu0 0.0
  %1356 = vmatpush2.msra.mxu0 0.0
  %1357 = vmatprep.subr.mxu0 0.0
  %1358 = vmatpush2.msra.mxu0 0.0
  %1359 = vmatprep.subr.mxu0 0.0
  %1360 = vmatpush2.msra.mxu0 0.0
  %1361 = vmatprep.mubr.f32.mxu0 0.0
  %1362 = vmatmul.mubr.f32.gmra.mxu0 %v1292
  %v1363 = vpop.f32.mrf.mxu0
  %v1364 = vadd.f32 %v1288, %v1363
  %v1365 = vpop.f32.mrf.mxu0
  %1366 = vmatprep.mubr.f32.mxu0 0.0
  %1367 = vmatmul.mubr.f32.gmra.mxu0 %v1295
  %v1368 = vpop.f32.mrf.mxu0
  %v1369 = vadd.f32 %v1288, %v1368
  %v1370 = vpop.f32.mrf.mxu0
  %1371 = vdwg.mxu0
  %v1372 = vadd.f32 %v1127, %v1364
  %v1373 = vadd.f32 %v1128, %v1369
  %v1374 = vld [vmem:[%s15] sm:$0x1]
  %v1375 = vld [vmem:[%s16] sm:$0x1]
  %v1376 = vsel %vm69, %v1372, 0.0
  %1377 = vadd.xlane.f32.xlu0 %v1376
  %v1378 = vpop.xlane.xlu0 %1377
  %v1379 = vsel %vm69, %v1373, 0.0
  %1380 = vadd.xlane.f32.xlu0 %v1379
  %v1381 = vpop.xlane.xlu0 %1380
  %v1382 = vmul.f32 %v1378, %v1092
  %v1383 = vmul.f32 %v1381, %v1092
  %v1384 = vsub.f32 %v1372, %v1382
  %v1385 = vsub.f32 %v1373, %v1383
  %v1386 = vmul.f32 %v1384, %v1384
  %v1387 = vmul.f32 %v1385, %v1385
  %v1388 = vsel %vm69, %v1386, 0.0
  %1389 = vadd.xlane.f32.xlu0 %v1388
  %v1390 = vpop.xlane.xlu0 %1389
  %v1391 = vsel %vm69, %v1387, 0.0
  %1392 = vadd.xlane.f32.xlu0 %v1391
  %v1393 = vpop.xlane.xlu0 %1392
  %v1394 = vmul.f32 %v1390, %v1092
  %v1395 = vmul.f32 %v1393, %v1092
  %v1396 = vadd.f32 %v1394, 1e-05
  %v1397 = vadd.f32 %v1395, 1e-05
  %v1398 = vrsqrt.pop %v1396
  %v1399 = vrsqrt.pop %v1397
  %v1400 = vmul.f32 %v1384, %v1398
  %v1401 = vmul.f32 %v1385, %v1399
  %v1403 = vlaneseq
  %v1404 = vshrl.u32 %v1403, 7
  %v1405 = vsub.s32 0, %v1404
  %v1406 = vrot.slane %v1374, %v1405
  %v1408 = vmul.f32 %v1400, %v1406
  %v1409 = vmul.f32 %v1401, %v1406
  %v1411 = vlaneseq
  %v1412 = vshrl.u32 %v1411, 7
  %v1413 = vsub.s32 0, %v1412
  %v1414 = vrot.slane %v1375, %v1413
  %v1416 = vadd.f32 %v1408, %v1414
  %v1417 = vadd.f32 %v1409, %v1414
  %1418 = vst.msk [vmem:[%s17] sm:$0xff] %vm69, %v1416
  %1419 = vst.msk [vmem:[%s17 + $0x8] sm:$0xff] %vm69, %v1417
  // Predicated region
  $region70: #{_lambda_.10} parent=0 // pred_check
    _
  $region71: #{_lambda_.10} parent=0 // pred_check_branch
    %1421 = sbr.rel (0) target = $region73
  $region72: #{_lambda_.10} parent=0 // pred_region
    _
  $region73: #{_lambda_.10} parent=0 // pred_fallthru
    _
  // Predicated region
  $region74: #{_lambda_.10} parent=0 // pred_check
    _
  $region75: #{_lambda_.10} parent=0 // pred_check_branch
    %1423 = sbr.rel (0) target = $region77
  $region76: #{_lambda_.10} parent=0 // pred_region
    _
  $region77: #{_lambda_.10} parent=0 // pred_fallthru
    _

// kernel: _lambda_.11
$region0: #{_lambda_.11}
  #allocation0 [shape = 'u32[]', space=smem, size = 0x4, offset = 0x4, fixed_abs, tag = 'smem constant byte address 0x4 - core index']
  #allocation1 [shape = 'u32[144,128]{1,0:T(1,128)}', space=vmem, size = 0x12000, scoped, tag = 'internal scratch']
  %s0 = inlined_call_operand.vmem [shape: f32[64,8], index: 0, kind: input, shape index: {}]
  %s1 = inlined_call_operand.vmem [shape: f32[8,8], index: 1, kind: input, shape index: {}]
  %s2 = inlined_call_operand.vmem [shape: f32[1,8], index: 2, kind: input, shape index: {}]
  %s3 = inlined_call_operand.vmem [shape: f32[8,8], index: 3, kind: input, shape index: {}]
  %s4 = inlined_call_operand.vmem [shape: f32[1,8], index: 4, kind: input, shape index: {}]
  %s5 = inlined_call_operand.vmem [shape: f32[8,8], index: 5, kind: input, shape index: {}]
  %s6 = inlined_call_operand.vmem [shape: f32[1,8], index: 6, kind: input, shape index: {}]
  %s7 = inlined_call_operand.vmem [shape: f32[8,8], index: 7, kind: input, shape index: {}]
  %s8 = inlined_call_operand.vmem [shape: f32[1,8], index: 8, kind: input, shape index: {}]
  %s9 = inlined_call_operand.vmem [shape: f32[8,64], index: 9, kind: input, shape index: {}]
  %s10 = inlined_call_operand.vmem [shape: f32[1,64], index: 10, kind: input, shape index: {}]
  %s11 = inlined_call_operand.vmem [shape: f32[64,8], index: 11, kind: input, shape index: {}]
  %s12 = inlined_call_operand.vmem [shape: f32[1,8], index: 12, kind: input, shape index: {}]
  %s13 = inlined_call_operand.vmem [shape: f32[1,8], index: 13, kind: input, shape index: {}, may-alias: {13,15}]
  %s14 = inlined_call_operand.vmem [shape: f32[1,8], index: 14, kind: input, shape index: {}, may-alias: {14,16}]
  %s15 = inlined_call_operand.vmem [shape: f32[1,8], index: 15, kind: input, shape index: {}, may-alias: {13,15}]
  %s16 = inlined_call_operand.vmem [shape: f32[1,8], index: 16, kind: input, shape index: {}, may-alias: {14,16}]
  %s17 = inlined_call_operand.vmem [shape: f32[64,8], index: 17, kind: output, shape index: {}]
  %s18 = sld [smem:[#allocation0]]
  $region78: #{_lambda_.11} parent=0
    _
  %s20 = ssub.s32 1, %s18
  %s21 = scalar_select 0, %s20, %s18
  // Predicated region
  $region2: #{_lambda_.11} parent=0 // pred_check
    _
  $region3: #{_lambda_.11} parent=0 // pred_check_branch
    %23 = sbr.rel (0) target = $region5
  $region4: #{_lambda_.11} parent=0 // pred_region
    _
  $region5: #{_lambda_.11} parent=0 // pred_fallthru
    _
  // Predicated region
  $region6: #{_lambda_.11} parent=0 // pred_check
    _
  $region7: #{_lambda_.11} parent=0 // pred_check_branch
    %25 = sbr.rel (0) target = $region9
  $region8: #{_lambda_.11} parent=0 // pred_region
    _
  $region9: #{_lambda_.11} parent=0 // pred_fallthru
    _
  // Predicated region
  $region10: #{_lambda_.11} parent=0 // pred_check
    _
  $region11: #{_lambda_.11} parent=0 // pred_check_branch
    %27 = sbr.rel (0) target = $region13
  $region12: #{_lambda_.11} parent=0 // pred_region
    _
  $region13: #{_lambda_.11} parent=0 // pred_fallthru
    _
  // Predicated region
  $region14: #{_lambda_.11} parent=0 // pred_check
    _
  $region15: #{_lambda_.11} parent=0 // pred_check_branch
    %29 = sbr.rel (0) target = $region17
  $region16: #{_lambda_.11} parent=0 // pred_region
    _
  $region17: #{_lambda_.11} parent=0 // pred_fallthru
    _
  // Predicated region
  $region18: #{_lambda_.11} parent=0 // pred_check
    _
  $region19: #{_lambda_.11} parent=0 // pred_check_branch
    %31 = sbr.rel (0) target = $region21
  $region20: #{_lambda_.11} parent=0 // pred_region
    _
  $region21: #{_lambda_.11} parent=0 // pred_fallthru
    _
  // Predicated region
  $region22: #{_lambda_.11} parent=0 // pred_check
    _
  $region23: #{_lambda_.11} parent=0 // pred_check_branch
    %33 = sbr.rel (0) target = $region25
  $region24: #{_lambda_.11} parent=0 // pred_region
    _
  $region25: #{_lambda_.11} parent=0 // pred_fallthru
    _
  // Predicated region
  $region26: #{_lambda_.11} parent=0 // pred_check
    _
  $region27: #{_lambda_.11} parent=0 // pred_check_branch
    %35 = sbr.rel (0) target = $region29
  $region28: #{_lambda_.11} parent=0 // pred_region
    _
  $region29: #{_lambda_.11} parent=0 // pred_fallthru
    _
  // Predicated region
  $region30: #{_lambda_.11} parent=0 // pred_check
    _
  $region31: #{_lambda_.11} parent=0 // pred_check_branch
    %37 = sbr.rel (0) target = $region33
  $region32: #{_lambda_.11} parent=0 // pred_region
    _
  $region33: #{_lambda_.11} parent=0 // pred_fallthru
    _
  // Predicated region
  $region34: #{_lambda_.11} parent=0 // pred_check
    _
  $region35: #{_lambda_.11} parent=0 // pred_check_branch
    %39 = sbr.rel (0) target = $region37
  $region36: #{_lambda_.11} parent=0 // pred_region
    _
  $region37: #{_lambda_.11} parent=0 // pred_fallthru
    _
  // Predicated region
  $region38: #{_lambda_.11} parent=0 // pred_check
    _
  $region39: #{_lambda_.11} parent=0 // pred_check_branch
    %41 = sbr.rel (0) target = $region41
  $region40: #{_lambda_.11} parent=0 // pred_region
    _
  $region41: #{_lambda_.11} parent=0 // pred_fallthru
    _
  // Predicated region
  $region42: #{_lambda_.11} parent=0 // pred_check
    _
  $region43: #{_lambda_.11} parent=0 // pred_check_branch
    %43 = sbr.rel (0) target = $region45
  $region44: #{_lambda_.11} parent=0 // pred_region
    _
  $region45: #{_lambda_.11} parent=0 // pred_fallthru
    _
  // Predicated region
  $region46: #{_lambda_.11} parent=0 // pred_check
    _
  $region47: #{_lambda_.11} parent=0 // pred_check_branch
    %45 = sbr.rel (0) target = $region49
  $region48: #{_lambda_.11} parent=0 // pred_region
    _
  $region49: #{_lambda_.11} parent=0 // pred_fallthru
    _
  // Predicated region
  $region50: #{_lambda_.11} parent=0 // pred_check
    _
  $region51: #{_lambda_.11} parent=0 // pred_check_branch
    %47 = sbr.rel (0) target = $region53
  $region52: #{_lambda_.11} parent=0 // pred_region
    _
  $region53: #{_lambda_.11} parent=0 // pred_fallthru
    _
  // Predicated region
  $region54: #{_lambda_.11} parent=0 // pred_check
    _
  $region55: #{_lambda_.11} parent=0 // pred_check_branch
    %49 = sbr.rel (0) target = $region57
  $region56: #{_lambda_.11} parent=0 // pred_region
    _
  $region57: #{_lambda_.11} parent=0 // pred_fallthru
    _
  // Predicated region
  $region58: #{_lambda_.11} parent=0 // pred_check
    _
  $region59: #{_lambda_.11} parent=0 // pred_check_branch
    %51 = sbr.rel (0) target = $region61
  $region60: #{_lambda_.11} parent=0 // pred_region
    _
  $region61: #{_lambda_.11} parent=0 // pred_fallthru
    _
  // Predicated region
  $region62: #{_lambda_.11} parent=0 // pred_check
    _
  $region63: #{_lambda_.11} parent=0 // pred_check_branch
    %53 = sbr.rel (0) target = $region65
  $region64: #{_lambda_.11} parent=0 // pred_region
    _
  $region65: #{_lambda_.11} parent=0 // pred_fallthru
    _
  // Predicated region
  $region66: #{_lambda_.11} parent=0 // pred_check
    _
  $region67: #{_lambda_.11} parent=0 // pred_check_branch
    %55 = sbr.rel (0) target = $region69
  $region68: #{_lambda_.11} parent=0 // pred_region
    _
  $region69: #{_lambda_.11} parent=0 // pred_fallthru
    _
  %v56 = vld [vmem:[%s0] sm:$0xff]
  %v57 = vld [vmem:[%s0 + $0x8] sm:$0xff]
  %v58 = vld [vmem:[%s0 + $0x10] sm:$0xff]
  %v59 = vld [vmem:[%s0 + $0x18] sm:$0xff]
  %v60 = vld [vmem:[%s0 + $0x20] sm:$0xff]
  %v61 = vld [vmem:[%s0 + $0x28] sm:$0xff]
  %v62 = vld [vmem:[%s0 + $0x30] sm:$0xff]
  %v63 = vld [vmem:[%s0 + $0x38] sm:$0xff]
  %v64 = vld [vmem:[%s1] sm:$0xff]
  %v65 = vld [vmem:[%s2] sm:$0x1]
  %v67 = vlaneseq
  %v68 = vshrl.u32 %v67, 7
  %v69 = vsub.s32 0, %v68
  %v70 = vrot.slane %v65, %v69
  %vm72 = vcmask 64512
  %v74 = vsel %vm72, %v56, 0
  %v77 = vsel %vm72, %v57, 0
  %v80 = vsel %vm72, %v58, 0
  %v83 = vsel %vm72, %v59, 0
  %v86 = vsel %vm72, %v60, 0
  %v89 = vsel %vm72, %v61, 0
  %v92 = vsel %vm72, %v62, 0
  %v95 = vsel %vm72, %v63, 0
  %97 = vmatprep.subr.mxu0 0.0
  %98 = vmatpush1.msra.mxu0 0.0
  %99 = vmatprep.subr.mxu0 0.0
  %100 = vmatpush1.msra.mxu0 0.0
  %101 = vmatprep.subr.mxu0 0.0
  %102 = vmatpush1.msra.mxu0 0.0
  %103 = vmatprep.subr.mxu0 0.0
  %104 = vmatpush1.msra.mxu0 0.0
  %105 = vmatprep.subr.mxu0 0.0
  %106 = vmatpush1.msra.mxu0 0.0
  %107 = vmatprep.subr.mxu0 0.0
  %108 = vmatpush1.msra.mxu0 0.0
  %109 = vmatprep.subr.mxu0 0.0
  %110 = vmatpush1.msra.mxu0 0.0
  %111 = vmatprep.subr.mxu0 0.0
  %112 = vmatpush1.msra.mxu0 0.0
  %113 = vmatprep.subr.mxu0 0.0
  %114 = vmatpush1.msra.mxu0 0.0
  %115 = vmatprep.subr.mxu0 0.0
  %116 = vmatpush1.msra.mxu0 0.0
  %117 = vmatprep.subr.mxu0 0.0
  %118 = vmatpush1.msra.mxu0 0.0
  %119 = vmatprep.subr.mxu0 0.0
  %120 = vmatpush1.msra.mxu0 0.0
  %121 = vmatprep.subr.mxu0 0.0
  %122 = vmatpush1.msra.mxu0 0.0
  %123 = vmatprep.subr.mxu0 0.0
  %124 = vmatpush1.msra.mxu0 0.0
  %125 = vmatprep.subr.mxu0 0.0
  %126 = vmatpush1.msra.mxu0 0.0
  %127 = vmatprep.subr.mxu0 0.0
  %128 = vmatpush1.msra.mxu0 %v64
  %129 = vmatprep.subr.mxu0 0.0
  %130 = vmatpush2.msra.mxu0 0.0
  %131 = vmatprep.subr.mxu0 0.0
  %132 = vmatpush2.msra.mxu0 0.0
  %133 = vmatprep.subr.mxu0 0.0
  %134 = vmatpush2.msra.mxu0 0.0
  %135 = vmatprep.subr.mxu0 0.0
  %136 = vmatpush2.msra.mxu0 0.0
  %137 = vmatprep.subr.mxu0 0.0
  %138 = vmatpush2.msra.mxu0 0.0
  %139 = vmatprep.subr.mxu0 0.0
  %140 = vmatpush2.msra.mxu0 0.0
  %141 = vmatprep.subr.mxu0 0.0
  %142 = vmatpush2.msra.mxu0 0.0
  %143 = vmatprep.subr.mxu0 0.0
  %144 = vmatpush2.msra.mxu0 0.0
  %145 = vmatprep.subr.mxu0 0.0
  %146 = vmatpush2.msra.mxu0 0.0
  %147 = vmatprep.subr.mxu0 0.0
  %148 = vmatpush2.msra.mxu0 0.0
  %149 = vmatprep.subr.mxu0 0.0
  %150 = vmatpush2.msra.mxu0 0.0
  %151 = vmatprep.subr.mxu0 0.0
  %152 = vmatpush2.msra.mxu0 0.0
  %153 = vmatprep.subr.mxu0 0.0
  %154 = vmatpush2.msra.mxu0 0.0
  %155 = vmatprep.subr.mxu0 0.0
  %156 = vmatpush2.msra.mxu0 0.0
  %157 = vmatprep.subr.mxu0 0.0
  %158 = vmatpush2.msra.mxu0 0.0
  %159 = vmatprep.subr.mxu0 0.0
  %160 = vmatpush2.msra.mxu0 0.0
  %161 = vmatprep.mubr.f32.mxu0 0.0
  %162 = vmatmul.mubr.f32.gmra.mxu0 %v74
  %v163 = vpop.f32.mrf.mxu0
  %v164 = vadd.f32 %v70, %v163
  %v165 = vpop.f32.mrf.mxu0
  %166 = vmatprep.mubr.f32.mxu0 0.0
  %167 = vmatmul.mubr.f32.gmra.mxu0 %v77
  %v168 = vpop.f32.mrf.mxu0
  %v169 = vadd.f32 %v70, %v168
  %v170 = vpop.f32.mrf.mxu0
  %171 = vmatprep.mubr.f32.mxu0 0.0
  %172 = vmatmul.mubr.f32.gmra.mxu0 %v80
  %v173 = vpop.f32.mrf.mxu0
  %v174 = vadd.f32 %v70, %v173
  %v175 = vpop.f32.mrf.mxu0
  %176 = vmatprep.mubr.f32.mxu0 0.0
  %177 = vmatmul.mubr.f32.gmra.mxu0 %v83
  %v178 = vpop.f32.mrf.mxu0
  %v179 = vadd.f32 %v70, %v178
  %v180 = vpop.f32.mrf.mxu0
  %181 = vmatprep.mubr.f32.mxu0 0.0
  %182 = vmatmul.mubr.f32.gmra.mxu0 %v86
  %v183 = vpop.f32.mrf.mxu0
  %v184 = vadd.f32 %v70, %v183
  %v185 = vpop.f32.mrf.mxu0
  %186 = vmatprep.mubr.f32.mxu0 0.0
  %187 = vmatmul.mubr.f32.gmra.mxu0 %v89
  %v188 = vpop.f32.mrf.mxu0
  %v189 = vadd.f32 %v70, %v188
  %v190 = vpop.f32.mrf.mxu0
  %191 = vmatprep.mubr.f32.mxu0 0.0
  %192 = vmatmul.mubr.f32.gmra.mxu0 %v92
  %v193 = vpop.f32.mrf.mxu0
  %v194 = vadd.f32 %v70, %v193
  %v195 = vpop.f32.mrf.mxu0
  %196 = vmatprep.mubr.f32.mxu0 0.0
  %197 = vmatmul.mubr.f32.gmra.mxu0 %v95
  %v198 = vpop.f32.mrf.mxu0
  %v199 = vadd.f32 %v70, %v198
  %v200 = vpop.f32.mrf.mxu0
  %201 = vdwg.mxu0
  %v202 = vld [vmem:[%s3] sm:$0xff]
  %v203 = vld [vmem:[%s4] sm:$0x1]
  %v205 = vlaneseq
  %v206 = vshrl.u32 %v205, 7
  %v207 = vsub.s32 0, %v206
  %v208 = vrot.slane %v203, %v207
  %210 = vmatprep.subr.mxu0 0.0
  %211 = vmatpush1.msra.mxu0 0.0
  %212 = vmatprep.subr.mxu0 0.0
  %213 = vmatpush1.msra.mxu0 0.0
  %214 = vmatprep.subr.mxu0 0.0
  %215 = vmatpush1.msra.mxu0 0.0
  %216 = vmatprep.subr.mxu0 0.0
  %217 = vmatpush1.msra.mxu0 0.0
  %218 = vmatprep.subr.mxu0 0.0
  %219 = vmatpush1.msra.mxu0 0.0
  %220 = vmatprep.subr.mxu0 0.0
  %221 = vmatpush1.msra.mxu0 0.0
  %222 = vmatprep.subr.mxu0 0.0
  %223 = vmatpush1.msra.mxu0 0.0
  %224 = vmatprep.subr.mxu0 0.0
  %225 = vmatpush1.msra.mxu0 0.0
  %226 = vmatprep.subr.mxu0 0.0
  %227 = vmatpush1.msra.mxu0 0.0
  %228 = vmatprep.subr.mxu0 0.0
  %229 = vmatpush1.msra.mxu0 0.0
  %230 = vmatprep.subr.mxu0 0.0
  %231 = vmatpush1.msra.mxu0 0.0
  %232 = vmatprep.subr.mxu0 0.0
  %233 = vmatpush1.msra.mxu0 0.0
  %234 = vmatprep.subr.mxu0 0.0
  %235 = vmatpush1.msra.mxu0 0.0
  %236 = vmatprep.subr.mxu0 0.0
  %237 = vmatpush1.msra.mxu0 0.0
  %238 = vmatprep.subr.mxu0 0.0
  %239 = vmatpush1.msra.mxu0 0.0
  %240 = vmatprep.subr.mxu0 0.0
  %241 = vmatpush1.msra.mxu0 %v202
  %242 = vmatprep.subr.mxu0 0.0
  %243 = vmatpush2.msra.mxu0 0.0
  %244 = vmatprep.subr.mxu0 0.0
  %245 = vmatpush2.msra.mxu0 0.0
  %246 = vmatprep.subr.mxu0 0.0
  %247 = vmatpush2.msra.mxu0 0.0
  %248 = vmatprep.subr.mxu0 0.0
  %249 = vmatpush2.msra.mxu0 0.0
  %250 = vmatprep.subr.mxu0 0.0
  %251 = vmatpush2.msra.mxu0 0.0
  %252 = vmatprep.subr.mxu0 0.0
  %253 = vmatpush2.msra.mxu0 0.0
  %254 = vmatprep.subr.mxu0 0.0
  %255 = vmatpush2.msra.mxu0 0.0
  %256 = vmatprep.subr.mxu0 0.0
  %257 = vmatpush2.msra.mxu0 0.0
  %258 = vmatprep.subr.mxu0 0.0
  %259 = vmatpush2.msra.mxu0 0.0
  %260 = vmatprep.subr.mxu0 0.0
  %261 = vmatpush2.msra.mxu0 0.0
  %262 = vmatprep.subr.mxu0 0.0
  %263 = vmatpush2.msra.mxu0 0.0
  %264 = vmatprep.subr.mxu0 0.0
  %265 = vmatpush2.msra.mxu0 0.0
  %266 = vmatprep.subr.mxu0 0.0
  %267 = vmatpush2.msra.mxu0 0.0
  %268 = vmatprep.subr.mxu0 0.0
  %269 = vmatpush2.msra.mxu0 0.0
  %270 = vmatprep.subr.mxu0 0.0
  %271 = vmatpush2.msra.mxu0 0.0
  %272 = vmatprep.subr.mxu0 0.0
  %273 = vmatpush2.msra.mxu0 0.0
  %274 = vmatprep.mubr.f32.mxu0 0.0
  %275 = vmatmul.mubr.f32.gmra.mxu0 %v74
  %v276 = vpop.f32.mrf.mxu0
  %v277 = vadd.f32 %v208, %v276
  %v278 = vpop.f32.mrf.mxu0
  %279 = vmatprep.mubr.f32.mxu0 0.0
  %280 = vmatmul.mubr.f32.gmra.mxu0 %v77
  %v281 = vpop.f32.mrf.mxu0
  %v282 = vadd.f32 %v208, %v281
  %v283 = vpop.f32.mrf.mxu0
  %284 = vmatprep.mubr.f32.mxu0 0.0
  %285 = vmatmul.mubr.f32.gmra.mxu0 %v80
  %v286 = vpop.f32.mrf.mxu0
  %v287 = vadd.f32 %v208, %v286
  %v288 = vpop.f32.mrf.mxu0
  %289 = vmatprep.mubr.f32.mxu0 0.0
  %290 = vmatmul.mubr.f32.gmra.mxu0 %v83
  %v291 = vpop.f32.mrf.mxu0
  %v292 = vadd.f32 %v208, %v291
  %v293 = vpop.f32.mrf.mxu0
  %294 = vmatprep.mubr.f32.mxu0 0.0
  %295 = vmatmul.mubr.f32.gmra.mxu0 %v86
  %v296 = vpop.f32.mrf.mxu0
  %v297 = vadd.f32 %v208, %v296
  %v298 = vpop.f32.mrf.mxu0
  %299 = vmatprep.mubr.f32.mxu0 0.0
  %300 = vmatmul.mubr.f32.gmra.mxu0 %v89
  %v301 = vpop.f32.mrf.mxu0
  %v302 = vadd.f32 %v208, %v301
  %v303 = vpop.f32.mrf.mxu0
  %304 = vmatprep.mubr.f32.mxu0 0.0
  %305 = vmatmul.mubr.f32.gmra.mxu0 %v92
  %v306 = vpop.f32.mrf.mxu0
  %v307 = vadd.f32 %v208, %v306
  %v308 = vpop.f32.mrf.mxu0
  %309 = vmatprep.mubr.f32.mxu0 0.0
  %310 = vmatmul.mubr.f32.gmra.mxu0 %v95
  %v311 = vpop.f32.mrf.mxu0
  %v312 = vadd.f32 %v208, %v311
  %v313 = vpop.f32.mrf.mxu0
  %314 = vdwg.mxu0
  %v315 = vld [vmem:[%s5] sm:$0xff]
  %v316 = vld [vmem:[%s6] sm:$0x1]
  %v318 = vlaneseq
  %v319 = vshrl.u32 %v318, 7
  %v320 = vsub.s32 0, %v319
  %v321 = vrot.slane %v316, %v320
  %323 = vmatprep.subr.mxu0 0.0
  %324 = vmatpush1.msra.mxu0 0.0
  %325 = vmatprep.subr.mxu0 0.0
  %326 = vmatpush1.msra.mxu0 0.0
  %327 = vmatprep.subr.mxu0 0.0
  %328 = vmatpush1.msra.mxu0 0.0
  %329 = vmatprep.subr.mxu0 0.0
  %330 = vmatpush1.msra.mxu0 0.0
  %331 = vmatprep.subr.mxu0 0.0
  %332 = vmatpush1.msra.mxu0 0.0
  %333 = vmatprep.subr.mxu0 0.0
  %334 = vmatpush1.msra.mxu0 0.0
  %335 = vmatprep.subr.mxu0 0.0
  %336 = vmatpush1.msra.mxu0 0.0
  %337 = vmatprep.subr.mxu0 0.0
  %338 = vmatpush1.msra.mxu0 0.0
  %339 = vmatprep.subr.mxu0 0.0
  %340 = vmatpush1.msra.mxu0 0.0
  %341 = vmatprep.subr.mxu0 0.0
  %342 = vmatpush1.msra.mxu0 0.0
  %343 = vmatprep.subr.mxu0 0.0
  %344 = vmatpush1.msra.mxu0 0.0
  %345 = vmatprep.subr.mxu0 0.0
  %346 = vmatpush1.msra.mxu0 0.0
  %347 = vmatprep.subr.mxu0 0.0
  %348 = vmatpush1.msra.mxu0 0.0
  %349 = vmatprep.subr.mxu0 0.0
  %350 = vmatpush1.msra.mxu0 0.0
  %351 = vmatprep.subr.mxu0 0.0
  %352 = vmatpush1.msra.mxu0 0.0
  %353 = vmatprep.subr.mxu0 0.0
  %354 = vmatpush1.msra.mxu0 %v315
  %355 = vmatprep.subr.mxu0 0.0
  %356 = vmatpush2.msra.mxu0 0.0
  %357 = vmatprep.subr.mxu0 0.0
  %358 = vmatpush2.msra.mxu0 0.0
  %359 = vmatprep.subr.mxu0 0.0
  %360 = vmatpush2.msra.mxu0 0.0
  %361 = vmatprep.subr.mxu0 0.0
  %362 = vmatpush2.msra.mxu0 0.0
  %363 = vmatprep.subr.mxu0 0.0
  %364 = vmatpush2.msra.mxu0 0.0
  %365 = vmatprep.subr.mxu0 0.0
  %366 = vmatpush2.msra.mxu0 0.0
  %367 = vmatprep.subr.mxu0 0.0
  %368 = vmatpush2.msra.mxu0 0.0
  %369 = vmatprep.subr.mxu0 0.0
  %370 = vmatpush2.msra.mxu0 0.0
  %371 = vmatprep.subr.mxu0 0.0
  %372 = vmatpush2.msra.mxu0 0.0
  %373 = vmatprep.subr.mxu0 0.0
  %374 = vmatpush2.msra.mxu0 0.0
  %375 = vmatprep.subr.mxu0 0.0
  %376 = vmatpush2.msra.mxu0 0.0
  %377 = vmatprep.subr.mxu0 0.0
  %378 = vmatpush2.msra.mxu0 0.0
  %379 = vmatprep.subr.mxu0 0.0
  %380 = vmatpush2.msra.mxu0 0.0
  %381 = vmatprep.subr.mxu0 0.0
  %382 = vmatpush2.msra.mxu0 0.0
  %383 = vmatprep.subr.mxu0 0.0
  %384 = vmatpush2.msra.mxu0 0.0
  %385 = vmatprep.subr.mxu0 0.0
  %386 = vmatpush2.msra.mxu0 0.0
  %387 = vmatprep.mubr.f32.mxu0 0.0
  %388 = vmatmul.mubr.f32.gmra.mxu0 %v74
  %v389 = vpop.f32.mrf.mxu0
  %v390 = vadd.f32 %v321, %v389
  %v391 = vpop.f32.mrf.mxu0
  %392 = vmatprep.mubr.f32.mxu0 0.0
  %393 = vmatmul.mubr.f32.gmra.mxu0 %v77
  %v394 = vpop.f32.mrf.mxu0
  %v395 = vadd.f32 %v321, %v394
  %v396 = vpop.f32.mrf.mxu0
  %397 = vmatprep.mubr.f32.mxu0 0.0
  %398 = vmatmul.mubr.f32.gmra.mxu0 %v80
  %v399 = vpop.f32.mrf.mxu0
  %v400 = vadd.f32 %v321, %v399
  %v401 = vpop.f32.mrf.mxu0
  %402 = vmatprep.mubr.f32.mxu0 0.0
  %403 = vmatmul.mubr.f32.gmra.mxu0 %v83
  %v404 = vpop.f32.mrf.mxu0
  %v405 = vadd.f32 %v321, %v404
  %v406 = vpop.f32.mrf.mxu0
  %407 = vmatprep.mubr.f32.mxu0 0.0
  %408 = vmatmul.mubr.f32.gmra.mxu0 %v86
  %v409 = vpop.f32.mrf.mxu0
  %v410 = vadd.f32 %v321, %v409
  %v411 = vpop.f32.mrf.mxu0
  %412 = vmatprep.mubr.f32.mxu0 0.0
  %413 = vmatmul.mubr.f32.gmra.mxu0 %v89
  %v414 = vpop.f32.mrf.mxu0
  %v415 = vadd.f32 %v321, %v414
  %v416 = vpop.f32.mrf.mxu0
  %417 = vmatprep.mubr.f32.mxu0 0.0
  %418 = vmatmul.mubr.f32.gmra.mxu0 %v92
  %v419 = vpop.f32.mrf.mxu0
  %v420 = vadd.f32 %v321, %v419
  %v421 = vpop.f32.mrf.mxu0
  %422 = vmatprep.mubr.f32.mxu0 0.0
  %423 = vmatmul.mubr.f32.gmra.mxu0 %v95
  %v424 = vpop.f32.mrf.mxu0
  %v425 = vadd.f32 %v321, %v424
  %v426 = vpop.f32.mrf.mxu0
  %427 = vdwg.mxu0
  %v428 = vlaneseq
  %v429 = vshrl.u32 %v428, 7
  %v430 = vlaneseq
  %v431 = vand.u32 %v430, 127
  %v432 = vmul.u32 %v431, 4
  %vm433 = vcmp.ge.s32.totalorder %v429, %v432
  %v434 = vadd.s32 %v431, 1
  %v435 = vmul.u32 %v434, 4
  %vm436 = vcmp.lt.s32.totalorder %v429, %v435
  %vm437 = vmand %vm433, %vm436
  %v438 = vsel %vm437, 1, 0
  %v439 = vcvt.s32.f32 %v438
  %v440 = vmul.u32 %v429, 4
  %vm441 = vcmp.ge.s32.totalorder %v431, %v440
  %v442 = vadd.s32 %v429, 1
  %v443 = vmul.u32 %v442, 4
  %vm444 = vcmp.lt.s32.totalorder %v431, %v443
  %vm445 = vmand %vm441, %vm444
  %v446 = vsel %vm445, 1, 0
  %v447 = vcvt.s32.f32 %v446
  %v448 = vmul.f32 %v164, %v277
  %v449 = vmul.f32 %v169, %v282
  %v450 = vmul.f32 %v174, %v287
  %v451 = vmul.f32 %v179, %v292
  %v453 = vsel %vm72, %v448, 0
  %v456 = vsel %vm72, %v449, 0
  %v459 = vsel %vm72, %v450, 0
  %v462 = vsel %vm72, %v451, 0
  %464 = vmatprep.subr.mxu0 0.0
  %465 = vmatpush1.msra.mxu0 0.0
  %466 = vmatprep.subr.mxu0 0.0
  %467 = vmatpush1.msra.mxu0 0.0
  %468 = vmatprep.subr.mxu0 0.0
  %469 = vmatpush1.msra.mxu0 0.0
  %470 = vmatprep.subr.mxu0 0.0
  %471 = vmatpush1.msra.mxu0 0.0
  %472 = vmatprep.subr.mxu0 0.0
  %473 = vmatpush1.msra.mxu0 0.0
  %474 = vmatprep.subr.mxu0 0.0
  %475 = vmatpush1.msra.mxu0 0.0
  %476 = vmatprep.subr.mxu0 0.0
  %477 = vmatpush1.msra.mxu0 0.0
  %478 = vmatprep.subr.mxu0 0.0
  %479 = vmatpush1.msra.mxu0 0.0
  %480 = vmatprep.subr.mxu0 0.0
  %481 = vmatpush1.msra.mxu0 0.0
  %482 = vmatprep.subr.mxu0 0.0
  %483 = vmatpush1.msra.mxu0 0.0
  %484 = vmatprep.subr.mxu0 0.0
  %485 = vmatpush1.msra.mxu0 0.0
  %486 = vmatprep.subr.mxu0 0.0
  %487 = vmatpush1.msra.mxu0 0.0
  %488 = vmatprep.subr.mxu0 0.0
  %489 = vmatpush1.msra.mxu0 0.0
  %490 = vmatprep.subr.mxu0 0.0
  %491 = vmatpush1.msra.mxu0 0.0
  %492 = vmatprep.subr.mxu0 0.0
  %493 = vmatpush1.msra.mxu0 0.0
  %494 = vmatprep.subr.mxu0 0.0
  %495 = vmatpush1.msra.mxu0 %v439
  %496 = vmatprep.subr.mxu0 0.0
  %497 = vmatpush2.msra.mxu0 0.0
  %498 = vmatprep.subr.mxu0 0.0
  %499 = vmatpush2.msra.mxu0 0.0
  %500 = vmatprep.subr.mxu0 0.0
  %501 = vmatpush2.msra.mxu0 0.0
  %502 = vmatprep.subr.mxu0 0.0
  %503 = vmatpush2.msra.mxu0 0.0
  %504 = vmatprep.subr.mxu0 0.0
  %505 = vmatpush2.msra.mxu0 0.0
  %506 = vmatprep.subr.mxu0 0.0
  %507 = vmatpush2.msra.mxu0 0.0
  %508 = vmatprep.subr.mxu0 0.0
  %509 = vmatpush2.msra.mxu0 0.0
  %510 = vmatprep.subr.mxu0 0.0
  %511 = vmatpush2.msra.mxu0 0.0
  %512 = vmatprep.subr.mxu0 0.0
  %513 = vmatpush2.msra.mxu0 0.0
  %514 = vmatprep.subr.mxu0 0.0
  %515 = vmatpush2.msra.mxu0 0.0
  %516 = vmatprep.subr.mxu0 0.0
  %517 = vmatpush2.msra.mxu0 0.0
  %518 = vmatprep.subr.mxu0 0.0
  %519 = vmatpush2.msra.mxu0 0.0
  %520 = vmatprep.subr.mxu0 0.0
  %521 = vmatpush2.msra.mxu0 0.0
  %522 = vmatprep.subr.mxu0 0.0
  %523 = vmatpush2.msra.mxu0 0.0
  %524 = vmatprep.subr.mxu0 0.0
  %525 = vmatpush2.msra.mxu0 0.0
  %526 = vmatprep.subr.mxu0 0.0
  %527 = vmatpush2.msra.mxu0 0.0
  %528 = vmatprep.mubr.f32.mxu0 0.0
  %529 = vmatmul.mubr.f32.gmra.mxu0 %v453
  %v530 = vpop.f32.mrf.mxu0
  %v531 = vadd.f32 0.0, %v530
  %v532 = vpop.f32.mrf.mxu0
  %533 = vmatprep.mubr.f32.mxu0 0.0
  %534 = vmatmul.mubr.f32.gmra.mxu0 %v456
  %v535 = vpop.f32.mrf.mxu0
  %v536 = vadd.f32 0.0, %v535
  %v537 = vpop.f32.mrf.mxu0
  %538 = vmatprep.mubr.f32.mxu0 0.0
  %539 = vmatmul.mubr.f32.gmra.mxu0 %v459
  %v540 = vpop.f32.mrf.mxu0
  %v541 = vadd.f32 0.0, %v540
  %v542 = vpop.f32.mrf.mxu0
  %543 = vmatprep.mubr.f32.mxu0 0.0
  %544 = vmatmul.mubr.f32.gmra.mxu0 %v462
  %v545 = vpop.f32.mrf.mxu0
  %v546 = vadd.f32 0.0, %v545
  %v547 = vpop.f32.mrf.mxu0
  %548 = vdwg.mxu0
  %v549 = vmul.f32 %v531, 0.5
  %v550 = vmul.f32 %v536, 0.5
  %v551 = vmul.f32 %v541, 0.5
  %v552 = vmul.f32 %v546, 0.5
  %v553 = vmul.f32 %v164, %v297
  %v554 = vmul.f32 %v169, %v302
  %v555 = vmul.f32 %v174, %v307
  %v556 = vmul.f32 %v179, %v312
  %v558 = vsel %vm72, %v553, 0
  %v561 = vsel %vm72, %v554, 0
  %v564 = vsel %vm72, %v555, 0
  %v567 = vsel %vm72, %v556, 0
  %569 = vmatprep.subr.mxu0 0.0
  %570 = vmatpush1.msra.mxu0 0.0
  %571 = vmatprep.subr.mxu0 0.0
  %572 = vmatpush1.msra.mxu0 0.0
  %573 = vmatprep.subr.mxu0 0.0
  %574 = vmatpush1.msra.mxu0 0.0
  %575 = vmatprep.subr.mxu0 0.0
  %576 = vmatpush1.msra.mxu0 0.0
  %577 = vmatprep.subr.mxu0 0.0
  %578 = vmatpush1.msra.mxu0 0.0
  %579 = vmatprep.subr.mxu0 0.0
  %580 = vmatpush1.msra.mxu0 0.0
  %581 = vmatprep.subr.mxu0 0.0
  %582 = vmatpush1.msra.mxu0 0.0
  %583 = vmatprep.subr.mxu0 0.0
  %584 = vmatpush1.msra.mxu0 0.0
  %585 = vmatprep.subr.mxu0 0.0
  %586 = vmatpush1.msra.mxu0 0.0
  %587 = vmatprep.subr.mxu0 0.0
  %588 = vmatpush1.msra.mxu0 0.0
  %589 = vmatprep.subr.mxu0 0.0
  %590 = vmatpush1.msra.mxu0 0.0
  %591 = vmatprep.subr.mxu0 0.0
  %592 = vmatpush1.msra.mxu0 0.0
  %593 = vmatprep.subr.mxu0 0.0
  %594 = vmatpush1.msra.mxu0 0.0
  %595 = vmatprep.subr.mxu0 0.0
  %596 = vmatpush1.msra.mxu0 0.0
  %597 = vmatprep.subr.mxu0 0.0
  %598 = vmatpush1.msra.mxu0 0.0
  %599 = vmatprep.subr.mxu0 0.0
  %600 = vmatpush1.msra.mxu0 %v439
  %601 = vmatprep.subr.mxu0 0.0
  %602 = vmatpush2.msra.mxu0 0.0
  %603 = vmatprep.subr.mxu0 0.0
  %604 = vmatpush2.msra.mxu0 0.0
  %605 = vmatprep.subr.mxu0 0.0
  %606 = vmatpush2.msra.mxu0 0.0
  %607 = vmatprep.subr.mxu0 0.0
  %608 = vmatpush2.msra.mxu0 0.0
  %609 = vmatprep.subr.mxu0 0.0
  %610 = vmatpush2.msra.mxu0 0.0
  %611 = vmatprep.subr.mxu0 0.0
  %612 = vmatpush2.msra.mxu0 0.0
  %613 = vmatprep.subr.mxu0 0.0
  %614 = vmatpush2.msra.mxu0 0.0
  %615 = vmatprep.subr.mxu0 0.0
  %616 = vmatpush2.msra.mxu0 0.0
  %617 = vmatprep.subr.mxu0 0.0
  %618 = vmatpush2.msra.mxu0 0.0
  %619 = vmatprep.subr.mxu0 0.0
  %620 = vmatpush2.msra.mxu0 0.0
  %621 = vmatprep.subr.mxu0 0.0
  %622 = vmatpush2.msra.mxu0 0.0
  %623 = vmatprep.subr.mxu0 0.0
  %624 = vmatpush2.msra.mxu0 0.0
  %625 = vmatprep.subr.mxu0 0.0
  %626 = vmatpush2.msra.mxu0 0.0
  %627 = vmatprep.subr.mxu0 0.0
  %628 = vmatpush2.msra.mxu0 0.0
  %629 = vmatprep.subr.mxu0 0.0
  %630 = vmatpush2.msra.mxu0 0.0
  %631 = vmatprep.subr.mxu0 0.0
  %632 = vmatpush2.msra.mxu0 0.0
  %633 = vmatprep.mubr.f32.mxu0 0.0
  %634 = vmatmul.mubr.f32.gmra.mxu0 %v558
  %v635 = vpop.f32.mrf.mxu0
  %v636 = vadd.f32 0.0, %v635
  %v637 = vpop.f32.mrf.mxu0
  %638 = vmatprep.mubr.f32.mxu0 0.0
  %639 = vmatmul.mubr.f32.gmra.mxu0 %v561
  %v640 = vpop.f32.mrf.mxu0
  %v641 = vadd.f32 0.0, %v640
  %v642 = vpop.f32.mrf.mxu0
  %643 = vmatprep.mubr.f32.mxu0 0.0
  %644 = vmatmul.mubr.f32.gmra.mxu0 %v564
  %v645 = vpop.f32.mrf.mxu0
  %v646 = vadd.f32 0.0, %v645
  %v647 = vpop.f32.mrf.mxu0
  %648 = vmatprep.mubr.f32.mxu0 0.0
  %649 = vmatmul.mubr.f32.gmra.mxu0 %v567
  %v650 = vpop.f32.mrf.mxu0
  %v651 = vadd.f32 0.0, %v650
  %v652 = vpop.f32.mrf.mxu0
  %653 = vdwg.mxu0
  %v654 = vmul.f32 %v636, 0.5
  %v655 = vmul.f32 %v641, 0.5
  %v656 = vmul.f32 %v646, 0.5
  %v657 = vmul.f32 %v651, 0.5
  %v658 = vmax.f32 %v549, %v654
  %v659 = vmax.f32 %v550, %v655
  %v660 = vmax.f32 %v551, %v656
  %v661 = vmax.f32 %v552, %v657
  %v662 = vsub.f32 %v549, %v658
  %v663 = vsub.f32 %v550, %v659
  %v664 = vsub.f32 %v551, %v660
  %v665 = vsub.f32 %v552, %v661
  %v666 = vmul.f32 %v662, 1.442695
  %v667 = vpow.pop %v666
  %v668 = vmul.f32 %v663, 1.442695
  %v669 = vpow.pop %v668
  %v670 = vmul.f32 %v664, 1.442695
  %v671 = vpow.pop %v670
  %v672 = vmul.f32 %v665, 1.442695
  %v673 = vpow.pop %v672
  %v674 = vsub.f32 %v654, %v658
  %v675 = vsub.f32 %v655, %v659
  %v676 = vsub.f32 %v656, %v660
  %v677 = vsub.f32 %v657, %v661
  %v678 = vmul.f32 %v674, 1.442695
  %v679 = vpow.pop %v678
  %v680 = vmul.f32 %v675, 1.442695
  %v681 = vpow.pop %v680
  %v682 = vmul.f32 %v676, 1.442695
  %v683 = vpow.pop %v682
  %v684 = vmul.f32 %v677, 1.442695
  %v685 = vpow.pop %v684
  %v686 = vadd.f32 %v667, %v679
  %v687 = vadd.f32 %v669, %v681
  %v688 = vadd.f32 %v671, %v683
  %v689 = vadd.f32 %v673, %v685
  %v690 = vrcp.pop %v686
  %v691 = vmul.f32 1.0, %v690
  %v692 = vrcp.pop %v687
  %v693 = vmul.f32 1.0, %v692
  %v694 = vrcp.pop %v688
  %v695 = vmul.f32 1.0, %v694
  %v696 = vrcp.pop %v689
  %v697 = vmul.f32 1.0, %v696
  %v698 = vmul.f32 %v667, %v691
  %v699 = vmul.f32 %v669, %v693
  %v700 = vmul.f32 %v671, %v695
  %v701 = vmul.f32 %v673, %v697
  %vm702 = vcmask 15360
  %v704 = vsel %vm702, %v698, 0
  %v707 = vsel %vm702, %v699, 0
  %v710 = vsel %vm702, %v700, 0
  %v713 = vsel %vm702, %v701, 0
  %vm715 = vcmask 1041408
  %v717 = vsel %vm715, %v447, 0
  %719 = vmatprep.subr.mxu0 0.0
  %720 = vmatpush1.msra.mxu0 0.0
  %721 = vmatprep.subr.mxu0 0.0
  %722 = vmatpush1.msra.mxu0 0.0
  %723 = vmatprep.subr.mxu0 0.0
  %724 = vmatpush1.msra.mxu0 0.0
  %725 = vmatprep.subr.mxu0 0.0
  %726 = vmatpush1.msra.mxu0 0.0
  %727 = vmatprep.subr.mxu0 0.0
  %728 = vmatpush1.msra.mxu0 0.0
  %729 = vmatprep.subr.mxu0 0.0
  %730 = vmatpush1.msra.mxu0 0.0
  %731 = vmatprep.subr.mxu0 0.0
  %732 = vmatpush1.msra.mxu0 0.0
  %733 = vmatprep.subr.mxu0 0.0
  %734 = vmatpush1.msra.mxu0 0.0
  %735 = vmatprep.subr.mxu0 0.0
  %736 = vmatpush1.msra.mxu0 0.0
  %737 = vmatprep.subr.mxu0 0.0
  %738 = vmatpush1.msra.mxu0 0.0
  %739 = vmatprep.subr.mxu0 0.0
  %740 = vmatpush1.msra.mxu0 0.0
  %741 = vmatprep.subr.mxu0 0.0
  %742 = vmatpush1.msra.mxu0 0.0
  %743 = vmatprep.subr.mxu0 0.0
  %744 = vmatpush1.msra.mxu0 0.0
  %745 = vmatprep.subr.mxu0 0.0
  %746 = vmatpush1.msra.mxu0 0.0
  %747 = vmatprep.subr.mxu0 0.0
  %748 = vmatpush1.msra.mxu0 0.0
  %749 = vmatprep.subr.mxu0 0.0
  %750 = vmatpush1.msra.mxu0 %v717
  %751 = vmatprep.subr.mxu0 0.0
  %752 = vmatpush2.msra.mxu0 0.0
  %753 = vmatprep.subr.mxu0 0.0
  %754 = vmatpush2.msra.mxu0 0.0
  %755 = vmatprep.subr.mxu0 0.0
  %756 = vmatpush2.msra.mxu0 0.0
  %757 = vmatprep.subr.mxu0 0.0
  %758 = vmatpush2.msra.mxu0 0.0
  %759 = vmatprep.subr.mxu0 0.0
  %760 = vmatpush2.msra.mxu0 0.0
  %761 = vmatprep.subr.mxu0 0.0
  %762 = vmatpush2.msra.mxu0 0.0
  %763 = vmatprep.subr.mxu0 0.0
  %764 = vmatpush2.msra.mxu0 0.0
  %765 = vmatprep.subr.mxu0 0.0
  %766 = vmatpush2.msra.mxu0 0.0
  %767 = vmatprep.subr.mxu0 0.0
  %768 = vmatpush2.msra.mxu0 0.0
  %769 = vmatprep.subr.mxu0 0.0
  %770 = vmatpush2.msra.mxu0 0.0
  %771 = vmatprep.subr.mxu0 0.0
  %772 = vmatpush2.msra.mxu0 0.0
  %773 = vmatprep.subr.mxu0 0.0
  %774 = vmatpush2.msra.mxu0 0.0
  %775 = vmatprep.subr.mxu0 0.0
  %776 = vmatpush2.msra.mxu0 0.0
  %777 = vmatprep.subr.mxu0 0.0
  %778 = vmatpush2.msra.mxu0 0.0
  %779 = vmatprep.subr.mxu0 0.0
  %780 = vmatpush2.msra.mxu0 0.0
  %781 = vmatprep.subr.mxu0 0.0
  %782 = vmatpush2.msra.mxu0 0.0
  %783 = vmatprep.mubr.f32.mxu0 0.0
  %784 = vmatmul.mubr.f32.gmra.mxu0 %v704
  %v785 = vpop.f32.mrf.mxu0
  %v786 = vadd.f32 0.0, %v785
  %v787 = vpop.f32.mrf.mxu0
  %788 = vmatprep.mubr.f32.mxu0 0.0
  %789 = vmatmul.mubr.f32.gmra.mxu0 %v707
  %v790 = vpop.f32.mrf.mxu0
  %v791 = vadd.f32 0.0, %v790
  %v792 = vpop.f32.mrf.mxu0
  %793 = vmatprep.mubr.f32.mxu0 0.0
  %794 = vmatmul.mubr.f32.gmra.mxu0 %v710
  %v795 = vpop.f32.mrf.mxu0
  %v796 = vadd.f32 0.0, %v795
  %v797 = vpop.f32.mrf.mxu0
  %798 = vmatprep.mubr.f32.mxu0 0.0
  %799 = vmatmul.mubr.f32.gmra.mxu0 %v713
  %v800 = vpop.f32.mrf.mxu0
  %v801 = vadd.f32 0.0, %v800
  %v802 = vpop.f32.mrf.mxu0
  %803 = vdwg.mxu0
  %v804 = vmul.f32 %v786, %v390
  %v805 = vmul.f32 %v791, %v395
  %v806 = vmul.f32 %v796, %v400
  %v807 = vmul.f32 %v801, %v405
  %v808 = vadd.f32 %v804, 0.0
  %v809 = vadd.f32 %v805, 0.0
  %v810 = vadd.f32 %v806, 0.0
  %v811 = vadd.f32 %v807, 0.0
  %v812 = vmul.f32 %v679, %v691
  %v813 = vmul.f32 %v681, %v693
  %v814 = vmul.f32 %v683, %v695
  %v815 = vmul.f32 %v685, %v697
  %v817 = vsel %vm702, %v812, 0
  %v820 = vsel %vm702, %v813, 0
  %v823 = vsel %vm702, %v814, 0
  %v826 = vsel %vm702, %v815, 0
  %828 = vmatprep.subr.mxu0 0.0
  %829 = vmatpush1.msra.mxu0 0.0
  %830 = vmatprep.subr.mxu0 0.0
  %831 = vmatpush1.msra.mxu0 0.0
  %832 = vmatprep.subr.mxu0 0.0
  %833 = vmatpush1.msra.mxu0 0.0
  %834 = vmatprep.subr.mxu0 0.0
  %835 = vmatpush1.msra.mxu0 0.0
  %836 = vmatprep.subr.mxu0 0.0
  %837 = vmatpush1.msra.mxu0 0.0
  %838 = vmatprep.subr.mxu0 0.0
  %839 = vmatpush1.msra.mxu0 0.0
  %840 = vmatprep.subr.mxu0 0.0
  %841 = vmatpush1.msra.mxu0 0.0
  %842 = vmatprep.subr.mxu0 0.0
  %843 = vmatpush1.msra.mxu0 0.0
  %844 = vmatprep.subr.mxu0 0.0
  %845 = vmatpush1.msra.mxu0 0.0
  %846 = vmatprep.subr.mxu0 0.0
  %847 = vmatpush1.msra.mxu0 0.0
  %848 = vmatprep.subr.mxu0 0.0
  %849 = vmatpush1.msra.mxu0 0.0
  %850 = vmatprep.subr.mxu0 0.0
  %851 = vmatpush1.msra.mxu0 0.0
  %852 = vmatprep.subr.mxu0 0.0
  %853 = vmatpush1.msra.mxu0 0.0
  %854 = vmatprep.subr.mxu0 0.0
  %855 = vmatpush1.msra.mxu0 0.0
  %856 = vmatprep.subr.mxu0 0.0
  %857 = vmatpush1.msra.mxu0 0.0
  %858 = vmatprep.subr.mxu0 0.0
  %859 = vmatpush1.msra.mxu0 %v717
  %860 = vmatprep.subr.mxu0 0.0
  %861 = vmatpush2.msra.mxu0 0.0
  %862 = vmatprep.subr.mxu0 0.0
  %863 = vmatpush2.msra.mxu0 0.0
  %864 = vmatprep.subr.mxu0 0.0
  %865 = vmatpush2.msra.mxu0 0.0
  %866 = vmatprep.subr.mxu0 0.0
  %867 = vmatpush2.msra.mxu0 0.0
  %868 = vmatprep.subr.mxu0 0.0
  %869 = vmatpush2.msra.mxu0 0.0
  %870 = vmatprep.subr.mxu0 0.0
  %871 = vmatpush2.msra.mxu0 0.0
  %872 = vmatprep.subr.mxu0 0.0
  %873 = vmatpush2.msra.mxu0 0.0
  %874 = vmatprep.subr.mxu0 0.0
  %875 = vmatpush2.msra.mxu0 0.0
  %876 = vmatprep.subr.mxu0 0.0
  %877 = vmatpush2.msra.mxu0 0.0
  %878 = vmatprep.subr.mxu0 0.0
  %879 = vmatpush2.msra.mxu0 0.0
  %880 = vmatprep.subr.mxu0 0.0
  %881 = vmatpush2.msra.mxu0 0.0
  %882 = vmatprep.subr.mxu0 0.0
  %883 = vmatpush2.msra.mxu0 0.0
  %884 = vmatprep.subr.mxu0 0.0
  %885 = vmatpush2.msra.mxu0 0.0
  %886 = vmatprep.subr.mxu0 0.0
  %887 = vmatpush2.msra.mxu0 0.0
  %888 = vmatprep.subr.mxu0 0.0
  %889 = vmatpush2.msra.mxu0 0.0
  %890 = vmatprep.subr.mxu0 0.0
  %891 = vmatpush2.msra.mxu0 0.0
  %892 = vmatprep.mubr.f32.mxu0 0.0
  %893 = vmatmul.mubr.f32.gmra.mxu0 %v817
  %v894 = vpop.f32.mrf.mxu0
  %v895 = vadd.f32 0.0, %v894
  %v896 = vpop.f32.mrf.mxu0
  %897 = vmatprep.mubr.f32.mxu0 0.0
  %898 = vmatmul.mubr.f32.gmra.mxu0 %v820
  %v899 = vpop.f32.mrf.mxu0
  %v900 = vadd.f32 0.0, %v899
  %v901 = vpop.f32.mrf.mxu0
  %902 = vmatprep.mubr.f32.mxu0 0.0
  %903 = vmatmul.mubr.f32.gmra.mxu0 %v823
  %v904 = vpop.f32.mrf.mxu0
  %v905 = vadd.f32 0.0, %v904
  %v906 = vpop.f32.mrf.mxu0
  %907 = vmatprep.mubr.f32.mxu0 0.0
  %908 = vmatmul.mubr.f32.gmra.mxu0 %v826
  %v909 = vpop.f32.mrf.mxu0
  %v910 = vadd.f32 0.0, %v909
  %v911 = vpop.f32.mrf.mxu0
  %912 = vdwg.mxu0
  %v913 = vmul.f32 %v895, %v410
  %v914 = vmul.f32 %v900, %v415
  %v915 = vmul.f32 %v905, %v420
  %v916 = vmul.f32 %v910, %v425
  %v917 = vadd.f32 %v808, %v913
  %v918 = vadd.f32 %v809, %v914
  %v919 = vadd.f32 %v810, %v915
  %v920 = vadd.f32 %v811, %v916
  %v921 = vmul.f32 %v184, %v277
  %v922 = vmul.f32 %v189, %v282
  %v923 = vmul.f32 %v194, %v287
  %v924 = vmul.f32 %v199, %v292
  %v926 = vsel %vm72, %v921, 0
  %v929 = vsel %vm72, %v922, 0
  %v932 = vsel %vm72, %v923, 0
  %v935 = vsel %vm72, %v924, 0
  %937 = vmatprep.subr.mxu0 0.0
  %938 = vmatpush1.msra.mxu0 0.0
  %939 = vmatprep.subr.mxu0 0.0
  %940 = vmatpush1.msra.mxu0 0.0
  %941 = vmatprep.subr.mxu0 0.0
  %942 = vmatpush1.msra.mxu0 0.0
  %943 = vmatprep.subr.mxu0 0.0
  %944 = vmatpush1.msra.mxu0 0.0
  %945 = vmatprep.subr.mxu0 0.0
  %946 = vmatpush1.msra.mxu0 0.0
  %947 = vmatprep.subr.mxu0 0.0
  %948 = vmatpush1.msra.mxu0 0.0
  %949 = vmatprep.subr.mxu0 0.0
  %950 = vmatpush1.msra.mxu0 0.0
  %951 = vmatprep.subr.mxu0 0.0
  %952 = vmatpush1.msra.mxu0 0.0
  %953 = vmatprep.subr.mxu0 0.0
  %954 = vmatpush1.msra.mxu0 0.0
  %955 = vmatprep.subr.mxu0 0.0
  %956 = vmatpush1.msra.mxu0 0.0
  %957 = vmatprep.subr.mxu0 0.0
  %958 = vmatpush1.msra.mxu0 0.0
  %959 = vmatprep.subr.mxu0 0.0
  %960 = vmatpush1.msra.mxu0 0.0
  %961 = vmatprep.subr.mxu0 0.0
  %962 = vmatpush1.msra.mxu0 0.0
  %963 = vmatprep.subr.mxu0 0.0
  %964 = vmatpush1.msra.mxu0 0.0
  %965 = vmatprep.subr.mxu0 0.0
  %966 = vmatpush1.msra.mxu0 0.0
  %967 = vmatprep.subr.mxu0 0.0
  %968 = vmatpush1.msra.mxu0 %v439
  %969 = vmatprep.subr.mxu0 0.0
  %970 = vmatpush2.msra.mxu0 0.0
  %971 = vmatprep.subr.mxu0 0.0
  %972 = vmatpush2.msra.mxu0 0.0
  %973 = vmatprep.subr.mxu0 0.0
  %974 = vmatpush2.msra.mxu0 0.0
  %975 = vmatprep.subr.mxu0 0.0
  %976 = vmatpush2.msra.mxu0 0.0
  %977 = vmatprep.subr.mxu0 0.0
  %978 = vmatpush2.msra.mxu0 0.0
  %979 = vmatprep.subr.mxu0 0.0
  %980 = vmatpush2.msra.mxu0 0.0
  %981 = vmatprep.subr.mxu0 0.0
  %982 = vmatpush2.msra.mxu0 0.0
  %983 = vmatprep.subr.mxu0 0.0
  %984 = vmatpush2.msra.mxu0 0.0
  %985 = vmatprep.subr.mxu0 0.0
  %986 = vmatpush2.msra.mxu0 0.0
  %987 = vmatprep.subr.mxu0 0.0
  %988 = vmatpush2.msra.mxu0 0.0
  %989 = vmatprep.subr.mxu0 0.0
  %990 = vmatpush2.msra.mxu0 0.0
  %991 = vmatprep.subr.mxu0 0.0
  %992 = vmatpush2.msra.mxu0 0.0
  %993 = vmatprep.subr.mxu0 0.0
  %994 = vmatpush2.msra.mxu0 0.0
  %995 = vmatprep.subr.mxu0 0.0
  %996 = vmatpush2.msra.mxu0 0.0
  %997 = vmatprep.subr.mxu0 0.0
  %998 = vmatpush2.msra.mxu0 0.0
  %999 = vmatprep.subr.mxu0 0.0
  %1000 = vmatpush2.msra.mxu0 0.0
  %1001 = vmatprep.mubr.f32.mxu0 0.0
  %1002 = vmatmul.mubr.f32.gmra.mxu0 %v926
  %v1003 = vpop.f32.mrf.mxu0
  %v1004 = vadd.f32 0.0, %v1003
  %v1005 = vpop.f32.mrf.mxu0
  %1006 = vmatprep.mubr.f32.mxu0 0.0
  %1007 = vmatmul.mubr.f32.gmra.mxu0 %v929
  %v1008 = vpop.f32.mrf.mxu0
  %v1009 = vadd.f32 0.0, %v1008
  %v1010 = vpop.f32.mrf.mxu0
  %1011 = vmatprep.mubr.f32.mxu0 0.0
  %1012 = vmatmul.mubr.f32.gmra.mxu0 %v932
  %v1013 = vpop.f32.mrf.mxu0
  %v1014 = vadd.f32 0.0, %v1013
  %v1015 = vpop.f32.mrf.mxu0
  %1016 = vmatprep.mubr.f32.mxu0 0.0
  %1017 = vmatmul.mubr.f32.gmra.mxu0 %v935
  %v1018 = vpop.f32.mrf.mxu0
  %v1019 = vadd.f32 0.0, %v1018
  %v1020 = vpop.f32.mrf.mxu0
  %1021 = vdwg.mxu0
  %v1022 = vmul.f32 %v1004, 0.5
  %v1023 = vmul.f32 %v1009, 0.5
  %v1024 = vmul.f32 %v1014, 0.5
  %v1025 = vmul.f32 %v1019, 0.5
  %v1026 = vmul.f32 %v184, %v297
  %v1027 = vmul.f32 %v189, %v302
  %v1028 = vmul.f32 %v194, %v307
  %v1029 = vmul.f32 %v199, %v312
  %v1031 = vsel %vm72, %v1026, 0
  %v1034 = vsel %vm72, %v1027, 0
  %v1037 = vsel %vm72, %v1028, 0
  %v1040 = vsel %vm72, %v1029, 0
  %1042 = vmatprep.subr.mxu0 0.0
  %1043 = vmatpush1.msra.mxu0 0.0
  %1044 = vmatprep.subr.mxu0 0.0
  %1045 = vmatpush1.msra.mxu0 0.0
  %1046 = vmatprep.subr.mxu0 0.0
  %1047 = vmatpush1.msra.mxu0 0.0
  %1048 = vmatprep.subr.mxu0 0.0
  %1049 = vmatpush1.msra.mxu0 0.0
  %1050 = vmatprep.subr.mxu0 0.0
  %1051 = vmatpush1.msra.mxu0 0.0
  %1052 = vmatprep.subr.mxu0 0.0
  %1053 = vmatpush1.msra.mxu0 0.0
  %1054 = vmatprep.subr.mxu0 0.0
  %1055 = vmatpush1.msra.mxu0 0.0
  %1056 = vmatprep.subr.mxu0 0.0
  %1057 = vmatpush1.msra.mxu0 0.0
  %1058 = vmatprep.subr.mxu0 0.0
  %1059 = vmatpush1.msra.mxu0 0.0
  %1060 = vmatprep.subr.mxu0 0.0
  %1061 = vmatpush1.msra.mxu0 0.0
  %1062 = vmatprep.subr.mxu0 0.0
  %1063 = vmatpush1.msra.mxu0 0.0
  %1064 = vmatprep.subr.mxu0 0.0
  %1065 = vmatpush1.msra.mxu0 0.0
  %1066 = vmatprep.subr.mxu0 0.0
  %1067 = vmatpush1.msra.mxu0 0.0
  %1068 = vmatprep.subr.mxu0 0.0
  %1069 = vmatpush1.msra.mxu0 0.0
  %1070 = vmatprep.subr.mxu0 0.0
  %1071 = vmatpush1.msra.mxu0 0.0
  %1072 = vmatprep.subr.mxu0 0.0
  %1073 = vmatpush1.msra.mxu0 %v439
  %1074 = vmatprep.subr.mxu0 0.0
  %1075 = vmatpush2.msra.mxu0 0.0
  %1076 = vmatprep.subr.mxu0 0.0
  %1077 = vmatpush2.msra.mxu0 0.0
  %1078 = vmatprep.subr.mxu0 0.0
  %1079 = vmatpush2.msra.mxu0 0.0
  %1080 = vmatprep.subr.mxu0 0.0
  %1081 = vmatpush2.msra.mxu0 0.0
  %1082 = vmatprep.subr.mxu0 0.0
  %1083 = vmatpush2.msra.mxu0 0.0
  %1084 = vmatprep.subr.mxu0 0.0
  %1085 = vmatpush2.msra.mxu0 0.0
  %1086 = vmatprep.subr.mxu0 0.0
  %1087 = vmatpush2.msra.mxu0 0.0
  %1088 = vmatprep.subr.mxu0 0.0
  %1089 = vmatpush2.msra.mxu0 0.0
  %1090 = vmatprep.subr.mxu0 0.0
  %1091 = vmatpush2.msra.mxu0 0.0
  %1092 = vmatprep.subr.mxu0 0.0
  %1093 = vmatpush2.msra.mxu0 0.0
  %1094 = vmatprep.subr.mxu0 0.0
  %1095 = vmatpush2.msra.mxu0 0.0
  %1096 = vmatprep.subr.mxu0 0.0
  %1097 = vmatpush2.msra.mxu0 0.0
  %1098 = vmatprep.subr.mxu0 0.0
  %1099 = vmatpush2.msra.mxu0 0.0
  %1100 = vmatprep.subr.mxu0 0.0
  %1101 = vmatpush2.msra.mxu0 0.0
  %1102 = vmatprep.subr.mxu0 0.0
  %1103 = vmatpush2.msra.mxu0 0.0
  %1104 = vmatprep.subr.mxu0 0.0
  %1105 = vmatpush2.msra.mxu0 0.0
  %1106 = vmatprep.mubr.f32.mxu0 0.0
  %1107 = vmatmul.mubr.f32.gmra.mxu0 %v1031
  %v1108 = vpop.f32.mrf.mxu0
  %v1109 = vadd.f32 0.0, %v1108
  %v1110 = vpop.f32.mrf.mxu0
  %1111 = vmatprep.mubr.f32.mxu0 0.0
  %1112 = vmatmul.mubr.f32.gmra.mxu0 %v1034
  %v1113 = vpop.f32.mrf.mxu0
  %v1114 = vadd.f32 0.0, %v1113
  %v1115 = vpop.f32.mrf.mxu0
  %1116 = vmatprep.mubr.f32.mxu0 0.0
  %1117 = vmatmul.mubr.f32.gmra.mxu0 %v1037
  %v1118 = vpop.f32.mrf.mxu0
  %v1119 = vadd.f32 0.0, %v1118
  %v1120 = vpop.f32.mrf.mxu0
  %1121 = vmatprep.mubr.f32.mxu0 0.0
  %1122 = vmatmul.mubr.f32.gmra.mxu0 %v1040
  %v1123 = vpop.f32.mrf.mxu0
  %v1124 = vadd.f32 0.0, %v1123
  %v1125 = vpop.f32.mrf.mxu0
  %1126 = vdwg.mxu0
  %v1127 = vmul.f32 %v1109, 0.5
  %v1128 = vmul.f32 %v1114, 0.5
  %v1129 = vmul.f32 %v1119, 0.5
  %v1130 = vmul.f32 %v1124, 0.5
  %v1131 = vmax.f32 %v1022, %v1127
  %v1132 = vmax.f32 %v1023, %v1128
  %v1133 = vmax.f32 %v1024, %v1129
  %v1134 = vmax.f32 %v1025, %v1130
  %v1135 = vsub.f32 %v1022, %v1131
  %v1136 = vsub.f32 %v1023, %v1132
  %v1137 = vsub.f32 %v1024, %v1133
  %v1138 = vsub.f32 %v1025, %v1134
  %v1139 = vmul.f32 %v1135, 1.442695
  %v1140 = vpow.pop %v1139
  %v1141 = vmul.f32 %v1136, 1.442695
  %v1142 = vpow.pop %v1141
  %v1143 = vmul.f32 %v1137, 1.442695
  %v1144 = vpow.pop %v1143
  %v1145 = vmul.f32 %v1138, 1.442695
  %v1146 = vpow.pop %v1145
  %v1147 = vsub.f32 %v1127, %v1131
  %v1148 = vsub.f32 %v1128, %v1132
  %v1149 = vsub.f32 %v1129, %v1133
  %v1150 = vsub.f32 %v1130, %v1134
  %v1151 = vmul.f32 %v1147, 1.442695
  %v1152 = vpow.pop %v1151
  %v1153 = vmul.f32 %v1148, 1.442695
  %v1154 = vpow.pop %v1153
  %v1155 = vmul.f32 %v1149, 1.442695
  %v1156 = vpow.pop %v1155
  %v1157 = vmul.f32 %v1150, 1.442695
  %v1158 = vpow.pop %v1157
  %v1159 = vadd.f32 %v1140, %v1152
  %v1160 = vadd.f32 %v1142, %v1154
  %v1161 = vadd.f32 %v1144, %v1156
  %v1162 = vadd.f32 %v1146, %v1158
  %v1163 = vrcp.pop %v1159
  %v1164 = vmul.f32 1.0, %v1163
  %v1165 = vrcp.pop %v1160
  %v1166 = vmul.f32 1.0, %v1165
  %v1167 = vrcp.pop %v1161
  %v1168 = vmul.f32 1.0, %v1167
  %v1169 = vrcp.pop %v1162
  %v1170 = vmul.f32 1.0, %v1169
  %v1171 = vmul.f32 %v1140, %v1164
  %v1172 = vmul.f32 %v1142, %v1166
  %v1173 = vmul.f32 %v1144, %v1168
  %v1174 = vmul.f32 %v1146, %v1170
  %v1176 = vsel %vm702, %v1171, 0
  %v1179 = vsel %vm702, %v1172, 0
  %v1182 = vsel %vm702, %v1173, 0
  %v1185 = vsel %vm702, %v1174, 0
  %1187 = vmatprep.subr.mxu0 0.0
  %1188 = vmatpush1.msra.mxu0 0.0
  %1189 = vmatprep.subr.mxu0 0.0
  %1190 = vmatpush1.msra.mxu0 0.0
  %1191 = vmatprep.subr.mxu0 0.0
  %1192 = vmatpush1.msra.mxu0 0.0
  %1193 = vmatprep.subr.mxu0 0.0
  %1194 = vmatpush1.msra.mxu0 0.0
  %1195 = vmatprep.subr.mxu0 0.0
  %1196 = vmatpush1.msra.mxu0 0.0
  %1197 = vmatprep.subr.mxu0 0.0
  %1198 = vmatpush1.msra.mxu0 0.0
  %1199 = vmatprep.subr.mxu0 0.0
  %1200 = vmatpush1.msra.mxu0 0.0
  %1201 = vmatprep.subr.mxu0 0.0
  %1202 = vmatpush1.msra.mxu0 0.0
  %1203 = vmatprep.subr.mxu0 0.0
  %1204 = vmatpush1.msra.mxu0 0.0
  %1205 = vmatprep.subr.mxu0 0.0
  %1206 = vmatpush1.msra.mxu0 0.0
  %1207 = vmatprep.subr.mxu0 0.0
  %1208 = vmatpush1.msra.mxu0 0.0
  %1209 = vmatprep.subr.mxu0 0.0
  %1210 = vmatpush1.msra.mxu0 0.0
  %1211 = vmatprep.subr.mxu0 0.0
  %1212 = vmatpush1.msra.mxu0 0.0
  %1213 = vmatprep.subr.mxu0 0.0
  %1214 = vmatpush1.msra.mxu0 0.0
  %1215 = vmatprep.subr.mxu0 0.0
  %1216 = vmatpush1.msra.mxu0 0.0
  %1217 = vmatprep.subr.mxu0 0.0
  %1218 = vmatpush1.msra.mxu0 %v717
  %1219 = vmatprep.subr.mxu0 0.0
  %1220 = vmatpush2.msra.mxu0 0.0
  %1221 = vmatprep.subr.mxu0 0.0
  %1222 = vmatpush2.msra.mxu0 0.0
  %1223 = vmatprep.subr.mxu0 0.0
  %1224 = vmatpush2.msra.mxu0 0.0
  %1225 = vmatprep.subr.mxu0 0.0
  %1226 = vmatpush2.msra.mxu0 0.0
  %1227 = vmatprep.subr.mxu0 0.0
  %1228 = vmatpush2.msra.mxu0 0.0
  %1229 = vmatprep.subr.mxu0 0.0
  %1230 = vmatpush2.msra.mxu0 0.0
  %1231 = vmatprep.subr.mxu0 0.0
  %1232 = vmatpush2.msra.mxu0 0.0
  %1233 = vmatprep.subr.mxu0 0.0
  %1234 = vmatpush2.msra.mxu0 0.0
  %1235 = vmatprep.subr.mxu0 0.0
  %1236 = vmatpush2.msra.mxu0 0.0
  %1237 = vmatprep.subr.mxu0 0.0
  %1238 = vmatpush2.msra.mxu0 0.0
  %1239 = vmatprep.subr.mxu0 0.0
  %1240 = vmatpush2.msra.mxu0 0.0
  %1241 = vmatprep.subr.mxu0 0.0
  %1242 = vmatpush2.msra.mxu0 0.0
  %1243 = vmatprep.subr.mxu0 0.0
  %1244 = vmatpush2.msra.mxu0 0.0
  %1245 = vmatprep.subr.mxu0 0.0
  %1246 = vmatpush2.msra.mxu0 0.0
  %1247 = vmatprep.subr.mxu0 0.0
  %1248 = vmatpush2.msra.mxu0 0.0
  %1249 = vmatprep.subr.mxu0 0.0
  %1250 = vmatpush2.msra.mxu0 0.0
  %1251 = vmatprep.mubr.f32.mxu0 0.0
  %1252 = vmatmul.mubr.f32.gmra.mxu0 %v1176
  %v1253 = vpop.f32.mrf.mxu0
  %v1254 = vadd.f32 0.0, %v1253
  %v1255 = vpop.f32.mrf.mxu0
  %1256 = vmatprep.mubr.f32.mxu0 0.0
  %1257 = vmatmul.mubr.f32.gmra.mxu0 %v1179
  %v1258 = vpop.f32.mrf.mxu0
  %v1259 = vadd.f32 0.0, %v1258
  %v1260 = vpop.f32.mrf.mxu0
  %1261 = vmatprep.mubr.f32.mxu0 0.0
  %1262 = vmatmul.mubr.f32.gmra.mxu0 %v1182
  %v1263 = vpop.f32.mrf.mxu0
  %v1264 = vadd.f32 0.0, %v1263
  %v1265 = vpop.f32.mrf.mxu0
  %1266 = vmatprep.mubr.f32.mxu0 0.0
  %1267 = vmatmul.mubr.f32.gmra.mxu0 %v1185
  %v1268 = vpop.f32.mrf.mxu0
  %v1269 = vadd.f32 0.0, %v1268
  %v1270 = vpop.f32.mrf.mxu0
  %1271 = vdwg.mxu0
  %v1272 = vmul.f32 %v1254, %v390
  %v1273 = vmul.f32 %v1259, %v395
  %v1274 = vmul.f32 %v1264, %v400
  %v1275 = vmul.f32 %v1269, %v405
  %v1276 = vadd.f32 %v1272, 0.0
  %v1277 = vadd.f32 %v1273, 0.0
  %v1278 = vadd.f32 %v1274, 0.0
  %v1279 = vadd.f32 %v1275, 0.0
  %v1280 = vmul.f32 %v1152, %v1164
  %v1281 = vmul.f32 %v1154, %v1166
  %v1282 = vmul.f32 %v1156, %v1168
  %v1283 = vmul.f32 %v1158, %v1170
  %v1285 = vsel %vm702, %v1280, 0
  %v1288 = vsel %vm702, %v1281, 0
  %v1291 = vsel %vm702, %v1282, 0
  %v1294 = vsel %vm702, %v1283, 0
  %1296 = vmatprep.subr.mxu0 0.0
  %1297 = vmatpush1.msra.mxu0 0.0
  %1298 = vmatprep.subr.mxu0 0.0
  %1299 = vmatpush1.msra.mxu0 0.0
  %1300 = vmatprep.subr.mxu0 0.0
  %1301 = vmatpush1.msra.mxu0 0.0
  %1302 = vmatprep.subr.mxu0 0.0
  %1303 = vmatpush1.msra.mxu0 0.0
  %1304 = vmatprep.subr.mxu0 0.0
  %1305 = vmatpush1.msra.mxu0 0.0
  %1306 = vmatprep.subr.mxu0 0.0
  %1307 = vmatpush1.msra.mxu0 0.0
  %1308 = vmatprep.subr.mxu0 0.0
  %1309 = vmatpush1.msra.mxu0 0.0
  %1310 = vmatprep.subr.mxu0 0.0
  %1311 = vmatpush1.msra.mxu0 0.0
  %1312 = vmatprep.subr.mxu0 0.0
  %1313 = vmatpush1.msra.mxu0 0.0
  %1314 = vmatprep.subr.mxu0 0.0
  %1315 = vmatpush1.msra.mxu0 0.0
  %1316 = vmatprep.subr.mxu0 0.0
  %1317 = vmatpush1.msra.mxu0 0.0
  %1318 = vmatprep.subr.mxu0 0.0
  %1319 = vmatpush1.msra.mxu0 0.0
  %1320 = vmatprep.subr.mxu0 0.0
  %1321 = vmatpush1.msra.mxu0 0.0
  %1322 = vmatprep.subr.mxu0 0.0
  %1323 = vmatpush1.msra.mxu0 0.0
  %1324 = vmatprep.subr.mxu0 0.0
  %1325 = vmatpush1.msra.mxu0 0.0
  %1326 = vmatprep.subr.mxu0 0.0
  %1327 = vmatpush1.msra.mxu0 %v717
  %1328 = vmatprep.subr.mxu0 0.0
  %1329 = vmatpush2.msra.mxu0 0.0
  %1330 = vmatprep.subr.mxu0 0.0
  %1331 = vmatpush2.msra.mxu0 0.0
  %1332 = vmatprep.subr.mxu0 0.0
  %1333 = vmatpush2.msra.mxu0 0.0
  %1334 = vmatprep.subr.mxu0 0.0
  %1335 = vmatpush2.msra.mxu0 0.0
  %1336 = vmatprep.subr.mxu0 0.0
  %1337 = vmatpush2.msra.mxu0 0.0
  %1338 = vmatprep.subr.mxu0 0.0
  %1339 = vmatpush2.msra.mxu0 0.0
  %1340 = vmatprep.subr.mxu0 0.0
  %1341 = vmatpush2.msra.mxu0 0.0
  %1342 = vmatprep.subr.mxu0 0.0
  %1343 = vmatpush2.msra.mxu0 0.0
  %1344 = vmatprep.subr.mxu0 0.0
  %1345 = vmatpush2.msra.mxu0 0.0
  %1346 = vmatprep.subr.mxu0 0.0
  %1347 = vmatpush2.msra.mxu0 0.0
  %1348 = vmatprep.subr.mxu0 0.0
  %1349 = vmatpush2.msra.mxu0 0.0
  %1350 = vmatprep.subr.mxu0 0.0
  %1351 = vmatpush2.msra.mxu0 0.0
  %1352 = vmatprep.subr.mxu0 0.0
  %1353 = vmatpush2.msra.mxu0 0.0
  %1354 = vmatprep.subr.mxu0 0.0
  %1355 = vmatpush2.msra.mxu0 0.0
  %1356 = vmatprep.subr.mxu0 0.0
  %1357 = vmatpush2.msra.mxu0 0.0
  %1358 = vmatprep.subr.mxu0 0.0
  %1359 = vmatpush2.msra.mxu0 0.0
  %1360 = vmatprep.mubr.f32.mxu0 0.0
  %1361 = vmatmul.mubr.f32.gmra.mxu0 %v1285
  %v1362 = vpop.f32.mrf.mxu0
  %v1363 = vadd.f32 0.0, %v1362
  %v1364 = vpop.f32.mrf.mxu0
  %1365 = vmatprep.mubr.f32.mxu0 0.0
  %1366 = vmatmul.mubr.f32.gmra.mxu0 %v1288
  %v1367 = vpop.f32.mrf.mxu0
  %v1368 = vadd.f32 0.0, %v1367
  %v1369 = vpop.f32.mrf.mxu0
  %1370 = vmatprep.mubr.f32.mxu0 0.0
  %1371 = vmatmul.mubr.f32.gmra.mxu0 %v1291
  %v1372 = vpop.f32.mrf.mxu0
  %v1373 = vadd.f32 0.0, %v1372
  %v1374 = vpop.f32.mrf.mxu0
  %1375 = vmatprep.mubr.f32.mxu0 0.0
  %1376 = vmatmul.mubr.f32.gmra.mxu0 %v1294
  %v1377 = vpop.f32.mrf.mxu0
  %v1378 = vadd.f32 0.0, %v1377
  %v1379 = vpop.f32.mrf.mxu0
  %1380 = vdwg.mxu0
  %v1381 = vmul.f32 %v1363, %v410
  %v1382 = vmul.f32 %v1368, %v415
  %v1383 = vmul.f32 %v1373, %v420
  %v1384 = vmul.f32 %v1378, %v425
  %v1385 = vadd.f32 %v1276, %v1381
  %v1386 = vadd.f32 %v1277, %v1382
  %v1387 = vadd.f32 %v1278, %v1383
  %v1388 = vadd.f32 %v1279, %v1384
  %v1389 = vld [vmem:[%s7] sm:$0xff]
  %v1390 = vld [vmem:[%s8] sm:$0x1]
  %v1392 = vlaneseq
  %v1393 = vshrl.u32 %v1392, 7
  %v1394 = vsub.s32 0, %v1393
  %v1395 = vrot.slane %v1390, %v1394
  %v1398 = vsel %vm72, %v917, 0
  %v1401 = vsel %vm72, %v918, 0
  %v1404 = vsel %vm72, %v919, 0
  %v1407 = vsel %vm72, %v920, 0
  %v1410 = vsel %vm72, %v1385, 0
  %v1413 = vsel %vm72, %v1386, 0
  %v1416 = vsel %vm72, %v1387, 0
  %v1419 = vsel %vm72, %v1388, 0
  %1421 = vmatprep.subr.mxu0 0.0
  %1422 = vmatpush1.msra.mxu0 0.0
  %1423 = vmatprep.subr.mxu0 0.0
  %1424 = vmatpush1.msra.mxu0 0.0
  %1425 = vmatprep.subr.mxu0 0.0
  %1426 = vmatpush1.msra.mxu0 0.0
  %1427 = vmatprep.subr.mxu0 0.0
  %1428 = vmatpush1.msra.mxu0 0.0
  %1429 = vmatprep.subr.mxu0 0.0
  %1430 = vmatpush1.msra.mxu0 0.0
  %1431 = vmatprep.subr.mxu0 0.0
  %1432 = vmatpush1.msra.mxu0 0.0
  %1433 = vmatprep.subr.mxu0 0.0
  %1434 = vmatpush1.msra.mxu0 0.0
  %1435 = vmatprep.subr.mxu0 0.0
  %1436 = vmatpush1.msra.mxu0 0.0
  %1437 = vmatprep.subr.mxu0 0.0
  %1438 = vmatpush1.msra.mxu0 0.0
  %1439 = vmatprep.subr.mxu0 0.0
  %1440 = vmatpush1.msra.mxu0 0.0
  %1441 = vmatprep.subr.mxu0 0.0
  %1442 = vmatpush1.msra.mxu0 0.0
  %1443 = vmatprep.subr.mxu0 0.0
  %1444 = vmatpush1.msra.mxu0 0.0
  %1445 = vmatprep.subr.mxu0 0.0
  %1446 = vmatpush1.msra.mxu0 0.0
  %1447 = vmatprep.subr.mxu0 0.0
  %1448 = vmatpush1.msra.mxu0 0.0
  %1449 = vmatprep.subr.mxu0 0.0
  %1450 = vmatpush1.msra.mxu0 0.0
  %1451 = vmatprep.subr.mxu0 0.0
  %1452 = vmatpush1.msra.mxu0 %v1389
  %1453 = vmatprep.subr.mxu0 0.0
  %1454 = vmatpush2.msra.mxu0 0.0
  %1455 = vmatprep.subr.mxu0 0.0
  %1456 = vmatpush2.msra.mxu0 0.0
  %1457 = vmatprep.subr.mxu0 0.0
  %1458 = vmatpush2.msra.mxu0 0.0
  %1459 = vmatprep.subr.mxu0 0.0
  %1460 = vmatpush2.msra.mxu0 0.0
  %1461 = vmatprep.subr.mxu0 0.0
  %1462 = vmatpush2.msra.mxu0 0.0
  %1463 = vmatprep.subr.mxu0 0.0
  %1464 = vmatpush2.msra.mxu0 0.0
  %1465 = vmatprep.subr.mxu0 0.0
  %1466 = vmatpush2.msra.mxu0 0.0
  %1467 = vmatprep.subr.mxu0 0.0
  %1468 = vmatpush2.msra.mxu0 0.0
  %1469 = vmatprep.subr.mxu0 0.0
  %1470 = vmatpush2.msra.mxu0 0.0
  %1471 = vmatprep.subr.mxu0 0.0
  %1472 = vmatpush2.msra.mxu0 0.0
  %1473 = vmatprep.subr.mxu0 0.0
  %1474 = vmatpush2.msra.mxu0 0.0
  %1475 = vmatprep.subr.mxu0 0.0
  %1476 = vmatpush2.msra.mxu0 0.0
  %1477 = vmatprep.subr.mxu0 0.0
  %1478 = vmatpush2.msra.mxu0 0.0
  %1479 = vmatprep.subr.mxu0 0.0
  %1480 = vmatpush2.msra.mxu0 0.0
  %1481 = vmatprep.subr.mxu0 0.0
  %1482 = vmatpush2.msra.mxu0 0.0
  %1483 = vmatprep.subr.mxu0 0.0
  %1484 = vmatpush2.msra.mxu0 0.0
  %1485 = vmatprep.mubr.f32.mxu0 0.0
  %1486 = vmatmul.mubr.f32.gmra.mxu0 %v1398
  %v1487 = vpop.f32.mrf.mxu0
  %v1488 = vadd.f32 %v1395, %v1487
  %v1489 = vpop.f32.mrf.mxu0
  %1490 = vmatprep.mubr.f32.mxu0 0.0
  %1491 = vmatmul.mubr.f32.gmra.mxu0 %v1401
  %v1492 = vpop.f32.mrf.mxu0
  %v1493 = vadd.f32 %v1395, %v1492
  %v1494 = vpop.f32.mrf.mxu0
  %1495 = vmatprep.mubr.f32.mxu0 0.0
  %1496 = vmatmul.mubr.f32.gmra.mxu0 %v1404
  %v1497 = vpop.f32.mrf.mxu0
  %v1498 = vadd.f32 %v1395, %v1497
  %v1499 = vpop.f32.mrf.mxu0
  %1500 = vmatprep.mubr.f32.mxu0 0.0
  %1501 = vmatmul.mubr.f32.gmra.mxu0 %v1407
  %v1502 = vpop.f32.mrf.mxu0
  %v1503 = vadd.f32 %v1395, %v1502
  %v1504 = vpop.f32.mrf.mxu0
  %1505 = vmatprep.mubr.f32.mxu0 0.0
  %1506 = vmatmul.mubr.f32.gmra.mxu0 %v1410
  %v1507 = vpop.f32.mrf.mxu0
  %v1508 = vadd.f32 %v1395, %v1507
  %v1509 = vpop.f32.mrf.mxu0
  %1510 = vmatprep.mubr.f32.mxu0 0.0
  %1511 = vmatmul.mubr.f32.gmra.mxu0 %v1413
  %v1512 = vpop.f32.mrf.mxu0
  %v1513 = vadd.f32 %v1395, %v1512
  %v1514 = vpop.f32.mrf.mxu0
  %1515 = vmatprep.mubr.f32.mxu0 0.0
  %1516 = vmatmul.mubr.f32.gmra.mxu0 %v1416
  %v1517 = vpop.f32.mrf.mxu0
  %v1518 = vadd.f32 %v1395, %v1517
  %v1519 = vpop.f32.mrf.mxu0
  %1520 = vmatprep.mubr.f32.mxu0 0.0
  %1521 = vmatmul.mubr.f32.gmra.mxu0 %v1419
  %v1522 = vpop.f32.mrf.mxu0
  %v1523 = vadd.f32 %v1395, %v1522
  %v1524 = vpop.f32.mrf.mxu0
  %1525 = vdwg.mxu0
  %v1526 = vadd.f32 %v56, %v1488
  %v1527 = vadd.f32 %v57, %v1493
  %v1528 = vadd.f32 %v58, %v1498
  %v1529 = vadd.f32 %v59, %v1503
  %v1530 = vadd.f32 %v60, %v1508
  %v1531 = vadd.f32 %v61, %v1513
  %v1532 = vadd.f32 %v62, %v1518
  %v1533 = vadd.f32 %v63, %v1523
  %v1534 = vld [vmem:[%s13] sm:$0x1]
  %v1535 = vld [vmem:[%s14] sm:$0x1]
  %v1536 = vsel %vm72, %v1526, 0.0
  %1537 = vadd.xlane.f32.xlu0 %v1536
  %v1538 = vpop.xlane.xlu0 %1537
  %v1539 = vsel %vm72, %v1527, 0.0
  %1540 = vadd.xlane.f32.xlu0 %v1539
  %v1541 = vpop.xlane.xlu0 %1540
  %v1542 = vsel %vm72, %v1528, 0.0
  %1543 = vadd.xlane.f32.xlu0 %v1542
  %v1544 = vpop.xlane.xlu0 %1543
  %v1545 = vsel %vm72, %v1529, 0.0
  %1546 = vadd.xlane.f32.xlu0 %v1545
  %v1547 = vpop.xlane.xlu0 %1546
  %v1548 = vsel %vm72, %v1530, 0.0
  %1549 = vadd.xlane.f32.xlu0 %v1548
  %v1550 = vpop.xlane.xlu0 %1549
  %v1551 = vsel %vm72, %v1531, 0.0
  %1552 = vadd.xlane.f32.xlu0 %v1551
  %v1553 = vpop.xlane.xlu0 %1552
  %v1554 = vsel %vm72, %v1532, 0.0
  %1555 = vadd.xlane.f32.xlu0 %v1554
  %v1556 = vpop.xlane.xlu0 %1555
  %v1557 = vsel %vm72, %v1533, 0.0
  %1558 = vadd.xlane.f32.xlu0 %v1557
  %v1559 = vpop.xlane.xlu0 %1558
  %v1560 = vrcp.pop 8.0
  %v1561 = vmul.f32 %v1538, %v1560
  %v1562 = vmul.f32 %v1541, %v1560
  %v1563 = vmul.f32 %v1544, %v1560
  %v1564 = vmul.f32 %v1547, %v1560
  %v1565 = vmul.f32 %v1550, %v1560
  %v1566 = vmul.f32 %v1553, %v1560
  %v1567 = vmul.f32 %v1556, %v1560
  %v1568 = vmul.f32 %v1559, %v1560
  %v1569 = vsub.f32 %v1526, %v1561
  %v1570 = vsub.f32 %v1527, %v1562
  %v1571 = vsub.f32 %v1528, %v1563
  %v1572 = vsub.f32 %v1529, %v1564
  %v1573 = vsub.f32 %v1530, %v1565
  %v1574 = vsub.f32 %v1531, %v1566
  %v1575 = vsub.f32 %v1532, %v1567
  %v1576 = vsub.f32 %v1533, %v1568
  %v1577 = vmul.f32 %v1569, %v1569
  %v1578 = vmul.f32 %v1570, %v1570
  %v1579 = vmul.f32 %v1571, %v1571
  %v1580 = vmul.f32 %v1572, %v1572
  %v1581 = vmul.f32 %v1573, %v1573
  %v1582 = vmul.f32 %v1574, %v1574
  %v1583 = vmul.f32 %v1575, %v1575
  %v1584 = vmul.f32 %v1576, %v1576
  %v1585 = vsel %vm72, %v1577, 0.0
  %1586 = vadd.xlane.f32.xlu0 %v1585
  %v1587 = vpop.xlane.xlu0 %1586
  %v1588 = vsel %vm72, %v1578, 0.0
  %1589 = vadd.xlane.f32.xlu0 %v1588
  %v1590 = vpop.xlane.xlu0 %1589
  %v1591 = vsel %vm72, %v1579, 0.0
  %1592 = vadd.xlane.f32.xlu0 %v1591
  %v1593 = vpop.xlane.xlu0 %1592
  %v1594 = vsel %vm72, %v1580, 0.0
  %1595 = vadd.xlane.f32.xlu0 %v1594
  %v1596 = vpop.xlane.xlu0 %1595
  %v1597 = vsel %vm72, %v1581, 0.0
  %1598 = vadd.xlane.f32.xlu0 %v1597
  %v1599 = vpop.xlane.xlu0 %1598
  %v1600 = vsel %vm72, %v1582, 0.0
  %1601 = vadd.xlane.f32.xlu0 %v1600
  %v1602 = vpop.xlane.xlu0 %1601
  %v1603 = vsel %vm72, %v1583, 0.0
  %1604 = vadd.xlane.f32.xlu0 %v1603
  %v1605 = vpop.xlane.xlu0 %1604
  %v1606 = vsel %vm72, %v1584, 0.0
  %1607 = vadd.xlane.f32.xlu0 %v1606
  %v1608 = vpop.xlane.xlu0 %1607
  %v1609 = vmul.f32 %v1587, %v1560
  %v1610 = vmul.f32 %v1590, %v1560
  %v1611 = vmul.f32 %v1593, %v1560
  %v1612 = vmul.f32 %v1596, %v1560
  %v1613 = vmul.f32 %v1599, %v1560
  %v1614 = vmul.f32 %v1602, %v1560
  %v1615 = vmul.f32 %v1605, %v1560
  %v1616 = vmul.f32 %v1608, %v1560
  %v1617 = vadd.f32 %v1609, 1e-05
  %v1618 = vadd.f32 %v1610, 1e-05
  %v1619 = vadd.f32 %v1611, 1e-05
  %v1620 = vadd.f32 %v1612, 1e-05
  %v1621 = vadd.f32 %v1613, 1e-05
  %v1622 = vadd.f32 %v1614, 1e-05
  %v1623 = vadd.f32 %v1615, 1e-05
  %v1624 = vadd.f32 %v1616, 1e-05
  %v1625 = vrsqrt.pop %v1617
  %v1626 = vrsqrt.pop %v1618
  %v1627 = vrsqrt.pop %v1619
  %v1628 = vrsqrt.pop %v1620
  %v1629 = vrsqrt.pop %v1621
  %v1630 = vrsqrt.pop %v1622
  %v1631 = vrsqrt.pop %v1623
  %v1632 = vrsqrt.pop %v1624
  %v1633 = vmul.f32 %v1569, %v1625
  %v1634 = vmul.f32 %v1570, %v1626
  %v1635 = vmul.f32 %v1571, %v1627
  %v1636 = vmul.f32 %v1572, %v1628
  %v1637 = vmul.f32 %v1573, %v1629
  %v1638 = vmul.f32 %v1574, %v1630
  %v1639 = vmul.f32 %v1575, %v1631
  %v1640 = vmul.f32 %v1576, %v1632
  %v1642 = vlaneseq
  %v1643 = vshrl.u32 %v1642, 7
  %v1644 = vsub.s32 0, %v1643
  %v1645 = vrot.slane %v1534, %v1644
  %v1647 = vmul.f32 %v1633, %v1645
  %v1648 = vmul.f32 %v1634, %v1645
  %v1649 = vmul.f32 %v1635, %v1645
  %v1650 = vmul.f32 %v1636, %v1645
  %v1651 = vmul.f32 %v1637, %v1645
  %v1652 = vmul.f32 %v1638, %v1645
  %v1653 = vmul.f32 %v1639, %v1645
  %v1654 = vmul.f32 %v1640, %v1645
  %v1656 = vlaneseq
  %v1657 = vshrl.u32 %v1656, 7
  %v1658 = vsub.s32 0, %v1657
  %v1659 = vrot.slane %v1535, %v1658
  %v1661 = vadd.f32 %v1647, %v1659
  %v1662 = vadd.f32 %v1648, %v1659
  %v1663 = vadd.f32 %v1649, %v1659
  %v1664 = vadd.f32 %v1650, %v1659
  %v1665 = vadd.f32 %v1651, %v1659
  %v1666 = vadd.f32 %v1652, %v1659
  %v1667 = vadd.f32 %v1653, %v1659
  %v1668 = vadd.f32 %v1654, %v1659
  %v1669 = vld [vmem:[%s9] sm:$0xff]
  %v1670 = vld [vmem:[%s10] sm:$0x1]
  %v1672 = vlaneseq
  %v1673 = vshrl.u32 %v1672, 7
  %v1674 = vsub.s32 0, %v1673
  %v1675 = vrot.slane %v1670, %v1674
  %v1678 = vsel %vm72, %v1661, 0
  %v1681 = vsel %vm72, %v1662, 0
  %v1684 = vsel %vm72, %v1663, 0
  %v1687 = vsel %vm72, %v1664, 0
  %v1690 = vsel %vm72, %v1665, 0
  %v1693 = vsel %vm72, %v1666, 0
  %v1696 = vsel %vm72, %v1667, 0
  %v1699 = vsel %vm72, %v1668, 0
  %1701 = vmatprep.subr.mxu0 0.0
  %1702 = vmatpush1.msra.mxu0 0.0
  %1703 = vmatprep.subr.mxu0 0.0
  %1704 = vmatpush1.msra.mxu0 0.0
  %1705 = vmatprep.subr.mxu0 0.0
  %1706 = vmatpush1.msra.mxu0 0.0
  %1707 = vmatprep.subr.mxu0 0.0
  %1708 = vmatpush1.msra.mxu0 0.0
  %1709 = vmatprep.subr.mxu0 0.0
  %1710 = vmatpush1.msra.mxu0 0.0
  %1711 = vmatprep.subr.mxu0 0.0
  %1712 = vmatpush1.msra.mxu0 0.0
  %1713 = vmatprep.subr.mxu0 0.0
  %1714 = vmatpush1.msra.mxu0 0.0
  %1715 = vmatprep.subr.mxu0 0.0
  %1716 = vmatpush1.msra.mxu0 0.0
  %1717 = vmatprep.subr.mxu0 0.0
  %1718 = vmatpush1.msra.mxu0 0.0
  %1719 = vmatprep.subr.mxu0 0.0
  %1720 = vmatpush1.msra.mxu0 0.0
  %1721 = vmatprep.subr.mxu0 0.0
  %1722 = vmatpush1.msra.mxu0 0.0
  %1723 = vmatprep.subr.mxu0 0.0
  %1724 = vmatpush1.msra.mxu0 0.0
  %1725 = vmatprep.subr.mxu0 0.0
  %1726 = vmatpush1.msra.mxu0 0.0
  %1727 = vmatprep.subr.mxu0 0.0
  %1728 = vmatpush1.msra.mxu0 0.0
  %1729 = vmatprep.subr.mxu0 0.0
  %1730 = vmatpush1.msra.mxu0 0.0
  %1731 = vmatprep.subr.mxu0 0.0
  %1732 = vmatpush1.msra.mxu0 %v1669
  %1733 = vmatprep.subr.mxu0 0.0
  %1734 = vmatpush2.msra.mxu0 0.0
  %1735 = vmatprep.subr.mxu0 0.0
  %1736 = vmatpush2.msra.mxu0 0.0
  %1737 = vmatprep.subr.mxu0 0.0
  %1738 = vmatpush2.msra.mxu0 0.0
  %1739 = vmatprep.subr.mxu0 0.0
  %1740 = vmatpush2.msra.mxu0 0.0
  %1741 = vmatprep.subr.mxu0 0.0
  %1742 = vmatpush2.msra.mxu0 0.0
  %1743 = vmatprep.subr.mxu0 0.0
  %1744 = vmatpush2.msra.mxu0 0.0
  %1745 = vmatprep.subr.mxu0 0.0
  %1746 = vmatpush2.msra.mxu0 0.0
  %1747 = vmatprep.subr.mxu0 0.0
  %1748 = vmatpush2.msra.mxu0 0.0
  %1749 = vmatprep.subr.mxu0 0.0
  %1750 = vmatpush2.msra.mxu0 0.0
  %1751 = vmatprep.subr.mxu0 0.0
  %1752 = vmatpush2.msra.mxu0 0.0
  %1753 = vmatprep.subr.mxu0 0.0
  %1754 = vmatpush2.msra.mxu0 0.0
  %1755 = vmatprep.subr.mxu0 0.0
  %1756 = vmatpush2.msra.mxu0 0.0
  %1757 = vmatprep.subr.mxu0 0.0
  %1758 = vmatpush2.msra.mxu0 0.0
  %1759 = vmatprep.subr.mxu0 0.0
  %1760 = vmatpush2.msra.mxu0 0.0
  %1761 = vmatprep.subr.mxu0 0.0
  %1762 = vmatpush2.msra.mxu0 0.0
  %1763 = vmatprep.subr.mxu0 0.0
  %1764 = vmatpush2.msra.mxu0 0.0
  %1765 = vmatprep.mubr.f32.mxu0 0.0
  %1766 = vmatmul.mubr.f32.gmra.mxu0 %v1678
  %v1767 = vpop.f32.mrf.mxu0
  %v1768 = vadd.f32 %v1675, %v1767
  %v1769 = vpop.f32.mrf.mxu0
  %1770 = vmatprep.mubr.f32.mxu0 0.0
  %1771 = vmatmul.mubr.f32.gmra.mxu0 %v1681
  %v1772 = vpop.f32.mrf.mxu0
  %v1773 = vadd.f32 %v1675, %v1772
  %v1774 = vpop.f32.mrf.mxu0
  %1775 = vmatprep.mubr.f32.mxu0 0.0
  %1776 = vmatmul.mubr.f32.gmra.mxu0 %v1684
  %v1777 = vpop.f32.mrf.mxu0
  %v1778 = vadd.f32 %v1675, %v1777
  %v1779 = vpop.f32.mrf.mxu0
  %1780 = vmatprep.mubr.f32.mxu0 0.0
  %1781 = vmatmul.mubr.f32.gmra.mxu0 %v1687
  %v1782 = vpop.f32.mrf.mxu0
  %v1783 = vadd.f32 %v1675, %v1782
  %v1784 = vpop.f32.mrf.mxu0
  %1785 = vmatprep.mubr.f32.mxu0 0.0
  %1786 = vmatmul.mubr.f32.gmra.mxu0 %v1690
  %v1787 = vpop.f32.mrf.mxu0
  %v1788 = vadd.f32 %v1675, %v1787
  %v1789 = vpop.f32.mrf.mxu0
  %1790 = vmatprep.mubr.f32.mxu0 0.0
  %1791 = vmatmul.mubr.f32.gmra.mxu0 %v1693
  %v1792 = vpop.f32.mrf.mxu0
  %v1793 = vadd.f32 %v1675, %v1792
  %v1794 = vpop.f32.mrf.mxu0
  %1795 = vmatprep.mubr.f32.mxu0 0.0
  %1796 = vmatmul.mubr.f32.gmra.mxu0 %v1696
  %v1797 = vpop.f32.mrf.mxu0
  %v1798 = vadd.f32 %v1675, %v1797
  %v1799 = vpop.f32.mrf.mxu0
  %1800 = vmatprep.mubr.f32.mxu0 0.0
  %1801 = vmatmul.mubr.f32.gmra.mxu0 %v1699
  %v1802 = vpop.f32.mrf.mxu0
  %v1803 = vadd.f32 %v1675, %v1802
  %v1804 = vpop.f32.mrf.mxu0
  %1805 = vdwg.mxu0
  %v1806 = vand.u32 2147483647, %v1768
  %v1807 = vand.u32 2147483647, %v1773
  %v1808 = vand.u32 2147483647, %v1778
  %v1809 = vand.u32 2147483647, %v1783
  %v1810 = vand.u32 2147483647, %v1788
  %v1811 = vand.u32 2147483647, %v1793
  %v1812 = vand.u32 2147483647, %v1798
  %v1813 = vand.u32 2147483647, %v1803
  %v1814 = vmul.f32 %v1806, 0.70710677
  %v1815 = vmul.f32 %v1807, 0.70710677
  %v1816 = vmul.f32 %v1808, 0.70710677
  %v1817 = vmul.f32 %v1809, 0.70710677
  %v1818 = vmul.f32 %v1810, 0.70710677
  %v1819 = vmul.f32 %v1811, 0.70710677
  %v1820 = vmul.f32 %v1812, 0.70710677
  %v1821 = vmul.f32 %v1813, 0.70710677
  %v1822 = vmul.f32 %v1814, 0.3275911
  %v1823 = vmul.f32 %v1815, 0.3275911
  %v1824 = vmul.f32 %v1816, 0.3275911
  %v1825 = vmul.f32 %v1817, 0.3275911
  %v1826 = vmul.f32 %v1818, 0.3275911
  %v1827 = vmul.f32 %v1819, 0.3275911
  %v1828 = vmul.f32 %v1820, 0.3275911
  %v1829 = vmul.f32 %v1821, 0.3275911
  %v1830 = vadd.f32 %v1822, 1.0
  %v1831 = vadd.f32 %v1823, 1.0
  %v1832 = vadd.f32 %v1824, 1.0
  %v1833 = vadd.f32 %v1825, 1.0
  %v1834 = vadd.f32 %v1826, 1.0
  %v1835 = vadd.f32 %v1827, 1.0
  %v1836 = vadd.f32 %v1828, 1.0
  %v1837 = vadd.f32 %v1829, 1.0
  %v1838 = vrcp.pop %v1830
  %v1839 = vmul.f32 1.0, %v1838
  %v1840 = vrcp.pop %v1831
  %v1841 = vmul.f32 1.0, %v1840
  %v1842 = vrcp.pop %v1832
  %v1843 = vmul.f32 1.0, %v1842
  %v1844 = vrcp.pop %v1833
  %v1845 = vmul.f32 1.0, %v1844
  %v1846 = vrcp.pop %v1834
  %v1847 = vmul.f32 1.0, %v1846
  %v1848 = vrcp.pop %v1835
  %v1849 = vmul.f32 1.0, %v1848
  %v1850 = vrcp.pop %v1836
  %v1851 = vmul.f32 1.0, %v1850
  %v1852 = vrcp.pop %v1837
  %v1853 = vmul.f32 1.0, %v1852
  %v1854 = vmul.f32 %v1839, 1.0614054
  %v1855 = vmul.f32 %v1841, 1.0614054
  %v1856 = vmul.f32 %v1843, 1.0614054
  %v1857 = vmul.f32 %v1845, 1.0614054
  %v1858 = vmul.f32 %v1847, 1.0614054
  %v1859 = vmul.f32 %v1849, 1.0614054
  %v1860 = vmul.f32 %v1851, 1.0614054
  %v1861 = vmul.f32 %v1853, 1.0614054
  %v1862 = vadd.f32 %v1854, -1.4531521
  %v1863 = vadd.f32 %v1855, -1.4531521
  %v1864 = vadd.f32 %v1856, -1.4531521
  %v1865 = vadd.f32 %v1857, -1.4531521
  %v1866 = vadd.f32 %v1858, -1.4531521
  %v1867 = vadd.f32 %v1859, -1.4531521
  %v1868 = vadd.f32 %v1860, -1.4531521
  %v1869 = vadd.f32 %v1861, -1.4531521
  %v1870 = vmul.f32 %v1839, %v1862
  %v1871 = vmul.f32 %v1841, %v1863
  %v1872 = vmul.f32 %v1843, %v1864
  %v1873 = vmul.f32 %v1845, %v1865
  %v1874 = vmul.f32 %v1847, %v1866
  %v1875 = vmul.f32 %v1849, %v1867
  %v1876 = vmul.f32 %v1851, %v1868
  %v1877 = vmul.f32 %v1853, %v1869
  %v1878 = vadd.f32 %v1870, 1.4214138
  %v1879 = vadd.f32 %v1871, 1.4214138
  %v1880 = vadd.f32 %v1872, 1.4214138
  %v1881 = vadd.f32 %v1873, 1.4214138
  %v1882 = vadd.f32 %v1874, 1.4214138
  %v1883 = vadd.f32 %v1875, 1.4214138
  %v1884 = vadd.f32 %v1876, 1.4214138
  %v1885 = vadd.f32 %v1877, 1.4214138
  %v1886 = vmul.f32 %v1839, %v1878
  %v1887 = vmul.f32 %v1841, %v1879
  %v1888 = vmul.f32 %v1843, %v1880
  %v1889 = vmul.f32 %v1845, %v1881
  %v1890 = vmul.f32 %v1847, %v1882
  %v1891 = vmul.f32 %v1849, %v1883
  %v1892 = vmul.f32 %v1851, %v1884
  %v1893 = vmul.f32 %v1853, %v1885
  %v1894 = vadd.f32 %v1886, -0.28449672
  %v1895 = vadd.f32 %v1887, -0.28449672
  %v1896 = vadd.f32 %v1888, -0.28449672
  %v1897 = vadd.f32 %v1889, -0.28449672
  %v1898 = vadd.f32 %v1890, -0.28449672
  %v1899 = vadd.f32 %v1891, -0.28449672
  %v1900 = vadd.f32 %v1892, -0.28449672
  %v1901 = vadd.f32 %v1893, -0.28449672
  %v1902 = vmul.f32 %v1839, %v1894
  %v1903 = vmul.f32 %v1841, %v1895
  %v1904 = vmul.f32 %v1843, %v1896
  %v1905 = vmul.f32 %v1845, %v1897
  %v1906 = vmul.f32 %v1847, %v1898
  %v1907 = vmul.f32 %v1849, %v1899
  %v1908 = vmul.f32 %v1851, %v1900
  %v1909 = vmul.f32 %v1853, %v1901
  %v1910 = vadd.f32 %v1902, 0.2548296
  %v1911 = vadd.f32 %v1903, 0.2548296
  %v1912 = vadd.f32 %v1904, 0.2548296
  %v1913 = vadd.f32 %v1905, 0.2548296
  %v1914 = vadd.f32 %v1906, 0.2548296
  %v1915 = vadd.f32 %v1907, 0.2548296
  %v1916 = vadd.f32 %v1908, 0.2548296
  %v1917 = vadd.f32 %v1909, 0.2548296
  %v1918 = vmul.f32 %v1839, %v1910
  %v1919 = vmul.f32 %v1841, %v1911
  %v1920 = vmul.f32 %v1843, %v1912
  %v1921 = vmul.f32 %v1845, %v1913
  %v1922 = vmul.f32 %v1847, %v1914
  %v1923 = vmul.f32 %v1849, %v1915
  %v1924 = vmul.f32 %v1851, %v1916
  %v1925 = vmul.f32 %v1853, %v1917
  %v1926 = vsub.f32 0.0, %v1814
  %v1927 = vsub.f32 0.0, %v1815
  %v1928 = vsub.f32 0.0, %v1816
  %v1929 = vsub.f32 0.0, %v1817
  %v1930 = vsub.f32 0.0, %v1818
  %v1931 = vsub.f32 0.0, %v1819
  %v1932 = vsub.f32 0.0, %v1820
  %v1933 = vsub.f32 0.0, %v1821
  %v1934 = vmul.f32 %v1926, %v1814
  %v1935 = vmul.f32 %v1927, %v1815
  %v1936 = vmul.f32 %v1928, %v1816
  %v1937 = vmul.f32 %v1929, %v1817
  %v1938 = vmul.f32 %v1930, %v1818
  %v1939 = vmul.f32 %v1931, %v1819
  %v1940 = vmul.f32 %v1932, %v1820
  %v1941 = vmul.f32 %v1933, %v1821
  %v1942 = vmul.f32 %v1934, 1.442695
  %v1943 = vpow.pop %v1942
  %v1944 = vmul.f32 %v1935, 1.442695
  %v1945 = vpow.pop %v1944
  %v1946 = vmul.f32 %v1936, 1.442695
  %v1947 = vpow.pop %v1946
  %v1948 = vmul.f32 %v1937, 1.442695
  %v1949 = vpow.pop %v1948
  %v1950 = vmul.f32 %v1938, 1.442695
  %v1951 = vpow.pop %v1950
  %v1952 = vmul.f32 %v1939, 1.442695
  %v1953 = vpow.pop %v1952
  %v1954 = vmul.f32 %v1940, 1.442695
  %v1955 = vpow.pop %v1954
  %v1956 = vmul.f32 %v1941, 1.442695
  %v1957 = vpow.pop %v1956
  %v1958 = vmul.f32 %v1918, %v1943
  %v1959 = vmul.f32 %v1919, %v1945
  %v1960 = vmul.f32 %v1920, %v1947
  %v1961 = vmul.f32 %v1921, %v1949
  %v1962 = vmul.f32 %v1922, %v1951
  %v1963 = vmul.f32 %v1923, %v1953
  %v1964 = vmul.f32 %v1924, %v1955
  %v1965 = vmul.f32 %v1925, %v1957
  %v1966 = vsub.f32 1.0, %v1958
  %v1967 = vsub.f32 1.0, %v1959
  %v1968 = vsub.f32 1.0, %v1960
  %v1969 = vsub.f32 1.0, %v1961
  %v1970 = vsub.f32 1.0, %v1962
  %v1971 = vsub.f32 1.0, %v1963
  %v1972 = vsub.f32 1.0, %v1964
  %v1973 = vsub.f32 1.0, %v1965
  %v1974 = vmul.f32 %v1768, 0.5
  %v1975 = vmul.f32 %v1773, 0.5
  %v1976 = vmul.f32 %v1778, 0.5
  %v1977 = vmul.f32 %v1783, 0.5
  %v1978 = vmul.f32 %v1788, 0.5
  %v1979 = vmul.f32 %v1793, 0.5
  %v1980 = vmul.f32 %v1798, 0.5
  %v1981 = vmul.f32 %v1803, 0.5
  %vm1982 = vcmp.ge.f32.partialorder %v1768, 0.0
  %vm1983 = vcmp.ge.f32.partialorder %v1773, 0.0
  %vm1984 = vcmp.ge.f32.partialorder %v1778, 0.0
  %vm1985 = vcmp.ge.f32.partialorder %v1783, 0.0
  %vm1986 = vcmp.ge.f32.partialorder %v1788, 0.0
  %vm1987 = vcmp.ge.f32.partialorder %v1793, 0.0
  %vm1988 = vcmp.ge.f32.partialorder %v1798, 0.0
  %vm1989 = vcmp.ge.f32.partialorder %v1803, 0.0
  %v1990 = vsub.f32 0.0, %v1966
  %v1991 = vsub.f32 0.0, %v1967
  %v1992 = vsub.f32 0.0, %v1968
  %v1993 = vsub.f32 0.0, %v1969
  %v1994 = vsub.f32 0.0, %v1970
  %v1995 = vsub.f32 0.0, %v1971
  %v1996 = vsub.f32 0.0, %v1972
  %v1997 = vsub.f32 0.0, %v1973
  %v1998 = vsel %vm1982, %v1966, %v1990
  %v1999 = vsel %vm1983, %v1967, %v1991
  %v2000 = vsel %vm1984, %v1968, %v1992
  %v2001 = vsel %vm1985, %v1969, %v1993
  %v2002 = vsel %vm1986, %v1970, %v1994
  %v2003 = vsel %vm1987, %v1971, %v1995
  %v2004 = vsel %vm1988, %v1972, %v1996
  %v2005 = vsel %vm1989, %v1973, %v1997
  %v2006 = vadd.f32 %v1998, 1.0
  %v2007 = vadd.f32 %v1999, 1.0
  %v2008 = vadd.f32 %v2000, 1.0
  %v2009 = vadd.f32 %v2001, 1.0
  %v2010 = vadd.f32 %v2002, 1.0
  %v2011 = vadd.f32 %v2003, 1.0
  %v2012 = vadd.f32 %v2004, 1.0
  %v2013 = vadd.f32 %v2005, 1.0
  %v2014 = vmul.f32 %v1974, %v2006
  %v2015 = vmul.f32 %v1975, %v2007
  %v2016 = vmul.f32 %v1976, %v2008
  %v2017 = vmul.f32 %v1977, %v2009
  %v2018 = vmul.f32 %v1978, %v2010
  %v2019 = vmul.f32 %v1979, %v2011
  %v2020 = vmul.f32 %v1980, %v2012
  %v2021 = vmul.f32 %v1981, %v2013
  %v2022 = vld [vmem:[%s11] sm:$0xff]
  %v2023 = vld [vmem:[%s11 + $0x8] sm:$0xff]
  %v2024 = vld [vmem:[%s11 + $0x10] sm:$0xff]
  %v2025 = vld [vmem:[%s11 + $0x18] sm:$0xff]
  %v2026 = vld [vmem:[%s11 + $0x20] sm:$0xff]
  %v2027 = vld [vmem:[%s11 + $0x28] sm:$0xff]
  %v2028 = vld [vmem:[%s11 + $0x30] sm:$0xff]
  %v2029 = vld [vmem:[%s11 + $0x38] sm:$0xff]
  %v2030 = vld [vmem:[%s12] sm:$0x1]
  %v2032 = vlaneseq
  %v2033 = vshrl.u32 %v2032, 7
  %v2034 = vsub.s32 0, %v2033
  %v2035 = vrot.slane %v2030, %v2034
  %vm2037 = vcmask 523264
  %v2039 = vsel %vm2037, %v2014, 0
  %v2042 = vsel %vm2037, %v2015, 0
  %v2045 = vsel %vm2037, %v2016, 0
  %v2048 = vsel %vm2037, %v2017, 0
  %v2051 = vsel %vm2037, %v2018, 0
  %v2054 = vsel %vm2037, %v2019, 0
  %v2057 = vsel %vm2037, %v2020, 0
  %v2060 = vsel %vm2037, %v2021, 0
  %2062 = vmatprep.subr.mxu0 0.0
  %2063 = vmatpush1.msra.mxu0 0.0
  %2064 = vmatprep.subr.mxu0 0.0
  %2065 = vmatpush1.msra.mxu0 0.0
  %2066 = vmatprep.subr.mxu0 0.0
  %2067 = vmatpush1.msra.mxu0 0.0
  %2068 = vmatprep.subr.mxu0 0.0
  %2069 = vmatpush1.msra.mxu0 0.0
  %2070 = vmatprep.subr.mxu0 0.0
  %2071 = vmatpush1.msra.mxu0 0.0
  %2072 = vmatprep.subr.mxu0 0.0
  %2073 = vmatpush1.msra.mxu0 0.0
  %2074 = vmatprep.subr.mxu0 0.0
  %2075 = vmatpush1.msra.mxu0 0.0
  %2076 = vmatprep.subr.mxu0 0.0
  %2077 = vmatpush1.msra.mxu0 0.0
  %2078 = vmatprep.subr.mxu0 0.0
  %2079 = vmatpush1.msra.mxu0 %v2029
  %2080 = vmatprep.subr.mxu0 0.0
  %2081 = vmatpush1.msra.mxu0 %v2028
  %2082 = vmatprep.subr.mxu0 0.0
  %2083 = vmatpush1.msra.mxu0 %v2027
  %2084 = vmatprep.subr.mxu0 0.0
  %2085 = vmatpush1.msra.mxu0 %v2026
  %2086 = vmatprep.subr.mxu0 0.0
  %2087 = vmatpush1.msra.mxu0 %v2025
  %2088 = vmatprep.subr.mxu0 0.0
  %2089 = vmatpush1.msra.mxu0 %v2024
  %2090 = vmatprep.subr.mxu0 0.0
  %2091 = vmatpush1.msra.mxu0 %v2023
  %2092 = vmatprep.subr.mxu0 0.0
  %2093 = vmatpush1.msra.mxu0 %v2022
  %2094 = vmatprep.subr.mxu0 0.0
  %2095 = vmatpush2.msra.mxu0 0.0
  %2096 = vmatprep.subr.mxu0 0.0
  %2097 = vmatpush2.msra.mxu0 0.0
  %2098 = vmatprep.subr.mxu0 0.0
  %2099 = vmatpush2.msra.mxu0 0.0
  %2100 = vmatprep.subr.mxu0 0.0
  %2101 = vmatpush2.msra.mxu0 0.0
  %2102 = vmatprep.subr.mxu0 0.0
  %2103 = vmatpush2.msra.mxu0 0.0
  %2104 = vmatprep.subr.mxu0 0.0
  %2105 = vmatpush2.msra.mxu0 0.0
  %2106 = vmatprep.subr.mxu0 0.0
  %2107 = vmatpush2.msra.mxu0 0.0
  %2108 = vmatprep.subr.mxu0 0.0
  %2109 = vmatpush2.msra.mxu0 0.0
  %2110 = vmatprep.subr.mxu0 0.0
  %2111 = vmatpush2.msra.mxu0 0.0
  %2112 = vmatprep.subr.mxu0 0.0
  %2113 = vmatpush2.msra.mxu0 0.0
  %2114 = vmatprep.subr.mxu0 0.0
  %2115 = vmatpush2.msra.mxu0 0.0
  %2116 = vmatprep.subr.mxu0 0.0
  %2117 = vmatpush2.msra.mxu0 0.0
  %2118 = vmatprep.subr.mxu0 0.0
  %2119 = vmatpush2.msra.mxu0 0.0
  %2120 = vmatprep.subr.mxu0 0.0
  %2121 = vmatpush2.msra.mxu0 0.0
  %2122 = vmatprep.subr.mxu0 0.0
  %2123 = vmatpush2.msra.mxu0 0.0
  %2124 = vmatprep.subr.mxu0 0.0
  %2125 = vmatpush2.msra.mxu0 0.0
  %2126 = vmatprep.mubr.f32.mxu0 0.0
  %2127 = vmatmul.mubr.f32.gmra.mxu0 %v2039
  %v2128 = vpop.f32.mrf.mxu0
  %v2129 = vadd.f32 %v2035, %v2128
  %v2130 = vpop.f32.mrf.mxu0
  %2131 = vmatprep.mubr.f32.mxu0 0.0
  %2132 = vmatmul.mubr.f32.gmra.mxu0 %v2042
  %v2133 = vpop.f32.mrf.mxu0
  %v2134 = vadd.f32 %v2035, %v2133
  %v2135 = vpop.f32.mrf.mxu0
  %2136 = vmatprep.mubr.f32.mxu0 0.0
  %2137 = vmatmul.mubr.f32.gmra.mxu0 %v2045
  %v2138 = vpop.f32.mrf.mxu0
  %v2139 = vadd.f32 %v2035, %v2138
  %v2140 = vpop.f32.mrf.mxu0
  %2141 = vmatprep.mubr.f32.mxu0 0.0
  %2142 = vmatmul.mubr.f32.gmra.mxu0 %v2048
  %v2143 = vpop.f32.mrf.mxu0
  %v2144 = vadd.f32 %v2035, %v2143
  %v2145 = vpop.f32.mrf.mxu0
  %2146 = vmatprep.mubr.f32.mxu0 0.0
  %2147 = vmatmul.mubr.f32.gmra.mxu0 %v2051
  %v2148 = vpop.f32.mrf.mxu0
  %v2149 = vadd.f32 %v2035, %v2148
  %v2150 = vpop.f32.mrf.mxu0
  %2151 = vmatprep.mubr.f32.mxu0 0.0
  %2152 = vmatmul.mubr.f32.gmra.mxu0 %v2054
  %v2153 = vpop.f32.mrf.mxu0
  %v2154 = vadd.f32 %v2035, %v2153
  %v2155 = vpop.f32.mrf.mxu0
  %2156 = vmatprep.mubr.f32.mxu0 0.0
  %2157 = vmatmul.mubr.f32.gmra.mxu0 %v2057
  %v2158 = vpop.f32.mrf.mxu0
  %v2159 = vadd.f32 %v2035, %v2158
  %v2160 = vpop.f32.mrf.mxu0
  %2161 = vmatprep.mubr.f32.mxu0 0.0
  %2162 = vmatmul.mubr.f32.gmra.mxu0 %v2060
  %v2163 = vpop.f32.mrf.mxu0
  %v2164 = vadd.f32 %v2035, %v2163
  %v2165 = vpop.f32.mrf.mxu0
  %2166 = vdwg.mxu0
  %v2167 = vadd.f32 %v1661, %v2129
  %v2168 = vadd.f32 %v1662, %v2134
  %v2169 = vadd.f32 %v1663, %v2139
  %v2170 = vadd.f32 %v1664, %v2144
  %v2171 = vadd.f32 %v1665, %v2149
  %v2172 = vadd.f32 %v1666, %v2154
  %v2173 = vadd.f32 %v1667, %v2159
  %v2174 = vadd.f32 %v1668, %v2164
  %v2175 = vld [vmem:[%s15] sm:$0x1]
  %v2176 = vld [vmem:[%s16] sm:$0x1]
  %v2177 = vsel %vm72, %v2167, 0.0
  %2178 = vadd.xlane.f32.xlu0 %v2177
  %v2179 = vpop.xlane.xlu0 %2178
  %v2180 = vsel %vm72, %v2168, 0.0
  %2181 = vadd.xlane.f32.xlu0 %v2180
  %v2182 = vpop.xlane.xlu0 %2181
  %v2183 = vsel %vm72, %v2169, 0.0
  %2184 = vadd.xlane.f32.xlu0 %v2183
  %v2185 = vpop.xlane.xlu0 %2184
  %v2186 = vsel %vm72, %v2170, 0.0
  %2187 = vadd.xlane.f32.xlu0 %v2186
  %v2188 = vpop.xlane.xlu0 %2187
  %v2189 = vsel %vm72, %v2171, 0.0
  %2190 = vadd.xlane.f32.xlu0 %v2189
  %v2191 = vpop.xlane.xlu0 %2190
  %v2192 = vsel %vm72, %v2172, 0.0
  %2193 = vadd.xlane.f32.xlu0 %v2192
  %v2194 = vpop.xlane.xlu0 %2193
  %v2195 = vsel %vm72, %v2173, 0.0
  %2196 = vadd.xlane.f32.xlu0 %v2195
  %v2197 = vpop.xlane.xlu0 %2196
  %v2198 = vsel %vm72, %v2174, 0.0
  %2199 = vadd.xlane.f32.xlu0 %v2198
  %v2200 = vpop.xlane.xlu0 %2199
  %v2201 = vmul.f32 %v2179, %v1560
  %v2202 = vmul.f32 %v2182, %v1560
  %v2203 = vmul.f32 %v2185, %v1560
  %v2204 = vmul.f32 %v2188, %v1560
  %v2205 = vmul.f32 %v2191, %v1560
  %v2206 = vmul.f32 %v2194, %v1560
  %v2207 = vmul.f32 %v2197, %v1560
  %v2208 = vmul.f32 %v2200, %v1560
  %v2209 = vsub.f32 %v2167, %v2201
  %v2210 = vsub.f32 %v2168, %v2202
  %v2211 = vsub.f32 %v2169, %v2203
  %v2212 = vsub.f32 %v2170, %v2204
  %v2213 = vsub.f32 %v2171, %v2205
  %v2214 = vsub.f32 %v2172, %v2206
  %v2215 = vsub.f32 %v2173, %v2207
  %v2216 = vsub.f32 %v2174, %v2208
  %v2217 = vmul.f32 %v2209, %v2209
  %v2218 = vmul.f32 %v2210, %v2210
  %v2219 = vmul.f32 %v2211, %v2211
  %v2220 = vmul.f32 %v2212, %v2212
  %v2221 = vmul.f32 %v2213, %v2213
  %v2222 = vmul.f32 %v2214, %v2214
  %v2223 = vmul.f32 %v2215, %v2215
  %v2224 = vmul.f32 %v2216, %v2216
  %v2225 = vsel %vm72, %v2217, 0.0
  %2226 = vadd.xlane.f32.xlu0 %v2225
  %v2227 = vpop.xlane.xlu0 %2226
  %v2228 = vsel %vm72, %v2218, 0.0
  %2229 = vadd.xlane.f32.xlu0 %v2228
  %v2230 = vpop.xlane.xlu0 %2229
  %v2231 = vsel %vm72, %v2219, 0.0
  %2232 = vadd.xlane.f32.xlu0 %v2231
  %v2233 = vpop.xlane.xlu0 %2232
  %v2234 = vsel %vm72, %v2220, 0.0
  %2235 = vadd.xlane.f32.xlu0 %v2234
  %v2236 = vpop.xlane.xlu0 %2235
  %v2237 = vsel %vm72, %v2221, 0.0
  %2238 = vadd.xlane.f32.xlu0 %v2237
  %v2239 = vpop.xlane.xlu0 %2238
  %v2240 = vsel %vm72, %v2222, 0.0
  %2241 = vadd.xlane.f32.xlu0 %v2240
  %v2242 = vpop.xlane.xlu0 %2241
  %v2243 = vsel %vm72, %v2223, 0.0
  %2244 = vadd.xlane.f32.xlu0 %v2243
  %v2245 = vpop.xlane.xlu0 %2244
  %v2246 = vsel %vm72, %v2224, 0.0
  %2247 = vadd.xlane.f32.xlu0 %v2246
  %v2248 = vpop.xlane.xlu0 %2247
  %v2249 = vmul.f32 %v2227, %v1560
  %v2250 = vmul.f32 %v2230, %v1560
  %v2251 = vmul.f32 %v2233, %v1560
  %v2252 = vmul.f32 %v2236, %v1560
  %v2253 = vmul.f32 %v2239, %v1560
  %v2254 = vmul.f32 %v2242, %v1560
  %v2255 = vmul.f32 %v2245, %v1560
  %v2256 = vmul.f32 %v2248, %v1560
  %v2257 = vadd.f32 %v2249, 1e-05
  %v2258 = vadd.f32 %v2250, 1e-05
  %v2259 = vadd.f32 %v2251, 1e-05
  %v2260 = vadd.f32 %v2252, 1e-05
  %v2261 = vadd.f32 %v2253, 1e-05
  %v2262 = vadd.f32 %v2254, 1e-05
  %v2263 = vadd.f32 %v2255, 1e-05
  %v2264 = vadd.f32 %v2256, 1e-05
  %v2265 = vrsqrt.pop %v2257
  %v2266 = vrsqrt.pop %v2258
  %v2267 = vrsqrt.pop %v2259
  %v2268 = vrsqrt.pop %v2260
  %v2269 = vrsqrt.pop %v2261
  %v2270 = vrsqrt.pop %v2262
  %v2271 = vrsqrt.pop %v2263
  %v2272 = vrsqrt.pop %v2264
  %v2273 = vmul.f32 %v2209, %v2265
  %v2274 = vmul.f32 %v2210, %v2266
  %v2275 = vmul.f32 %v2211, %v2267
  %v2276 = vmul.f32 %v2212, %v2268
  %v2277 = vmul.f32 %v2213, %v2269
  %v2278 = vmul.f32 %v2214, %v2270
  %v2279 = vmul.f32 %v2215, %v2271
  %v2280 = vmul.f32 %v2216, %v2272
  %v2282 = vlaneseq
  %v2283 = vshrl.u32 %v2282, 7
  %v2284 = vsub.s32 0, %v2283
  %v2285 = vrot.slane %v2175, %v2284
  %v2287 = vmul.f32 %v2273, %v2285
  %v2288 = vmul.f32 %v2274, %v2285
  %v2289 = vmul.f32 %v2275, %v2285
  %v2290 = vmul.f32 %v2276, %v2285
  %v2291 = vmul.f32 %v2277, %v2285
  %v2292 = vmul.f32 %v2278, %v2285
  %v2293 = vmul.f32 %v2279, %v2285
  %v2294 = vmul.f32 %v2280, %v2285
  %v2296 = vlaneseq
  %v2297 = vshrl.u32 %v2296, 7
  %v2298 = vsub.s32 0, %v2297
  %v2299 = vrot.slane %v2176, %v2298
  %v2301 = vadd.f32 %v2287, %v2299
  %v2302 = vadd.f32 %v2288, %v2299
  %v2303 = vadd.f32 %v2289, %v2299
  %v2304 = vadd.f32 %v2290, %v2299
  %v2305 = vadd.f32 %v2291, %v2299
  %v2306 = vadd.f32 %v2292, %v2299
  %v2307 = vadd.f32 %v2293, %v2299
  %v2308 = vadd.f32 %v2294, %v2299
  %2309 = vst.msk [vmem:[%s17] sm:$0xff] %vm72, %v2301
  %2310 = vst.msk [vmem:[%s17 + $0x8] sm:$0xff] %vm72, %v2302
  %2311 = vst.msk [vmem:[%s17 + $0x10] sm:$0xff] %vm72, %v2303
  %2312 = vst.msk [vmem:[%s17 + $0x18] sm:$0xff] %vm72, %v2304
  %2313 = vst.msk [vmem:[%s17 + $0x20] sm:$0xff] %vm72, %v2305
  %2314 = vst.msk [vmem:[%s17 + $0x28] sm:$0xff] %vm72, %v2306
  %2315 = vst.msk [vmem:[%s17 + $0x30] sm:$0xff] %vm72, %v2307
  %2316 = vst.msk [vmem:[%s17 + $0x38] sm:$0xff] %vm72, %v2308
  // Predicated region
  $region70: #{_lambda_.11} parent=0 // pred_check
    _
  $region71: #{_lambda_.11} parent=0 // pred_check_branch
    %2318 = sbr.rel (0) target = $region73
  $region72: #{_lambda_.11} parent=0 // pred_region
    _
  $region73: #{_lambda_.11} parent=0 // pred_fallthru
    _
  // Predicated region
  $region74: #{_lambda_.11} parent=0 // pred_check
    _
  $region75: #{_lambda_.11} parent=0 // pred_check_branch
    %2320 = sbr.rel (0) target = $region77
  $region76: #{_lambda_.11} parent=0 // pred_region
    _
  $region77: #{_lambda_.11} parent=0 // pred_fallthru
    _

// kernel: _lambda_.7
$region0: #{_lambda_.7}
  #allocation0 [shape = 'u32[]', space=smem, size = 0x4, offset = 0x4, fixed_abs, tag = 'smem constant byte address 0x4 - core index']
  #allocation1 [shape = 'u32[144,128]{1,0:T(1,128)}', space=vmem, size = 0x12000, scoped, tag = 'internal scratch']
  %s0 = inlined_call_operand.vmem [shape: f32[2,4], index: 0, kind: input, shape index: {}]
  %s1 = inlined_call_operand.vmem [shape: f32[8,2,4], index: 1, kind: input, shape index: {}]
  %s2 = inlined_call_operand.vmem [shape: f32[4,32], index: 2, kind: input, shape index: {}]
  %s3 = inlined_call_operand.vmem [shape: f32[1,32], index: 3, kind: input, shape index: {}]
  %s4 = inlined_call_operand.vmem [shape: f32[32,32], index: 4, kind: input, shape index: {}]
  %s5 = inlined_call_operand.vmem [shape: f32[1,32], index: 5, kind: input, shape index: {}]
  %s6 = inlined_call_operand.vmem [shape: f32[1,32,32], index: 6, kind: input, shape index: {}]
  %s7 = inlined_call_operand.vmem [shape: f32[1,1,32], index: 7, kind: input, shape index: {}]
  %s8 = inlined_call_operand.vmem [shape: f32[32,128], index: 8, kind: input, shape index: {}]
  %s9 = inlined_call_operand.vmem [shape: f32[1,128], index: 9, kind: input, shape index: {}]
  %s10 = inlined_call_operand.vmem [shape: f32[8,2,32], index: 10, kind: output, shape index: {}]
  %s11 = sld [smem:[#allocation0]]
  $region50: #{_lambda_.7} parent=0
    _
  %s13 = ssub.s32 1, %s11
  %s14 = scalar_select 0, %s13, %s11
  // Predicated region
  $region2: #{_lambda_.7} parent=0 // pred_check
    _
  $region3: #{_lambda_.7} parent=0 // pred_check_branch
    %16 = sbr.rel (0) target = $region5
  $region4: #{_lambda_.7} parent=0 // pred_region
    _
  $region5: #{_lambda_.7} parent=0 // pred_fallthru
    _
  // Predicated region
  $region6: #{_lambda_.7} parent=0 // pred_check
    _
  $region7: #{_lambda_.7} parent=0 // pred_check_branch
    %18 = sbr.rel (0) target = $region9
  $region8: #{_lambda_.7} parent=0 // pred_region
    _
  $region9: #{_lambda_.7} parent=0 // pred_fallthru
    _
  // Predicated region
  $region10: #{_lambda_.7} parent=0 // pred_check
    _
  $region11: #{_lambda_.7} parent=0 // pred_check_branch
    %20 = sbr.rel (0) target = $region13
  $region12: #{_lambda_.7} parent=0 // pred_region
    _
  $region13: #{_lambda_.7} parent=0 // pred_fallthru
    _
  // Predicated region
  $region14: #{_lambda_.7} parent=0 // pred_check
    _
  $region15: #{_lambda_.7} parent=0 // pred_check_branch
    %22 = sbr.rel (0) target = $region17
  $region16: #{_lambda_.7} parent=0 // pred_region
    _
  $region17: #{_lambda_.7} parent=0 // pred_fallthru
    _
  // Predicated region
  $region18: #{_lambda_.7} parent=0 // pred_check
    _
  $region19: #{_lambda_.7} parent=0 // pred_check_branch
    %24 = sbr.rel (0) target = $region21
  $region20: #{_lambda_.7} parent=0 // pred_region
    _
  $region21: #{_lambda_.7} parent=0 // pred_fallthru
    _
  // Predicated region
  $region22: #{_lambda_.7} parent=0 // pred_check
    _
  $region23: #{_lambda_.7} parent=0 // pred_check_branch
    %26 = sbr.rel (0) target = $region25
  $region24: #{_lambda_.7} parent=0 // pred_region
    _
  $region25: #{_lambda_.7} parent=0 // pred_fallthru
    _
  // Predicated region
  $region26: #{_lambda_.7} parent=0 // pred_check
    _
  $region27: #{_lambda_.7} parent=0 // pred_check_branch
    %28 = sbr.rel (0) target = $region29
  $region28: #{_lambda_.7} parent=0 // pred_region
    _
  $region29: #{_lambda_.7} parent=0 // pred_fallthru
    _
  // Predicated region
  $region30: #{_lambda_.7} parent=0 // pred_check
    _
  $region31: #{_lambda_.7} parent=0 // pred_check_branch
    %30 = sbr.rel (0) target = $region33
  $region32: #{_lambda_.7} parent=0 // pred_region
    _
  $region33: #{_lambda_.7} parent=0 // pred_fallthru
    _
  // Predicated region
  $region34: #{_lambda_.7} parent=0 // pred_check
    _
  $region35: #{_lambda_.7} parent=0 // pred_check_branch
    %32 = sbr.rel (0) target = $region37
  $region36: #{_lambda_.7} parent=0 // pred_region
    _
  $region37: #{_lambda_.7} parent=0 // pred_fallthru
    _
  // Predicated region
  $region38: #{_lambda_.7} parent=0 // pred_check
    _
  $region39: #{_lambda_.7} parent=0 // pred_check_branch
    %34 = sbr.rel (0) target = $region41
  $region40: #{_lambda_.7} parent=0 // pred_region
    _
  $region41: #{_lambda_.7} parent=0 // pred_fallthru
    _
  %v35 = vld [vmem:[%s0] sm:$0x3]
  %v36 = vld [vmem:[%s2] sm:$0xf]
  %v37 = vld [vmem:[%s3] sm:$0x1]
  %v38 = vmul.f32 %v37, 8.0
  %v40 = vlaneseq
  %v41 = vshrl.u32 %v40, 7
  %v42 = vsub.s32 0, %v41
  %v43 = vrot.slane %v38, %v42
  %vm45 = vcmask 31744
  %v47 = vsel %vm45, %v35, 0
  %vm49 = vcmask 1043456
  %v51 = vsel %vm49, %v36, 0
  %53 = vmatprep.subr.mxu0 0.0
  %54 = vmatpush1.msra.mxu0 0.0
  %55 = vmatprep.subr.mxu0 0.0
  %56 = vmatpush1.msra.mxu0 0.0
  %57 = vmatprep.subr.mxu0 0.0
  %58 = vmatpush1.msra.mxu0 0.0
  %59 = vmatprep.subr.mxu0 0.0
  %60 = vmatpush1.msra.mxu0 0.0
  %61 = vmatprep.subr.mxu0 0.0
  %62 = vmatpush1.msra.mxu0 0.0
  %63 = vmatprep.subr.mxu0 0.0
  %64 = vmatpush1.msra.mxu0 0.0
  %65 = vmatprep.subr.mxu0 0.0
  %66 = vmatpush1.msra.mxu0 0.0
  %67 = vmatprep.subr.mxu0 0.0
  %68 = vmatpush1.msra.mxu0 0.0
  %69 = vmatprep.subr.mxu0 0.0
  %70 = vmatpush1.msra.mxu0 0.0
  %71 = vmatprep.subr.mxu0 0.0
  %72 = vmatpush1.msra.mxu0 0.0
  %73 = vmatprep.subr.mxu0 0.0
  %74 = vmatpush1.msra.mxu0 0.0
  %75 = vmatprep.subr.mxu0 0.0
  %76 = vmatpush1.msra.mxu0 0.0
  %77 = vmatprep.subr.mxu0 0.0
  %78 = vmatpush1.msra.mxu0 0.0
  %79 = vmatprep.subr.mxu0 0.0
  %80 = vmatpush1.msra.mxu0 0.0
  %81 = vmatprep.subr.mxu0 0.0
  %82 = vmatpush1.msra.mxu0 0.0
  %83 = vmatprep.subr.mxu0 0.0
  %84 = vmatpush1.msra.mxu0 %v51
  %85 = vmatprep.subr.mxu0 0.0
  %86 = vmatpush2.msra.mxu0 0.0
  %87 = vmatprep.subr.mxu0 0.0
  %88 = vmatpush2.msra.mxu0 0.0
  %89 = vmatprep.subr.mxu0 0.0
  %90 = vmatpush2.msra.mxu0 0.0
  %91 = vmatprep.subr.mxu0 0.0
  %92 = vmatpush2.msra.mxu0 0.0
  %93 = vmatprep.subr.mxu0 0.0
  %94 = vmatpush2.msra.mxu0 0.0
  %95 = vmatprep.subr.mxu0 0.0
  %96 = vmatpush2.msra.mxu0 0.0
  %97 = vmatprep.subr.mxu0 0.0
  %98 = vmatpush2.msra.mxu0 0.0
  %99 = vmatprep.subr.mxu0 0.0
  %100 = vmatpush2.msra.mxu0 0.0
  %101 = vmatprep.subr.mxu0 0.0
  %102 = vmatpush2.msra.mxu0 0.0
  %103 = vmatprep.subr.mxu0 0.0
  %104 = vmatpush2.msra.mxu0 0.0
  %105 = vmatprep.subr.mxu0 0.0
  %106 = vmatpush2.msra.mxu0 0.0
  %107 = vmatprep.subr.mxu0 0.0
  %108 = vmatpush2.msra.mxu0 0.0
  %109 = vmatprep.subr.mxu0 0.0
  %110 = vmatpush2.msra.mxu0 0.0
  %111 = vmatprep.subr.mxu0 0.0
  %112 = vmatpush2.msra.mxu0 0.0
  %113 = vmatprep.subr.mxu0 0.0
  %114 = vmatpush2.msra.mxu0 0.0
  %115 = vmatprep.subr.mxu0 0.0
  %116 = vmatpush2.msra.mxu0 0.0
  %117 = vmatprep.mubr.f32.mxu0 0.0
  %118 = vmatmul.mubr.f32.gmra.mxu0 %v47
  %v119 = vpop.f32.mrf.mxu0
  %v120 = vadd.f32 %v43, %v119
  %v121 = vpop.f32.mrf.mxu0
  %122 = vdwg.mxu0
  %vm123 = vcmask 254976
  %124 = vst.msk [vmem:[%s10] sm:$0x3] %vm123, %v120
  %v125 = vld [vmem:[%s1] sm:$0x3]
  %v126 = vld [vmem:[%s4] sm:$0xff]
  %v127 = vld [vmem:[%s4 + $0x8] sm:$0xff]
  %v128 = vld [vmem:[%s4 + $0x10] sm:$0xff]
  %v129 = vld [vmem:[%s4 + $0x18] sm:$0xff]
  %v130 = vld [vmem:[%s5] sm:$0x1]
  %v132 = vlaneseq
  %v133 = vshrl.u32 %v132, 7
  %v134 = vsub.s32 0, %v133
  %v135 = vrot.slane %v130, %v134
  %vm137 = vcmask 261120
  %v139 = vsel %vm137, %v120, 0
  %141 = vmatprep.subr.mxu0 0.0
  %142 = vmatpush1.msra.mxu0 0.0
  %143 = vmatprep.subr.mxu0 0.0
  %144 = vmatpush1.msra.mxu0 0.0
  %145 = vmatprep.subr.mxu0 0.0
  %146 = vmatpush1.msra.mxu0 0.0
  %147 = vmatprep.subr.mxu0 0.0
  %148 = vmatpush1.msra.mxu0 0.0
  %149 = vmatprep.subr.mxu0 0.0
  %150 = vmatpush1.msra.mxu0 0.0
  %151 = vmatprep.subr.mxu0 0.0
  %152 = vmatpush1.msra.mxu0 0.0
  %153 = vmatprep.subr.mxu0 0.0
  %154 = vmatpush1.msra.mxu0 0.0
  %155 = vmatprep.subr.mxu0 0.0
  %156 = vmatpush1.msra.mxu0 0.0
  %157 = vmatprep.subr.mxu0 0.0
  %158 = vmatpush1.msra.mxu0 0.0
  %159 = vmatprep.subr.mxu0 0.0
  %160 = vmatpush1.msra.mxu0 0.0
  %161 = vmatprep.subr.mxu0 0.0
  %162 = vmatpush1.msra.mxu0 0.0
  %163 = vmatprep.subr.mxu0 0.0
  %164 = vmatpush1.msra.mxu0 0.0
  %165 = vmatprep.subr.mxu0 0.0
  %166 = vmatpush1.msra.mxu0 %v129
  %167 = vmatprep.subr.mxu0 0.0
  %168 = vmatpush1.msra.mxu0 %v128
  %169 = vmatprep.subr.mxu0 0.0
  %170 = vmatpush1.msra.mxu0 %v127
  %171 = vmatprep.subr.mxu0 0.0
  %172 = vmatpush1.msra.mxu0 %v126
  %173 = vmatprep.subr.mxu0 0.0
  %174 = vmatpush2.msra.mxu0 0.0
  %175 = vmatprep.subr.mxu0 0.0
  %176 = vmatpush2.msra.mxu0 0.0
  %177 = vmatprep.subr.mxu0 0.0
  %178 = vmatpush2.msra.mxu0 0.0
  %179 = vmatprep.subr.mxu0 0.0
  %180 = vmatpush2.msra.mxu0 0.0
  %181 = vmatprep.subr.mxu0 0.0
  %182 = vmatpush2.msra.mxu0 0.0
  %183 = vmatprep.subr.mxu0 0.0
  %184 = vmatpush2.msra.mxu0 0.0
  %185 = vmatprep.subr.mxu0 0.0
  %186 = vmatpush2.msra.mxu0 0.0
  %187 = vmatprep.subr.mxu0 0.0
  %188 = vmatpush2.msra.mxu0 0.0
  %189 = vmatprep.subr.mxu0 0.0
  %190 = vmatpush2.msra.mxu0 0.0
  %191 = vmatprep.subr.mxu0 0.0
  %192 = vmatpush2.msra.mxu0 0.0
  %193 = vmatprep.subr.mxu0 0.0
  %194 = vmatpush2.msra.mxu0 0.0
  %195 = vmatprep.subr.mxu0 0.0
  %196 = vmatpush2.msra.mxu0 0.0
  %197 = vmatprep.subr.mxu0 0.0
  %198 = vmatpush2.msra.mxu0 0.0
  %199 = vmatprep.subr.mxu0 0.0
  %200 = vmatpush2.msra.mxu0 0.0
  %201 = vmatprep.subr.mxu0 0.0
  %202 = vmatpush2.msra.mxu0 0.0
  %203 = vmatprep.subr.mxu0 0.0
  %204 = vmatpush2.msra.mxu0 0.0
  %205 = vmatprep.mubr.f32.mxu0 0.0
  %206 = vmatmul.mubr.f32.gmra.mxu0 %v139
  %v207 = vpop.f32.mrf.mxu0
  %v208 = vadd.f32 %v135, %v207
  %v209 = vpop.f32.mrf.mxu0
  %210 = vdwg.mxu0
  %v211 = vmax.f32 %v208, 0.0
  %v212 = vld [vmem:[%s6] sm:$0xff]
  %v213 = vld [vmem:[%s6 + $0x8] sm:$0xff]
  %v214 = vld [vmem:[%s6 + $0x10] sm:$0xff]
  %v215 = vld [vmem:[%s6 + $0x18] sm:$0xff]
  %v216 = vld [vmem:[%s7] sm:$0x1]
  %v218 = vlaneseq
  %v219 = vshrl.u32 %v218, 7
  %v220 = vsub.s32 0, %v219
  %v221 = vrot.slane %v216, %v220
  %v224 = vsel %vm137, %v211, 0
  %226 = vmatprep.subr.mxu0 0.0
  %227 = vmatpush1.msra.mxu0 0.0
  %228 = vmatprep.subr.mxu0 0.0
  %229 = vmatpush1.msra.mxu0 0.0
  %230 = vmatprep.subr.mxu0 0.0
  %231 = vmatpush1.msra.mxu0 0.0
  %232 = vmatprep.subr.mxu0 0.0
  %233 = vmatpush1.msra.mxu0 0.0
  %234 = vmatprep.subr.mxu0 0.0
  %235 = vmatpush1.msra.mxu0 0.0
  %236 = vmatprep.subr.mxu0 0.0
  %237 = vmatpush1.msra.mxu0 0.0
  %238 = vmatprep.subr.mxu0 0.0
  %239 = vmatpush1.msra.mxu0 0.0
  %240 = vmatprep.subr.mxu0 0.0
  %241 = vmatpush1.msra.mxu0 0.0
  %242 = vmatprep.subr.mxu0 0.0
  %243 = vmatpush1.msra.mxu0 0.0
  %244 = vmatprep.subr.mxu0 0.0
  %245 = vmatpush1.msra.mxu0 0.0
  %246 = vmatprep.subr.mxu0 0.0
  %247 = vmatpush1.msra.mxu0 0.0
  %248 = vmatprep.subr.mxu0 0.0
  %249 = vmatpush1.msra.mxu0 0.0
  %250 = vmatprep.subr.mxu0 0.0
  %251 = vmatpush1.msra.mxu0 %v215
  %252 = vmatprep.subr.mxu0 0.0
  %253 = vmatpush1.msra.mxu0 %v214
  %254 = vmatprep.subr.mxu0 0.0
  %255 = vmatpush1.msra.mxu0 %v213
  %256 = vmatprep.subr.mxu0 0.0
  %257 = vmatpush1.msra.mxu0 %v212
  %258 = vmatprep.subr.mxu0 0.0
  %259 = vmatpush2.msra.mxu0 0.0
  %260 = vmatprep.subr.mxu0 0.0
  %261 = vmatpush2.msra.mxu0 0.0
  %262 = vmatprep.subr.mxu0 0.0
  %263 = vmatpush2.msra.mxu0 0.0
  %264 = vmatprep.subr.mxu0 0.0
  %265 = vmatpush2.msra.mxu0 0.0
  %266 = vmatprep.subr.mxu0 0.0
  %267 = vmatpush2.msra.mxu0 0.0
  %268 = vmatprep.subr.mxu0 0.0
  %269 = vmatpush2.msra.mxu0 0.0
  %270 = vmatprep.subr.mxu0 0.0
  %271 = vmatpush2.msra.mxu0 0.0
  %272 = vmatprep.subr.mxu0 0.0
  %273 = vmatpush2.msra.mxu0 0.0
  %274 = vmatprep.subr.mxu0 0.0
  %275 = vmatpush2.msra.mxu0 0.0
  %276 = vmatprep.subr.mxu0 0.0
  %277 = vmatpush2.msra.mxu0 0.0
  %278 = vmatprep.subr.mxu0 0.0
  %279 = vmatpush2.msra.mxu0 0.0
  %280 = vmatprep.subr.mxu0 0.0
  %281 = vmatpush2.msra.mxu0 0.0
  %282 = vmatprep.subr.mxu0 0.0
  %283 = vmatpush2.msra.mxu0 0.0
  %284 = vmatprep.subr.mxu0 0.0
  %285 = vmatpush2.msra.mxu0 0.0
  %286 = vmatprep.subr.mxu0 0.0
  %287 = vmatpush2.msra.mxu0 0.0
  %288 = vmatprep.subr.mxu0 0.0
  %289 = vmatpush2.msra.mxu0 0.0
  %290 = vmatprep.mubr.f32.mxu0 0.0
  %291 = vmatmul.mubr.f32.gmra.mxu0 %v224
  %v292 = vpop.f32.mrf.mxu0
  %v293 = vadd.f32 %v221, %v292
  %v294 = vpop.f32.mrf.mxu0
  %295 = vdwg.mxu0
  %v296 = vmax.f32 %v293, 0.0
  %v297 = vld [vmem:[%s8] sm:$0xff]
  %v298 = vld [vmem:[%s8 + $0x8] sm:$0xff]
  %v299 = vld [vmem:[%s8 + $0x10] sm:$0xff]
  %v300 = vld [vmem:[%s8 + $0x18] sm:$0xff]
  %v301 = vld [vmem:[%s9] sm:$0x1]
  %v303 = vlaneseq
  %v304 = vshrl.u32 %v303, 7
  %v305 = vsub.s32 0, %v304
  %v306 = vrot.slane %v301, %v305
  %v309 = vsel %vm137, %v296, 0
  %311 = vmatprep.subr.mxu0 0.0
  %312 = vmatpush1.msra.mxu0 0.0
  %313 = vmatprep.subr.mxu0 0.0
  %314 = vmatpush1.msra.mxu0 0.0
  %315 = vmatprep.subr.mxu0 0.0
  %316 = vmatpush1.msra.mxu0 0.0
  %317 = vmatprep.subr.mxu0 0.0
  %318 = vmatpush1.msra.mxu0 0.0
  %319 = vmatprep.subr.mxu0 0.0
  %320 = vmatpush1.msra.mxu0 0.0
  %321 = vmatprep.subr.mxu0 0.0
  %322 = vmatpush1.msra.mxu0 0.0
  %323 = vmatprep.subr.mxu0 0.0
  %324 = vmatpush1.msra.mxu0 0.0
  %325 = vmatprep.subr.mxu0 0.0
  %326 = vmatpush1.msra.mxu0 0.0
  %327 = vmatprep.subr.mxu0 0.0
  %328 = vmatpush1.msra.mxu0 0.0
  %329 = vmatprep.subr.mxu0 0.0
  %330 = vmatpush1.msra.mxu0 0.0
  %331 = vmatprep.subr.mxu0 0.0
  %332 = vmatpush1.msra.mxu0 0.0
  %333 = vmatprep.subr.mxu0 0.0
  %334 = vmatpush1.msra.mxu0 0.0
  %335 = vmatprep.subr.mxu0 0.0
  %336 = vmatpush1.msra.mxu0 %v300
  %337 = vmatprep.subr.mxu0 0.0
  %338 = vmatpush1.msra.mxu0 %v299
  %339 = vmatprep.subr.mxu0 0.0
  %340 = vmatpush1.msra.mxu0 %v298
  %341 = vmatprep.subr.mxu0 0.0
  %342 = vmatpush1.msra.mxu0 %v297
  %343 = vmatprep.subr.mxu0 0.0
  %344 = vmatpush2.msra.mxu0 0.0
  %345 = vmatprep.subr.mxu0 0.0
  %346 = vmatpush2.msra.mxu0 0.0
  %347 = vmatprep.subr.mxu0 0.0
  %348 = vmatpush2.msra.mxu0 0.0
  %349 = vmatprep.subr.mxu0 0.0
  %350 = vmatpush2.msra.mxu0 0.0
  %351 = vmatprep.subr.mxu0 0.0
  %352 = vmatpush2.msra.mxu0 0.0
  %353 = vmatprep.subr.mxu0 0.0
  %354 = vmatpush2.msra.mxu0 0.0
  %355 = vmatprep.subr.mxu0 0.0
  %356 = vmatpush2.msra.mxu0 0.0
  %357 = vmatprep.subr.mxu0 0.0
  %358 = vmatpush2.msra.mxu0 0.0
  %359 = vmatprep.subr.mxu0 0.0
  %360 = vmatpush2.msra.mxu0 0.0
  %361 = vmatprep.subr.mxu0 0.0
  %362 = vmatpush2.msra.mxu0 0.0
  %363 = vmatprep.subr.mxu0 0.0
  %364 = vmatpush2.msra.mxu0 0.0
  %365 = vmatprep.subr.mxu0 0.0
  %366 = vmatpush2.msra.mxu0 0.0
  %367 = vmatprep.subr.mxu0 0.0
  %368 = vmatpush2.msra.mxu0 0.0
  %369 = vmatprep.subr.mxu0 0.0
  %370 = vmatpush2.msra.mxu0 0.0
  %371 = vmatprep.subr.mxu0 0.0
  %372 = vmatpush2.msra.mxu0 0.0
  %373 = vmatprep.subr.mxu0 0.0
  %374 = vmatpush2.msra.mxu0 0.0
  %375 = vmatprep.mubr.f32.mxu0 0.0
  %376 = vmatmul.mubr.f32.gmra.mxu0 %v309
  %v377 = vpop.f32.mrf.mxu0
  %v378 = vadd.f32 %v306, %v377
  %v379 = vpop.f32.mrf.mxu0
  %380 = vdwg.mxu0
  %382 = vset.pattern.permute.xlu0 0
  %383 = vperm.xlu0 %382, %v125
  %v384 = vpop.permute.xlu0 %383
  %v386 = vmul.f32 %v378, %v384
  %v387 = vadd.f32 %v386, 0.0
  %388 = vset.pattern.permute.xlu0 1
  %389 = vperm.xlu0 %388, %v125
  %v390 = vpop.permute.xlu0 %389
  %v392 = vmul.f32 %v378, %v390
  %394 = vrot.lane.b32.xlu0 %v392, 96
  %v395 = vpop.permute.xlu0 %394
  %v397 = vadd.f32 %v387, %v395
  %398 = vset.pattern.permute.xlu0 2
  %399 = vperm.xlu0 %398, %v125
  %v400 = vpop.permute.xlu0 %399
  %v402 = vmul.f32 %v378, %v400
  %404 = vrot.lane.b32.xlu0 %v402, 64
  %v405 = vpop.permute.xlu0 %404
  %v407 = vadd.f32 %v397, %v405
  %408 = vset.pattern.permute.xlu0 3
  %409 = vperm.xlu0 %408, %v125
  %v410 = vpop.permute.xlu0 %409
  %v412 = vmul.f32 %v378, %v410
  %414 = vrot.lane.b32.xlu0 %v412, 32
  %v415 = vpop.permute.xlu0 %414
  %v417 = vadd.f32 %v407, %v415
  %v418 = vadd.f32 %v120, %v417
  %s419 = scalar_lea.vmem %s10, 2
  %420 = vst.msk [vmem:[%s419] sm:$0x3] %vm123, %v418
  %s421 = scalar_lea.vmem %s1, 2
  %v422 = vld [vmem:[%s421] sm:$0x3]
  %v423 = vld [vmem:[%s4] sm:$0xff]
  %v424 = vld [vmem:[%s4 + $0x8] sm:$0xff]
  %v425 = vld [vmem:[%s4 + $0x10] sm:$0xff]
  %v426 = vld [vmem:[%s4 + $0x18] sm:$0xff]
  %v427 = vld [vmem:[%s5] sm:$0x1]
  %v429 = vlaneseq
  %v430 = vshrl.u32 %v429, 7
  %v431 = vsub.s32 0, %v430
  %v432 = vrot.slane %v427, %v431
  %v435 = vsel %vm137, %v418, 0
  %437 = vmatprep.subr.mxu0 0.0
  %438 = vmatpush1.msra.mxu0 0.0
  %439 = vmatprep.subr.mxu0 0.0
  %440 = vmatpush1.msra.mxu0 0.0
  %441 = vmatprep.subr.mxu0 0.0
  %442 = vmatpush1.msra.mxu0 0.0
  %443 = vmatprep.subr.mxu0 0.0
  %444 = vmatpush1.msra.mxu0 0.0
  %445 = vmatprep.subr.mxu0 0.0
  %446 = vmatpush1.msra.mxu0 0.0
  %447 = vmatprep.subr.mxu0 0.0
  %448 = vmatpush1.msra.mxu0 0.0
  %449 = vmatprep.subr.mxu0 0.0
  %450 = vmatpush1.msra.mxu0 0.0
  %451 = vmatprep.subr.mxu0 0.0
  %452 = vmatpush1.msra.mxu0 0.0
  %453 = vmatprep.subr.mxu0 0.0
  %454 = vmatpush1.msra.mxu0 0.0
  %455 = vmatprep.subr.mxu0 0.0
  %456 = vmatpush1.msra.mxu0 0.0
  %457 = vmatprep.subr.mxu0 0.0
  %458 = vmatpush1.msra.mxu0 0.0
  %459 = vmatprep.subr.mxu0 0.0
  %460 = vmatpush1.msra.mxu0 0.0
  %461 = vmatprep.subr.mxu0 0.0
  %462 = vmatpush1.msra.mxu0 %v426
  %463 = vmatprep.subr.mxu0 0.0
  %464 = vmatpush1.msra.mxu0 %v425
  %465 = vmatprep.subr.mxu0 0.0
  %466 = vmatpush1.msra.mxu0 %v424
  %467 = vmatprep.subr.mxu0 0.0
  %468 = vmatpush1.msra.mxu0 %v423
  %469 = vmatprep.subr.mxu0 0.0
  %470 = vmatpush2.msra.mxu0 0.0
  %471 = vmatprep.subr.mxu0 0.0
  %472 = vmatpush2.msra.mxu0 0.0
  %473 = vmatprep.subr.mxu0 0.0
  %474 = vmatpush2.msra.mxu0 0.0
  %475 = vmatprep.subr.mxu0 0.0
  %476 = vmatpush2.msra.mxu0 0.0
  %477 = vmatprep.subr.mxu0 0.0
  %478 = vmatpush2.msra.mxu0 0.0
  %479 = vmatprep.subr.mxu0 0.0
  %480 = vmatpush2.msra.mxu0 0.0
  %481 = vmatprep.subr.mxu0 0.0
  %482 = vmatpush2.msra.mxu0 0.0
  %483 = vmatprep.subr.mxu0 0.0
  %484 = vmatpush2.msra.mxu0 0.0
  %485 = vmatprep.subr.mxu0 0.0
  %486 = vmatpush2.msra.mxu0 0.0
  %487 = vmatprep.subr.mxu0 0.0
  %488 = vmatpush2.msra.mxu0 0.0
  %489 = vmatprep.subr.mxu0 0.0
  %490 = vmatpush2.msra.mxu0 0.0
  %491 = vmatprep.subr.mxu0 0.0
  %492 = vmatpush2.msra.mxu0 0.0
  %493 = vmatprep.subr.mxu0 0.0
  %494 = vmatpush2.msra.mxu0 0.0
  %495 = vmatprep.subr.mxu0 0.0
  %496 = vmatpush2.msra.mxu0 0.0
  %497 = vmatprep.subr.mxu0 0.0
  %498 = vmatpush2.msra.mxu0 0.0
  %499 = vmatprep.subr.mxu0 0.0
  %500 = vmatpush2.msra.mxu0 0.0
  %501 = vmatprep.mubr.f32.mxu0 0.0
  %502 = vmatmul.mubr.f32.gmra.mxu0 %v435
  %v503 = vpop.f32.mrf.mxu0
  %v504 = vadd.f32 %v432, %v503
  %v505 = vpop.f32.mrf.mxu0
  %506 = vdwg.mxu0
  %v507 = vmax.f32 %v504, 0.0
  %v508 = vld [vmem:[%s6] sm:$0xff]
  %v509 = vld [vmem:[%s6 + $0x8] sm:$0xff]
  %v510 = vld [vmem:[%s6 + $0x10] sm:$0xff]
  %v511 = vld [vmem:[%s6 + $0x18] sm:$0xff]
  %v512 = vld [vmem:[%s7] sm:$0x1]
  %v514 = vlaneseq
  %v515 = vshrl.u32 %v514, 7
  %v516 = vsub.s32 0, %v515
  %v517 = vrot.slane %v512, %v516
  %v520 = vsel %vm137, %v507, 0
  %522 = vmatprep.subr.mxu0 0.0
  %523 = vmatpush1.msra.mxu0 0.0
  %524 = vmatprep.subr.mxu0 0.0
  %525 = vmatpush1.msra.mxu0 0.0
  %526 = vmatprep.subr.mxu0 0.0
  %527 = vmatpush1.msra.mxu0 0.0
  %528 = vmatprep.subr.mxu0 0.0
  %529 = vmatpush1.msra.mxu0 0.0
  %530 = vmatprep.subr.mxu0 0.0
  %531 = vmatpush1.msra.mxu0 0.0
  %532 = vmatprep.subr.mxu0 0.0
  %533 = vmatpush1.msra.mxu0 0.0
  %534 = vmatprep.subr.mxu0 0.0
  %535 = vmatpush1.msra.mxu0 0.0
  %536 = vmatprep.subr.mxu0 0.0
  %537 = vmatpush1.msra.mxu0 0.0
  %538 = vmatprep.subr.mxu0 0.0
  %539 = vmatpush1.msra.mxu0 0.0
  %540 = vmatprep.subr.mxu0 0.0
  %541 = vmatpush1.msra.mxu0 0.0
  %542 = vmatprep.subr.mxu0 0.0
  %543 = vmatpush1.msra.mxu0 0.0
  %544 = vmatprep.subr.mxu0 0.0
  %545 = vmatpush1.msra.mxu0 0.0
  %546 = vmatprep.subr.mxu0 0.0
  %547 = vmatpush1.msra.mxu0 %v511
  %548 = vmatprep.subr.mxu0 0.0
  %549 = vmatpush1.msra.mxu0 %v510
  %550 = vmatprep.subr.mxu0 0.0
  %551 = vmatpush1.msra.mxu0 %v509
  %552 = vmatprep.subr.mxu0 0.0
  %553 = vmatpush1.msra.mxu0 %v508
  %554 = vmatprep.subr.mxu0 0.0
  %555 = vmatpush2.msra.mxu0 0.0
  %556 = vmatprep.subr.mxu0 0.0
  %557 = vmatpush2.msra.mxu0 0.0
  %558 = vmatprep.subr.mxu0 0.0
  %559 = vmatpush2.msra.mxu0 0.0
  %560 = vmatprep.subr.mxu0 0.0
  %561 = vmatpush2.msra.mxu0 0.0
  %562 = vmatprep.subr.mxu0 0.0
  %563 = vmatpush2.msra.mxu0 0.0
  %564 = vmatprep.subr.mxu0 0.0
  %565 = vmatpush2.msra.mxu0 0.0
  %566 = vmatprep.subr.mxu0 0.0
  %567 = vmatpush2.msra.mxu0 0.0
  %568 = vmatprep.subr.mxu0 0.0
  %569 = vmatpush2.msra.mxu0 0.0
  %570 = vmatprep.subr.mxu0 0.0
  %571 = vmatpush2.msra.mxu0 0.0
  %572 = vmatprep.subr.mxu0 0.0
  %573 = vmatpush2.msra.mxu0 0.0
  %574 = vmatprep.subr.mxu0 0.0
  %575 = vmatpush2.msra.mxu0 0.0
  %576 = vmatprep.subr.mxu0 0.0
  %577 = vmatpush2.msra.mxu0 0.0
  %578 = vmatprep.subr.mxu0 0.0
  %579 = vmatpush2.msra.mxu0 0.0
  %580 = vmatprep.subr.mxu0 0.0
  %581 = vmatpush2.msra.mxu0 0.0
  %582 = vmatprep.subr.mxu0 0.0
  %583 = vmatpush2.msra.mxu0 0.0
  %584 = vmatprep.subr.mxu0 0.0
  %585 = vmatpush2.msra.mxu0 0.0
  %586 = vmatprep.mubr.f32.mxu0 0.0
  %587 = vmatmul.mubr.f32.gmra.mxu0 %v520
  %v588 = vpop.f32.mrf.mxu0
  %v589 = vadd.f32 %v517, %v588
  %v590 = vpop.f32.mrf.mxu0
  %591 = vdwg.mxu0
  %v592 = vmax.f32 %v589, 0.0
  %v593 = vld [vmem:[%s8] sm:$0xff]
  %v594 = vld [vmem:[%s8 + $0x8] sm:$0xff]
  %v595 = vld [vmem:[%s8 + $0x10] sm:$0xff]
  %v596 = vld [vmem:[%s8 + $0x18] sm:$0xff]
  %v597 = vld [vmem:[%s9] sm:$0x1]
  %v599 = vlaneseq
  %v600 = vshrl.u32 %v599, 7
  %v601 = vsub.s32 0, %v600
  %v602 = vrot.slane %v597, %v601
  %v605 = vsel %vm137, %v592, 0
  %607 = vmatprep.subr.mxu0 0.0
  %608 = vmatpush1.msra.mxu0 0.0
  %609 = vmatprep.subr.mxu0 0.0
  %610 = vmatpush1.msra.mxu0 0.0
  %611 = vmatprep.subr.mxu0 0.0
  %612 = vmatpush1.msra.mxu0 0.0
  %613 = vmatprep.subr.mxu0 0.0
  %614 = vmatpush1.msra.mxu0 0.0
  %615 = vmatprep.subr.mxu0 0.0
  %616 = vmatpush1.msra.mxu0 0.0
  %617 = vmatprep.subr.mxu0 0.0
  %618 = vmatpush1.msra.mxu0 0.0
  %619 = vmatprep.subr.mxu0 0.0
  %620 = vmatpush1.msra.mxu0 0.0
  %621 = vmatprep.subr.mxu0 0.0
  %622 = vmatpush1.msra.mxu0 0.0
  %623 = vmatprep.subr.mxu0 0.0
  %624 = vmatpush1.msra.mxu0 0.0
  %625 = vmatprep.subr.mxu0 0.0
  %626 = vmatpush1.msra.mxu0 0.0
  %627 = vmatprep.subr.mxu0 0.0
  %628 = vmatpush1.msra.mxu0 0.0
  %629 = vmatprep.subr.mxu0 0.0
  %630 = vmatpush1.msra.mxu0 0.0
  %631 = vmatprep.subr.mxu0 0.0
  %632 = vmatpush1.msra.mxu0 %v596
  %633 = vmatprep.subr.mxu0 0.0
  %634 = vmatpush1.msra.mxu0 %v595
  %635 = vmatprep.subr.mxu0 0.0
  %636 = vmatpush1.msra.mxu0 %v594
  %637 = vmatprep.subr.mxu0 0.0
  %638 = vmatpush1.msra.mxu0 %v593
  %639 = vmatprep.subr.mxu0 0.0
  %640 = vmatpush2.msra.mxu0 0.0
  %641 = vmatprep.subr.mxu0 0.0
  %642 = vmatpush2.msra.mxu0 0.0
  %643 = vmatprep.subr.mxu0 0.0
  %644 = vmatpush2.msra.mxu0 0.0
  %645 = vmatprep.subr.mxu0 0.0
  %646 = vmatpush2.msra.mxu0 0.0
  %647 = vmatprep.subr.mxu0 0.0
  %648 = vmatpush2.msra.mxu0 0.0
  %649 = vmatprep.subr.mxu0 0.0
  %650 = vmatpush2.msra.mxu0 0.0
  %651 = vmatprep.subr.mxu0 0.0
  %652 = vmatpush2.msra.mxu0 0.0
  %653 = vmatprep.subr.mxu0 0.0
  %654 = vmatpush2.msra.mxu0 0.0
  %655 = vmatprep.subr.mxu0 0.0
  %656 = vmatpush2.msra.mxu0 0.0
  %657 = vmatprep.subr.mxu0 0.0
  %658 = vmatpush2.msra.mxu0 0.0
  %659 = vmatprep.subr.mxu0 0.0
  %660 = vmatpush2.msra.mxu0 0.0
  %661 = vmatprep.subr.mxu0 0.0
  %662 = vmatpush2.msra.mxu0 0.0
  %663 = vmatprep.subr.mxu0 0.0
  %664 = vmatpush2.msra.mxu0 0.0
  %665 = vmatprep.subr.mxu0 0.0
  %666 = vmatpush2.msra.mxu0 0.0
  %667 = vmatprep.subr.mxu0 0.0
  %668 = vmatpush2.msra.mxu0 0.0
  %669 = vmatprep.subr.mxu0 0.0
  %670 = vmatpush2.msra.mxu0 0.0
  %671 = vmatprep.mubr.f32.mxu0 0.0
  %672 = vmatmul.mubr.f32.gmra.mxu0 %v605
  %v673 = vpop.f32.mrf.mxu0
  %v674 = vadd.f32 %v602, %v673
  %v675 = vpop.f32.mrf.mxu0
  %676 = vdwg.mxu0
  %678 = vset.pattern.permute.xlu0 0
  %679 = vperm.xlu0 %678, %v422
  %v680 = vpop.permute.xlu0 %679
  %v682 = vmul.f32 %v674, %v680
  %v683 = vadd.f32 %v682, 0.0
  %684 = vset.pattern.permute.xlu0 1
  %685 = vperm.xlu0 %684, %v422
  %v686 = vpop.permute.xlu0 %685
  %v688 = vmul.f32 %v674, %v686
  %690 = vrot.lane.b32.xlu0 %v688, 96
  %v691 = vpop.permute.xlu0 %690
  %v693 = vadd.f32 %v683, %v691
  %694 = vset.pattern.permute.xlu0 2
  %695 = vperm.xlu0 %694, %v422
  %v696 = vpop.permute.xlu0 %695
  %v698 = vmul.f32 %v674, %v696
  %700 = vrot.lane.b32.xlu0 %v698, 64
  %v701 = vpop.permute.xlu0 %700
  %v703 = vadd.f32 %v693, %v701
  %704 = vset.pattern.permute.xlu0 3
  %705 = vperm.xlu0 %704, %v422
  %v706 = vpop.permute.xlu0 %705
  %v708 = vmul.f32 %v674, %v706
  %710 = vrot.lane.b32.xlu0 %v708, 32
  %v711 = vpop.permute.xlu0 %710
  %v713 = vadd.f32 %v703, %v711
  %v714 = vadd.f32 %v418, %v713
  %s715 = scalar_lea.vmem %s10, 4
  %716 = vst.msk [vmem:[%s715] sm:$0x3] %vm123, %v714
  %s717 = scalar_lea.vmem %s1, 4
  %v718 = vld [vmem:[%s717] sm:$0x3]
  %v719 = vld [vmem:[%s4] sm:$0xff]
  %v720 = vld [vmem:[%s4 + $0x8] sm:$0xff]
  %v721 = vld [vmem:[%s4 + $0x10] sm:$0xff]
  %v722 = vld [vmem:[%s4 + $0x18] sm:$0xff]
  %v723 = vld [vmem:[%s5] sm:$0x1]
  %v725 = vlaneseq
  %v726 = vshrl.u32 %v725, 7
  %v727 = vsub.s32 0, %v726
  %v728 = vrot.slane %v723, %v727
  %v731 = vsel %vm137, %v714, 0
  %733 = vmatprep.subr.mxu0 0.0
  %734 = vmatpush1.msra.mxu0 0.0
  %735 = vmatprep.subr.mxu0 0.0
  %736 = vmatpush1.msra.mxu0 0.0
  %737 = vmatprep.subr.mxu0 0.0
  %738 = vmatpush1.msra.mxu0 0.0
  %739 = vmatprep.subr.mxu0 0.0
  %740 = vmatpush1.msra.mxu0 0.0
  %741 = vmatprep.subr.mxu0 0.0
  %742 = vmatpush1.msra.mxu0 0.0
  %743 = vmatprep.subr.mxu0 0.0
  %744 = vmatpush1.msra.mxu0 0.0
  %745 = vmatprep.subr.mxu0 0.0
  %746 = vmatpush1.msra.mxu0 0.0
  %747 = vmatprep.subr.mxu0 0.0
  %748 = vmatpush1.msra.mxu0 0.0
  %749 = vmatprep.subr.mxu0 0.0
  %750 = vmatpush1.msra.mxu0 0.0
  %751 = vmatprep.subr.mxu0 0.0
  %752 = vmatpush1.msra.mxu0 0.0
  %753 = vmatprep.subr.mxu0 0.0
  %754 = vmatpush1.msra.mxu0 0.0
  %755 = vmatprep.subr.mxu0 0.0
  %756 = vmatpush1.msra.mxu0 0.0
  %757 = vmatprep.subr.mxu0 0.0
  %758 = vmatpush1.msra.mxu0 %v722
  %759 = vmatprep.subr.mxu0 0.0
  %760 = vmatpush1.msra.mxu0 %v721
  %761 = vmatprep.subr.mxu0 0.0
  %762 = vmatpush1.msra.mxu0 %v720
  %763 = vmatprep.subr.mxu0 0.0
  %764 = vmatpush1.msra.mxu0 %v719
  %765 = vmatprep.subr.mxu0 0.0
  %766 = vmatpush2.msra.mxu0 0.0
  %767 = vmatprep.subr.mxu0 0.0
  %768 = vmatpush2.msra.mxu0 0.0
  %769 = vmatprep.subr.mxu0 0.0
  %770 = vmatpush2.msra.mxu0 0.0
  %771 = vmatprep.subr.mxu0 0.0
  %772 = vmatpush2.msra.mxu0 0.0
  %773 = vmatprep.subr.mxu0 0.0
  %774 = vmatpush2.msra.mxu0 0.0
  %775 = vmatprep.subr.mxu0 0.0
  %776 = vmatpush2.msra.mxu0 0.0
  %777 = vmatprep.subr.mxu0 0.0
  %778 = vmatpush2.msra.mxu0 0.0
  %779 = vmatprep.subr.mxu0 0.0
  %780 = vmatpush2.msra.mxu0 0.0
  %781 = vmatprep.subr.mxu0 0.0
  %782 = vmatpush2.msra.mxu0 0.0
  %783 = vmatprep.subr.mxu0 0.0
  %784 = vmatpush2.msra.mxu0 0.0
  %785 = vmatprep.subr.mxu0 0.0
  %786 = vmatpush2.msra.mxu0 0.0
  %787 = vmatprep.subr.mxu0 0.0
  %788 = vmatpush2.msra.mxu0 0.0
  %789 = vmatprep.subr.mxu0 0.0
  %790 = vmatpush2.msra.mxu0 0.0
  %791 = vmatprep.subr.mxu0 0.0
  %792 = vmatpush2.msra.mxu0 0.0
  %793 = vmatprep.subr.mxu0 0.0
  %794 = vmatpush2.msra.mxu0 0.0
  %795 = vmatprep.subr.mxu0 0.0
  %796 = vmatpush2.msra.mxu0 0.0
  %797 = vmatprep.mubr.f32.mxu0 0.0
  %798 = vmatmul.mubr.f32.gmra.mxu0 %v731
  %v799 = vpop.f32.mrf.mxu0
  %v800 = vadd.f32 %v728, %v799
  %v801 = vpop.f32.mrf.mxu0
  %802 = vdwg.mxu0
  %v803 = vmax.f32 %v800, 0.0
  %v804 = vld [vmem:[%s6] sm:$0xff]
  %v805 = vld [vmem:[%s6 + $0x8] sm:$0xff]
  %v806 = vld [vmem:[%s6 + $0x10] sm:$0xff]
  %v807 = vld [vmem:[%s6 + $0x18] sm:$0xff]
  %v808 = vld [vmem:[%s7] sm:$0x1]
  %v810 = vlaneseq
  %v811 = vshrl.u32 %v810, 7
  %v812 = vsub.s32 0, %v811
  %v813 = vrot.slane %v808, %v812
  %v816 = vsel %vm137, %v803, 0
  %818 = vmatprep.subr.mxu0 0.0
  %819 = vmatpush1.msra.mxu0 0.0
  %820 = vmatprep.subr.mxu0 0.0
  %821 = vmatpush1.msra.mxu0 0.0
  %822 = vmatprep.subr.mxu0 0.0
  %823 = vmatpush1.msra.mxu0 0.0
  %824 = vmatprep.subr.mxu0 0.0
  %825 = vmatpush1.msra.mxu0 0.0
  %826 = vmatprep.subr.mxu0 0.0
  %827 = vmatpush1.msra.mxu0 0.0
  %828 = vmatprep.subr.mxu0 0.0
  %829 = vmatpush1.msra.mxu0 0.0
  %830 = vmatprep.subr.mxu0 0.0
  %831 = vmatpush1.msra.mxu0 0.0
  %832 = vmatprep.subr.mxu0 0.0
  %833 = vmatpush1.msra.mxu0 0.0
  %834 = vmatprep.subr.mxu0 0.0
  %835 = vmatpush1.msra.mxu0 0.0
  %836 = vmatprep.subr.mxu0 0.0
  %837 = vmatpush1.msra.mxu0 0.0
  %838 = vmatprep.subr.mxu0 0.0
  %839 = vmatpush1.msra.mxu0 0.0
  %840 = vmatprep.subr.mxu0 0.0
  %841 = vmatpush1.msra.mxu0 0.0
  %842 = vmatprep.subr.mxu0 0.0
  %843 = vmatpush1.msra.mxu0 %v807
  %844 = vmatprep.subr.mxu0 0.0
  %845 = vmatpush1.msra.mxu0 %v806
  %846 = vmatprep.subr.mxu0 0.0
  %847 = vmatpush1.msra.mxu0 %v805
  %848 = vmatprep.subr.mxu0 0.0
  %849 = vmatpush1.msra.mxu0 %v804
  %850 = vmatprep.subr.mxu0 0.0
  %851 = vmatpush2.msra.mxu0 0.0
  %852 = vmatprep.subr.mxu0 0.0
  %853 = vmatpush2.msra.mxu0 0.0
  %854 = vmatprep.subr.mxu0 0.0
  %855 = vmatpush2.msra.mxu0 0.0
  %856 = vmatprep.subr.mxu0 0.0
  %857 = vmatpush2.msra.mxu0 0.0
  %858 = vmatprep.subr.mxu0 0.0
  %859 = vmatpush2.msra.mxu0 0.0
  %860 = vmatprep.subr.mxu0 0.0
  %861 = vmatpush2.msra.mxu0 0.0
  %862 = vmatprep.subr.mxu0 0.0
  %863 = vmatpush2.msra.mxu0 0.0
  %864 = vmatprep.subr.mxu0 0.0
  %865 = vmatpush2.msra.mxu0 0.0
  %866 = vmatprep.subr.mxu0 0.0
  %867 = vmatpush2.msra.mxu0 0.0
  %868 = vmatprep.subr.mxu0 0.0
  %869 = vmatpush2.msra.mxu0 0.0
  %870 = vmatprep.subr.mxu0 0.0
  %871 = vmatpush2.msra.mxu0 0.0
  %872 = vmatprep.subr.mxu0 0.0
  %873 = vmatpush2.msra.mxu0 0.0
  %874 = vmatprep.subr.mxu0 0.0
  %875 = vmatpush2.msra.mxu0 0.0
  %876 = vmatprep.subr.mxu0 0.0
  %877 = vmatpush2.msra.mxu0 0.0
  %878 = vmatprep.subr.mxu0 0.0
  %879 = vmatpush2.msra.mxu0 0.0
  %880 = vmatprep.subr.mxu0 0.0
  %881 = vmatpush2.msra.mxu0 0.0
  %882 = vmatprep.mubr.f32.mxu0 0.0
  %883 = vmatmul.mubr.f32.gmra.mxu0 %v816
  %v884 = vpop.f32.mrf.mxu0
  %v885 = vadd.f32 %v813, %v884
  %v886 = vpop.f32.mrf.mxu0
  %887 = vdwg.mxu0
  %v888 = vmax.f32 %v885, 0.0
  %v889 = vld [vmem:[%s8] sm:$0xff]
  %v890 = vld [vmem:[%s8 + $0x8] sm:$0xff]
  %v891 = vld [vmem:[%s8 + $0x10] sm:$0xff]
  %v892 = vld [vmem:[%s8 + $0x18] sm:$0xff]
  %v893 = vld [vmem:[%s9] sm:$0x1]
  %v895 = vlaneseq
  %v896 = vshrl.u32 %v895, 7
  %v897 = vsub.s32 0, %v896
  %v898 = vrot.slane %v893, %v897
  %v901 = vsel %vm137, %v888, 0
  %903 = vmatprep.subr.mxu0 0.0
  %904 = vmatpush1.msra.mxu0 0.0
  %905 = vmatprep.subr.mxu0 0.0
  %906 = vmatpush1.msra.mxu0 0.0
  %907 = vmatprep.subr.mxu0 0.0
  %908 = vmatpush1.msra.mxu0 0.0
  %909 = vmatprep.subr.mxu0 0.0
  %910 = vmatpush1.msra.mxu0 0.0
  %911 = vmatprep.subr.mxu0 0.0
  %912 = vmatpush1.msra.mxu0 0.0
  %913 = vmatprep.subr.mxu0 0.0
  %914 = vmatpush1.msra.mxu0 0.0
  %915 = vmatprep.subr.mxu0 0.0
  %916 = vmatpush1.msra.mxu0 0.0
  %917 = vmatprep.subr.mxu0 0.0
  %918 = vmatpush1.msra.mxu0 0.0
  %919 = vmatprep.subr.mxu0 0.0
  %920 = vmatpush1.msra.mxu0 0.0
  %921 = vmatprep.subr.mxu0 0.0
  %922 = vmatpush1.msra.mxu0 0.0
  %923 = vmatprep.subr.mxu0 0.0
  %924 = vmatpush1.msra.mxu0 0.0
  %925 = vmatprep.subr.mxu0 0.0
  %926 = vmatpush1.msra.mxu0 0.0
  %927 = vmatprep.subr.mxu0 0.0
  %928 = vmatpush1.msra.mxu0 %v892
  %929 = vmatprep.subr.mxu0 0.0
  %930 = vmatpush1.msra.mxu0 %v891
  %931 = vmatprep.subr.mxu0 0.0
  %932 = vmatpush1.msra.mxu0 %v890
  %933 = vmatprep.subr.mxu0 0.0
  %934 = vmatpush1.msra.mxu0 %v889
  %935 = vmatprep.subr.mxu0 0.0
  %936 = vmatpush2.msra.mxu0 0.0
  %937 = vmatprep.subr.mxu0 0.0
  %938 = vmatpush2.msra.mxu0 0.0
  %939 = vmatprep.subr.mxu0 0.0
  %940 = vmatpush2.msra.mxu0 0.0
  %941 = vmatprep.subr.mxu0 0.0
  %942 = vmatpush2.msra.mxu0 0.0
  %943 = vmatprep.subr.mxu0 0.0
  %944 = vmatpush2.msra.mxu0 0.0
  %945 = vmatprep.subr.mxu0 0.0
  %946 = vmatpush2.msra.mxu0 0.0
  %947 = vmatprep.subr.mxu0 0.0
  %948 = vmatpush2.msra.mxu0 0.0
  %949 = vmatprep.subr.mxu0 0.0
  %950 = vmatpush2.msra.mxu0 0.0
  %951 = vmatprep.subr.mxu0 0.0
  %952 = vmatpush2.msra.mxu0 0.0
  %953 = vmatprep.subr.mxu0 0.0
  %954 = vmatpush2.msra.mxu0 0.0
  %955 = vmatprep.subr.mxu0 0.0
  %956 = vmatpush2.msra.mxu0 0.0
  %957 = vmatprep.subr.mxu0 0.0
  %958 = vmatpush2.msra.mxu0 0.0
  %959 = vmatprep.subr.mxu0 0.0
  %960 = vmatpush2.msra.mxu0 0.0
  %961 = vmatprep.subr.mxu0 0.0
  %962 = vmatpush2.msra.mxu0 0.0
  %963 = vmatprep.subr.mxu0 0.0
  %964 = vmatpush2.msra.mxu0 0.0
  %965 = vmatprep.subr.mxu0 0.0
  %966 = vmatpush2.msra.mxu0 0.0
  %967 = vmatprep.mubr.f32.mxu0 0.0
  %968 = vmatmul.mubr.f32.gmra.mxu0 %v901
  %v969 = vpop.f32.mrf.mxu0
  %v970 = vadd.f32 %v898, %v969
  %v971 = vpop.f32.mrf.mxu0
  %972 = vdwg.mxu0
  %974 = vset.pattern.permute.xlu0 0
  %975 = vperm.xlu0 %974, %v718
  %v976 = vpop.permute.xlu0 %975
  %v978 = vmul.f32 %v970, %v976
  %v979 = vadd.f32 %v978, 0.0
  %980 = vset.pattern.permute.xlu0 1
  %981 = vperm.xlu0 %980, %v718
  %v982 = vpop.permute.xlu0 %981
  %v984 = vmul.f32 %v970, %v982
  %986 = vrot.lane.b32.xlu0 %v984, 96
  %v987 = vpop.permute.xlu0 %986
  %v989 = vadd.f32 %v979, %v987
  %990 = vset.pattern.permute.xlu0 2
  %991 = vperm.xlu0 %990, %v718
  %v992 = vpop.permute.xlu0 %991
  %v994 = vmul.f32 %v970, %v992
  %996 = vrot.lane.b32.xlu0 %v994, 64
  %v997 = vpop.permute.xlu0 %996
  %v999 = vadd.f32 %v989, %v997
  %1000 = vset.pattern.permute.xlu0 3
  %1001 = vperm.xlu0 %1000, %v718
  %v1002 = vpop.permute.xlu0 %1001
  %v1004 = vmul.f32 %v970, %v1002
  %1006 = vrot.lane.b32.xlu0 %v1004, 32
  %v1007 = vpop.permute.xlu0 %1006
  %v1009 = vadd.f32 %v999, %v1007
  %v1010 = vadd.f32 %v714, %v1009
  %s1011 = scalar_lea.vmem %s10, 6
  %1012 = vst.msk [vmem:[%s1011] sm:$0x3] %vm123, %v1010
  %s1013 = scalar_lea.vmem %s1, 6
  %v1014 = vld [vmem:[%s1013] sm:$0x3]
  %v1015 = vld [vmem:[%s4] sm:$0xff]
  %v1016 = vld [vmem:[%s4 + $0x8] sm:$0xff]
  %v1017 = vld [vmem:[%s4 + $0x10] sm:$0xff]
  %v1018 = vld [vmem:[%s4 + $0x18] sm:$0xff]
  %v1019 = vld [vmem:[%s5] sm:$0x1]
  %v1021 = vlaneseq
  %v1022 = vshrl.u32 %v1021, 7
  %v1023 = vsub.s32 0, %v1022
  %v1024 = vrot.slane %v1019, %v1023
  %v1027 = vsel %vm137, %v1010, 0
  %1029 = vmatprep.subr.mxu0 0.0
  %1030 = vmatpush1.msra.mxu0 0.0
  %1031 = vmatprep.subr.mxu0 0.0
  %1032 = vmatpush1.msra.mxu0 0.0
  %1033 = vmatprep.subr.mxu0 0.0
  %1034 = vmatpush1.msra.mxu0 0.0
  %1035 = vmatprep.subr.mxu0 0.0
  %1036 = vmatpush1.msra.mxu0 0.0
  %1037 = vmatprep.subr.mxu0 0.0
  %1038 = vmatpush1.msra.mxu0 0.0
  %1039 = vmatprep.subr.mxu0 0.0
  %1040 = vmatpush1.msra.mxu0 0.0
  %1041 = vmatprep.subr.mxu0 0.0
  %1042 = vmatpush1.msra.mxu0 0.0
  %1043 = vmatprep.subr.mxu0 0.0
  %1044 = vmatpush1.msra.mxu0 0.0
  %1045 = vmatprep.subr.mxu0 0.0
  %1046 = vmatpush1.msra.mxu0 0.0
  %1047 = vmatprep.subr.mxu0 0.0
  %1048 = vmatpush1.msra.mxu0 0.0
  %1049 = vmatprep.subr.mxu0 0.0
  %1050 = vmatpush1.msra.mxu0 0.0
  %1051 = vmatprep.subr.mxu0 0.0
  %1052 = vmatpush1.msra.mxu0 0.0
  %1053 = vmatprep.subr.mxu0 0.0
  %1054 = vmatpush1.msra.mxu0 %v1018
  %1055 = vmatprep.subr.mxu0 0.0
  %1056 = vmatpush1.msra.mxu0 %v1017
  %1057 = vmatprep.subr.mxu0 0.0
  %1058 = vmatpush1.msra.mxu0 %v1016
  %1059 = vmatprep.subr.mxu0 0.0
  %1060 = vmatpush1.msra.mxu0 %v1015
  %1061 = vmatprep.subr.mxu0 0.0
  %1062 = vmatpush2.msra.mxu0 0.0
  %1063 = vmatprep.subr.mxu0 0.0
  %1064 = vmatpush2.msra.mxu0 0.0
  %1065 = vmatprep.subr.mxu0 0.0
  %1066 = vmatpush2.msra.mxu0 0.0
  %1067 = vmatprep.subr.mxu0 0.0
  %1068 = vmatpush2.msra.mxu0 0.0
  %1069 = vmatprep.subr.mxu0 0.0
  %1070 = vmatpush2.msra.mxu0 0.0
  %1071 = vmatprep.subr.mxu0 0.0
  %1072 = vmatpush2.msra.mxu0 0.0
  %1073 = vmatprep.subr.mxu0 0.0
  %1074 = vmatpush2.msra.mxu0 0.0
  %1075 = vmatprep.subr.mxu0 0.0
  %1076 = vmatpush2.msra.mxu0 0.0
  %1077 = vmatprep.subr.mxu0 0.0
  %1078 = vmatpush2.msra.mxu0 0.0
  %1079 = vmatprep.subr.mxu0 0.0
  %1080 = vmatpush2.msra.mxu0 0.0
  %1081 = vmatprep.subr.mxu0 0.0
  %1082 = vmatpush2.msra.mxu0 0.0
  %1083 = vmatprep.subr.mxu0 0.0
  %1084 = vmatpush2.msra.mxu0 0.0
  %1085 = vmatprep.subr.mxu0 0.0
  %1086 = vmatpush2.msra.mxu0 0.0
  %1087 = vmatprep.subr.mxu0 0.0
  %1088 = vmatpush2.msra.mxu0 0.0
  %1089 = vmatprep.subr.mxu0 0.0
  %1090 = vmatpush2.msra.mxu0 0.0
  %1091 = vmatprep.subr.mxu0 0.0
  %1092 = vmatpush2.msra.mxu0 0.0
  %1093 = vmatprep.mubr.f32.mxu0 0.0
  %1094 = vmatmul.mubr.f32.gmra.mxu0 %v1027
  %v1095 = vpop.f32.mrf.mxu0
  %v1096 = vadd.f32 %v1024, %v1095
  %v1097 = vpop.f32.mrf.mxu0
  %1098 = vdwg.mxu0
  %v1099 = vmax.f32 %v1096, 0.0
  %v1100 = vld [vmem:[%s6] sm:$0xff]
  %v1101 = vld [vmem:[%s6 + $0x8] sm:$0xff]
  %v1102 = vld [vmem:[%s6 + $0x10] sm:$0xff]
  %v1103 = vld [vmem:[%s6 + $0x18] sm:$0xff]
  %v1104 = vld [vmem:[%s7] sm:$0x1]
  %v1106 = vlaneseq
  %v1107 = vshrl.u32 %v1106, 7
  %v1108 = vsub.s32 0, %v1107
  %v1109 = vrot.slane %v1104, %v1108
  %v1112 = vsel %vm137, %v1099, 0
  %1114 = vmatprep.subr.mxu0 0.0
  %1115 = vmatpush1.msra.mxu0 0.0
  %1116 = vmatprep.subr.mxu0 0.0
  %1117 = vmatpush1.msra.mxu0 0.0
  %1118 = vmatprep.subr.mxu0 0.0
  %1119 = vmatpush1.msra.mxu0 0.0
  %1120 = vmatprep.subr.mxu0 0.0
  %1121 = vmatpush1.msra.mxu0 0.0
  %1122 = vmatprep.subr.mxu0 0.0
  %1123 = vmatpush1.msra.mxu0 0.0
  %1124 = vmatprep.subr.mxu0 0.0
  %1125 = vmatpush1.msra.mxu0 0.0
  %1126 = vmatprep.subr.mxu0 0.0
  %1127 = vmatpush1.msra.mxu0 0.0
  %1128 = vmatprep.subr.mxu0 0.0
  %1129 = vmatpush1.msra.mxu0 0.0
  %1130 = vmatprep.subr.mxu0 0.0
  %1131 = vmatpush1.msra.mxu0 0.0
  %1132 = vmatprep.subr.mxu0 0.0
  %1133 = vmatpush1.msra.mxu0 0.0
  %1134 = vmatprep.subr.mxu0 0.0
  %1135 = vmatpush1.msra.mxu0 0.0
  %1136 = vmatprep.subr.mxu0 0.0
  %1137 = vmatpush1.msra.mxu0 0.0
  %1138 = vmatprep.subr.mxu0 0.0
  %1139 = vmatpush1.msra.mxu0 %v1103
  %1140 = vmatprep.subr.mxu0 0.0
  %1141 = vmatpush1.msra.mxu0 %v1102
  %1142 = vmatprep.subr.mxu0 0.0
  %1143 = vmatpush1.msra.mxu0 %v1101
  %1144 = vmatprep.subr.mxu0 0.0
  %1145 = vmatpush1.msra.mxu0 %v1100
  %1146 = vmatprep.subr.mxu0 0.0
  %1147 = vmatpush2.msra.mxu0 0.0
  %1148 = vmatprep.subr.mxu0 0.0
  %1149 = vmatpush2.msra.mxu0 0.0
  %1150 = vmatprep.subr.mxu0 0.0
  %1151 = vmatpush2.msra.mxu0 0.0
  %1152 = vmatprep.subr.mxu0 0.0
  %1153 = vmatpush2.msra.mxu0 0.0
  %1154 = vmatprep.subr.mxu0 0.0
  %1155 = vmatpush2.msra.mxu0 0.0
  %1156 = vmatprep.subr.mxu0 0.0
  %1157 = vmatpush2.msra.mxu0 0.0
  %1158 = vmatprep.subr.mxu0 0.0
  %1159 = vmatpush2.msra.mxu0 0.0
  %1160 = vmatprep.subr.mxu0 0.0
  %1161 = vmatpush2.msra.mxu0 0.0
  %1162 = vmatprep.subr.mxu0 0.0
  %1163 = vmatpush2.msra.mxu0 0.0
  %1164 = vmatprep.subr.mxu0 0.0
  %1165 = vmatpush2.msra.mxu0 0.0
  %1166 = vmatprep.subr.mxu0 0.0
  %1167 = vmatpush2.msra.mxu0 0.0
  %1168 = vmatprep.subr.mxu0 0.0
  %1169 = vmatpush2.msra.mxu0 0.0
  %1170 = vmatprep.subr.mxu0 0.0
  %1171 = vmatpush2.msra.mxu0 0.0
  %1172 = vmatprep.subr.mxu0 0.0
  %1173 = vmatpush2.msra.mxu0 0.0
  %1174 = vmatprep.subr.mxu0 0.0
  %1175 = vmatpush2.msra.mxu0 0.0
  %1176 = vmatprep.subr.mxu0 0.0
  %1177 = vmatpush2.msra.mxu0 0.0
  %1178 = vmatprep.mubr.f32.mxu0 0.0
  %1179 = vmatmul.mubr.f32.gmra.mxu0 %v1112
  %v1180 = vpop.f32.mrf.mxu0
  %v1181 = vadd.f32 %v1109, %v1180
  %v1182 = vpop.f32.mrf.mxu0
  %1183 = vdwg.mxu0
  %v1184 = vmax.f32 %v1181, 0.0
  %v1185 = vld [vmem:[%s8] sm:$0xff]
  %v1186 = vld [vmem:[%s8 + $0x8] sm:$0xff]
  %v1187 = vld [vmem:[%s8 + $0x10] sm:$0xff]
  %v1188 = vld [vmem:[%s8 + $0x18] sm:$0xff]
  %v1189 = vld [vmem:[%s9] sm:$0x1]
  %v1191 = vlaneseq
  %v1192 = vshrl.u32 %v1191, 7
  %v1193 = vsub.s32 0, %v1192
  %v1194 = vrot.slane %v1189, %v1193
  %v1197 = vsel %vm137, %v1184, 0
  %1199 = vmatprep.subr.mxu0 0.0
  %1200 = vmatpush1.msra.mxu0 0.0
  %1201 = vmatprep.subr.mxu0 0.0
  %1202 = vmatpush1.msra.mxu0 0.0
  %1203 = vmatprep.subr.mxu0 0.0
  %1204 = vmatpush1.msra.mxu0 0.0
  %1205 = vmatprep.subr.mxu0 0.0
  %1206 = vmatpush1.msra.mxu0 0.0
  %1207 = vmatprep.subr.mxu0 0.0
  %1208 = vmatpush1.msra.mxu0 0.0
  %1209 = vmatprep.subr.mxu0 0.0
  %1210 = vmatpush1.msra.mxu0 0.0
  %1211 = vmatprep.subr.mxu0 0.0
  %1212 = vmatpush1.msra.mxu0 0.0
  %1213 = vmatprep.subr.mxu0 0.0
  %1214 = vmatpush1.msra.mxu0 0.0
  %1215 = vmatprep.subr.mxu0 0.0
  %1216 = vmatpush1.msra.mxu0 0.0
  %1217 = vmatprep.subr.mxu0 0.0
  %1218 = vmatpush1.msra.mxu0 0.0
  %1219 = vmatprep.subr.mxu0 0.0
  %1220 = vmatpush1.msra.mxu0 0.0
  %1221 = vmatprep.subr.mxu0 0.0
  %1222 = vmatpush1.msra.mxu0 0.0
  %1223 = vmatprep.subr.mxu0 0.0
  %1224 = vmatpush1.msra.mxu0 %v1188
  %1225 = vmatprep.subr.mxu0 0.0
  %1226 = vmatpush1.msra.mxu0 %v1187
  %1227 = vmatprep.subr.mxu0 0.0
  %1228 = vmatpush1.msra.mxu0 %v1186
  %1229 = vmatprep.subr.mxu0 0.0
  %1230 = vmatpush1.msra.mxu0 %v1185
  %1231 = vmatprep.subr.mxu0 0.0
  %1232 = vmatpush2.msra.mxu0 0.0
  %1233 = vmatprep.subr.mxu0 0.0
  %1234 = vmatpush2.msra.mxu0 0.0
  %1235 = vmatprep.subr.mxu0 0.0
  %1236 = vmatpush2.msra.mxu0 0.0
  %1237 = vmatprep.subr.mxu0 0.0
  %1238 = vmatpush2.msra.mxu0 0.0
  %1239 = vmatprep.subr.mxu0 0.0
  %1240 = vmatpush2.msra.mxu0 0.0
  %1241 = vmatprep.subr.mxu0 0.0
  %1242 = vmatpush2.msra.mxu0 0.0
  %1243 = vmatprep.subr.mxu0 0.0
  %1244 = vmatpush2.msra.mxu0 0.0
  %1245 = vmatprep.subr.mxu0 0.0
  %1246 = vmatpush2.msra.mxu0 0.0
  %1247 = vmatprep.subr.mxu0 0.0
  %1248 = vmatpush2.msra.mxu0 0.0
  %1249 = vmatprep.subr.mxu0 0.0
  %1250 = vmatpush2.msra.mxu0 0.0
  %1251 = vmatprep.subr.mxu0 0.0
  %1252 = vmatpush2.msra.mxu0 0.0
  %1253 = vmatprep.subr.mxu0 0.0
  %1254 = vmatpush2.msra.mxu0 0.0
  %1255 = vmatprep.subr.mxu0 0.0
  %1256 = vmatpush2.msra.mxu0 0.0
  %1257 = vmatprep.subr.mxu0 0.0
  %1258 = vmatpush2.msra.mxu0 0.0
  %1259 = vmatprep.subr.mxu0 0.0
  %1260 = vmatpush2.msra.mxu0 0.0
  %1261 = vmatprep.subr.mxu0 0.0
  %1262 = vmatpush2.msra.mxu0 0.0
  %1263 = vmatprep.mubr.f32.mxu0 0.0
  %1264 = vmatmul.mubr.f32.gmra.mxu0 %v1197
  %v1265 = vpop.f32.mrf.mxu0
  %v1266 = vadd.f32 %v1194, %v1265
  %v1267 = vpop.f32.mrf.mxu0
  %1268 = vdwg.mxu0
  %1270 = vset.pattern.permute.xlu0 0
  %1271 = vperm.xlu0 %1270, %v1014
  %v1272 = vpop.permute.xlu0 %1271
  %v1274 = vmul.f32 %v1266, %v1272
  %v1275 = vadd.f32 %v1274, 0.0
  %1276 = vset.pattern.permute.xlu0 1
  %1277 = vperm.xlu0 %1276, %v1014
  %v1278 = vpop.permute.xlu0 %1277
  %v1280 = vmul.f32 %v1266, %v1278
  %1282 = vrot.lane.b32.xlu0 %v1280, 96
  %v1283 = vpop.permute.xlu0 %1282
  %v1285 = vadd.f32 %v1275, %v1283
  %1286 = vset.pattern.permute.xlu0 2
  %1287 = vperm.xlu0 %1286, %v1014
  %v1288 = vpop.permute.xlu0 %1287
  %v1290 = vmul.f32 %v1266, %v1288
  %1292 = vrot.lane.b32.xlu0 %v1290, 64
  %v1293 = vpop.permute.xlu0 %1292
  %v1295 = vadd.f32 %v1285, %v1293
  %1296 = vset.pattern.permute.xlu0 3
  %1297 = vperm.xlu0 %1296, %v1014
  %v1298 = vpop.permute.xlu0 %1297
  %v1300 = vmul.f32 %v1266, %v1298
  %1302 = vrot.lane.b32.xlu0 %v1300, 32
  %v1303 = vpop.permute.xlu0 %1302
  %v1305 = vadd.f32 %v1295, %v1303
  %v1306 = vadd.f32 %v1010, %v1305
  %s1307 = scalar_lea.vmem %s10, 8
  %1308 = vst.msk [vmem:[%s1307] sm:$0x3] %vm123, %v1306
  %s1309 = scalar_lea.vmem %s1, 8
  %v1310 = vld [vmem:[%s1309] sm:$0x3]
  %v1311 = vld [vmem:[%s4] sm:$0xff]
  %v1312 = vld [vmem:[%s4 + $0x8] sm:$0xff]
  %v1313 = vld [vmem:[%s4 + $0x10] sm:$0xff]
  %v1314 = vld [vmem:[%s4 + $0x18] sm:$0xff]
  %v1315 = vld [vmem:[%s5] sm:$0x1]
  %v1317 = vlaneseq
  %v1318 = vshrl.u32 %v1317, 7
  %v1319 = vsub.s32 0, %v1318
  %v1320 = vrot.slane %v1315, %v1319
  %v1323 = vsel %vm137, %v1306, 0
  %1325 = vmatprep.subr.mxu0 0.0
  %1326 = vmatpush1.msra.mxu0 0.0
  %1327 = vmatprep.subr.mxu0 0.0
  %1328 = vmatpush1.msra.mxu0 0.0
  %1329 = vmatprep.subr.mxu0 0.0
  %1330 = vmatpush1.msra.mxu0 0.0
  %1331 = vmatprep.subr.mxu0 0.0
  %1332 = vmatpush1.msra.mxu0 0.0
  %1333 = vmatprep.subr.mxu0 0.0
  %1334 = vmatpush1.msra.mxu0 0.0
  %1335 = vmatprep.subr.mxu0 0.0
  %1336 = vmatpush1.msra.mxu0 0.0
  %1337 = vmatprep.subr.mxu0 0.0
  %1338 = vmatpush1.msra.mxu0 0.0
  %1339 = vmatprep.subr.mxu0 0.0
  %1340 = vmatpush1.msra.mxu0 0.0
  %1341 = vmatprep.subr.mxu0 0.0
  %1342 = vmatpush1.msra.mxu0 0.0
  %1343 = vmatprep.subr.mxu0 0.0
  %1344 = vmatpush1.msra.mxu0 0.0
  %1345 = vmatprep.subr.mxu0 0.0
  %1346 = vmatpush1.msra.mxu0 0.0
  %1347 = vmatprep.subr.mxu0 0.0
  %1348 = vmatpush1.msra.mxu0 0.0
  %1349 = vmatprep.subr.mxu0 0.0
  %1350 = vmatpush1.msra.mxu0 %v1314
  %1351 = vmatprep.subr.mxu0 0.0
  %1352 = vmatpush1.msra.mxu0 %v1313
  %1353 = vmatprep.subr.mxu0 0.0
  %1354 = vmatpush1.msra.mxu0 %v1312
  %1355 = vmatprep.subr.mxu0 0.0
  %1356 = vmatpush1.msra.mxu0 %v1311
  %1357 = vmatprep.subr.mxu0 0.0
  %1358 = vmatpush2.msra.mxu0 0.0
  %1359 = vmatprep.subr.mxu0 0.0
  %1360 = vmatpush2.msra.mxu0 0.0
  %1361 = vmatprep.subr.mxu0 0.0
  %1362 = vmatpush2.msra.mxu0 0.0
  %1363 = vmatprep.subr.mxu0 0.0
  %1364 = vmatpush2.msra.mxu0 0.0
  %1365 = vmatprep.subr.mxu0 0.0
  %1366 = vmatpush2.msra.mxu0 0.0
  %1367 = vmatprep.subr.mxu0 0.0
  %1368 = vmatpush2.msra.mxu0 0.0
  %1369 = vmatprep.subr.mxu0 0.0
  %1370 = vmatpush2.msra.mxu0 0.0
  %1371 = vmatprep.subr.mxu0 0.0
  %1372 = vmatpush2.msra.mxu0 0.0
  %1373 = vmatprep.subr.mxu0 0.0
  %1374 = vmatpush2.msra.mxu0 0.0
  %1375 = vmatprep.subr.mxu0 0.0
  %1376 = vmatpush2.msra.mxu0 0.0
  %1377 = vmatprep.subr.mxu0 0.0
  %1378 = vmatpush2.msra.mxu0 0.0
  %1379 = vmatprep.subr.mxu0 0.0
  %1380 = vmatpush2.msra.mxu0 0.0
  %1381 = vmatprep.subr.mxu0 0.0
  %1382 = vmatpush2.msra.mxu0 0.0
  %1383 = vmatprep.subr.mxu0 0.0
  %1384 = vmatpush2.msra.mxu0 0.0
  %1385 = vmatprep.subr.mxu0 0.0
  %1386 = vmatpush2.msra.mxu0 0.0
  %1387 = vmatprep.subr.mxu0 0.0
  %1388 = vmatpush2.msra.mxu0 0.0
  %1389 = vmatprep.mubr.f32.mxu0 0.0
  %1390 = vmatmul.mubr.f32.gmra.mxu0 %v1323
  %v1391 = vpop.f32.mrf.mxu0
  %v1392 = vadd.f32 %v1320, %v1391
  %v1393 = vpop.f32.mrf.mxu0
  %1394 = vdwg.mxu0
  %v1395 = vmax.f32 %v1392, 0.0
  %v1396 = vld [vmem:[%s6] sm:$0xff]
  %v1397 = vld [vmem:[%s6 + $0x8] sm:$0xff]
  %v1398 = vld [vmem:[%s6 + $0x10] sm:$0xff]
  %v1399 = vld [vmem:[%s6 + $0x18] sm:$0xff]
  %v1400 = vld [vmem:[%s7] sm:$0x1]
  %v1402 = vlaneseq
  %v1403 = vshrl.u32 %v1402, 7
  %v1404 = vsub.s32 0, %v1403
  %v1405 = vrot.slane %v1400, %v1404
  %v1408 = vsel %vm137, %v1395, 0
  %1410 = vmatprep.subr.mxu0 0.0
  %1411 = vmatpush1.msra.mxu0 0.0
  %1412 = vmatprep.subr.mxu0 0.0
  %1413 = vmatpush1.msra.mxu0 0.0
  %1414 = vmatprep.subr.mxu0 0.0
  %1415 = vmatpush1.msra.mxu0 0.0
  %1416 = vmatprep.subr.mxu0 0.0
  %1417 = vmatpush1.msra.mxu0 0.0
  %1418 = vmatprep.subr.mxu0 0.0
  %1419 = vmatpush1.msra.mxu0 0.0
  %1420 = vmatprep.subr.mxu0 0.0
  %1421 = vmatpush1.msra.mxu0 0.0
  %1422 = vmatprep.subr.mxu0 0.0
  %1423 = vmatpush1.msra.mxu0 0.0
  %1424 = vmatprep.subr.mxu0 0.0
  %1425 = vmatpush1.msra.mxu0 0.0
  %1426 = vmatprep.subr.mxu0 0.0
  %1427 = vmatpush1.msra.mxu0 0.0
  %1428 = vmatprep.subr.mxu0 0.0
  %1429 = vmatpush1.msra.mxu0 0.0
  %1430 = vmatprep.subr.mxu0 0.0
  %1431 = vmatpush1.msra.mxu0 0.0
  %1432 = vmatprep.subr.mxu0 0.0
  %1433 = vmatpush1.msra.mxu0 0.0
  %1434 = vmatprep.subr.mxu0 0.0
  %1435 = vmatpush1.msra.mxu0 %v1399
  %1436 = vmatprep.subr.mxu0 0.0
  %1437 = vmatpush1.msra.mxu0 %v1398
  %1438 = vmatprep.subr.mxu0 0.0
  %1439 = vmatpush1.msra.mxu0 %v1397
  %1440 = vmatprep.subr.mxu0 0.0
  %1441 = vmatpush1.msra.mxu0 %v1396
  %1442 = vmatprep.subr.mxu0 0.0
  %1443 = vmatpush2.msra.mxu0 0.0
  %1444 = vmatprep.subr.mxu0 0.0
  %1445 = vmatpush2.msra.mxu0 0.0
  %1446 = vmatprep.subr.mxu0 0.0
  %1447 = vmatpush2.msra.mxu0 0.0
  %1448 = vmatprep.subr.mxu0 0.0
  %1449 = vmatpush2.msra.mxu0 0.0
  %1450 = vmatprep.subr.mxu0 0.0
  %1451 = vmatpush2.msra.mxu0 0.0
  %1452 = vmatprep.subr.mxu0 0.0
  %1453 = vmatpush2.msra.mxu0 0.0
  %1454 = vmatprep.subr.mxu0 0.0
  %1455 = vmatpush2.msra.mxu0 0.0
  %1456 = vmatprep.subr.mxu0 0.0
  %1457 = vmatpush2.msra.mxu0 0.0
  %1458 = vmatprep.subr.mxu0 0.0
  %1459 = vmatpush2.msra.mxu0 0.0
  %1460 = vmatprep.subr.mxu0 0.0
  %1461 = vmatpush2.msra.mxu0 0.0
  %1462 = vmatprep.subr.mxu0 0.0
  %1463 = vmatpush2.msra.mxu0 0.0
  %1464 = vmatprep.subr.mxu0 0.0
  %1465 = vmatpush2.msra.mxu0 0.0
  %1466 = vmatprep.subr.mxu0 0.0
  %1467 = vmatpush2.msra.mxu0 0.0
  %1468 = vmatprep.subr.mxu0 0.0
  %1469 = vmatpush2.msra.mxu0 0.0
  %1470 = vmatprep.subr.mxu0 0.0
  %1471 = vmatpush2.msra.mxu0 0.0
  %1472 = vmatprep.subr.mxu0 0.0
  %1473 = vmatpush2.msra.mxu0 0.0
  %1474 = vmatprep.mubr.f32.mxu0 0.0
  %1475 = vmatmul.mubr.f32.gmra.mxu0 %v1408
  %v1476 = vpop.f32.mrf.mxu0
  %v1477 = vadd.f32 %v1405, %v1476
  %v1478 = vpop.f32.mrf.mxu0
  %1479 = vdwg.mxu0
  %v1480 = vmax.f32 %v1477, 0.0
  %v1481 = vld [vmem:[%s8] sm:$0xff]
  %v1482 = vld [vmem:[%s8 + $0x8] sm:$0xff]
  %v1483 = vld [vmem:[%s8 + $0x10] sm:$0xff]
  %v1484 = vld [vmem:[%s8 + $0x18] sm:$0xff]
  %v1485 = vld [vmem:[%s9] sm:$0x1]
  %v1487 = vlaneseq
  %v1488 = vshrl.u32 %v1487, 7
  %v1489 = vsub.s32 0, %v1488
  %v1490 = vrot.slane %v1485, %v1489
  %v1493 = vsel %vm137, %v1480, 0
  %1495 = vmatprep.subr.mxu0 0.0
  %1496 = vmatpush1.msra.mxu0 0.0
  %1497 = vmatprep.subr.mxu0 0.0
  %1498 = vmatpush1.msra.mxu0 0.0
  %1499 = vmatprep.subr.mxu0 0.0
  %1500 = vmatpush1.msra.mxu0 0.0
  %1501 = vmatprep.subr.mxu0 0.0
  %1502 = vmatpush1.msra.mxu0 0.0
  %1503 = vmatprep.subr.mxu0 0.0
  %1504 = vmatpush1.msra.mxu0 0.0
  %1505 = vmatprep.subr.mxu0 0.0
  %1506 = vmatpush1.msra.mxu0 0.0
  %1507 = vmatprep.subr.mxu0 0.0
  %1508 = vmatpush1.msra.mxu0 0.0
  %1509 = vmatprep.subr.mxu0 0.0
  %1510 = vmatpush1.msra.mxu0 0.0
  %1511 = vmatprep.subr.mxu0 0.0
  %1512 = vmatpush1.msra.mxu0 0.0
  %1513 = vmatprep.subr.mxu0 0.0
  %1514 = vmatpush1.msra.mxu0 0.0
  %1515 = vmatprep.subr.mxu0 0.0
  %1516 = vmatpush1.msra.mxu0 0.0
  %1517 = vmatprep.subr.mxu0 0.0
  %1518 = vmatpush1.msra.mxu0 0.0
  %1519 = vmatprep.subr.mxu0 0.0
  %1520 = vmatpush1.msra.mxu0 %v1484
  %1521 = vmatprep.subr.mxu0 0.0
  %1522 = vmatpush1.msra.mxu0 %v1483
  %1523 = vmatprep.subr.mxu0 0.0
  %1524 = vmatpush1.msra.mxu0 %v1482
  %1525 = vmatprep.subr.mxu0 0.0
  %1526 = vmatpush1.msra.mxu0 %v1481
  %1527 = vmatprep.subr.mxu0 0.0
  %1528 = vmatpush2.msra.mxu0 0.0
  %1529 = vmatprep.subr.mxu0 0.0
  %1530 = vmatpush2.msra.mxu0 0.0
  %1531 = vmatprep.subr.mxu0 0.0
  %1532 = vmatpush2.msra.mxu0 0.0
  %1533 = vmatprep.subr.mxu0 0.0
  %1534 = vmatpush2.msra.mxu0 0.0
  %1535 = vmatprep.subr.mxu0 0.0
  %1536 = vmatpush2.msra.mxu0 0.0
  %1537 = vmatprep.subr.mxu0 0.0
  %1538 = vmatpush2.msra.mxu0 0.0
  %1539 = vmatprep.subr.mxu0 0.0
  %1540 = vmatpush2.msra.mxu0 0.0
  %1541 = vmatprep.subr.mxu0 0.0
  %1542 = vmatpush2.msra.mxu0 0.0
  %1543 = vmatprep.subr.mxu0 0.0
  %1544 = vmatpush2.msra.mxu0 0.0
  %1545 = vmatprep.subr.mxu0 0.0
  %1546 = vmatpush2.msra.mxu0 0.0
  %1547 = vmatprep.subr.mxu0 0.0
  %1548 = vmatpush2.msra.mxu0 0.0
  %1549 = vmatprep.subr.mxu0 0.0
  %1550 = vmatpush2.msra.mxu0 0.0
  %1551 = vmatprep.subr.mxu0 0.0
  %1552 = vmatpush2.msra.mxu0 0.0
  %1553 = vmatprep.subr.mxu0 0.0
  %1554 = vmatpush2.msra.mxu0 0.0
  %1555 = vmatprep.subr.mxu0 0.0
  %1556 = vmatpush2.msra.mxu0 0.0
  %1557 = vmatprep.subr.mxu0 0.0
  %1558 = vmatpush2.msra.mxu0 0.0
  %1559 = vmatprep.mubr.f32.mxu0 0.0
  %1560 = vmatmul.mubr.f32.gmra.mxu0 %v1493
  %v1561 = vpop.f32.mrf.mxu0
  %v1562 = vadd.f32 %v1490, %v1561
  %v1563 = vpop.f32.mrf.mxu0
  %1564 = vdwg.mxu0
  %1566 = vset.pattern.permute.xlu0 0
  %1567 = vperm.xlu0 %1566, %v1310
  %v1568 = vpop.permute.xlu0 %1567
  %v1570 = vmul.f32 %v1562, %v1568
  %v1571 = vadd.f32 %v1570, 0.0
  %1572 = vset.pattern.permute.xlu0 1
  %1573 = vperm.xlu0 %1572, %v1310
  %v1574 = vpop.permute.xlu0 %1573
  %v1576 = vmul.f32 %v1562, %v1574
  %1578 = vrot.lane.b32.xlu0 %v1576, 96
  %v1579 = vpop.permute.xlu0 %1578
  %v1581 = vadd.f32 %v1571, %v1579
  %1582 = vset.pattern.permute.xlu0 2
  %1583 = vperm.xlu0 %1582, %v1310
  %v1584 = vpop.permute.xlu0 %1583
  %v1586 = vmul.f32 %v1562, %v1584
  %1588 = vrot.lane.b32.xlu0 %v1586, 64
  %v1589 = vpop.permute.xlu0 %1588
  %v1591 = vadd.f32 %v1581, %v1589
  %1592 = vset.pattern.permute.xlu0 3
  %1593 = vperm.xlu0 %1592, %v1310
  %v1594 = vpop.permute.xlu0 %1593
  %v1596 = vmul.f32 %v1562, %v1594
  %1598 = vrot.lane.b32.xlu0 %v1596, 32
  %v1599 = vpop.permute.xlu0 %1598
  %v1601 = vadd.f32 %v1591, %v1599
  %v1602 = vadd.f32 %v1306, %v1601
  %s1603 = scalar_lea.vmem %s10, 10
  %1604 = vst.msk [vmem:[%s1603] sm:$0x3] %vm123, %v1602
  %s1605 = scalar_lea.vmem %s1, 10
  %v1606 = vld [vmem:[%s1605] sm:$0x3]
  %v1607 = vld [vmem:[%s4] sm:$0xff]
  %v1608 = vld [vmem:[%s4 + $0x8] sm:$0xff]
  %v1609 = vld [vmem:[%s4 + $0x10] sm:$0xff]
  %v1610 = vld [vmem:[%s4 + $0x18] sm:$0xff]
  %v1611 = vld [vmem:[%s5] sm:$0x1]
  %v1613 = vlaneseq
  %v1614 = vshrl.u32 %v1613, 7
  %v1615 = vsub.s32 0, %v1614
  %v1616 = vrot.slane %v1611, %v1615
  %v1619 = vsel %vm137, %v1602, 0
  %1621 = vmatprep.subr.mxu0 0.0
  %1622 = vmatpush1.msra.mxu0 0.0
  %1623 = vmatprep.subr.mxu0 0.0
  %1624 = vmatpush1.msra.mxu0 0.0
  %1625 = vmatprep.subr.mxu0 0.0
  %1626 = vmatpush1.msra.mxu0 0.0
  %1627 = vmatprep.subr.mxu0 0.0
  %1628 = vmatpush1.msra.mxu0 0.0
  %1629 = vmatprep.subr.mxu0 0.0
  %1630 = vmatpush1.msra.mxu0 0.0
  %1631 = vmatprep.subr.mxu0 0.0
  %1632 = vmatpush1.msra.mxu0 0.0
  %1633 = vmatprep.subr.mxu0 0.0
  %1634 = vmatpush1.msra.mxu0 0.0
  %1635 = vmatprep.subr.mxu0 0.0
  %1636 = vmatpush1.msra.mxu0 0.0
  %1637 = vmatprep.subr.mxu0 0.0
  %1638 = vmatpush1.msra.mxu0 0.0
  %1639 = vmatprep.subr.mxu0 0.0
  %1640 = vmatpush1.msra.mxu0 0.0
  %1641 = vmatprep.subr.mxu0 0.0
  %1642 = vmatpush1.msra.mxu0 0.0
  %1643 = vmatprep.subr.mxu0 0.0
  %1644 = vmatpush1.msra.mxu0 0.0
  %1645 = vmatprep.subr.mxu0 0.0
  %1646 = vmatpush1.msra.mxu0 %v1610
  %1647 = vmatprep.subr.mxu0 0.0
  %1648 = vmatpush1.msra.mxu0 %v1609
  %1649 = vmatprep.subr.mxu0 0.0
  %1650 = vmatpush1.msra.mxu0 %v1608
  %1651 = vmatprep.subr.mxu0 0.0
  %1652 = vmatpush1.msra.mxu0 %v1607
  %1653 = vmatprep.subr.mxu0 0.0
  %1654 = vmatpush2.msra.mxu0 0.0
  %1655 = vmatprep.subr.mxu0 0.0
  %1656 = vmatpush2.msra.mxu0 0.0
  %1657 = vmatprep.subr.mxu0 0.0
  %1658 = vmatpush2.msra.mxu0 0.0
  %1659 = vmatprep.subr.mxu0 0.0
  %1660 = vmatpush2.msra.mxu0 0.0
  %1661 = vmatprep.subr.mxu0 0.0
  %1662 = vmatpush2.msra.mxu0 0.0
  %1663 = vmatprep.subr.mxu0 0.0
  %1664 = vmatpush2.msra.mxu0 0.0
  %1665 = vmatprep.subr.mxu0 0.0
  %1666 = vmatpush2.msra.mxu0 0.0
  %1667 = vmatprep.subr.mxu0 0.0
  %1668 = vmatpush2.msra.mxu0 0.0
  %1669 = vmatprep.subr.mxu0 0.0
  %1670 = vmatpush2.msra.mxu0 0.0
  %1671 = vmatprep.subr.mxu0 0.0
  %1672 = vmatpush2.msra.mxu0 0.0
  %1673 = vmatprep.subr.mxu0 0.0
  %1674 = vmatpush2.msra.mxu0 0.0
  %1675 = vmatprep.subr.mxu0 0.0
  %1676 = vmatpush2.msra.mxu0 0.0
  %1677 = vmatprep.subr.mxu0 0.0
  %1678 = vmatpush2.msra.mxu0 0.0
  %1679 = vmatprep.subr.mxu0 0.0
  %1680 = vmatpush2.msra.mxu0 0.0
  %1681 = vmatprep.subr.mxu0 0.0
  %1682 = vmatpush2.msra.mxu0 0.0
  %1683 = vmatprep.subr.mxu0 0.0
  %1684 = vmatpush2.msra.mxu0 0.0
  %1685 = vmatprep.mubr.f32.mxu0 0.0
  %1686 = vmatmul.mubr.f32.gmra.mxu0 %v1619
  %v1687 = vpop.f32.mrf.mxu0
  %v1688 = vadd.f32 %v1616, %v1687
  %v1689 = vpop.f32.mrf.mxu0
  %1690 = vdwg.mxu0
  %v1691 = vmax.f32 %v1688, 0.0
  %v1692 = vld [vmem:[%s6] sm:$0xff]
  %v1693 = vld [vmem:[%s6 + $0x8] sm:$0xff]
  %v1694 = vld [vmem:[%s6 + $0x10] sm:$0xff]
  %v1695 = vld [vmem:[%s6 + $0x18] sm:$0xff]
  %v1696 = vld [vmem:[%s7] sm:$0x1]
  %v1698 = vlaneseq
  %v1699 = vshrl.u32 %v1698, 7
  %v1700 = vsub.s32 0, %v1699
  %v1701 = vrot.slane %v1696, %v1700
  %v1704 = vsel %vm137, %v1691, 0
  %1706 = vmatprep.subr.mxu0 0.0
  %1707 = vmatpush1.msra.mxu0 0.0
  %1708 = vmatprep.subr.mxu0 0.0
  %1709 = vmatpush1.msra.mxu0 0.0
  %1710 = vmatprep.subr.mxu0 0.0
  %1711 = vmatpush1.msra.mxu0 0.0
  %1712 = vmatprep.subr.mxu0 0.0
  %1713 = vmatpush1.msra.mxu0 0.0
  %1714 = vmatprep.subr.mxu0 0.0
  %1715 = vmatpush1.msra.mxu0 0.0
  %1716 = vmatprep.subr.mxu0 0.0
  %1717 = vmatpush1.msra.mxu0 0.0
  %1718 = vmatprep.subr.mxu0 0.0
  %1719 = vmatpush1.msra.mxu0 0.0
  %1720 = vmatprep.subr.mxu0 0.0
  %1721 = vmatpush1.msra.mxu0 0.0
  %1722 = vmatprep.subr.mxu0 0.0
  %1723 = vmatpush1.msra.mxu0 0.0
  %1724 = vmatprep.subr.mxu0 0.0
  %1725 = vmatpush1.msra.mxu0 0.0
  %1726 = vmatprep.subr.mxu0 0.0
  %1727 = vmatpush1.msra.mxu0 0.0
  %1728 = vmatprep.subr.mxu0 0.0
  %1729 = vmatpush1.msra.mxu0 0.0
  %1730 = vmatprep.subr.mxu0 0.0
  %1731 = vmatpush1.msra.mxu0 %v1695
  %1732 = vmatprep.subr.mxu0 0.0
  %1733 = vmatpush1.msra.mxu0 %v1694
  %1734 = vmatprep.subr.mxu0 0.0
  %1735 = vmatpush1.msra.mxu0 %v1693
  %1736 = vmatprep.subr.mxu0 0.0
  %1737 = vmatpush1.msra.mxu0 %v1692
  %1738 = vmatprep.subr.mxu0 0.0
  %1739 = vmatpush2.msra.mxu0 0.0
  %1740 = vmatprep.subr.mxu0 0.0
  %1741 = vmatpush2.msra.mxu0 0.0
  %1742 = vmatprep.subr.mxu0 0.0
  %1743 = vmatpush2.msra.mxu0 0.0
  %1744 = vmatprep.subr.mxu0 0.0
  %1745 = vmatpush2.msra.mxu0 0.0
  %1746 = vmatprep.subr.mxu0 0.0
  %1747 = vmatpush2.msra.mxu0 0.0
  %1748 = vmatprep.subr.mxu0 0.0
  %1749 = vmatpush2.msra.mxu0 0.0
  %1750 = vmatprep.subr.mxu0 0.0
  %1751 = vmatpush2.msra.mxu0 0.0
  %1752 = vmatprep.subr.mxu0 0.0
  %1753 = vmatpush2.msra.mxu0 0.0
  %1754 = vmatprep.subr.mxu0 0.0
  %1755 = vmatpush2.msra.mxu0 0.0
  %1756 = vmatprep.subr.mxu0 0.0
  %1757 = vmatpush2.msra.mxu0 0.0
  %1758 = vmatprep.subr.mxu0 0.0
  %1759 = vmatpush2.msra.mxu0 0.0
  %1760 = vmatprep.subr.mxu0 0.0
  %1761 = vmatpush2.msra.mxu0 0.0
  %1762 = vmatprep.subr.mxu0 0.0
  %1763 = vmatpush2.msra.mxu0 0.0
  %1764 = vmatprep.subr.mxu0 0.0
  %1765 = vmatpush2.msra.mxu0 0.0
  %1766 = vmatprep.subr.mxu0 0.0
  %1767 = vmatpush2.msra.mxu0 0.0
  %1768 = vmatprep.subr.mxu0 0.0
  %1769 = vmatpush2.msra.mxu0 0.0
  %1770 = vmatprep.mubr.f32.mxu0 0.0
  %1771 = vmatmul.mubr.f32.gmra.mxu0 %v1704
  %v1772 = vpop.f32.mrf.mxu0
  %v1773 = vadd.f32 %v1701, %v1772
  %v1774 = vpop.f32.mrf.mxu0
  %1775 = vdwg.mxu0
  %v1776 = vmax.f32 %v1773, 0.0
  %v1777 = vld [vmem:[%s8] sm:$0xff]
  %v1778 = vld [vmem:[%s8 + $0x8] sm:$0xff]
  %v1779 = vld [vmem:[%s8 + $0x10] sm:$0xff]
  %v1780 = vld [vmem:[%s8 + $0x18] sm:$0xff]
  %v1781 = vld [vmem:[%s9] sm:$0x1]
  %v1783 = vlaneseq
  %v1784 = vshrl.u32 %v1783, 7
  %v1785 = vsub.s32 0, %v1784
  %v1786 = vrot.slane %v1781, %v1785
  %v1789 = vsel %vm137, %v1776, 0
  %1791 = vmatprep.subr.mxu0 0.0
  %1792 = vmatpush1.msra.mxu0 0.0
  %1793 = vmatprep.subr.mxu0 0.0
  %1794 = vmatpush1.msra.mxu0 0.0
  %1795 = vmatprep.subr.mxu0 0.0
  %1796 = vmatpush1.msra.mxu0 0.0
  %1797 = vmatprep.subr.mxu0 0.0
  %1798 = vmatpush1.msra.mxu0 0.0
  %1799 = vmatprep.subr.mxu0 0.0
  %1800 = vmatpush1.msra.mxu0 0.0
  %1801 = vmatprep.subr.mxu0 0.0
  %1802 = vmatpush1.msra.mxu0 0.0
  %1803 = vmatprep.subr.mxu0 0.0
  %1804 = vmatpush1.msra.mxu0 0.0
  %1805 = vmatprep.subr.mxu0 0.0
  %1806 = vmatpush1.msra.mxu0 0.0
  %1807 = vmatprep.subr.mxu0 0.0
  %1808 = vmatpush1.msra.mxu0 0.0
  %1809 = vmatprep.subr.mxu0 0.0
  %1810 = vmatpush1.msra.mxu0 0.0
  %1811 = vmatprep.subr.mxu0 0.0
  %1812 = vmatpush1.msra.mxu0 0.0
  %1813 = vmatprep.subr.mxu0 0.0
  %1814 = vmatpush1.msra.mxu0 0.0
  %1815 = vmatprep.subr.mxu0 0.0
  %1816 = vmatpush1.msra.mxu0 %v1780
  %1817 = vmatprep.subr.mxu0 0.0
  %1818 = vmatpush1.msra.mxu0 %v1779
  %1819 = vmatprep.subr.mxu0 0.0
  %1820 = vmatpush1.msra.mxu0 %v1778
  %1821 = vmatprep.subr.mxu0 0.0
  %1822 = vmatpush1.msra.mxu0 %v1777
  %1823 = vmatprep.subr.mxu0 0.0
  %1824 = vmatpush2.msra.mxu0 0.0
  %1825 = vmatprep.subr.mxu0 0.0
  %1826 = vmatpush2.msra.mxu0 0.0
  %1827 = vmatprep.subr.mxu0 0.0
  %1828 = vmatpush2.msra.mxu0 0.0
  %1829 = vmatprep.subr.mxu0 0.0
  %1830 = vmatpush2.msra.mxu0 0.0
  %1831 = vmatprep.subr.mxu0 0.0
  %1832 = vmatpush2.msra.mxu0 0.0
  %1833 = vmatprep.subr.mxu0 0.0
  %1834 = vmatpush2.msra.mxu0 0.0
  %1835 = vmatprep.subr.mxu0 0.0
  %1836 = vmatpush2.msra.mxu0 0.0
  %1837 = vmatprep.subr.mxu0 0.0
  %1838 = vmatpush2.msra.mxu0 0.0
  %1839 = vmatprep.subr.mxu0 0.0
  %1840 = vmatpush2.msra.mxu0 0.0
  %1841 = vmatprep.subr.mxu0 0.0
  %1842 = vmatpush2.msra.mxu0 0.0
  %1843 = vmatprep.subr.mxu0 0.0
  %1844 = vmatpush2.msra.mxu0 0.0
  %1845 = vmatprep.subr.mxu0 0.0
  %1846 = vmatpush2.msra.mxu0 0.0
  %1847 = vmatprep.subr.mxu0 0.0
  %1848 = vmatpush2.msra.mxu0 0.0
  %1849 = vmatprep.subr.mxu0 0.0
  %1850 = vmatpush2.msra.mxu0 0.0
  %1851 = vmatprep.subr.mxu0 0.0
  %1852 = vmatpush2.msra.mxu0 0.0
  %1853 = vmatprep.subr.mxu0 0.0
  %1854 = vmatpush2.msra.mxu0 0.0
  %1855 = vmatprep.mubr.f32.mxu0 0.0
  %1856 = vmatmul.mubr.f32.gmra.mxu0 %v1789
  %v1857 = vpop.f32.mrf.mxu0
  %v1858 = vadd.f32 %v1786, %v1857
  %v1859 = vpop.f32.mrf.mxu0
  %1860 = vdwg.mxu0
  %1862 = vset.pattern.permute.xlu0 0
  %1863 = vperm.xlu0 %1862, %v1606
  %v1864 = vpop.permute.xlu0 %1863
  %v1866 = vmul.f32 %v1858, %v1864
  %v1867 = vadd.f32 %v1866, 0.0
  %1868 = vset.pattern.permute.xlu0 1
  %1869 = vperm.xlu0 %1868, %v1606
  %v1870 = vpop.permute.xlu0 %1869
  %v1872 = vmul.f32 %v1858, %v1870
  %1874 = vrot.lane.b32.xlu0 %v1872, 96
  %v1875 = vpop.permute.xlu0 %1874
  %v1877 = vadd.f32 %v1867, %v1875
  %1878 = vset.pattern.permute.xlu0 2
  %1879 = vperm.xlu0 %1878, %v1606
  %v1880 = vpop.permute.xlu0 %1879
  %v1882 = vmul.f32 %v1858, %v1880
  %1884 = vrot.lane.b32.xlu0 %v1882, 64
  %v1885 = vpop.permute.xlu0 %1884
  %v1887 = vadd.f32 %v1877, %v1885
  %1888 = vset.pattern.permute.xlu0 3
  %1889 = vperm.xlu0 %1888, %v1606
  %v1890 = vpop.permute.xlu0 %1889
  %v1892 = vmul.f32 %v1858, %v1890
  %1894 = vrot.lane.b32.xlu0 %v1892, 32
  %v1895 = vpop.permute.xlu0 %1894
  %v1897 = vadd.f32 %v1887, %v1895
  %v1898 = vadd.f32 %v1602, %v1897
  %s1899 = scalar_lea.vmem %s10, 12
  %1900 = vst.msk [vmem:[%s1899] sm:$0x3] %vm123, %v1898
  %s1901 = scalar_lea.vmem %s1, 12
  %v1902 = vld [vmem:[%s1901] sm:$0x3]
  %v1903 = vld [vmem:[%s4] sm:$0xff]
  %v1904 = vld [vmem:[%s4 + $0x8] sm:$0xff]
  %v1905 = vld [vmem:[%s4 + $0x10] sm:$0xff]
  %v1906 = vld [vmem:[%s4 + $0x18] sm:$0xff]
  %v1907 = vld [vmem:[%s5] sm:$0x1]
  %v1909 = vlaneseq
  %v1910 = vshrl.u32 %v1909, 7
  %v1911 = vsub.s32 0, %v1910
  %v1912 = vrot.slane %v1907, %v1911
  %v1915 = vsel %vm137, %v1898, 0
  %1917 = vmatprep.subr.mxu0 0.0
  %1918 = vmatpush1.msra.mxu0 0.0
  %1919 = vmatprep.subr.mxu0 0.0
  %1920 = vmatpush1.msra.mxu0 0.0
  %1921 = vmatprep.subr.mxu0 0.0
  %1922 = vmatpush1.msra.mxu0 0.0
  %1923 = vmatprep.subr.mxu0 0.0
  %1924 = vmatpush1.msra.mxu0 0.0
  %1925 = vmatprep.subr.mxu0 0.0
  %1926 = vmatpush1.msra.mxu0 0.0
  %1927 = vmatprep.subr.mxu0 0.0
  %1928 = vmatpush1.msra.mxu0 0.0
  %1929 = vmatprep.subr.mxu0 0.0
  %1930 = vmatpush1.msra.mxu0 0.0
  %1931 = vmatprep.subr.mxu0 0.0
  %1932 = vmatpush1.msra.mxu0 0.0
  %1933 = vmatprep.subr.mxu0 0.0
  %1934 = vmatpush1.msra.mxu0 0.0
  %1935 = vmatprep.subr.mxu0 0.0
  %1936 = vmatpush1.msra.mxu0 0.0
  %1937 = vmatprep.subr.mxu0 0.0
  %1938 = vmatpush1.msra.mxu0 0.0
  %1939 = vmatprep.subr.mxu0 0.0
  %1940 = vmatpush1.msra.mxu0 0.0
  %1941 = vmatprep.subr.mxu0 0.0
  %1942 = vmatpush1.msra.mxu0 %v1906
  %1943 = vmatprep.subr.mxu0 0.0
  %1944 = vmatpush1.msra.mxu0 %v1905
  %1945 = vmatprep.subr.mxu0 0.0
  %1946 = vmatpush1.msra.mxu0 %v1904
  %1947 = vmatprep.subr.mxu0 0.0
  %1948 = vmatpush1.msra.mxu0 %v1903
  %1949 = vmatprep.subr.mxu0 0.0
  %1950 = vmatpush2.msra.mxu0 0.0
  %1951 = vmatprep.subr.mxu0 0.0
  %1952 = vmatpush2.msra.mxu0 0.0
  %1953 = vmatprep.subr.mxu0 0.0
  %1954 = vmatpush2.msra.mxu0 0.0
  %1955 = vmatprep.subr.mxu0 0.0
  %1956 = vmatpush2.msra.mxu0 0.0
  %1957 = vmatprep.subr.mxu0 0.0
  %1958 = vmatpush2.msra.mxu0 0.0
  %1959 = vmatprep.subr.mxu0 0.0
  %1960 = vmatpush2.msra.mxu0 0.0
  %1961 = vmatprep.subr.mxu0 0.0
  %1962 = vmatpush2.msra.mxu0 0.0
  %1963 = vmatprep.subr.mxu0 0.0
  %1964 = vmatpush2.msra.mxu0 0.0
  %1965 = vmatprep.subr.mxu0 0.0
  %1966 = vmatpush2.msra.mxu0 0.0
  %1967 = vmatprep.subr.mxu0 0.0
  %1968 = vmatpush2.msra.mxu0 0.0
  %1969 = vmatprep.subr.mxu0 0.0
  %1970 = vmatpush2.msra.mxu0 0.0
  %1971 = vmatprep.subr.mxu0 0.0
  %1972 = vmatpush2.msra.mxu0 0.0
  %1973 = vmatprep.subr.mxu0 0.0
  %1974 = vmatpush2.msra.mxu0 0.0
  %1975 = vmatprep.subr.mxu0 0.0
  %1976 = vmatpush2.msra.mxu0 0.0
  %1977 = vmatprep.subr.mxu0 0.0
  %1978 = vmatpush2.msra.mxu0 0.0
  %1979 = vmatprep.subr.mxu0 0.0
  %1980 = vmatpush2.msra.mxu0 0.0
  %1981 = vmatprep.mubr.f32.mxu0 0.0
  %1982 = vmatmul.mubr.f32.gmra.mxu0 %v1915
  %v1983 = vpop.f32.mrf.mxu0
  %v1984 = vadd.f32 %v1912, %v1983
  %v1985 = vpop.f32.mrf.mxu0
  %1986 = vdwg.mxu0
  %v1987 = vmax.f32 %v1984, 0.0
  %v1988 = vld [vmem:[%s6] sm:$0xff]
  %v1989 = vld [vmem:[%s6 + $0x8] sm:$0xff]
  %v1990 = vld [vmem:[%s6 + $0x10] sm:$0xff]
  %v1991 = vld [vmem:[%s6 + $0x18] sm:$0xff]
  %v1992 = vld [vmem:[%s7] sm:$0x1]
  %v1994 = vlaneseq
  %v1995 = vshrl.u32 %v1994, 7
  %v1996 = vsub.s32 0, %v1995
  %v1997 = vrot.slane %v1992, %v1996
  %v2000 = vsel %vm137, %v1987, 0
  %2002 = vmatprep.subr.mxu0 0.0
  %2003 = vmatpush1.msra.mxu0 0.0
  %2004 = vmatprep.subr.mxu0 0.0
  %2005 = vmatpush1.msra.mxu0 0.0
  %2006 = vmatprep.subr.mxu0 0.0
  %2007 = vmatpush1.msra.mxu0 0.0
  %2008 = vmatprep.subr.mxu0 0.0
  %2009 = vmatpush1.msra.mxu0 0.0
  %2010 = vmatprep.subr.mxu0 0.0
  %2011 = vmatpush1.msra.mxu0 0.0
  %2012 = vmatprep.subr.mxu0 0.0
  %2013 = vmatpush1.msra.mxu0 0.0
  %2014 = vmatprep.subr.mxu0 0.0
  %2015 = vmatpush1.msra.mxu0 0.0
  %2016 = vmatprep.subr.mxu0 0.0
  %2017 = vmatpush1.msra.mxu0 0.0
  %2018 = vmatprep.subr.mxu0 0.0
  %2019 = vmatpush1.msra.mxu0 0.0
  %2020 = vmatprep.subr.mxu0 0.0
  %2021 = vmatpush1.msra.mxu0 0.0
  %2022 = vmatprep.subr.mxu0 0.0
  %2023 = vmatpush1.msra.mxu0 0.0
  %2024 = vmatprep.subr.mxu0 0.0
  %2025 = vmatpush1.msra.mxu0 0.0
  %2026 = vmatprep.subr.mxu0 0.0
  %2027 = vmatpush1.msra.mxu0 %v1991
  %2028 = vmatprep.subr.mxu0 0.0
  %2029 = vmatpush1.msra.mxu0 %v1990
  %2030 = vmatprep.subr.mxu0 0.0
  %2031 = vmatpush1.msra.mxu0 %v1989
  %2032 = vmatprep.subr.mxu0 0.0
  %2033 = vmatpush1.msra.mxu0 %v1988
  %2034 = vmatprep.subr.mxu0 0.0
  %2035 = vmatpush2.msra.mxu0 0.0
  %2036 = vmatprep.subr.mxu0 0.0
  %2037 = vmatpush2.msra.mxu0 0.0
  %2038 = vmatprep.subr.mxu0 0.0
  %2039 = vmatpush2.msra.mxu0 0.0
  %2040 = vmatprep.subr.mxu0 0.0
  %2041 = vmatpush2.msra.mxu0 0.0
  %2042 = vmatprep.subr.mxu0 0.0
  %2043 = vmatpush2.msra.mxu0 0.0
  %2044 = vmatprep.subr.mxu0 0.0
  %2045 = vmatpush2.msra.mxu0 0.0
  %2046 = vmatprep.subr.mxu0 0.0
  %2047 = vmatpush2.msra.mxu0 0.0
  %2048 = vmatprep.subr.mxu0 0.0
  %2049 = vmatpush2.msra.mxu0 0.0
  %2050 = vmatprep.subr.mxu0 0.0
  %2051 = vmatpush2.msra.mxu0 0.0
  %2052 = vmatprep.subr.mxu0 0.0
  %2053 = vmatpush2.msra.mxu0 0.0
  %2054 = vmatprep.subr.mxu0 0.0
  %2055 = vmatpush2.msra.mxu0 0.0
  %2056 = vmatprep.subr.mxu0 0.0
  %2057 = vmatpush2.msra.mxu0 0.0
  %2058 = vmatprep.subr.mxu0 0.0
  %2059 = vmatpush2.msra.mxu0 0.0
  %2060 = vmatprep.subr.mxu0 0.0
  %2061 = vmatpush2.msra.mxu0 0.0
  %2062 = vmatprep.subr.mxu0 0.0
  %2063 = vmatpush2.msra.mxu0 0.0
  %2064 = vmatprep.subr.mxu0 0.0
  %2065 = vmatpush2.msra.mxu0 0.0
  %2066 = vmatprep.mubr.f32.mxu0 0.0
  %2067 = vmatmul.mubr.f32.gmra.mxu0 %v2000
  %v2068 = vpop.f32.mrf.mxu0
  %v2069 = vadd.f32 %v1997, %v2068
  %v2070 = vpop.f32.mrf.mxu0
  %2071 = vdwg.mxu0
  %v2072 = vmax.f32 %v2069, 0.0
  %v2073 = vld [vmem:[%s8] sm:$0xff]
  %v2074 = vld [vmem:[%s8 + $0x8] sm:$0xff]
  %v2075 = vld [vmem:[%s8 + $0x10] sm:$0xff]
  %v2076 = vld [vmem:[%s8 + $0x18] sm:$0xff]
  %v2077 = vld [vmem:[%s9] sm:$0x1]
  %v2079 = vlaneseq
  %v2080 = vshrl.u32 %v2079, 7
  %v2081 = vsub.s32 0, %v2080
  %v2082 = vrot.slane %v2077, %v2081
  %v2085 = vsel %vm137, %v2072, 0
  %2087 = vmatprep.subr.mxu0 0.0
  %2088 = vmatpush1.msra.mxu0 0.0
  %2089 = vmatprep.subr.mxu0 0.0
  %2090 = vmatpush1.msra.mxu0 0.0
  %2091 = vmatprep.subr.mxu0 0.0
  %2092 = vmatpush1.msra.mxu0 0.0
  %2093 = vmatprep.subr.mxu0 0.0
  %2094 = vmatpush1.msra.mxu0 0.0
  %2095 = vmatprep.subr.mxu0 0.0
  %2096 = vmatpush1.msra.mxu0 0.0
  %2097 = vmatprep.subr.mxu0 0.0
  %2098 = vmatpush1.msra.mxu0 0.0
  %2099 = vmatprep.subr.mxu0 0.0
  %2100 = vmatpush1.msra.mxu0 0.0
  %2101 = vmatprep.subr.mxu0 0.0
  %2102 = vmatpush1.msra.mxu0 0.0
  %2103 = vmatprep.subr.mxu0 0.0
  %2104 = vmatpush1.msra.mxu0 0.0
  %2105 = vmatprep.subr.mxu0 0.0
  %2106 = vmatpush1.msra.mxu0 0.0
  %2107 = vmatprep.subr.mxu0 0.0
  %2108 = vmatpush1.msra.mxu0 0.0
  %2109 = vmatprep.subr.mxu0 0.0
  %2110 = vmatpush1.msra.mxu0 0.0
  %2111 = vmatprep.subr.mxu0 0.0
  %2112 = vmatpush1.msra.mxu0 %v2076
  %2113 = vmatprep.subr.mxu0 0.0
  %2114 = vmatpush1.msra.mxu0 %v2075
  %2115 = vmatprep.subr.mxu0 0.0
  %2116 = vmatpush1.msra.mxu0 %v2074
  %2117 = vmatprep.subr.mxu0 0.0
  %2118 = vmatpush1.msra.mxu0 %v2073
  %2119 = vmatprep.subr.mxu0 0.0
  %2120 = vmatpush2.msra.mxu0 0.0
  %2121 = vmatprep.subr.mxu0 0.0
  %2122 = vmatpush2.msra.mxu0 0.0
  %2123 = vmatprep.subr.mxu0 0.0
  %2124 = vmatpush2.msra.mxu0 0.0
  %2125 = vmatprep.subr.mxu0 0.0
  %2126 = vmatpush2.msra.mxu0 0.0
  %2127 = vmatprep.subr.mxu0 0.0
  %2128 = vmatpush2.msra.mxu0 0.0
  %2129 = vmatprep.subr.mxu0 0.0
  %2130 = vmatpush2.msra.mxu0 0.0
  %2131 = vmatprep.subr.mxu0 0.0
  %2132 = vmatpush2.msra.mxu0 0.0
  %2133 = vmatprep.subr.mxu0 0.0
  %2134 = vmatpush2.msra.mxu0 0.0
  %2135 = vmatprep.subr.mxu0 0.0
  %2136 = vmatpush2.msra.mxu0 0.0
  %2137 = vmatprep.subr.mxu0 0.0
  %2138 = vmatpush2.msra.mxu0 0.0
  %2139 = vmatprep.subr.mxu0 0.0
  %2140 = vmatpush2.msra.mxu0 0.0
  %2141 = vmatprep.subr.mxu0 0.0
  %2142 = vmatpush2.msra.mxu0 0.0
  %2143 = vmatprep.subr.mxu0 0.0
  %2144 = vmatpush2.msra.mxu0 0.0
  %2145 = vmatprep.subr.mxu0 0.0
  %2146 = vmatpush2.msra.mxu0 0.0
  %2147 = vmatprep.subr.mxu0 0.0
  %2148 = vmatpush2.msra.mxu0 0.0
  %2149 = vmatprep.subr.mxu0 0.0
  %2150 = vmatpush2.msra.mxu0 0.0
  %2151 = vmatprep.mubr.f32.mxu0 0.0
  %2152 = vmatmul.mubr.f32.gmra.mxu0 %v2085
  %v2153 = vpop.f32.mrf.mxu0
  %v2154 = vadd.f32 %v2082, %v2153
  %v2155 = vpop.f32.mrf.mxu0
  %2156 = vdwg.mxu0
  %2158 = vset.pattern.permute.xlu0 0
  %2159 = vperm.xlu0 %2158, %v1902
  %v2160 = vpop.permute.xlu0 %2159
  %v2162 = vmul.f32 %v2154, %v2160
  %v2163 = vadd.f32 %v2162, 0.0
  %2164 = vset.pattern.permute.xlu0 1
  %2165 = vperm.xlu0 %2164, %v1902
  %v2166 = vpop.permute.xlu0 %2165
  %v2168 = vmul.f32 %v2154, %v2166
  %2170 = vrot.lane.b32.xlu0 %v2168, 96
  %v2171 = vpop.permute.xlu0 %2170
  %v2173 = vadd.f32 %v2163, %v2171
  %2174 = vset.pattern.permute.xlu0 2
  %2175 = vperm.xlu0 %2174, %v1902
  %v2176 = vpop.permute.xlu0 %2175
  %v2178 = vmul.f32 %v2154, %v2176
  %2180 = vrot.lane.b32.xlu0 %v2178, 64
  %v2181 = vpop.permute.xlu0 %2180
  %v2183 = vadd.f32 %v2173, %v2181
  %2184 = vset.pattern.permute.xlu0 3
  %2185 = vperm.xlu0 %2184, %v1902
  %v2186 = vpop.permute.xlu0 %2185
  %v2188 = vmul.f32 %v2154, %v2186
  %2190 = vrot.lane.b32.xlu0 %v2188, 32
  %v2191 = vpop.permute.xlu0 %2190
  %v2193 = vadd.f32 %v2183, %v2191
  %v2194 = vadd.f32 %v1898, %v2193
  %s2195 = scalar_lea.vmem %s10, 14
  %2196 = vst.msk [vmem:[%s2195] sm:$0x3] %vm123, %v2194
  // Predicated region
  $region42: #{_lambda_.7} parent=0 // pred_check
    _
  $region43: #{_lambda_.7} parent=0 // pred_check_branch
    %2198 = sbr.rel (0) target = $region45
  $region44: #{_lambda_.7} parent=0 // pred_region
    _
  $region45: #{_lambda_.7} parent=0 // pred_fallthru
    _
  // Predicated region
  $region46: #{_lambda_.7} parent=0 // pred_check
    _
  $region47: #{_lambda_.7} parent=0 // pred_check_branch
    %2200 = sbr.rel (0) target = $region49
  $region48: #{_lambda_.7} parent=0 // pred_region
    _
  $region49: #{_lambda_.7} parent=0 // pred_fallthru
    _

// kernel: _lambda_.12
$region0: #{_lambda_.12}
  #allocation0 [shape = 'u32[]', space=smem, size = 0x4, offset = 0x4, fixed_abs, tag = 'smem constant byte address 0x4 - core index']
  #allocation1 [shape = 'u32[144,128]{1,0:T(1,128)}', space=vmem, size = 0x12000, scoped, tag = 'internal scratch']
  %s0 = inlined_call_operand.vmem [shape: f32[16,32], index: 0, kind: input, shape index: {}]
  %s1 = inlined_call_operand.vmem [shape: f32[16,32], index: 1, kind: input, shape index: {}]
  %s2 = inlined_call_operand.vmem [shape: f32[32,32], index: 2, kind: input, shape index: {}]
  %s3 = inlined_call_operand.vmem [shape: f32[32,32], index: 3, kind: input, shape index: {}]
  %s4 = inlined_call_operand.vmem [shape: f32[1,32], index: 4, kind: input, shape index: {}]
  %s5 = inlined_call_operand.vmem [shape: f32[32,4], index: 5, kind: input, shape index: {}]
  %s6 = inlined_call_operand.vmem [shape: f32[1,4], index: 6, kind: input, shape index: {}]
  %s7 = inlined_call_operand.vmem [shape: f32[16,4], index: 7, kind: output, shape index: {}]
  %s8 = sld [smem:[#allocation0]]
  $region38: #{_lambda_.12} parent=0
    _
  %s10 = ssub.s32 1, %s8
  %s11 = scalar_select 0, %s10, %s8
  // Predicated region
  $region2: #{_lambda_.12} parent=0 // pred_check
    _
  $region3: #{_lambda_.12} parent=0 // pred_check_branch
    %13 = sbr.rel (0) target = $region5
  $region4: #{_lambda_.12} parent=0 // pred_region
    _
  $region5: #{_lambda_.12} parent=0 // pred_fallthru
    _
  // Predicated region
  $region6: #{_lambda_.12} parent=0 // pred_check
    _
  $region7: #{_lambda_.12} parent=0 // pred_check_branch
    %15 = sbr.rel (0) target = $region9
  $region8: #{_lambda_.12} parent=0 // pred_region
    _
  $region9: #{_lambda_.12} parent=0 // pred_fallthru
    _
  // Predicated region
  $region10: #{_lambda_.12} parent=0 // pred_check
    _
  $region11: #{_lambda_.12} parent=0 // pred_check_branch
    %17 = sbr.rel (0) target = $region13
  $region12: #{_lambda_.12} parent=0 // pred_region
    _
  $region13: #{_lambda_.12} parent=0 // pred_fallthru
    _
  // Predicated region
  $region14: #{_lambda_.12} parent=0 // pred_check
    _
  $region15: #{_lambda_.12} parent=0 // pred_check_branch
    %19 = sbr.rel (0) target = $region17
  $region16: #{_lambda_.12} parent=0 // pred_region
    _
  $region17: #{_lambda_.12} parent=0 // pred_fallthru
    _
  // Predicated region
  $region18: #{_lambda_.12} parent=0 // pred_check
    _
  $region19: #{_lambda_.12} parent=0 // pred_check_branch
    %21 = sbr.rel (0) target = $region21
  $region20: #{_lambda_.12} parent=0 // pred_region
    _
  $region21: #{_lambda_.12} parent=0 // pred_fallthru
    _
  // Predicated region
  $region22: #{_lambda_.12} parent=0 // pred_check
    _
  $region23: #{_lambda_.12} parent=0 // pred_check_branch
    %23 = sbr.rel (0) target = $region25
  $region24: #{_lambda_.12} parent=0 // pred_region
    _
  $region25: #{_lambda_.12} parent=0 // pred_fallthru
    _
  // Predicated region
  $region26: #{_lambda_.12} parent=0 // pred_check
    _
  $region27: #{_lambda_.12} parent=0 // pred_check_branch
    %25 = sbr.rel (0) target = $region29
  $region28: #{_lambda_.12} parent=0 // pred_region
    _
  $region29: #{_lambda_.12} parent=0 // pred_fallthru
    _
  %v26 = vld [vmem:[%s0] sm:$0xff]
  %v27 = vld [vmem:[%s0 + $0x8] sm:$0xff]
  %v28 = vld [vmem:[%s2] sm:$0xff]
  %v29 = vld [vmem:[%s2 + $0x8] sm:$0xff]
  %v30 = vld [vmem:[%s2 + $0x10] sm:$0xff]
  %v31 = vld [vmem:[%s2 + $0x18] sm:$0xff]
  %v32 = vld [vmem:[%s1] sm:$0xff]
  %v33 = vld [vmem:[%s1 + $0x8] sm:$0xff]
  %v34 = vld [vmem:[%s3] sm:$0xff]
  %v35 = vld [vmem:[%s3 + $0x8] sm:$0xff]
  %v36 = vld [vmem:[%s3 + $0x10] sm:$0xff]
  %v37 = vld [vmem:[%s3 + $0x18] sm:$0xff]
  %vm38 = vcmask 261120
  %v40 = vsel %vm38, %v32, 0
  %v43 = vsel %vm38, %v33, 0
  %45 = vmatprep.subr.mxu0 0.0
  %46 = vmatpush1.msra.mxu0 0.0
  %47 = vmatprep.subr.mxu0 0.0
  %48 = vmatpush1.msra.mxu0 0.0
  %49 = vmatprep.subr.mxu0 0.0
  %50 = vmatpush1.msra.mxu0 0.0
  %51 = vmatprep.subr.mxu0 0.0
  %52 = vmatpush1.msra.mxu0 0.0
  %53 = vmatprep.subr.mxu0 0.0
  %54 = vmatpush1.msra.mxu0 0.0
  %55 = vmatprep.subr.mxu0 0.0
  %56 = vmatpush1.msra.mxu0 0.0
  %57 = vmatprep.subr.mxu0 0.0
  %58 = vmatpush1.msra.mxu0 0.0
  %59 = vmatprep.subr.mxu0 0.0
  %60 = vmatpush1.msra.mxu0 0.0
  %61 = vmatprep.subr.mxu0 0.0
  %62 = vmatpush1.msra.mxu0 0.0
  %63 = vmatprep.subr.mxu0 0.0
  %64 = vmatpush1.msra.mxu0 0.0
  %65 = vmatprep.subr.mxu0 0.0
  %66 = vmatpush1.msra.mxu0 0.0
  %67 = vmatprep.subr.mxu0 0.0
  %68 = vmatpush1.msra.mxu0 0.0
  %69 = vmatprep.subr.mxu0 0.0
  %70 = vmatpush1.msra.mxu0 %v37
  %71 = vmatprep.subr.mxu0 0.0
  %72 = vmatpush1.msra.mxu0 %v36
  %73 = vmatprep.subr.mxu0 0.0
  %74 = vmatpush1.msra.mxu0 %v35
  %75 = vmatprep.subr.mxu0 0.0
  %76 = vmatpush1.msra.mxu0 %v34
  %77 = vmatprep.subr.mxu0 0.0
  %78 = vmatpush2.msra.mxu0 0.0
  %79 = vmatprep.subr.mxu0 0.0
  %80 = vmatpush2.msra.mxu0 0.0
  %81 = vmatprep.subr.mxu0 0.0
  %82 = vmatpush2.msra.mxu0 0.0
  %83 = vmatprep.subr.mxu0 0.0
  %84 = vmatpush2.msra.mxu0 0.0
  %85 = vmatprep.subr.mxu0 0.0
  %86 = vmatpush2.msra.mxu0 0.0
  %87 = vmatprep.subr.mxu0 0.0
  %88 = vmatpush2.msra.mxu0 0.0
  %89 = vmatprep.subr.mxu0 0.0
  %90 = vmatpush2.msra.mxu0 0.0
  %91 = vmatprep.subr.mxu0 0.0
  %92 = vmatpush2.msra.mxu0 0.0
  %93 = vmatprep.subr.mxu0 0.0
  %94 = vmatpush2.msra.mxu0 0.0
  %95 = vmatprep.subr.mxu0 0.0
  %96 = vmatpush2.msra.mxu0 0.0
  %97 = vmatprep.subr.mxu0 0.0
  %98 = vmatpush2.msra.mxu0 0.0
  %99 = vmatprep.subr.mxu0 0.0
  %100 = vmatpush2.msra.mxu0 0.0
  %101 = vmatprep.subr.mxu0 0.0
  %102 = vmatpush2.msra.mxu0 0.0
  %103 = vmatprep.subr.mxu0 0.0
  %104 = vmatpush2.msra.mxu0 0.0
  %105 = vmatprep.subr.mxu0 0.0
  %106 = vmatpush2.msra.mxu0 0.0
  %107 = vmatprep.subr.mxu0 0.0
  %108 = vmatpush2.msra.mxu0 0.0
  %109 = vmatprep.mubr.f32.mxu0 0.0
  %110 = vmatmul.mubr.f32.gmra.mxu0 %v40
  %v111 = vpop.f32.mrf.mxu0
  %v112 = vadd.f32 0.0, %v111
  %v113 = vpop.f32.mrf.mxu0
  %114 = vmatprep.mubr.f32.mxu0 0.0
  %115 = vmatmul.mubr.f32.gmra.mxu0 %v43
  %v116 = vpop.f32.mrf.mxu0
  %v117 = vadd.f32 0.0, %v116
  %v118 = vpop.f32.mrf.mxu0
  %119 = vdwg.mxu0
  %v121 = vsel %vm38, %v26, 0
  %v124 = vsel %vm38, %v27, 0
  %126 = vmatprep.subr.mxu0 0.0
  %127 = vmatpush1.msra.mxu0 0.0
  %128 = vmatprep.subr.mxu0 0.0
  %129 = vmatpush1.msra.mxu0 0.0
  %130 = vmatprep.subr.mxu0 0.0
  %131 = vmatpush1.msra.mxu0 0.0
  %132 = vmatprep.subr.mxu0 0.0
  %133 = vmatpush1.msra.mxu0 0.0
  %134 = vmatprep.subr.mxu0 0.0
  %135 = vmatpush1.msra.mxu0 0.0
  %136 = vmatprep.subr.mxu0 0.0
  %137 = vmatpush1.msra.mxu0 0.0
  %138 = vmatprep.subr.mxu0 0.0
  %139 = vmatpush1.msra.mxu0 0.0
  %140 = vmatprep.subr.mxu0 0.0
  %141 = vmatpush1.msra.mxu0 0.0
  %142 = vmatprep.subr.mxu0 0.0
  %143 = vmatpush1.msra.mxu0 0.0
  %144 = vmatprep.subr.mxu0 0.0
  %145 = vmatpush1.msra.mxu0 0.0
  %146 = vmatprep.subr.mxu0 0.0
  %147 = vmatpush1.msra.mxu0 0.0
  %148 = vmatprep.subr.mxu0 0.0
  %149 = vmatpush1.msra.mxu0 0.0
  %150 = vmatprep.subr.mxu0 0.0
  %151 = vmatpush1.msra.mxu0 %v31
  %152 = vmatprep.subr.mxu0 0.0
  %153 = vmatpush1.msra.mxu0 %v30
  %154 = vmatprep.subr.mxu0 0.0
  %155 = vmatpush1.msra.mxu0 %v29
  %156 = vmatprep.subr.mxu0 0.0
  %157 = vmatpush1.msra.mxu0 %v28
  %158 = vmatprep.subr.mxu0 0.0
  %159 = vmatpush2.msra.mxu0 0.0
  %160 = vmatprep.subr.mxu0 0.0
  %161 = vmatpush2.msra.mxu0 0.0
  %162 = vmatprep.subr.mxu0 0.0
  %163 = vmatpush2.msra.mxu0 0.0
  %164 = vmatprep.subr.mxu0 0.0
  %165 = vmatpush2.msra.mxu0 0.0
  %166 = vmatprep.subr.mxu0 0.0
  %167 = vmatpush2.msra.mxu0 0.0
  %168 = vmatprep.subr.mxu0 0.0
  %169 = vmatpush2.msra.mxu0 0.0
  %170 = vmatprep.subr.mxu0 0.0
  %171 = vmatpush2.msra.mxu0 0.0
  %172 = vmatprep.subr.mxu0 0.0
  %173 = vmatpush2.msra.mxu0 0.0
  %174 = vmatprep.subr.mxu0 0.0
  %175 = vmatpush2.msra.mxu0 0.0
  %176 = vmatprep.subr.mxu0 0.0
  %177 = vmatpush2.msra.mxu0 0.0
  %178 = vmatprep.subr.mxu0 0.0
  %179 = vmatpush2.msra.mxu0 0.0
  %180 = vmatprep.subr.mxu0 0.0
  %181 = vmatpush2.msra.mxu0 0.0
  %182 = vmatprep.subr.mxu0 0.0
  %183 = vmatpush2.msra.mxu0 0.0
  %184 = vmatprep.subr.mxu0 0.0
  %185 = vmatpush2.msra.mxu0 0.0
  %186 = vmatprep.subr.mxu0 0.0
  %187 = vmatpush2.msra.mxu0 0.0
  %188 = vmatprep.subr.mxu0 0.0
  %189 = vmatpush2.msra.mxu0 0.0
  %190 = vmatprep.mubr.f32.mxu0 0.0
  %191 = vmatmul.mubr.f32.gmra.mxu0 %v121
  %v192 = vpop.f32.mrf.mxu0
  %v193 = vadd.f32 %v112, %v192
  %v194 = vpop.f32.mrf.mxu0
  %195 = vmatprep.mubr.f32.mxu0 0.0
  %196 = vmatmul.mubr.f32.gmra.mxu0 %v124
  %v197 = vpop.f32.mrf.mxu0
  %v198 = vadd.f32 %v117, %v197
  %v199 = vpop.f32.mrf.mxu0
  %200 = vdwg.mxu0
  %v201 = vld [vmem:[%s4] sm:$0x1]
  %v203 = vlaneseq
  %v204 = vshrl.u32 %v203, 7
  %v205 = vsub.s32 0, %v204
  %v206 = vrot.slane %v201, %v205
  %v208 = vadd.f32 %v193, %v206
  %v209 = vadd.f32 %v198, %v206
  %v210 = vmax.f32 %v208, 0.0
  %v211 = vmax.f32 %v209, 0.0
  %v212 = vld [vmem:[%s5] sm:$0xff]
  %v213 = vld [vmem:[%s5 + $0x8] sm:$0xff]
  %v214 = vld [vmem:[%s5 + $0x10] sm:$0xff]
  %v215 = vld [vmem:[%s5 + $0x18] sm:$0xff]
  %v216 = vld [vmem:[%s6] sm:$0x1]
  %v218 = vlaneseq
  %v219 = vshrl.u32 %v218, 7
  %v220 = vsub.s32 0, %v219
  %v221 = vrot.slane %v216, %v220
  %v224 = vsel %vm38, %v210, 0
  %v227 = vsel %vm38, %v211, 0
  %229 = vmatprep.subr.mxu0 0.0
  %230 = vmatpush1.msra.mxu0 0.0
  %231 = vmatprep.subr.mxu0 0.0
  %232 = vmatpush1.msra.mxu0 0.0
  %233 = vmatprep.subr.mxu0 0.0
  %234 = vmatpush1.msra.mxu0 0.0
  %235 = vmatprep.subr.mxu0 0.0
  %236 = vmatpush1.msra.mxu0 0.0
  %237 = vmatprep.subr.mxu0 0.0
  %238 = vmatpush1.msra.mxu0 0.0
  %239 = vmatprep.subr.mxu0 0.0
  %240 = vmatpush1.msra.mxu0 0.0
  %241 = vmatprep.subr.mxu0 0.0
  %242 = vmatpush1.msra.mxu0 0.0
  %243 = vmatprep.subr.mxu0 0.0
  %244 = vmatpush1.msra.mxu0 0.0
  %245 = vmatprep.subr.mxu0 0.0
  %246 = vmatpush1.msra.mxu0 0.0
  %247 = vmatprep.subr.mxu0 0.0
  %248 = vmatpush1.msra.mxu0 0.0
  %249 = vmatprep.subr.mxu0 0.0
  %250 = vmatpush1.msra.mxu0 0.0
  %251 = vmatprep.subr.mxu0 0.0
  %252 = vmatpush1.msra.mxu0 0.0
  %253 = vmatprep.subr.mxu0 0.0
  %254 = vmatpush1.msra.mxu0 %v215
  %255 = vmatprep.subr.mxu0 0.0
  %256 = vmatpush1.msra.mxu0 %v214
  %257 = vmatprep.subr.mxu0 0.0
  %258 = vmatpush1.msra.mxu0 %v213
  %259 = vmatprep.subr.mxu0 0.0
  %260 = vmatpush1.msra.mxu0 %v212
  %261 = vmatprep.subr.mxu0 0.0
  %262 = vmatpush2.msra.mxu0 0.0
  %263 = vmatprep.subr.mxu0 0.0
  %264 = vmatpush2.msra.mxu0 0.0
  %265 = vmatprep.subr.mxu0 0.0
  %266 = vmatpush2.msra.mxu0 0.0
  %267 = vmatprep.subr.mxu0 0.0
  %268 = vmatpush2.msra.mxu0 0.0
  %269 = vmatprep.subr.mxu0 0.0
  %270 = vmatpush2.msra.mxu0 0.0
  %271 = vmatprep.subr.mxu0 0.0
  %272 = vmatpush2.msra.mxu0 0.0
  %273 = vmatprep.subr.mxu0 0.0
  %274 = vmatpush2.msra.mxu0 0.0
  %275 = vmatprep.subr.mxu0 0.0
  %276 = vmatpush2.msra.mxu0 0.0
  %277 = vmatprep.subr.mxu0 0.0
  %278 = vmatpush2.msra.mxu0 0.0
  %279 = vmatprep.subr.mxu0 0.0
  %280 = vmatpush2.msra.mxu0 0.0
  %281 = vmatprep.subr.mxu0 0.0
  %282 = vmatpush2.msra.mxu0 0.0
  %283 = vmatprep.subr.mxu0 0.0
  %284 = vmatpush2.msra.mxu0 0.0
  %285 = vmatprep.subr.mxu0 0.0
  %286 = vmatpush2.msra.mxu0 0.0
  %287 = vmatprep.subr.mxu0 0.0
  %288 = vmatpush2.msra.mxu0 0.0
  %289 = vmatprep.subr.mxu0 0.0
  %290 = vmatpush2.msra.mxu0 0.0
  %291 = vmatprep.subr.mxu0 0.0
  %292 = vmatpush2.msra.mxu0 0.0
  %293 = vmatprep.mubr.f32.mxu0 0.0
  %294 = vmatmul.mubr.f32.gmra.mxu0 %v224
  %v295 = vpop.f32.mrf.mxu0
  %v296 = vadd.f32 %v221, %v295
  %v297 = vpop.f32.mrf.mxu0
  %298 = vmatprep.mubr.f32.mxu0 0.0
  %299 = vmatmul.mubr.f32.gmra.mxu0 %v227
  %v300 = vpop.f32.mrf.mxu0
  %v301 = vadd.f32 %v221, %v300
  %v302 = vpop.f32.mrf.mxu0
  %303 = vdwg.mxu0
  %vm304 = vcmask 31744
  %305 = vst.msk [vmem:[%s7] sm:$0xff] %vm304, %v296
  %306 = vst.msk [vmem:[%s7 + $0x8] sm:$0xff] %vm304, %v301
  // Predicated region
  $region30: #{_lambda_.12} parent=0 // pred_check
    _
  $region31: #{_lambda_.12} parent=0 // pred_check_branch
    %308 = sbr.rel (0) target = $region33
  $region32: #{_lambda_.12} parent=0 // pred_region
    _
  $region33: #{_lambda_.12} parent=0 // pred_fallthru
    _
  // Predicated region
  $region34: #{_lambda_.12} parent=0 // pred_check
    _
  $region35: #{_lambda_.12} parent=0 // pred_check_branch
    %310 = sbr.rel (0) target = $region37
  $region36: #{_lambda_.12} parent=0 // pred_region
    _
  $region37: #{_lambda_.12} parent=0 // pred_fallthru
    _

</llo_original>
